<compile_context>
chip_gen: v7x
topology: tpu7x:2x2x1
jax: 0.10.0
libtpu: 0.0.40
codegen_flags: <defaults>
</compile_context>

<pallas_src>
import numpy as np
import jax
import jax.numpy as jnp
from jax.experimental import pallas as pl
from jax.experimental.pallas import tpu as pltpu

# ----------------------------- model hyper-parameters -----------------------------
BATCH = 2
ZDIM = 32
NUM_CLASSES = 10
BASE = 16
IMG = 16                    # image height/width
CHANNEL = 3
FIRST_K = IMG // 4          # 4: kernel of the first ConvTranspose (1x1 -> 4x4)
BN_EPS = 1e-5

SLOT = 128                  # lane width of one activation "row slot" in VMEM
H1, C1 = FIRST_K, BASE * 2  # generator layer-1 output: 4 x 4 x 32   (row = 128 lanes)
H2, C2 = 8, BASE            # generator layer-2 output: 8 x 8 x 16   (row = 128 lanes)
H3, C3 = IMG, CHANNEL       # generator layer-3 output: 16 x 16 x 3  (2 rows / slot)
HD1, CD1 = 8, BASE          # discriminator layer-1 output: 8 x 8 x 16 (row = 128 lanes)
HD2, CD2 = 4, BASE * 2      # discriminator layer-2 output: 4 x 4 x 32 (row = 128 lanes)
BLK_B = 8                   # batch block per grid step (sublane-dense)

G1_SLOTS = H1 + 2           # 6:  pad | rows 0..3 | pad
G2_SLOTS = H2 + 2           # 10: pad | rows 0..7 | pad
G3_SLOTS = IMG // 2 + 2     # 10: pad | image rows packed 2/slot | pad
D1_SLOTS = HD1 + 3          # 11: pad,pad | rows 0..7 | pad


# ----------------------------- fused Pallas kernel -----------------------------
def _gan_kernel(zy_ref, w1_ref, s1_ref, b1_ref,
                g2w_ref, s2_ref, b2_ref,
                g3w_ref, b3_ref,
                d1w_ref, d1b_ref, d2w_ref, d2b_ref,
                wfc_ref, bfc_ref,
                out_ref,
                g1_buf, g2_buf, g3_buf, d1_buf):
    f32, bf16 = jnp.float32, jnp.bfloat16
    zslot = jnp.zeros((BLK_B, SLOT), bf16)

    # Zero only the padding border slots; interior slots are fully overwritten below.
    g1_buf[:, :SLOT] = zslot
    g1_buf[:, (G1_SLOTS - 1) * SLOT:G1_SLOTS * SLOT] = zslot
    g2_buf[:, :SLOT] = zslot
    g2_buf[:, (G2_SLOTS - 1) * SLOT:G2_SLOTS * SLOT] = zslot
    g3_buf[:, :SLOT] = zslot
    g3_buf[:, (G3_SLOTS - 1) * SLOT:G3_SLOTS * SLOT] = zslot
    d1_buf[:, :2 * SLOT] = jnp.zeros((BLK_B, 2 * SLOT), bf16)
    d1_buf[:, (D1_SLOTS - 1) * SLOT:D1_SLOTS * SLOT] = zslot

    def mm(x_bf16, w_ref):
        # bf16 operands on the MXU, f32 accumulation.
        return jnp.dot(x_bf16, w_ref[...], preferred_element_type=f32)

    # ---- G1: ConvTranspose(zdim+nc -> 2*base, k=4) on a 1x1 input == matmul; BN + ReLU.
    h = mm(zy_ref[...].astype(bf16), w1_ref)                      # (B, 4*4*32) = (B, 512)
    h = jnp.maximum(h * s1_ref[...] + b1_ref[...], 0.0)
    g1_buf[:, SLOT:SLOT * (1 + H1)] = h.astype(bf16)              # rows 0..3 -> slots 1..4

    # ---- G2: ConvTranspose(2*base -> base, k=4, s=2, p=1), 4x4 -> 8x8; BN + ReLU.
    # Paired rows: output rows (2j, 2j+1) = one matmul over the 3-slot window (j-1, j, j+1).
    for j in range(H2 // 2):
        x = g1_buf[:, SLOT * j:SLOT * (j + 3)]
        a = mm(x, g2w_ref)                                        # (B, 256)
        a = jnp.maximum(a * s2_ref[...] + b2_ref[...], 0.0)
        g2_buf[:, SLOT * (2 * j + 1):SLOT * (2 * j + 3)] = a.astype(bf16)

    # ---- G3: ConvTranspose(base -> 3, k=4, s=2, p=1), 8x8 -> 16x16; bias + tanh.
    # Paired output rows are packed into one 128-lane slot (2*48 lanes used, rest are
    # zero columns baked into g3w / b3), so the store is a full unmasked slot.
    for j in range(H3 // 2):
        x = g2_buf[:, SLOT * j:SLOT * (j + 3)]
        a = jnp.tanh(mm(x, g3w_ref) + b3_ref[...])                # (B, 128)
        g3_buf[:, SLOT * (j + 1):SLOT * (j + 2)] = a.astype(bf16)

    # ---- D1: Conv(3 -> base, k=5, s=2, p=2), 16x16 -> 8x8; bias + LeakyReLU(0.2).
    # Paired output rows (2m, 2m+1) read the 4-slot window of packed image rows 4m-2..4m+5.
    for m in range(HD1 // 2):
        x = g3_buf[:, SLOT * 2 * m:SLOT * (2 * m + 4)]
        a = mm(x, d1w_ref) + d1b_ref[...]                         # (B, 256)
        a = jnp.where(a > 0, a, 0.2 * a)
        d1_buf[:, SLOT * (2 * m + 2):SLOT * (2 * m + 4)] = a.astype(bf16)

    # ---- D2: Conv(base -> 2*base, k=5, s=2, p=2), 8x8 -> 4x4; bias + LeakyReLU(0.2),
    #      fused with Linear(2*base*4*4 -> 1): lane-wise accumulate, single reduce at end.
    acc = jnp.zeros((BLK_B, 2 * HD2 * CD2), f32)                  # (B, 256)
    for m in range(HD2 // 2):
        x = d1_buf[:, SLOT * 4 * m:SLOT * (4 * m + 7)]
        a = mm(x, d2w_ref) + d2b_ref[...]                         # (B, 256)
        a = jnp.where(a > 0, a, 0.2 * a)
        acc = acc + a * wfc_ref[:, 2 * SLOT * m:2 * SLOT * (m + 1)]

    logit = jnp.sum(acc, axis=-1, keepdims=True) + bfc_ref[...]   # (B, 1)
    # ---- sigmoid (f32 epilogue; exp over/underflow saturates harmlessly to 0 / 1).
    out_ref[...] = 1.0 / (1.0 + jnp.exp(-logit))


# ----------------------------- one-time weight preparation -----------------------------
def _bn_affine(gamma, beta, mean, var):
    scale = gamma * jax.lax.rsqrt(var + BN_EPS)
    return scale, beta - mean * scale


def _convt_xblock(w, ky, win, wout):
    """Single-kernel-row block for ConvTranspose2d(k=4, s=2, p=1).

    w: (Cin, Cout, 4, 4).  Returns (win*Cin, wout*Cout) mapping lane ix*Cin+ci of one
    input row to column ox*Cout+co of one output row, using kernel row `ky` and the
    x relation ox = 2*ix - 1 + kx.
    """
    cin, cout, k = w.shape[0], w.shape[1], w.shape[2]
    ox = np.arange(wout)[:, None]
    ix = np.arange(win)[None, :]
    kx = ox + 1 - 2 * ix
    valid = jnp.asarray((kx >= 0) & (kx < k), dtype=w.dtype)
    kxc = jnp.asarray(np.clip(kx, 0, k - 1).reshape(-1).astype(np.int32))
    g = jnp.take(w[:, :, ky, :], kxc, axis=2).reshape(cin, cout, wout, win)
    g = g * valid[None, None]
    return jnp.transpose(g, (3, 0, 2, 1)).reshape(win * cin, wout * cout)


def _conv_xblock(w, ky, win, wout, pad=2, stride=2):
    """Single-kernel-row block for Conv2d(k=5, s=2, p=2).

    w: (Cout, Cin, 5, 5).  Returns (win*Cin, wout*Cout) mapping lane ix*Cin+ci of one
    input row to column ox*Cout+co of one output row, using kernel row `ky` and the
    x relation ix = 2*ox - pad + kx.
    """
    cout, cin, k = w.shape[0], w.shape[1], w.shape[2]
    ox = np.arange(wout)[:, None]
    ix = np.arange(win)[None, :]
    kx = ix - stride * ox + pad
    valid = jnp.asarray((kx >= 0) & (kx < k), dtype=w.dtype)
    kxc = jnp.asarray(np.clip(kx, 0, k - 1).reshape(-1).astype(np.int32))
    g = jnp.take(w[:, :, ky, :], kxc, axis=2).reshape(cout, cin, wout, win)
    g = g * valid[None, None]
    return jnp.transpose(g, (3, 1, 2, 0)).reshape(win * cin, wout * cout)


def _convt_paired_mat(w, win, wout, n_pad_cols=0):
    """Paired row matrix for ConvTranspose2d(k=4, s=2, p=1).

    Maps a 3-slot window of input rows (j-1, j, j+1) to output rows (2j, 2j+1):
    even output 2j uses kernel rows (3, 1) on rows (j-1, j); odd 2j+1 uses (2, 0) on
    rows (j, j+1).  Shape: (3*SLOT, 2*wout*Cout + n_pad_cols).
    """
    cin, cout = w.shape[0], w.shape[1]
    nrow, ncol = win * cin, wout * cout
    z = jnp.zeros((nrow, ncol), w.dtype)

    def slot(even_blk, odd_blk):
        blk = jnp.concatenate([even_blk, odd_blk], axis=1)
        return jnp.pad(blk, ((0, SLOT - nrow), (0, 0)))

    r = jnp.concatenate([
        slot(_convt_xblock(w, 3, win, wout), z),                      # input row j-1
        slot(_convt_xblock(w, 1, win, wout),
             _convt_xblock(w, 2, win, wout)),                         # input row j
        slot(z, _convt_xblock(w, 0, win, wout)),                      # input row j+1
    ], axis=0)
    if n_pad_cols:
        r = jnp.pad(r, ((0, 0), (0, n_pad_cols)))
    return r


def _conv_paired_mat(w, win, wout, rows_per_slot, win_slots, first_row_offset):
    """Paired row matrix for Conv2d(k=5, s=2, p=2) producing output rows (2m, 2m+1).

    Input rows are packed `rows_per_slot` per 128-lane slot; the window covers
    `win_slots` consecutive slots whose first packed row is input row
    (4m + first_row_offset).  Shape: (win_slots*SLOT, 2*wout*Cout).
    """
    cout, cin, k = w.shape[0], w.shape[1], w.shape[2]
    ncol = wout * cout
    nrow = win * cin
    zc = jnp.zeros((nrow, ncol), w.dtype)

    def xb(ky):
        return _conv_xblock(w, ky, win, wout) if 0 <= ky < k else zc

    slots = []
    for ws in range(win_slots):
        halves = []
        for l in range(rows_per_slot):
            dr = rows_per_slot * ws + l + first_row_offset            # input row = 4m + dr
            # even output row 2m: ky = dr + 2;  odd output row 2m+1: ky = dr
            halves.append(jnp.concatenate([xb(dr + 2), xb(dr)], axis=1))
        blk = jnp.concatenate(halves, axis=0)
        slots.append(jnp.pad(blk, ((0, SLOT - rows_per_slot * nrow), (0, 0))))
    return jnp.concatenate(slots, axis=0)


def prepare_params(p):
    """One-time conversion of PyTorch-layout parameters into kernel-ready matrices."""
    wdt, f32 = jnp.bfloat16, jnp.float32

    # G1: ConvT on a 1x1 input == matmul; columns ordered (kh, kw, cout) == NHWC rows.
    w1 = jnp.transpose(p["g_w1"], (0, 2, 3, 1)).reshape(ZDIM + NUM_CLASSES, H1 * H1 * C1)
    s1, b1 = _bn_affine(p["g_bn1_g"], p["g_bn1_b"], p["g_bn1_m"], p["g_bn1_v"])

    g2w = _convt_paired_mat(p["g_w2"], win=H1, wout=H2)                      # (384, 256)
    s2, b2 = _bn_affine(p["g_bn2_g"], p["g_bn2_b"], p["g_bn2_m"], p["g_bn2_v"])

    g3_pad = SLOT - 2 * H3 * CHANNEL                                         # 32 zero cols
    g3w = _convt_paired_mat(p["g_w3"], win=H2, wout=H3, n_pad_cols=g3_pad)   # (384, 128)
    b3 = jnp.pad(jnp.tile(p["g_b3"], 2 * H3), (0, g3_pad))                   # (128,)

    # D1 reads the packed (2 image rows / slot) layout; D2 reads 1 row / slot.
    d1w = _conv_paired_mat(p["d_w1"], win=IMG, wout=HD1,
                           rows_per_slot=2, win_slots=4, first_row_offset=-2)  # (512, 256)
    d2w = _conv_paired_mat(p["d_w2"], win=HD1, wout=HD2,
                           rows_per_slot=1, win_slots=7, first_row_offset=-2)  # (896, 256)

    # FC: permute the torch (c, h, w) flatten order into our (h, w, c) row order.
    wfc = jnp.transpose(p["d_wfc"].reshape(CD2, HD2, HD2), (1, 2, 0)).reshape(1, -1)

    return (
        w1.astype(wdt),
        jnp.tile(s1, H1 * H1).reshape(1, -1).astype(f32),
        jnp.tile(b1, H1 * H1).reshape(1, -1).astype(f32),
        g2w.astype(wdt),
        jnp.tile(s2, 2 * H2).reshape(1, -1).astype(f32),
        jnp.tile(b2, 2 * H2).reshape(1, -1).astype(f32),
        g3w.astype(wdt),
        b3.reshape(1, -1).astype(f32),
        d1w.astype(wdt),
        jnp.tile(p["d_b1"], 2 * HD1).reshape(1, -1).astype(f32),
        d2w.astype(wdt),
        jnp.tile(p["d_b2"], 2 * HD2).reshape(1, -1).astype(f32),
        wfc.astype(f32),
        p["d_bfc"].reshape(1, 1).astype(f32),
    )


# ----------------------------- forward pass -----------------------------
@jax.jit
def gan_forward(prep, x, y):
    """GAN forward: discriminator(generator(x, y)).  x: (B, zdim, 1, 1), y: (B, nc, 1, 1)."""
    b = x.shape[0]
    zy = jnp.concatenate([x.reshape(b, ZDIM), y.reshape(b, NUM_CLASSES)],
                         axis=1).astype(jnp.float32)
    b_pad = -(-b // BLK_B) * BLK_B                     # pad batch to a multiple of BLK_B (8)
    if b_pad != b:
        zy = jnp.pad(zy, ((0, b_pad - b), (0, 0)))
    n_blocks = b_pad // BLK_B

    in_specs = [pl.BlockSpec((BLK_B, ZDIM + NUM_CLASSES), lambda i: (i, 0))]
    in_specs += [pl.BlockSpec(w.shape, lambda i: (0, 0)) for w in prep]

    out = pl.pallas_call(
        _gan_kernel,
        out_shape=jax.ShapeDtypeStruct((b_pad, 1), jnp.float32),
        grid=(n_blocks,),
        in_specs=in_specs,
        out_specs=pl.BlockSpec((BLK_B, 1), lambda i: (i, 0)),
        scratch_shapes=[
            pltpu.VMEM((BLK_B, G1_SLOTS * SLOT), jnp.bfloat16),   # G1 output (+ pad rows)
            pltpu.VMEM((BLK_B, G2_SLOTS * SLOT), jnp.bfloat16),   # G2 output
            pltpu.VMEM((BLK_B, G3_SLOTS * SLOT), jnp.bfloat16),   # image (2 rows / slot)
            pltpu.VMEM((BLK_B, D1_SLOTS * SLOT), jnp.bfloat16),   # D1 output
        ],
        compiler_params=pltpu.CompilerParams(
            # Single core for tiny batches; megacore split only once each core gets
            # a full sublane-dense (BLK_B=8) block of work.
            dimension_semantics=("parallel",) if n_blocks > 1 else ("arbitrary",),
        ),
    )(zy, *prep)
    return out[:b]


# ----------------------------- pure-JAX reference (validation only) -----------------------------
def _reference_forward(p, x, y):
    hp = jax.lax.Precision.HIGHEST
    b = x.shape[0]
    dn = ("NCHW", "OIHW", "NCHW")
    zy = jnp.concatenate([x.reshape(b, -1), y.reshape(b, -1)], axis=1)

    def convt(h, w, stride, pad):
        k = w.shape[2]
        w_flip = jnp.transpose(w[:, :, ::-1, ::-1], (1, 0, 2, 3))
        return jax.lax.conv_general_dilated(
            h, w_flip, window_strides=(1, 1),
            padding=[(k - 1 - pad, k - 1 - pad)] * 2,
            lhs_dilation=(stride, stride), dimension_numbers=dn, precision=hp)

    def conv(h, w, stride, pad):
        return jax.lax.conv_general_dilated(
            h, w, window_strides=(stride, stride),
            padding=[(pad, pad)] * 2, dimension_numbers=dn, precision=hp)

    def bn(h, g, bta, m, v):
        s = g * jax.lax.rsqrt(v + BN_EPS)
        return h * s[None, :, None, None] + (bta - m * s)[None, :, None, None]

    h = jnp.einsum("bc,cokl->bokl", zy, p["g_w1"], precision=hp)
    h = jnp.maximum(bn(h, p["g_bn1_g"], p["g_bn1_b"], p["g_bn1_m"], p["g_bn1_v"]), 0.0)
    h = convt(h, p["g_w2"], 2, 1)
    h = jnp.maximum(bn(h, p["g_bn2_g"], p["g_bn2_b"], p["g_bn2_m"], p["g_bn2_v"]), 0.0)
    h = jnp.tanh(convt(h, p["g_w3"], 2, 1) + p["g_b3"][None, :, None, None])
    h = conv(h, p["d_w1"], 2, 2) + p["d_b1"][None, :, None, None]
    h = jnp.where(h > 0, h, 0.2 * h)
    h = conv(h, p["d_w2"], 2, 2) + p["d_b2"][None, :, None, None]
    h = jnp.where(h > 0, h, 0.2 * h)
    logit = h.reshape(b, -1) @ p["d_wfc"].T + p["d_bfc"][None, :]
    return jax.nn.sigmoid(logit)


# ----------------------------- deterministic parameter init -----------------------------
def init_params(key, std=0.05):
    ks = jax.random.split(key, 18)
    n = lambda k, shape, s=std: (s * jax.random.normal(k, shape)).astype(jnp.float32)
    return {
        # Generator
        "g_w1": n(ks[0], (ZDIM + NUM_CLASSES, C1, FIRST_K, FIRST_K)),
        "g_bn1_g": 1.0 + n(ks[1], (C1,)),
        "g_bn1_b": n(ks[2], (C1,)),
        "g_bn1_m": n(ks[3], (C1,), 0.1),
        "g_bn1_v": 1.0 + jnp.abs(n(ks[4], (C1,), 0.1)),
        "g_w2": n(ks[5], (C1, C2, 4, 4)),
        "g_bn2_g": 1.0 + n(ks[6], (C2,)),
        "g_bn2_b": n(ks[7], (C2,)),
        "g_bn2_m": n(ks[8], (C2,), 0.1),
        "g_bn2_v": 1.0 + jnp.abs(n(ks[9], (C2,), 0.1)),
        "g_w3": n(ks[10], (C2, CHANNEL, 4, 4)),
        "g_b3": n(ks[11], (CHANNEL,)),
        # Discriminator
        "d_w1": n(ks[12], (CD1, CHANNEL, 5, 5)),
        "d_b1": n(ks[13], (CD1,)),
        "d_w2": n(ks[14], (CD2, CD1, 5, 5)),
        "d_b2": n(ks[15], (CD2,)),
        "d_wfc": n(ks[16], (1, CD2 * HD2 * HD2)),
        "d_bfc": n(ks[17], (1,)),
    }


# ----------------------------- main -----------------------------
if __name__ == "__main__":
    key = jax.random.PRNGKey(0)
    k_param, k_z = jax.random.split(key, 2)
    params = init_params(k_param)
    prep = prepare_params(params)        # one-time weight prep, hoisted out of the forward

    # x: latent noise (B, zdim, 1, 1);  y: one-hot class condition (B, num_classes, 1, 1)
    x = jax.random.normal(k_z, (BATCH, ZDIM, 1, 1), dtype=jnp.float32)
    labels = jnp.arange(BATCH) % NUM_CLASSES
    y = jax.nn.one_hot(labels, NUM_CLASSES, dtype=jnp.float32).reshape(
        BATCH, NUM_CLASSES, 1, 1)

    out = jax.block_until_ready(gan_forward(prep, x, y))
    ref = _reference_forward(params, x, y)

    assert out.shape == (BATCH, 1)
    assert bool(jnp.all(jnp.isfinite(out)))
    assert bool(jnp.all((out >= 0.0) & (out <= 1.0)))
    err = float(jnp.max(jnp.abs(out - ref)))
    assert err < 5e-2, f"Pallas kernel vs pure-JAX reference mismatch: max |diff| = {err}"
    print("KERNEL_OK")
</pallas_src>

<mosaic_0001>
module attributes {stable_mosaic.version = 11 : i64} {
  func.func @_gan_kernel(%arg0: i32, %arg1: memref<8x42xf32, #tpu.memory_space<vmem>>, %arg2: memref<42x512xbf16, #tpu.memory_space<vmem>>, %arg3: memref<1x512xf32, #tpu.memory_space<vmem>>, %arg4: memref<1x512xf32, #tpu.memory_space<vmem>>, %arg5: memref<384x256xbf16, #tpu.memory_space<vmem>>, %arg6: memref<1x256xf32, #tpu.memory_space<vmem>>, %arg7: memref<1x256xf32, #tpu.memory_space<vmem>>, %arg8: memref<384x128xbf16, #tpu.memory_space<vmem>>, %arg9: memref<1x128xf32, #tpu.memory_space<vmem>>, %arg10: memref<512x256xbf16, #tpu.memory_space<vmem>>, %arg11: memref<1x256xf32, #tpu.memory_space<vmem>>, %arg12: memref<896x256xbf16, #tpu.memory_space<vmem>>, %arg13: memref<1x256xf32, #tpu.memory_space<vmem>>, %arg14: memref<1x512xf32, #tpu.memory_space<vmem>>, %arg15: memref<1x1xf32, #tpu.memory_space<vmem>>, %arg16: memref<8x1xf32, #tpu.memory_space<vmem>>, %arg17: memref<8x768xbf16, #tpu.memory_space<vmem>>, %arg18: memref<8x1280xbf16, #tpu.memory_space<vmem>>, %arg19: memref<8x1280xbf16, #tpu.memory_space<vmem>>, %arg20: memref<8x1408xbf16, #tpu.memory_space<vmem>>) attributes {dimension_semantics = [#tpu.dimension_semantics<arbitrary>], iteration_bounds = array<i64: 1>, scalar_prefetch = 0 : i64, scratch_operands = 4 : i64, tpu.core_type = #tpu.core_type<tc>, window_params = [{transform_indices = @transform_0, window_bounds = array<i64: 8, 42>}, {pipeline_mode = #tpu.pipeline_mode<synchronous>, transform_indices = @transform_1, window_bounds = array<i64: 42, 512>}, {pipeline_mode = #tpu.pipeline_mode<synchronous>, transform_indices = @transform_2, window_bounds = array<i64: 1, 512>}, {pipeline_mode = #tpu.pipeline_mode<synchronous>, transform_indices = @transform_3, window_bounds = array<i64: 1, 512>}, {pipeline_mode = #tpu.pipeline_mode<synchronous>, transform_indices = @transform_4, window_bounds = array<i64: 384, 256>}, {pipeline_mode = #tpu.pipeline_mode<synchronous>, transform_indices = @transform_5, window_bounds = array<i64: 1, 256>}, {pipeline_mode = #tpu.pipeline_mode<synchronous>, transform_indices = @transform_6, window_bounds = array<i64: 1, 256>}, {pipeline_mode = #tpu.pipeline_mode<synchronous>, transform_indices = @transform_7, window_bounds = array<i64: 384, 128>}, {pipeline_mode = #tpu.pipeline_mode<synchronous>, transform_indices = @transform_8, window_bounds = array<i64: 1, 128>}, {pipeline_mode = #tpu.pipeline_mode<synchronous>, transform_indices = @transform_9, window_bounds = array<i64: 512, 256>}, {pipeline_mode = #tpu.pipeline_mode<synchronous>, transform_indices = @transform_10, window_bounds = array<i64: 1, 256>}, {pipeline_mode = #tpu.pipeline_mode<synchronous>, transform_indices = @transform_11, window_bounds = array<i64: 896, 256>}, {pipeline_mode = #tpu.pipeline_mode<synchronous>, transform_indices = @transform_12, window_bounds = array<i64: 1, 256>}, {pipeline_mode = #tpu.pipeline_mode<synchronous>, transform_indices = @transform_13, window_bounds = array<i64: 1, 512>}, {pipeline_mode = #tpu.pipeline_mode<synchronous>, transform_indices = @transform_14, window_bounds = array<i64: 1, 1>}, {transform_indices = @transform_15, window_bounds = array<i64: 8, 1>}]} {
    %cst = arith.constant 0.000000e+00 : bf16
    %0 = vector.broadcast %cst : bf16 to vector<8x128xbf16>
    %c0 = arith.constant 0 : index
    %c0_0 = arith.constant 0 : index
    %1 = vector.load %arg17[%c0, %c0_0] : memref<8x768xbf16, #tpu.memory_space<vmem>>, vector<8x128xbf16>
    tpu.vector_store %arg17[%c0, %c0_0], %0 {strides = array<i32>} : memref<8x768xbf16, #tpu.memory_space<vmem>>, vector<8x128xbf16>,
    %c0_1 = arith.constant 0 : index
    %c640 = arith.constant 640 : index
    %2 = vector.load %arg17[%c0_1, %c640] : memref<8x768xbf16, #tpu.memory_space<vmem>>, vector<8x128xbf16>
    tpu.vector_store %arg17[%c0_1, %c640], %0 {strides = array<i32>} : memref<8x768xbf16, #tpu.memory_space<vmem>>, vector<8x128xbf16>,
    %c0_2 = arith.constant 0 : index
    %c0_3 = arith.constant 0 : index
    %3 = vector.load %arg18[%c0_2, %c0_3] : memref<8x1280xbf16, #tpu.memory_space<vmem>>, vector<8x128xbf16>
    tpu.vector_store %arg18[%c0_2, %c0_3], %0 {strides = array<i32>} : memref<8x1280xbf16, #tpu.memory_space<vmem>>, vector<8x128xbf16>,
    %c0_4 = arith.constant 0 : index
    %c1152 = arith.constant 1152 : index
    %4 = vector.load %arg18[%c0_4, %c1152] : memref<8x1280xbf16, #tpu.memory_space<vmem>>, vector<8x128xbf16>
    tpu.vector_store %arg18[%c0_4, %c1152], %0 {strides = array<i32>} : memref<8x1280xbf16, #tpu.memory_space<vmem>>, vector<8x128xbf16>,
    %c0_5 = arith.constant 0 : index
    %c0_6 = arith.constant 0 : index
    %5 = vector.load %arg19[%c0_5, %c0_6] : memref<8x1280xbf16, #tpu.memory_space<vmem>>, vector<8x128xbf16>
    tpu.vector_store %arg19[%c0_5, %c0_6], %0 {strides = array<i32>} : memref<8x1280xbf16, #tpu.memory_space<vmem>>, vector<8x128xbf16>,
    %c0_7 = arith.constant 0 : index
    %c1152_8 = arith.constant 1152 : index
    %6 = vector.load %arg19[%c0_7, %c1152_8] : memref<8x1280xbf16, #tpu.memory_space<vmem>>, vector<8x128xbf16>
    tpu.vector_store %arg19[%c0_7, %c1152_8], %0 {strides = array<i32>} : memref<8x1280xbf16, #tpu.memory_space<vmem>>, vector<8x128xbf16>,
    %cst_9 = arith.constant 0.000000e+00 : bf16
    %7 = vector.broadcast %cst_9 : bf16 to vector<8x256xbf16>
    %c0_10 = arith.constant 0 : index
    %c0_11 = arith.constant 0 : index
    %8 = vector.load %arg20[%c0_10, %c0_11] : memref<8x1408xbf16, #tpu.memory_space<vmem>>, vector<8x256xbf16>
    tpu.vector_store %arg20[%c0_10, %c0_11], %7 {strides = array<i32>} : memref<8x1408xbf16, #tpu.memory_space<vmem>>, vector<8x256xbf16>,
    %c0_12 = arith.constant 0 : index
    %c1280 = arith.constant 1280 : index
    %9 = vector.load %arg20[%c0_12, %c1280] : memref<8x1408xbf16, #tpu.memory_space<vmem>>, vector<8x128xbf16>
    tpu.vector_store %arg20[%c0_12, %c1280], %0 {strides = array<i32>} : memref<8x1408xbf16, #tpu.memory_space<vmem>>, vector<8x128xbf16>,
    %c0_13 = arith.constant 0 : index
    %c0_14 = arith.constant 0 : index
    %10 = vector.load %arg1[%c0_13, %c0_14] : memref<8x42xf32, #tpu.memory_space<vmem>>, vector<8x42xf32>
    %11 = arith.truncf %10 : vector<8x42xf32> to vector<8x42xbf16>
    %c0_15 = arith.constant 0 : index
    %c0_16 = arith.constant 0 : index
    %12 = vector.load %arg2[%c0_15, %c0_16] : memref<42x512xbf16, #tpu.memory_space<vmem>>, vector<42x512xbf16>
    %cst_17 = arith.constant dense<0.000000e+00> : vector<8x512xf32>
    %13 = tpu.matmul %11, %12, %cst_17 {dimension_numbers = #tpu.dot_dimension_numbers<[1], [0], [0], [1], [0, 0, 1, 1], [], []>} : vector<8x42xbf16>, vector<42x512xbf16>, vector<8x512xf32> -> vector<8x512xf32>
    %c0_18 = arith.constant 0 : index
    %c0_19 = arith.constant 0 : index
    %14 = vector.load %arg3[%c0_18, %c0_19] : memref<1x512xf32, #tpu.memory_space<vmem>>, vector<1x512xf32>
    %15 = vector.broadcast %14 : vector<1x512xf32> to vector<8x512xf32>
    %16 = arith.mulf %13, %15 : vector<8x512xf32>
    %c0_20 = arith.constant 0 : index
    %c0_21 = arith.constant 0 : index
    %17 = vector.load %arg4[%c0_20, %c0_21] : memref<1x512xf32, #tpu.memory_space<vmem>>, vector<1x512xf32>
    %18 = vector.broadcast %17 : vector<1x512xf32> to vector<8x512xf32>
    %19 = arith.addf %16, %18 : vector<8x512xf32>
    %cst_22 = arith.constant 0.000000e+00 : f32
    %20 = vector.broadcast %cst_22 : f32 to vector<8x512xf32>
    %21 = arith.maximumf %19, %20 : vector<8x512xf32>
    %22 = arith.truncf %21 : vector<8x512xf32> to vector<8x512xbf16>
    %c0_23 = arith.constant 0 : index
    %c128 = arith.constant 128 : index
    %23 = vector.load %arg17[%c0_23, %c128] : memref<8x768xbf16, #tpu.memory_space<vmem>>, vector<8x512xbf16>
    tpu.vector_store %arg17[%c0_23, %c128], %22 {strides = array<i32>} : memref<8x768xbf16, #tpu.memory_space<vmem>>, vector<8x512xbf16>,
    %c0_24 = arith.constant 0 : index
    %c0_25 = arith.constant 0 : index
    %24 = vector.load %arg17[%c0_24, %c0_25] : memref<8x768xbf16, #tpu.memory_space<vmem>>, vector<8x384xbf16>
    %c0_26 = arith.constant 0 : index
    %c0_27 = arith.constant 0 : index
    %25 = vector.load %arg5[%c0_26, %c0_27] : memref<384x256xbf16, #tpu.memory_space<vmem>>, vector<384x256xbf16>
    %cst_28 = arith.constant dense<0.000000e+00> : vector<8x256xf32>
    %26 = tpu.matmul %24, %25, %cst_28 {dimension_numbers = #tpu.dot_dimension_numbers<[1], [0], [0], [1], [0, 0, 1, 1], [], []>} : vector<8x384xbf16>, vector<384x256xbf16>, vector<8x256xf32> -> vector<8x256xf32>
    %c0_29 = arith.constant 0 : index
    %c0_30 = arith.constant 0 : index
    %27 = vector.load %arg6[%c0_29, %c0_30] : memref<1x256xf32, #tpu.memory_space<vmem>>, vector<1x256xf32>
    %28 = vector.broadcast %27 : vector<1x256xf32> to vector<8x256xf32>
    %29 = arith.mulf %26, %28 : vector<8x256xf32>
    %c0_31 = arith.constant 0 : index
    %c0_32 = arith.constant 0 : index
    %30 = vector.load %arg7[%c0_31, %c0_32] : memref<1x256xf32, #tpu.memory_space<vmem>>, vector<1x256xf32>
    %31 = vector.broadcast %30 : vector<1x256xf32> to vector<8x256xf32>
    %32 = arith.addf %29, %31 : vector<8x256xf32>
    %cst_33 = arith.constant 0.000000e+00 : f32
    %33 = vector.broadcast %cst_33 : f32 to vector<8x256xf32>
    %34 = arith.maximumf %32, %33 : vector<8x256xf32>
    %35 = arith.truncf %34 : vector<8x256xf32> to vector<8x256xbf16>
    %c0_34 = arith.constant 0 : index
    %c128_35 = arith.constant 128 : index
    %36 = vector.load %arg18[%c0_34, %c128_35] : memref<8x1280xbf16, #tpu.memory_space<vmem>>, vector<8x256xbf16>
    tpu.vector_store %arg18[%c0_34, %c128_35], %35 {strides = array<i32>} : memref<8x1280xbf16, #tpu.memory_space<vmem>>, vector<8x256xbf16>,
    %c0_36 = arith.constant 0 : index
    %c128_37 = arith.constant 128 : index
    %37 = vector.load %arg17[%c0_36, %c128_37] : memref<8x768xbf16, #tpu.memory_space<vmem>>, vector<8x384xbf16>
    %c0_38 = arith.constant 0 : index
    %c0_39 = arith.constant 0 : index
    %38 = vector.load %arg5[%c0_38, %c0_39] : memref<384x256xbf16, #tpu.memory_space<vmem>>, vector<384x256xbf16>
    %cst_40 = arith.constant dense<0.000000e+00> : vector<8x256xf32>
    %39 = tpu.matmul %37, %38, %cst_40 {dimension_numbers = #tpu.dot_dimension_numbers<[1], [0], [0], [1], [0, 0, 1, 1], [], []>} : vector<8x384xbf16>, vector<384x256xbf16>, vector<8x256xf32> -> vector<8x256xf32>
    %c0_41 = arith.constant 0 : index
    %c0_42 = arith.constant 0 : index
    %40 = vector.load %arg6[%c0_41, %c0_42] : memref<1x256xf32, #tpu.memory_space<vmem>>, vector<1x256xf32>
    %41 = vector.broadcast %40 : vector<1x256xf32> to vector<8x256xf32>
    %42 = arith.mulf %39, %41 : vector<8x256xf32>
    %c0_43 = arith.constant 0 : index
    %c0_44 = arith.constant 0 : index
    %43 = vector.load %arg7[%c0_43, %c0_44] : memref<1x256xf32, #tpu.memory_space<vmem>>, vector<1x256xf32>
    %44 = vector.broadcast %43 : vector<1x256xf32> to vector<8x256xf32>
    %45 = arith.addf %42, %44 : vector<8x256xf32>
    %cst_45 = arith.constant 0.000000e+00 : f32
    %46 = vector.broadcast %cst_45 : f32 to vector<8x256xf32>
    %47 = arith.maximumf %45, %46 : vector<8x256xf32>
    %48 = arith.truncf %47 : vector<8x256xf32> to vector<8x256xbf16>
    %c0_46 = arith.constant 0 : index
    %c384 = arith.constant 384 : index
    %49 = vector.load %arg18[%c0_46, %c384] : memref<8x1280xbf16, #tpu.memory_space<vmem>>, vector<8x256xbf16>
    tpu.vector_store %arg18[%c0_46, %c384], %48 {strides = array<i32>} : memref<8x1280xbf16, #tpu.memory_space<vmem>>, vector<8x256xbf16>,
    %c0_47 = arith.constant 0 : index
    %c256 = arith.constant 256 : index
    %50 = vector.load %arg17[%c0_47, %c256] : memref<8x768xbf16, #tpu.memory_space<vmem>>, vector<8x384xbf16>
    %c0_48 = arith.constant 0 : index
    %c0_49 = arith.constant 0 : index
    %51 = vector.load %arg5[%c0_48, %c0_49] : memref<384x256xbf16, #tpu.memory_space<vmem>>, vector<384x256xbf16>
    %cst_50 = arith.constant dense<0.000000e+00> : vector<8x256xf32>
    %52 = tpu.matmul %50, %51, %cst_50 {dimension_numbers = #tpu.dot_dimension_numbers<[1], [0], [0], [1], [0, 0, 1, 1], [], []>} : vector<8x384xbf16>, vector<384x256xbf16>, vector<8x256xf32> -> vector<8x256xf32>
    %c0_51 = arith.constant 0 : index
    %c0_52 = arith.constant 0 : index
    %53 = vector.load %arg6[%c0_51, %c0_52] : memref<1x256xf32, #tpu.memory_space<vmem>>, vector<1x256xf32>
    %54 = vector.broadcast %53 : vector<1x256xf32> to vector<8x256xf32>
    %55 = arith.mulf %52, %54 : vector<8x256xf32>
    %c0_53 = arith.constant 0 : index
    %c0_54 = arith.constant 0 : index
    %56 = vector.load %arg7[%c0_53, %c0_54] : memref<1x256xf32, #tpu.memory_space<vmem>>, vector<1x256xf32>
    %57 = vector.broadcast %56 : vector<1x256xf32> to vector<8x256xf32>
    %58 = arith.addf %55, %57 : vector<8x256xf32>
    %cst_55 = arith.constant 0.000000e+00 : f32
    %59 = vector.broadcast %cst_55 : f32 to vector<8x256xf32>
    %60 = arith.maximumf %58, %59 : vector<8x256xf32>
    %61 = arith.truncf %60 : vector<8x256xf32> to vector<8x256xbf16>
    %c0_56 = arith.constant 0 : index
    %c640_57 = arith.constant 640 : index
    %62 = vector.load %arg18[%c0_56, %c640_57] : memref<8x1280xbf16, #tpu.memory_space<vmem>>, vector<8x256xbf16>
    tpu.vector_store %arg18[%c0_56, %c640_57], %61 {strides = array<i32>} : memref<8x1280xbf16, #tpu.memory_space<vmem>>, vector<8x256xbf16>,
    %c0_58 = arith.constant 0 : index
    %c384_59 = arith.constant 384 : index
    %63 = vector.load %arg17[%c0_58, %c384_59] : memref<8x768xbf16, #tpu.memory_space<vmem>>, vector<8x384xbf16>
    %c0_60 = arith.constant 0 : index
    %c0_61 = arith.constant 0 : index
    %64 = vector.load %arg5[%c0_60, %c0_61] : memref<384x256xbf16, #tpu.memory_space<vmem>>, vector<384x256xbf16>
    %cst_62 = arith.constant dense<0.000000e+00> : vector<8x256xf32>
    %65 = tpu.matmul %63, %64, %cst_62 {dimension_numbers = #tpu.dot_dimension_numbers<[1], [0], [0], [1], [0, 0, 1, 1], [], []>} : vector<8x384xbf16>, vector<384x256xbf16>, vector<8x256xf32> -> vector<8x256xf32>
    %c0_63 = arith.constant 0 : index
    %c0_64 = arith.constant 0 : index
    %66 = vector.load %arg6[%c0_63, %c0_64] : memref<1x256xf32, #tpu.memory_space<vmem>>, vector<1x256xf32>
    %67 = vector.broadcast %66 : vector<1x256xf32> to vector<8x256xf32>
    %68 = arith.mulf %65, %67 : vector<8x256xf32>
    %c0_65 = arith.constant 0 : index
    %c0_66 = arith.constant 0 : index
    %69 = vector.load %arg7[%c0_65, %c0_66] : memref<1x256xf32, #tpu.memory_space<vmem>>, vector<1x256xf32>
    %70 = vector.broadcast %69 : vector<1x256xf32> to vector<8x256xf32>
    %71 = arith.addf %68, %70 : vector<8x256xf32>
    %cst_67 = arith.constant 0.000000e+00 : f32
    %72 = vector.broadcast %cst_67 : f32 to vector<8x256xf32>
    %73 = arith.maximumf %71, %72 : vector<8x256xf32>
    %74 = arith.truncf %73 : vector<8x256xf32> to vector<8x256xbf16>
    %c0_68 = arith.constant 0 : index
    %c896 = arith.constant 896 : index
    %75 = vector.load %arg18[%c0_68, %c896] : memref<8x1280xbf16, #tpu.memory_space<vmem>>, vector<8x256xbf16>
    tpu.vector_store %arg18[%c0_68, %c896], %74 {strides = array<i32>} : memref<8x1280xbf16, #tpu.memory_space<vmem>>, vector<8x256xbf16>,
    %c0_69 = arith.constant 0 : index
    %c0_70 = arith.constant 0 : index
    %76 = vector.load %arg18[%c0_69, %c0_70] : memref<8x1280xbf16, #tpu.memory_space<vmem>>, vector<8x384xbf16>
    %c0_71 = arith.constant 0 : index
    %c0_72 = arith.constant 0 : index
    %77 = vector.load %arg8[%c0_71, %c0_72] : memref<384x128xbf16, #tpu.memory_space<vmem>>, vector<384x128xbf16>
    %cst_73 = arith.constant dense<0.000000e+00> : vector<8x128xf32>
    %78 = tpu.matmul %76, %77, %cst_73 {dimension_numbers = #tpu.dot_dimension_numbers<[1], [0], [0], [1], [0, 0, 1, 1], [], []>} : vector<8x384xbf16>, vector<384x128xbf16>, vector<8x128xf32> -> vector<8x128xf32>
    %c0_74 = arith.constant 0 : index
    %c0_75 = arith.constant 0 : index
    %79 = vector.load %arg9[%c0_74, %c0_75] : memref<1x128xf32, #tpu.memory_space<vmem>>, vector<1x128xf32>
    %80 = vector.broadcast %79 : vector<1x128xf32> to vector<8x128xf32>
    %81 = arith.addf %78, %80 : vector<8x128xf32>
    %82 = math.tanh %81 : vector<8x128xf32>
    %83 = arith.truncf %82 : vector<8x128xf32> to vector<8x128xbf16>
    %c0_76 = arith.constant 0 : index
    %c128_77 = arith.constant 128 : index
    %84 = vector.load %arg19[%c0_76, %c128_77] : memref<8x1280xbf16, #tpu.memory_space<vmem>>, vector<8x128xbf16>
    tpu.vector_store %arg19[%c0_76, %c128_77], %83 {strides = array<i32>} : memref<8x1280xbf16, #tpu.memory_space<vmem>>, vector<8x128xbf16>,
    %c0_78 = arith.constant 0 : index
    %c128_79 = arith.constant 128 : index
    %85 = vector.load %arg18[%c0_78, %c128_79] : memref<8x1280xbf16, #tpu.memory_space<vmem>>, vector<8x384xbf16>
    %c0_80 = arith.constant 0 : index
    %c0_81 = arith.constant 0 : index
    %86 = vector.load %arg8[%c0_80, %c0_81] : memref<384x128xbf16, #tpu.memory_space<vmem>>, vector<384x128xbf16>
    %cst_82 = arith.constant dense<0.000000e+00> : vector<8x128xf32>
    %87 = tpu.matmul %85, %86, %cst_82 {dimension_numbers = #tpu.dot_dimension_numbers<[1], [0], [0], [1], [0, 0, 1, 1], [], []>} : vector<8x384xbf16>, vector<384x128xbf16>, vector<8x128xf32> -> vector<8x128xf32>
    %c0_83 = arith.constant 0 : index
    %c0_84 = arith.constant 0 : index
    %88 = vector.load %arg9[%c0_83, %c0_84] : memref<1x128xf32, #tpu.memory_space<vmem>>, vector<1x128xf32>
    %89 = vector.broadcast %88 : vector<1x128xf32> to vector<8x128xf32>
    %90 = arith.addf %87, %89 : vector<8x128xf32>
    %91 = math.tanh %90 : vector<8x128xf32>
    %92 = arith.truncf %91 : vector<8x128xf32> to vector<8x128xbf16>
    %c0_85 = arith.constant 0 : index
    %c256_86 = arith.constant 256 : index
    %93 = vector.load %arg19[%c0_85, %c256_86] : memref<8x1280xbf16, #tpu.memory_space<vmem>>, vector<8x128xbf16>
    tpu.vector_store %arg19[%c0_85, %c256_86], %92 {strides = array<i32>} : memref<8x1280xbf16, #tpu.memory_space<vmem>>, vector<8x128xbf16>,
    %c0_87 = arith.constant 0 : index
    %c256_88 = arith.constant 256 : index
    %94 = vector.load %arg18[%c0_87, %c256_88] : memref<8x1280xbf16, #tpu.memory_space<vmem>>, vector<8x384xbf16>
    %c0_89 = arith.constant 0 : index
    %c0_90 = arith.constant 0 : index
    %95 = vector.load %arg8[%c0_89, %c0_90] : memref<384x128xbf16, #tpu.memory_space<vmem>>, vector<384x128xbf16>
    %cst_91 = arith.constant dense<0.000000e+00> : vector<8x128xf32>
    %96 = tpu.matmul %94, %95, %cst_91 {dimension_numbers = #tpu.dot_dimension_numbers<[1], [0], [0], [1], [0, 0, 1, 1], [], []>} : vector<8x384xbf16>, vector<384x128xbf16>, vector<8x128xf32> -> vector<8x128xf32>
    %c0_92 = arith.constant 0 : index
    %c0_93 = arith.constant 0 : index
    %97 = vector.load %arg9[%c0_92, %c0_93] : memref<1x128xf32, #tpu.memory_space<vmem>>, vector<1x128xf32>
    %98 = vector.broadcast %97 : vector<1x128xf32> to vector<8x128xf32>
    %99 = arith.addf %96, %98 : vector<8x128xf32>
    %100 = math.tanh %99 : vector<8x128xf32>
    %101 = arith.truncf %100 : vector<8x128xf32> to vector<8x128xbf16>
    %c0_94 = arith.constant 0 : index
    %c384_95 = arith.constant 384 : index
    %102 = vector.load %arg19[%c0_94, %c384_95] : memref<8x1280xbf16, #tpu.memory_space<vmem>>, vector<8x128xbf16>
    tpu.vector_store %arg19[%c0_94, %c384_95], %101 {strides = array<i32>} : memref<8x1280xbf16, #tpu.memory_space<vmem>>, vector<8x128xbf16>,
    %c0_96 = arith.constant 0 : index
    %c384_97 = arith.constant 384 : index
    %103 = vector.load %arg18[%c0_96, %c384_97] : memref<8x1280xbf16, #tpu.memory_space<vmem>>, vector<8x384xbf16>
    %c0_98 = arith.constant 0 : index
    %c0_99 = arith.constant 0 : index
    %104 = vector.load %arg8[%c0_98, %c0_99] : memref<384x128xbf16, #tpu.memory_space<vmem>>, vector<384x128xbf16>
    %cst_100 = arith.constant dense<0.000000e+00> : vector<8x128xf32>
    %105 = tpu.matmul %103, %104, %cst_100 {dimension_numbers = #tpu.dot_dimension_numbers<[1], [0], [0], [1], [0, 0, 1, 1], [], []>} : vector<8x384xbf16>, vector<384x128xbf16>, vector<8x128xf32> -> vector<8x128xf32>
    %c0_101 = arith.constant 0 : index
    %c0_102 = arith.constant 0 : index
    %106 = vector.load %arg9[%c0_101, %c0_102] : memref<1x128xf32, #tpu.memory_space<vmem>>, vector<1x128xf32>
    %107 = vector.broadcast %106 : vector<1x128xf32> to vector<8x128xf32>
    %108 = arith.addf %105, %107 : vector<8x128xf32>
    %109 = math.tanh %108 : vector<8x128xf32>
    %110 = arith.truncf %109 : vector<8x128xf32> to vector<8x128xbf16>
    %c0_103 = arith.constant 0 : index
    %c512 = arith.constant 512 : index
    %111 = vector.load %arg19[%c0_103, %c512] : memref<8x1280xbf16, #tpu.memory_space<vmem>>, vector<8x128xbf16>
    tpu.vector_store %arg19[%c0_103, %c512], %110 {strides = array<i32>} : memref<8x1280xbf16, #tpu.memory_space<vmem>>, vector<8x128xbf16>,
    %c0_104 = arith.constant 0 : index
    %c512_105 = arith.constant 512 : index
    %112 = vector.load %arg18[%c0_104, %c512_105] : memref<8x1280xbf16, #tpu.memory_space<vmem>>, vector<8x384xbf16>
    %c0_106 = arith.constant 0 : index
    %c0_107 = arith.constant 0 : index
    %113 = vector.load %arg8[%c0_106, %c0_107] : memref<384x128xbf16, #tpu.memory_space<vmem>>, vector<384x128xbf16>
    %cst_108 = arith.constant dense<0.000000e+00> : vector<8x128xf32>
    %114 = tpu.matmul %112, %113, %cst_108 {dimension_numbers = #tpu.dot_dimension_numbers<[1], [0], [0], [1], [0, 0, 1, 1], [], []>} : vector<8x384xbf16>, vector<384x128xbf16>, vector<8x128xf32> -> vector<8x128xf32>
    %c0_109 = arith.constant 0 : index
    %c0_110 = arith.constant 0 : index
    %115 = vector.load %arg9[%c0_109, %c0_110] : memref<1x128xf32, #tpu.memory_space<vmem>>, vector<1x128xf32>
    %116 = vector.broadcast %115 : vector<1x128xf32> to vector<8x128xf32>
    %117 = arith.addf %114, %116 : vector<8x128xf32>
    %118 = math.tanh %117 : vector<8x128xf32>
    %119 = arith.truncf %118 : vector<8x128xf32> to vector<8x128xbf16>
    %c0_111 = arith.constant 0 : index
    %c640_112 = arith.constant 640 : index
    %120 = vector.load %arg19[%c0_111, %c640_112] : memref<8x1280xbf16, #tpu.memory_space<vmem>>, vector<8x128xbf16>
    tpu.vector_store %arg19[%c0_111, %c640_112], %119 {strides = array<i32>} : memref<8x1280xbf16, #tpu.memory_space<vmem>>, vector<8x128xbf16>,
    %c0_113 = arith.constant 0 : index
    %c640_114 = arith.constant 640 : index
    %121 = vector.load %arg18[%c0_113, %c640_114] : memref<8x1280xbf16, #tpu.memory_space<vmem>>, vector<8x384xbf16>
    %c0_115 = arith.constant 0 : index
    %c0_116 = arith.constant 0 : index
    %122 = vector.load %arg8[%c0_115, %c0_116] : memref<384x128xbf16, #tpu.memory_space<vmem>>, vector<384x128xbf16>
    %cst_117 = arith.constant dense<0.000000e+00> : vector<8x128xf32>
    %123 = tpu.matmul %121, %122, %cst_117 {dimension_numbers = #tpu.dot_dimension_numbers<[1], [0], [0], [1], [0, 0, 1, 1], [], []>} : vector<8x384xbf16>, vector<384x128xbf16>, vector<8x128xf32> -> vector<8x128xf32>
    %c0_118 = arith.constant 0 : index
    %c0_119 = arith.constant 0 : index
    %124 = vector.load %arg9[%c0_118, %c0_119] : memref<1x128xf32, #tpu.memory_space<vmem>>, vector<1x128xf32>
    %125 = vector.broadcast %124 : vector<1x128xf32> to vector<8x128xf32>
    %126 = arith.addf %123, %125 : vector<8x128xf32>
    %127 = math.tanh %126 : vector<8x128xf32>
    %128 = arith.truncf %127 : vector<8x128xf32> to vector<8x128xbf16>
    %c0_120 = arith.constant 0 : index
    %c768 = arith.constant 768 : index
    %129 = vector.load %arg19[%c0_120, %c768] : memref<8x1280xbf16, #tpu.memory_space<vmem>>, vector<8x128xbf16>
    tpu.vector_store %arg19[%c0_120, %c768], %128 {strides = array<i32>} : memref<8x1280xbf16, #tpu.memory_space<vmem>>, vector<8x128xbf16>,
    %c0_121 = arith.constant 0 : index
    %c768_122 = arith.constant 768 : index
    %130 = vector.load %arg18[%c0_121, %c768_122] : memref<8x1280xbf16, #tpu.memory_space<vmem>>, vector<8x384xbf16>
    %c0_123 = arith.constant 0 : index
    %c0_124 = arith.constant 0 : index
    %131 = vector.load %arg8[%c0_123, %c0_124] : memref<384x128xbf16, #tpu.memory_space<vmem>>, vector<384x128xbf16>
    %cst_125 = arith.constant dense<0.000000e+00> : vector<8x128xf32>
    %132 = tpu.matmul %130, %131, %cst_125 {dimension_numbers = #tpu.dot_dimension_numbers<[1], [0], [0], [1], [0, 0, 1, 1], [], []>} : vector<8x384xbf16>, vector<384x128xbf16>, vector<8x128xf32> -> vector<8x128xf32>
    %c0_126 = arith.constant 0 : index
    %c0_127 = arith.constant 0 : index
    %133 = vector.load %arg9[%c0_126, %c0_127] : memref<1x128xf32, #tpu.memory_space<vmem>>, vector<1x128xf32>
    %134 = vector.broadcast %133 : vector<1x128xf32> to vector<8x128xf32>
    %135 = arith.addf %132, %134 : vector<8x128xf32>
    %136 = math.tanh %135 : vector<8x128xf32>
    %137 = arith.truncf %136 : vector<8x128xf32> to vector<8x128xbf16>
    %c0_128 = arith.constant 0 : index
    %c896_129 = arith.constant 896 : index
    %138 = vector.load %arg19[%c0_128, %c896_129] : memref<8x1280xbf16, #tpu.memory_space<vmem>>, vector<8x128xbf16>
    tpu.vector_store %arg19[%c0_128, %c896_129], %137 {strides = array<i32>} : memref<8x1280xbf16, #tpu.memory_space<vmem>>, vector<8x128xbf16>,
    %c0_130 = arith.constant 0 : index
    %c896_131 = arith.constant 896 : index
    %139 = vector.load %arg18[%c0_130, %c896_131] : memref<8x1280xbf16, #tpu.memory_space<vmem>>, vector<8x384xbf16>
    %c0_132 = arith.constant 0 : index
    %c0_133 = arith.constant 0 : index
    %140 = vector.load %arg8[%c0_132, %c0_133] : memref<384x128xbf16, #tpu.memory_space<vmem>>, vector<384x128xbf16>
    %cst_134 = arith.constant dense<0.000000e+00> : vector<8x128xf32>
    %141 = tpu.matmul %139, %140, %cst_134 {dimension_numbers = #tpu.dot_dimension_numbers<[1], [0], [0], [1], [0, 0, 1, 1], [], []>} : vector<8x384xbf16>, vector<384x128xbf16>, vector<8x128xf32> -> vector<8x128xf32>
    %c0_135 = arith.constant 0 : index
    %c0_136 = arith.constant 0 : index
    %142 = vector.load %arg9[%c0_135, %c0_136] : memref<1x128xf32, #tpu.memory_space<vmem>>, vector<1x128xf32>
    %143 = vector.broadcast %142 : vector<1x128xf32> to vector<8x128xf32>
    %144 = arith.addf %141, %143 : vector<8x128xf32>
    %145 = math.tanh %144 : vector<8x128xf32>
    %146 = arith.truncf %145 : vector<8x128xf32> to vector<8x128xbf16>
    %c0_137 = arith.constant 0 : index
    %c1024 = arith.constant 1024 : index
    %147 = vector.load %arg19[%c0_137, %c1024] : memref<8x1280xbf16, #tpu.memory_space<vmem>>, vector<8x128xbf16>
    tpu.vector_store %arg19[%c0_137, %c1024], %146 {strides = array<i32>} : memref<8x1280xbf16, #tpu.memory_space<vmem>>, vector<8x128xbf16>,
    %c0_138 = arith.constant 0 : index
    %c0_139 = arith.constant 0 : index
    %148 = vector.load %arg19[%c0_138, %c0_139] : memref<8x1280xbf16, #tpu.memory_space<vmem>>, vector<8x512xbf16>
    %c0_140 = arith.constant 0 : index
    %c0_141 = arith.constant 0 : index
    %149 = vector.load %arg10[%c0_140, %c0_141] : memref<512x256xbf16, #tpu.memory_space<vmem>>, vector<512x256xbf16>
    %cst_142 = arith.constant dense<0.000000e+00> : vector<8x256xf32>
    %150 = tpu.matmul %148, %149, %cst_142 {dimension_numbers = #tpu.dot_dimension_numbers<[1], [0], [0], [1], [0, 0, 1, 1], [], []>} : vector<8x512xbf16>, vector<512x256xbf16>, vector<8x256xf32> -> vector<8x256xf32>
    %c0_143 = arith.constant 0 : index
    %c0_144 = arith.constant 0 : index
    %151 = vector.load %arg11[%c0_143, %c0_144] : memref<1x256xf32, #tpu.memory_space<vmem>>, vector<1x256xf32>
    %152 = vector.broadcast %151 : vector<1x256xf32> to vector<8x256xf32>
    %153 = arith.addf %150, %152 : vector<8x256xf32>
    %cst_145 = arith.constant 0.000000e+00 : f32
    %154 = vector.broadcast %cst_145 : f32 to vector<8x256xf32>
    %155 = arith.cmpf ogt, %153, %154 : vector<8x256xf32>
    %cst_146 = arith.constant 2.000000e-01 : f32
    %156 = vector.broadcast %cst_146 : f32 to vector<8x256xf32>
    %157 = arith.mulf %156, %153 : vector<8x256xf32>
    %158 = arith.select %155, %153, %157 : vector<8x256xi1>, vector<8x256xf32>
    %159 = arith.truncf %158 : vector<8x256xf32> to vector<8x256xbf16>
    %c0_147 = arith.constant 0 : index
    %c256_148 = arith.constant 256 : index
    %160 = vector.load %arg20[%c0_147, %c256_148] : memref<8x1408xbf16, #tpu.memory_space<vmem>>, vector<8x256xbf16>
    tpu.vector_store %arg20[%c0_147, %c256_148], %159 {strides = array<i32>} : memref<8x1408xbf16, #tpu.memory_space<vmem>>, vector<8x256xbf16>,
    %c0_149 = arith.constant 0 : index
    %c256_150 = arith.constant 256 : index
    %161 = vector.load %arg19[%c0_149, %c256_150] : memref<8x1280xbf16, #tpu.memory_space<vmem>>, vector<8x512xbf16>
    %c0_151 = arith.constant 0 : index
    %c0_152 = arith.constant 0 : index
    %162 = vector.load %arg10[%c0_151, %c0_152] : memref<512x256xbf16, #tpu.memory_space<vmem>>, vector<512x256xbf16>
    %cst_153 = arith.constant dense<0.000000e+00> : vector<8x256xf32>
    %163 = tpu.matmul %161, %162, %cst_153 {dimension_numbers = #tpu.dot_dimension_numbers<[1], [0], [0], [1], [0, 0, 1, 1], [], []>} : vector<8x512xbf16>, vector<512x256xbf16>, vector<8x256xf32> -> vector<8x256xf32>
    %c0_154 = arith.constant 0 : index
    %c0_155 = arith.constant 0 : index
    %164 = vector.load %arg11[%c0_154, %c0_155] : memref<1x256xf32, #tpu.memory_space<vmem>>, vector<1x256xf32>
    %165 = vector.broadcast %164 : vector<1x256xf32> to vector<8x256xf32>
    %166 = arith.addf %163, %165 : vector<8x256xf32>
    %cst_156 = arith.constant 0.000000e+00 : f32
    %167 = vector.broadcast %cst_156 : f32 to vector<8x256xf32>
    %168 = arith.cmpf ogt, %166, %167 : vector<8x256xf32>
    %cst_157 = arith.constant 2.000000e-01 : f32
    %169 = vector.broadcast %cst_157 : f32 to vector<8x256xf32>
    %170 = arith.mulf %169, %166 : vector<8x256xf32>
    %171 = arith.select %168, %166, %170 : vector<8x256xi1>, vector<8x256xf32>
    %172 = arith.truncf %171 : vector<8x256xf32> to vector<8x256xbf16>
    %c0_158 = arith.constant 0 : index
    %c512_159 = arith.constant 512 : index
    %173 = vector.load %arg20[%c0_158, %c512_159] : memref<8x1408xbf16, #tpu.memory_space<vmem>>, vector<8x256xbf16>
    tpu.vector_store %arg20[%c0_158, %c512_159], %172 {strides = array<i32>} : memref<8x1408xbf16, #tpu.memory_space<vmem>>, vector<8x256xbf16>,
    %c0_160 = arith.constant 0 : index
    %c512_161 = arith.constant 512 : index
    %174 = vector.load %arg19[%c0_160, %c512_161] : memref<8x1280xbf16, #tpu.memory_space<vmem>>, vector<8x512xbf16>
    %c0_162 = arith.constant 0 : index
    %c0_163 = arith.constant 0 : index
    %175 = vector.load %arg10[%c0_162, %c0_163] : memref<512x256xbf16, #tpu.memory_space<vmem>>, vector<512x256xbf16>
    %cst_164 = arith.constant dense<0.000000e+00> : vector<8x256xf32>
    %176 = tpu.matmul %174, %175, %cst_164 {dimension_numbers = #tpu.dot_dimension_numbers<[1], [0], [0], [1], [0, 0, 1, 1], [], []>} : vector<8x512xbf16>, vector<512x256xbf16>, vector<8x256xf32> -> vector<8x256xf32>
    %c0_165 = arith.constant 0 : index
    %c0_166 = arith.constant 0 : index
    %177 = vector.load %arg11[%c0_165, %c0_166] : memref<1x256xf32, #tpu.memory_space<vmem>>, vector<1x256xf32>
    %178 = vector.broadcast %177 : vector<1x256xf32> to vector<8x256xf32>
    %179 = arith.addf %176, %178 : vector<8x256xf32>
    %cst_167 = arith.constant 0.000000e+00 : f32
    %180 = vector.broadcast %cst_167 : f32 to vector<8x256xf32>
    %181 = arith.cmpf ogt, %179, %180 : vector<8x256xf32>
    %cst_168 = arith.constant 2.000000e-01 : f32
    %182 = vector.broadcast %cst_168 : f32 to vector<8x256xf32>
    %183 = arith.mulf %182, %179 : vector<8x256xf32>
    %184 = arith.select %181, %179, %183 : vector<8x256xi1>, vector<8x256xf32>
    %185 = arith.truncf %184 : vector<8x256xf32> to vector<8x256xbf16>
    %c0_169 = arith.constant 0 : index
    %c768_170 = arith.constant 768 : index
    %186 = vector.load %arg20[%c0_169, %c768_170] : memref<8x1408xbf16, #tpu.memory_space<vmem>>, vector<8x256xbf16>
    tpu.vector_store %arg20[%c0_169, %c768_170], %185 {strides = array<i32>} : memref<8x1408xbf16, #tpu.memory_space<vmem>>, vector<8x256xbf16>,
    %c0_171 = arith.constant 0 : index
    %c768_172 = arith.constant 768 : index
    %187 = vector.load %arg19[%c0_171, %c768_172] : memref<8x1280xbf16, #tpu.memory_space<vmem>>, vector<8x512xbf16>
    %c0_173 = arith.constant 0 : index
    %c0_174 = arith.constant 0 : index
    %188 = vector.load %arg10[%c0_173, %c0_174] : memref<512x256xbf16, #tpu.memory_space<vmem>>, vector<512x256xbf16>
    %cst_175 = arith.constant dense<0.000000e+00> : vector<8x256xf32>
    %189 = tpu.matmul %187, %188, %cst_175 {dimension_numbers = #tpu.dot_dimension_numbers<[1], [0], [0], [1], [0, 0, 1, 1], [], []>} : vector<8x512xbf16>, vector<512x256xbf16>, vector<8x256xf32> -> vector<8x256xf32>
    %c0_176 = arith.constant 0 : index
    %c0_177 = arith.constant 0 : index
    %190 = vector.load %arg11[%c0_176, %c0_177] : memref<1x256xf32, #tpu.memory_space<vmem>>, vector<1x256xf32>
    %191 = vector.broadcast %190 : vector<1x256xf32> to vector<8x256xf32>
    %192 = arith.addf %189, %191 : vector<8x256xf32>
    %cst_178 = arith.constant 0.000000e+00 : f32
    %193 = vector.broadcast %cst_178 : f32 to vector<8x256xf32>
    %194 = arith.cmpf ogt, %192, %193 : vector<8x256xf32>
    %cst_179 = arith.constant 2.000000e-01 : f32
    %195 = vector.broadcast %cst_179 : f32 to vector<8x256xf32>
    %196 = arith.mulf %195, %192 : vector<8x256xf32>
    %197 = arith.select %194, %192, %196 : vector<8x256xi1>, vector<8x256xf32>
    %198 = arith.truncf %197 : vector<8x256xf32> to vector<8x256xbf16>
    %c0_180 = arith.constant 0 : index
    %c1024_181 = arith.constant 1024 : index
    %199 = vector.load %arg20[%c0_180, %c1024_181] : memref<8x1408xbf16, #tpu.memory_space<vmem>>, vector<8x256xbf16>
    tpu.vector_store %arg20[%c0_180, %c1024_181], %198 {strides = array<i32>} : memref<8x1408xbf16, #tpu.memory_space<vmem>>, vector<8x256xbf16>,
    %cst_182 = arith.constant 0.000000e+00 : f32
    %200 = vector.broadcast %cst_182 : f32 to vector<8x256xf32>
    %c0_183 = arith.constant 0 : index
    %c0_184 = arith.constant 0 : index
    %201 = vector.load %arg20[%c0_183, %c0_184] : memref<8x1408xbf16, #tpu.memory_space<vmem>>, vector<8x896xbf16>
    %c0_185 = arith.constant 0 : index
    %c0_186 = arith.constant 0 : index
    %202 = vector.load %arg12[%c0_185, %c0_186] : memref<896x256xbf16, #tpu.memory_space<vmem>>, vector<896x256xbf16>
    %cst_187 = arith.constant dense<0.000000e+00> : vector<8x256xf32>
    %203 = tpu.matmul %201, %202, %cst_187 {dimension_numbers = #tpu.dot_dimension_numbers<[1], [0], [0], [1], [0, 0, 1, 1], [], []>} : vector<8x896xbf16>, vector<896x256xbf16>, vector<8x256xf32> -> vector<8x256xf32>
    %c0_188 = arith.constant 0 : index
    %c0_189 = arith.constant 0 : index
    %204 = vector.load %arg13[%c0_188, %c0_189] : memref<1x256xf32, #tpu.memory_space<vmem>>, vector<1x256xf32>
    %205 = vector.broadcast %204 : vector<1x256xf32> to vector<8x256xf32>
    %206 = arith.addf %203, %205 : vector<8x256xf32>
    %cst_190 = arith.constant 0.000000e+00 : f32
    %207 = vector.broadcast %cst_190 : f32 to vector<8x256xf32>
    %208 = arith.cmpf ogt, %206, %207 : vector<8x256xf32>
    %cst_191 = arith.constant 2.000000e-01 : f32
    %209 = vector.broadcast %cst_191 : f32 to vector<8x256xf32>
    %210 = arith.mulf %209, %206 : vector<8x256xf32>
    %211 = arith.select %208, %206, %210 : vector<8x256xi1>, vector<8x256xf32>
    %c0_192 = arith.constant 0 : index
    %c0_193 = arith.constant 0 : index
    %212 = vector.load %arg14[%c0_192, %c0_193] : memref<1x512xf32, #tpu.memory_space<vmem>>, vector<1x256xf32>
    %213 = vector.broadcast %212 : vector<1x256xf32> to vector<8x256xf32>
    %214 = arith.mulf %211, %213 : vector<8x256xf32>
    %215 = arith.addf %200, %214 : vector<8x256xf32>
    %c0_194 = arith.constant 0 : index
    %c512_195 = arith.constant 512 : index
    %216 = vector.load %arg20[%c0_194, %c512_195] : memref<8x1408xbf16, #tpu.memory_space<vmem>>, vector<8x896xbf16>
    %c0_196 = arith.constant 0 : index
    %c0_197 = arith.constant 0 : index
    %217 = vector.load %arg12[%c0_196, %c0_197] : memref<896x256xbf16, #tpu.memory_space<vmem>>, vector<896x256xbf16>
    %cst_198 = arith.constant dense<0.000000e+00> : vector<8x256xf32>
    %218 = tpu.matmul %216, %217, %cst_198 {dimension_numbers = #tpu.dot_dimension_numbers<[1], [0], [0], [1], [0, 0, 1, 1], [], []>} : vector<8x896xbf16>, vector<896x256xbf16>, vector<8x256xf32> -> vector<8x256xf32>
    %c0_199 = arith.constant 0 : index
    %c0_200 = arith.constant 0 : index
    %219 = vector.load %arg13[%c0_199, %c0_200] : memref<1x256xf32, #tpu.memory_space<vmem>>, vector<1x256xf32>
    %220 = vector.broadcast %219 : vector<1x256xf32> to vector<8x256xf32>
    %221 = arith.addf %218, %220 : vector<8x256xf32>
    %cst_201 = arith.constant 0.000000e+00 : f32
    %222 = vector.broadcast %cst_201 : f32 to vector<8x256xf32>
    %223 = arith.cmpf ogt, %221, %222 : vector<8x256xf32>
    %cst_202 = arith.constant 2.000000e-01 : f32
    %224 = vector.broadcast %cst_202 : f32 to vector<8x256xf32>
    %225 = arith.mulf %224, %221 : vector<8x256xf32>
    %226 = arith.select %223, %221, %225 : vector<8x256xi1>, vector<8x256xf32>
    %c0_203 = arith.constant 0 : index
    %c256_204 = arith.constant 256 : index
    %227 = vector.load %arg14[%c0_203, %c256_204] : memref<1x512xf32, #tpu.memory_space<vmem>>, vector<1x256xf32>
    %228 = vector.broadcast %227 : vector<1x256xf32> to vector<8x256xf32>
    %229 = arith.mulf %226, %228 : vector<8x256xf32>
    %230 = arith.addf %215, %229 : vector<8x256xf32>
    %cst_205 = arith.constant dense<0.000000e+00> : vector<8xf32>
    %231 = vector.multi_reduction <add>, %230, %cst_205 [1] : vector<8x256xf32> to vector<8xf32>
    %232 = vector.shape_cast %231 : vector<8xf32> to vector<8x1xf32>
    %c0_206 = arith.constant 0 : index
    %c0_207 = arith.constant 0 : index
    %233 = vector.load %arg15[%c0_206, %c0_207] : memref<1x1xf32, #tpu.memory_space<vmem>>, vector<1x1xf32>
    %234 = vector.broadcast %233 : vector<1x1xf32> to vector<8x1xf32>
    %235 = arith.addf %232, %234 : vector<8x1xf32>
    %cst_208 = arith.constant 0.000000e+00 : f32
    %236 = vector.broadcast %cst_208 : f32 to vector<8x1xf32>
    %237 = arith.subf %236, %235 : vector<8x1xf32>
    %238 = math.exp %237 : vector<8x1xf32>
    %cst_209 = arith.constant 1.000000e+00 : f32
    %239 = vector.broadcast %cst_209 : f32 to vector<8x1xf32>
    %240 = arith.addf %239, %238 : vector<8x1xf32>
    %cst_210 = arith.constant 1.000000e+00 : f32
    %241 = vector.broadcast %cst_210 : f32 to vector<8x1xf32>
    %242 = arith.divf %241, %240 : vector<8x1xf32>
    %c0_211 = arith.constant 0 : index
    %c0_212 = arith.constant 0 : index
    %243 = vector.load %arg16[%c0_211, %c0_212] : memref<8x1xf32, #tpu.memory_space<vmem>>, vector<8x1xf32>
    tpu.vector_store %arg16[%c0_211, %c0_212], %242 {strides = array<i32>} : memref<8x1xf32, #tpu.memory_space<vmem>>, vector<8x1xf32>,
    return
  }
  func.func @transform_0(%arg0: i32) -> (i32, i32) {
    %c0_i32 = arith.constant 0 : i32
    %c0_i32_0 = arith.constant 0 : i32
    return %arg0, %c0_i32 : i32, i32
  }
  func.func @transform_1(%arg0: i32) -> (i32, i32) {
    %c0_i32 = arith.constant 0 : i32
    %c0_i32_0 = arith.constant 0 : i32
    %c0_i32_1 = arith.constant 0 : i32
    return %c0_i32, %c0_i32_0 : i32, i32
  }
  func.func @transform_2(%arg0: i32) -> (i32, i32) {
    %c0_i32 = arith.constant 0 : i32
    %c0_i32_0 = arith.constant 0 : i32
    %c0_i32_1 = arith.constant 0 : i32
    return %c0_i32, %c0_i32_0 : i32, i32
  }
  func.func @transform_3(%arg0: i32) -> (i32, i32) {
    %c0_i32 = arith.constant 0 : i32
    %c0_i32_0 = arith.constant 0 : i32
    %c0_i32_1 = arith.constant 0 : i32
    return %c0_i32, %c0_i32_0 : i32, i32
  }
  func.func @transform_4(%arg0: i32) -> (i32, i32) {
    %c0_i32 = arith.constant 0 : i32
    %c0_i32_0 = arith.constant 0 : i32
    %c0_i32_1 = arith.constant 0 : i32
    return %c0_i32, %c0_i32_0 : i32, i32
  }
  func.func @transform_5(%arg0: i32) -> (i32, i32) {
    %c0_i32 = arith.constant 0 : i32
    %c0_i32_0 = arith.constant 0 : i32
    %c0_i32_1 = arith.constant 0 : i32
    return %c0_i32, %c0_i32_0 : i32, i32
  }
  func.func @transform_6(%arg0: i32) -> (i32, i32) {
    %c0_i32 = arith.constant 0 : i32
    %c0_i32_0 = arith.constant 0 : i32
    %c0_i32_1 = arith.constant 0 : i32
    return %c0_i32, %c0_i32_0 : i32, i32
  }
  func.func @transform_7(%arg0: i32) -> (i32, i32) {
    %c0_i32 = arith.constant 0 : i32
    %c0_i32_0 = arith.constant 0 : i32
    %c0_i32_1 = arith.constant 0 : i32
    return %c0_i32, %c0_i32_0 : i32, i32
  }
  func.func @transform_8(%arg0: i32) -> (i32, i32) {
    %c0_i32 = arith.constant 0 : i32
    %c0_i32_0 = arith.constant 0 : i32
    %c0_i32_1 = arith.constant 0 : i32
    return %c0_i32, %c0_i32_0 : i32, i32
  }
  func.func @transform_9(%arg0: i32) -> (i32, i32) {
    %c0_i32 = arith.constant 0 : i32
    %c0_i32_0 = arith.constant 0 : i32
    %c0_i32_1 = arith.constant 0 : i32
    return %c0_i32, %c0_i32_0 : i32, i32
  }
  func.func @transform_10(%arg0: i32) -> (i32, i32) {
    %c0_i32 = arith.constant 0 : i32
    %c0_i32_0 = arith.constant 0 : i32
    %c0_i32_1 = arith.constant 0 : i32
    return %c0_i32, %c0_i32_0 : i32, i32
  }
  func.func @transform_11(%arg0: i32) -> (i32, i32) {
    %c0_i32 = arith.constant 0 : i32
    %c0_i32_0 = arith.constant 0 : i32
    %c0_i32_1 = arith.constant 0 : i32
    return %c0_i32, %c0_i32_0 : i32, i32
  }
  func.func @transform_12(%arg0: i32) -> (i32, i32) {
    %c0_i32 = arith.constant 0 : i32
    %c0_i32_0 = arith.constant 0 : i32
    %c0_i32_1 = arith.constant 0 : i32
    return %c0_i32, %c0_i32_0 : i32, i32
  }
  func.func @transform_13(%arg0: i32) -> (i32, i32) {
    %c0_i32 = arith.constant 0 : i32
    %c0_i32_0 = arith.constant 0 : i32
    %c0_i32_1 = arith.constant 0 : i32
    return %c0_i32, %c0_i32_0 : i32, i32
  }
  func.func @transform_14(%arg0: i32) -> (i32, i32) {
    %c0_i32 = arith.constant 0 : i32
    %c0_i32_0 = arith.constant 0 : i32
    %c0_i32_1 = arith.constant 0 : i32
    return %c0_i32, %c0_i32_0 : i32, i32
  }
  func.func @transform_15(%arg0: i32) -> (i32, i32) {
    %c0_i32 = arith.constant 0 : i32
    %c0_i32_0 = arith.constant 0 : i32
    return %arg0, %c0_i32 : i32, i32
  }
}

</mosaic_0001>

<llo_original>
// kernel: gan_forward.1
$region0: #{gan_forward.1}
  #allocation0 [shape = 'u32[]', space=smem, size = 0x4, offset = 0x4, fixed_abs, tag = 'smem constant byte address 0x4 - core index']
  #allocation1 [shape = 'u32[144,128]{1,0:T(1,128)}', space=vmem, size = 0x12000, scoped, tag = 'internal scratch']
  #allocation2 [shape = 'bf16[8,768]{1,0:T(8,128)(2,1)}', space=vmem, size = 0x3000, scoped, tag = 'scratch operand']
  #allocation3 [shape = 'bf16[8,1280]{1,0:T(8,128)(2,1)}', space=vmem, size = 0x5000, scoped, tag = 'scratch operand']
  #allocation4 [shape = 'bf16[8,1280]{1,0:T(8,128)(2,1)}', space=vmem, size = 0x5000, scoped, tag = 'scratch operand']
  #allocation5 [shape = 'bf16[8,1408]{1,0:T(8,128)(2,1)}', space=vmem, size = 0x5800, scoped, tag = 'scratch operand']
  #allocation6 [shape = 'f32[1,1]{1,0:T(1,128)S(1)}', space=vmem, size = 0x200, scoped, tag = 'scoped memory for gan_forward.1']
  %s0 = inlined_call_operand.vmem [shape: f32[8,42], index: 0, kind: input, shape index: {}]
  %s1 = inlined_call_operand.hbm [shape: bf16[42,512], index: 1, kind: input, shape index: {}]
  %s2 = inlined_call_operand.vmem [shape: f32[1,512], index: 2, kind: input, shape index: {}]
  %s3 = inlined_call_operand.vmem [shape: f32[1,512], index: 3, kind: input, shape index: {}]
  %s4 = inlined_call_operand.hbm [shape: bf16[384,256], index: 4, kind: input, shape index: {}]
  %s5 = inlined_call_operand.vmem [shape: f32[1,256], index: 5, kind: input, shape index: {}]
  %s6 = inlined_call_operand.vmem [shape: f32[1,256], index: 6, kind: input, shape index: {}]
  %s7 = inlined_call_operand.hbm [shape: bf16[384,128], index: 7, kind: input, shape index: {}]
  %s8 = inlined_call_operand.vmem [shape: f32[1,128], index: 8, kind: input, shape index: {}]
  %s9 = inlined_call_operand.hbm [shape: bf16[512,256], index: 9, kind: input, shape index: {}]
  %s10 = inlined_call_operand.vmem [shape: f32[1,256], index: 10, kind: input, shape index: {}]
  %s11 = inlined_call_operand.hbm [shape: bf16[896,256], index: 11, kind: input, shape index: {}]
  %s12 = inlined_call_operand.vmem [shape: f32[1,256], index: 12, kind: input, shape index: {}]
  %s13 = inlined_call_operand.vmem [shape: f32[1,512], index: 13, kind: input, shape index: {}]
  %s14 = inlined_call_operand.<no memory space> [shape: f32[1,1], index: 14, kind: input, shape index: {}]
  %s15 = inlined_call_operand.vmem [shape: f32[8,1], index: 15, kind: output, shape index: {}]
  %s16 = sld [smem:[#allocation0]]
  $region90: #{gan_forward.1} parent=0
    _
  %s18 = ssub.s32 1, %s16
  %s19 = scalar_select 0, %s18, %s16
  %v20 = vstv %s14
  %21 = vst [vmem:[#allocation6] sm:$0x1] %v20
  $region1: #{gan_forward.1} parent=0
    #allocation7 [shape = 'u8[49152]{0}', space=vmem, size = 0xc000, scoped, tag = 'input window, operand 1, single buffered']
    #allocation8 [shape = 's32[1]{0}', space=sflag, size = 0x4, scoped, tag = 'scoped memory for gan_forward.1']
    #allocation9 [shape = 'u8[196608]{0}', space=vmem, size = 0x30000, scoped, tag = 'input window, operand 4, single buffered']
    #allocation10 [shape = 's32[1]{0}', space=sflag, size = 0x4, scoped, tag = 'scoped memory for gan_forward.1']
    #allocation11 [shape = 'u8[98304]{0}', space=vmem, size = 0x18000, scoped, tag = 'input window, operand 7, single buffered']
    #allocation12 [shape = 'u8[262144]{0}', space=vmem, size = 0x40000, scoped, tag = 'input window, operand 9, single buffered']
    #allocation13 [shape = 's32[1]{0}', space=sflag, size = 0x4, scoped, tag = 'scoped memory for gan_forward.1']
    #allocation14 [shape = 'u8[458752]{0}', space=vmem, size = 0x70000, scoped, tag = 'input window, operand 11, single buffered']
    %22 = vsyncpa [#allocation8], 0
    %23 = vsyncpa [#allocation10], 0
    %24 = vsyncpa [#allocation13], 0
    // Predicated region
    $region2: #{gan_forward.1} parent=1 // pred_check
      _
    $region3: #{gan_forward.1} parent=1 // pred_check_branch
      %26 = sbr.rel (0) target = $region5
    $region4: #{gan_forward.1} parent=1 // pred_region
      _
    $region5: #{gan_forward.1} parent=1 // pred_fallthru
      _
    // Predicated region
    $region6: #{gan_forward.1} parent=1 // pred_check
      _
    $region7: #{gan_forward.1} parent=1 // pred_check_branch
      %28 = sbr.rel (0) target = $region9
    $region8: #{gan_forward.1} parent=1 // pred_region
      %s30 = ssub.s32 1536, 1536
      %31 = vsyncadd [#allocation8], %s30
      %s32 = sshll.u32 [#allocation7], 4
      %s33 = int_to_ptr.vmem [resolvable:$true] %s32
      %38 = dma.hbm_to_vmem [thread:$0]  %s1, 1536, %s33, [#allocation8], 256, 256, 16
    $region9: #{gan_forward.1} parent=1 // pred_fallthru
      _
    // Predicated region
    $region10: #{gan_forward.1} parent=1 // pred_check
      _
    $region11: #{gan_forward.1} parent=1 // pred_check_branch
      %40 = sbr.rel (0) target = $region13
    $region12: #{gan_forward.1} parent=1 // pred_region
      _
    $region13: #{gan_forward.1} parent=1 // pred_fallthru
      _
    // Predicated region
    $region14: #{gan_forward.1} parent=1 // pred_check
      _
    $region15: #{gan_forward.1} parent=1 // pred_check_branch
      %42 = sbr.rel (0) target = $region17
    $region16: #{gan_forward.1} parent=1 // pred_region
      _
    $region17: #{gan_forward.1} parent=1 // pred_fallthru
      _
    // Predicated region
    $region18: #{gan_forward.1} parent=1 // pred_check
      _
    $region19: #{gan_forward.1} parent=1 // pred_check_branch
      %44 = sbr.rel (0) target = $region21
    $region20: #{gan_forward.1} parent=1 // pred_region
      %s46 = ssub.s32 6144, 6144
      %47 = vsyncadd [#allocation10], %s46
      %s48 = sshll.u32 [#allocation9], 4
      %s49 = int_to_ptr.vmem [resolvable:$true] %s48
      %54 = dma.hbm_to_vmem [thread:$0]  %s4, 6144, %s49, [#allocation10], 128, 128, 8
    $region21: #{gan_forward.1} parent=1 // pred_fallthru
      _
    // Predicated region
    $region22: #{gan_forward.1} parent=1 // pred_check
      _
    $region23: #{gan_forward.1} parent=1 // pred_check_branch
      %56 = sbr.rel (0) target = $region25
    $region24: #{gan_forward.1} parent=1 // pred_region
      _
    $region25: #{gan_forward.1} parent=1 // pred_fallthru
      _
    // Predicated region
    $region26: #{gan_forward.1} parent=1 // pred_check
      _
    $region27: #{gan_forward.1} parent=1 // pred_check_branch
      %58 = sbr.rel (0) target = $region29
    $region28: #{gan_forward.1} parent=1 // pred_region
      _
    $region29: #{gan_forward.1} parent=1 // pred_fallthru
      _
    // Predicated region
    $region30: #{gan_forward.1} parent=1 // pred_check
      _
    $region31: #{gan_forward.1} parent=1 // pred_check_branch
      %60 = sbr.rel (0) target = $region33
    $region32: #{gan_forward.1} parent=1 // pred_region
      %s62 = ssub.s32 3072, 3072
      %63 = vsyncadd [#allocation10], %s62
      %s64 = sshll.u32 [#allocation11], 4
      %s65 = int_to_ptr.vmem [resolvable:$true] %s64
      %70 = dma.hbm_to_vmem [thread:$0]  %s7, 3072, %s65, [#allocation10], 64, 64, 4
    $region33: #{gan_forward.1} parent=1 // pred_fallthru
      _
    // Predicated region
    $region34: #{gan_forward.1} parent=1 // pred_check
      _
    $region35: #{gan_forward.1} parent=1 // pred_check_branch
      %72 = sbr.rel (0) target = $region37
    $region36: #{gan_forward.1} parent=1 // pred_region
      _
    $region37: #{gan_forward.1} parent=1 // pred_fallthru
      _
    // Predicated region
    $region38: #{gan_forward.1} parent=1 // pred_check
      _
    $region39: #{gan_forward.1} parent=1 // pred_check_branch
      %74 = sbr.rel (0) target = $region41
    $region40: #{gan_forward.1} parent=1 // pred_region
      %s76 = ssub.s32 8192, 8192
      %77 = vsyncadd [#allocation13], %s76
      %s78 = sshll.u32 [#allocation12], 4
      %s79 = int_to_ptr.vmem [resolvable:$true] %s78
      %84 = dma.hbm_to_vmem [thread:$0]  %s9, 8192, %s79, [#allocation13], 128, 128, 8
    $region41: #{gan_forward.1} parent=1 // pred_fallthru
      _
    // Predicated region
    $region42: #{gan_forward.1} parent=1 // pred_check
      _
    $region43: #{gan_forward.1} parent=1 // pred_check_branch
      %86 = sbr.rel (0) target = $region45
    $region44: #{gan_forward.1} parent=1 // pred_region
      _
    $region45: #{gan_forward.1} parent=1 // pred_fallthru
      _
    // Predicated region
    $region46: #{gan_forward.1} parent=1 // pred_check
      _
    $region47: #{gan_forward.1} parent=1 // pred_check_branch
      %88 = sbr.rel (0) target = $region49
    $region48: #{gan_forward.1} parent=1 // pred_region
      %s90 = ssub.s32 14336, 14336
      %91 = vsyncadd [#allocation13], %s90
      %s92 = sshll.u32 [#allocation14], 4
      %s93 = int_to_ptr.vmem [resolvable:$true] %s92
      %98 = dma.hbm_to_vmem [thread:$0]  %s11, 14336, %s93, [#allocation13], 128, 128, 8
    $region49: #{gan_forward.1} parent=1 // pred_fallthru
      _
    // Predicated region
    $region50: #{gan_forward.1} parent=1 // pred_check
      _
    $region51: #{gan_forward.1} parent=1 // pred_check_branch
      %100 = sbr.rel (0) target = $region53
    $region52: #{gan_forward.1} parent=1 // pred_region
      _
    $region53: #{gan_forward.1} parent=1 // pred_fallthru
      _
    // Predicated region
    $region54: #{gan_forward.1} parent=1 // pred_check
      _
    $region55: #{gan_forward.1} parent=1 // pred_check_branch
      %102 = sbr.rel (0) target = $region57
    $region56: #{gan_forward.1} parent=1 // pred_region
      _
    $region57: #{gan_forward.1} parent=1 // pred_fallthru
      _
    // Predicated region
    $region58: #{gan_forward.1} parent=1 // pred_check
      _
    $region59: #{gan_forward.1} parent=1 // pred_check_branch
      %104 = sbr.rel (0) target = $region61
    $region60: #{gan_forward.1} parent=1 // pred_region
      _
    $region61: #{gan_forward.1} parent=1 // pred_fallthru
      _
    // Predicated region
    $region62: #{gan_forward.1} parent=1 // pred_check
      _
    $region63: #{gan_forward.1} parent=1 // pred_check_branch
      %106 = sbr.rel (0) target = $region65
    $region64: #{gan_forward.1} parent=1 // pred_region
      %107 = dma.done [#allocation8], 1536
    $region65: #{gan_forward.1} parent=1 // pred_fallthru
      _
    // Predicated region
    $region66: #{gan_forward.1} parent=1 // pred_check
      _
    $region67: #{gan_forward.1} parent=1 // pred_check_branch
      %109 = sbr.rel (0) target = $region69
    $region68: #{gan_forward.1} parent=1 // pred_region
      %110 = dma.done [#allocation10], 6144
    $region69: #{gan_forward.1} parent=1 // pred_fallthru
      _
    // Predicated region
    $region70: #{gan_forward.1} parent=1 // pred_check
      _
    $region71: #{gan_forward.1} parent=1 // pred_check_branch
      %112 = sbr.rel (0) target = $region73
    $region72: #{gan_forward.1} parent=1 // pred_region
      %113 = dma.done [#allocation10], 3072
    $region73: #{gan_forward.1} parent=1 // pred_fallthru
      _
    // Predicated region
    $region74: #{gan_forward.1} parent=1 // pred_check
      _
    $region75: #{gan_forward.1} parent=1 // pred_check_branch
      %115 = sbr.rel (0) target = $region77
    $region76: #{gan_forward.1} parent=1 // pred_region
      %116 = dma.done [#allocation13], 8192
    $region77: #{gan_forward.1} parent=1 // pred_fallthru
      _
    // Predicated region
    $region78: #{gan_forward.1} parent=1 // pred_check
      _
    $region79: #{gan_forward.1} parent=1 // pred_check_branch
      %118 = sbr.rel (0) target = $region81
    $region80: #{gan_forward.1} parent=1 // pred_region
      %119 = dma.done [#allocation13], 14336
    $region81: #{gan_forward.1} parent=1 // pred_fallthru
      _
    %121 = vst [vmem:[#allocation2] sm:$0xf] 0
    %122 = vst [vmem:[#allocation2 + $0x14] sm:$0xf] 0
    %123 = vst [vmem:[#allocation3] sm:$0xf] 0
    %124 = vst [vmem:[#allocation3 + $0x24] sm:$0xf] 0
    %125 = vst [vmem:[#allocation4] sm:$0xf] 0
    %126 = vst [vmem:[#allocation4 + $0x24] sm:$0xf] 0
    %127 = vst [vmem:[#allocation5] sm:$0xff] 0
    %128 = vst [vmem:[#allocation5 + $0x28] sm:$0xf] 0
    %v129 = vld [vmem:[%s0] sm:$0xff]
    %v130 = vpack.c.bf16 %v129, %v129
    %v131 = vld [vmem:[#allocation7] sm:$0xff]
    %v132 = vld [vmem:[#allocation7 + $0x8] sm:$0xff]
    %v133 = vld [vmem:[#allocation7 + $0x10] sm:$0xff]
    %v134 = vld [vmem:[#allocation7 + $0x18] sm:$0xff]
    %v135 = vld [vmem:[#allocation7 + $0x20] sm:$0xff]
    %v136 = vld [vmem:[#allocation7 + $0x28] sm:$0xff]
    %v137 = vld [vmem:[#allocation7 + $0x30] sm:$0xff]
    %v138 = vld [vmem:[#allocation7 + $0x38] sm:$0xff]
    %v139 = vld [vmem:[#allocation7 + $0x40] sm:$0xff]
    %v140 = vld [vmem:[#allocation7 + $0x48] sm:$0xff]
    %v141 = vld [vmem:[#allocation7 + $0x50] sm:$0x11]
    %v142 = vld [vmem:[#allocation7 + $0x58] sm:$0x11]
    %v155 = vunpack.c.l.b16 %v131
    %v156 = vunpack.c.h.b16 %v131
    %v157 = vunpack.c.l.b16 %v132
    %v158 = vunpack.c.h.b16 %v132
    %v159 = vunpack.c.l.b16 %v133
    %v160 = vunpack.c.h.b16 %v133
    %v161 = vunpack.c.l.b16 %v134
    %v162 = vunpack.c.h.b16 %v134
    %v163 = vunpack.c.l.b16 %v135
    %v164 = vunpack.c.h.b16 %v135
    %v165 = vunpack.c.l.b16 %v136
    %v166 = vunpack.c.h.b16 %v136
    %v167 = vunpack.c.l.b16 %v137
    %v168 = vunpack.c.h.b16 %v137
    %v169 = vunpack.c.l.b16 %v138
    %v170 = vunpack.c.h.b16 %v138
    %v171 = vunpack.c.l.b16 %v139
    %v172 = vunpack.c.h.b16 %v139
    %v173 = vunpack.c.l.b16 %v140
    %v174 = vunpack.c.h.b16 %v140
    %v175 = vunpack.c.l.b16 %v141
    %v176 = vunpack.c.h.b16 %v141
    %v177 = vunpack.c.l.b16 %v142
    %v178 = vunpack.c.h.b16 %v142
    %v179 = vpack.c.b16 %v159, %v155
    %v180 = vpack.c.b16 %v160, %v156
    %v181 = vpack.c.b16 %v161, %v157
    %v182 = vpack.c.b16 %v162, %v158
    %v183 = vpack.c.b16 %v167, %v163
    %v184 = vpack.c.b16 %v168, %v164
    %v185 = vpack.c.b16 %v169, %v165
    %v186 = vpack.c.b16 %v170, %v166
    %v187 = vpack.c.b16 %v175, %v171
    %v188 = vpack.c.b16 %v176, %v172
    %v189 = vpack.c.b16 %v177, %v173
    %v190 = vpack.c.b16 %v178, %v174
    %vm199 = vcmask 343040
    %v201 = vsel %vm199, %v130, 0
    %vm203 = vcmask 1044480
    %v205 = vsel %vm203, %v187, 0
    %v208 = vsel %vm203, %v188, 0
    %v211 = vsel %vm203, %v189, 0
    %v214 = vsel %vm203, %v190, 0
    %216 = vmatprep.subr.bf16.mxu0 %v180
    %217 = vmatpush1.bf16.msra.mxu0 %v179
    %218 = vmatprep.subr.bf16.mxu0 %v184
    %219 = vmatpush1.bf16.msra.mxu0 %v183
    %220 = vmatprep.subr.bf16.mxu0 %v208
    %221 = vmatpush1.bf16.msra.mxu0 %v205
    %222 = vmatprep.subr.bf16.mxu0 0
    %223 = vmatpush1.bf16.msra.mxu0 0
    %224 = vmatprep.subr.bf16.mxu0 0
    %225 = vmatpush1.bf16.msra.mxu0 0
    %226 = vmatprep.subr.bf16.mxu0 0
    %227 = vmatpush1.bf16.msra.mxu0 0
    %228 = vmatprep.subr.bf16.mxu0 0
    %229 = vmatpush1.bf16.msra.mxu0 0
    %230 = vmatprep.subr.bf16.mxu0 0
    %231 = vmatpush1.bf16.msra.mxu0 0
    %232 = vmatprep.subr.bf16.mxu0 0
    %233 = vmatpush1.bf16.msra.mxu0 0
    %234 = vmatprep.subr.bf16.mxu0 0
    %235 = vmatpush1.bf16.msra.mxu0 0
    %236 = vmatprep.subr.bf16.mxu0 0
    %237 = vmatpush1.bf16.msra.mxu0 0
    %238 = vmatprep.subr.bf16.mxu0 0
    %239 = vmatpush1.bf16.msra.mxu0 0
    %240 = vmatprep.subr.bf16.mxu0 0
    %241 = vmatpush1.bf16.msra.mxu0 0
    %242 = vmatprep.subr.bf16.mxu0 0
    %243 = vmatpush1.bf16.msra.mxu0 0
    %244 = vmatprep.subr.bf16.mxu0 0
    %245 = vmatpush1.bf16.msra.mxu0 0
    %246 = vmatprep.subr.bf16.mxu0 0
    %247 = vmatpush1.bf16.msra.mxu0 0
    %248 = vmatprep.mubr.bf16.mxu0 0
    %249 = vmatmul.mubr.bf16.gmra.mrb[0].mxu0 %v201
    %v250 = vpop.f32.mrb[0].mxu0
    %v251 = vadd.f32 0.0, %v250
    %v252 = vpop.f32.mrb[0].mxu0
    %v253 = vadd.f32 0.0, %v252
    %v254 = vpop.f32.mrb[0].mxu0
    %v255 = vpop.f32.mrb[0].mxu0
    %256 = vdwg.mxu0
    %257 = vmatprep.subr.bf16.mxu0 %v182
    %258 = vmatpush1.bf16.msra.mxu0 %v181
    %259 = vmatprep.subr.bf16.mxu0 %v186
    %260 = vmatpush1.bf16.msra.mxu0 %v185
    %261 = vmatprep.subr.bf16.mxu0 %v214
    %262 = vmatpush1.bf16.msra.mxu0 %v211
    %263 = vmatprep.subr.bf16.mxu0 0
    %264 = vmatpush1.bf16.msra.mxu0 0
    %265 = vmatprep.subr.bf16.mxu0 0
    %266 = vmatpush1.bf16.msra.mxu0 0
    %267 = vmatprep.subr.bf16.mxu0 0
    %268 = vmatpush1.bf16.msra.mxu0 0
    %269 = vmatprep.subr.bf16.mxu0 0
    %270 = vmatpush1.bf16.msra.mxu0 0
    %271 = vmatprep.subr.bf16.mxu0 0
    %272 = vmatpush1.bf16.msra.mxu0 0
    %273 = vmatprep.subr.bf16.mxu0 0
    %274 = vmatpush1.bf16.msra.mxu0 0
    %275 = vmatprep.subr.bf16.mxu0 0
    %276 = vmatpush1.bf16.msra.mxu0 0
    %277 = vmatprep.subr.bf16.mxu0 0
    %278 = vmatpush1.bf16.msra.mxu0 0
    %279 = vmatprep.subr.bf16.mxu0 0
    %280 = vmatpush1.bf16.msra.mxu0 0
    %281 = vmatprep.subr.bf16.mxu0 0
    %282 = vmatpush1.bf16.msra.mxu0 0
    %283 = vmatprep.subr.bf16.mxu0 0
    %284 = vmatpush1.bf16.msra.mxu0 0
    %285 = vmatprep.subr.bf16.mxu0 0
    %286 = vmatpush1.bf16.msra.mxu0 0
    %287 = vmatprep.subr.bf16.mxu0 0
    %288 = vmatpush1.bf16.msra.mxu0 0
    %289 = vmatprep.mubr.bf16.mxu0 0
    %290 = vmatmul.mubr.bf16.gmra.mrb[0].mxu0 %v201
    %v291 = vpop.f32.mrb[0].mxu0
    %v292 = vadd.f32 0.0, %v291
    %v293 = vpop.f32.mrb[0].mxu0
    %v294 = vadd.f32 0.0, %v293
    %v295 = vpop.f32.mrb[0].mxu0
    %v296 = vpop.f32.mrb[0].mxu0
    %297 = vdwg.mxu0
    %v298 = vld [vmem:[%s2] sm:$0xf]
    %v300 = vlaneseq
    %v301 = vshrl.u32 %v300, 7
    %v302 = vsub.s32 0, %v301
    %v303 = vrot.slane %v298, %v302
    %v304 = vlaneseq
    %v305 = vshrl.u32 %v304, 7
    %v306 = vsub.s32 1, %v305
    %v307 = vrot.slane %v298, %v306
    %v308 = vlaneseq
    %v309 = vshrl.u32 %v308, 7
    %v310 = vsub.s32 2, %v309
    %v311 = vrot.slane %v298, %v310
    %v312 = vlaneseq
    %v313 = vshrl.u32 %v312, 7
    %v314 = vsub.s32 3, %v313
    %v315 = vrot.slane %v298, %v314
    %v320 = vmul.f32 %v251, %v303
    %v321 = vmul.f32 %v253, %v307
    %v322 = vmul.f32 %v292, %v311
    %v323 = vmul.f32 %v294, %v315
    %v324 = vld [vmem:[%s3] sm:$0xf]
    %v326 = vlaneseq
    %v327 = vshrl.u32 %v326, 7
    %v328 = vsub.s32 0, %v327
    %v329 = vrot.slane %v324, %v328
    %v330 = vlaneseq
    %v331 = vshrl.u32 %v330, 7
    %v332 = vsub.s32 1, %v331
    %v333 = vrot.slane %v324, %v332
    %v334 = vlaneseq
    %v335 = vshrl.u32 %v334, 7
    %v336 = vsub.s32 2, %v335
    %v337 = vrot.slane %v324, %v336
    %v338 = vlaneseq
    %v339 = vshrl.u32 %v338, 7
    %v340 = vsub.s32 3, %v339
    %v341 = vrot.slane %v324, %v340
    %v346 = vadd.f32 %v320, %v329
    %v347 = vadd.f32 %v321, %v333
    %v348 = vadd.f32 %v322, %v337
    %v349 = vadd.f32 %v323, %v341
    %v350 = vmax.f32 %v346, 0.0
    %v351 = vmax.f32 %v347, 0.0
    %v352 = vmax.f32 %v348, 0.0
    %v353 = vmax.f32 %v349, 0.0
    %v354 = vpack.c.bf16 %v350, %v350
    %v355 = vpack.c.bf16 %v351, %v351
    %v356 = vpack.c.bf16 %v352, %v352
    %v357 = vpack.c.bf16 %v353, %v353
    %v362 = vunpack.c.l.b16 %v354
    %v363 = vunpack.c.l.b16 %v355
    %v364 = vunpack.c.l.b16 %v356
    %v365 = vunpack.c.l.b16 %v357
    %v366 = vpack.c.b16 %v363, %v362
    %v367 = vpack.c.b16 %v365, %v364
    %370 = vst [vmem:[#allocation2 + $0x4] sm:$0xff] %v366
    %371 = vst [vmem:[#allocation2 + $0xc] sm:$0xff] %v367
    %v372 = vld [vmem:[#allocation2] sm:$0xff]
    %v373 = vld [vmem:[#allocation2 + $0x8] sm:$0xf]
    %v374 = vld [vmem:[#allocation9] sm:$0xff]
    %v375 = vld [vmem:[#allocation9 + $0x8] sm:$0xff]
    %v376 = vld [vmem:[#allocation9 + $0x10] sm:$0xff]
    %v377 = vld [vmem:[#allocation9 + $0x18] sm:$0xff]
    %v378 = vld [vmem:[#allocation9 + $0x20] sm:$0xff]
    %v379 = vld [vmem:[#allocation9 + $0x28] sm:$0xff]
    %v380 = vld [vmem:[#allocation9 + $0x30] sm:$0xff]
    %v381 = vld [vmem:[#allocation9 + $0x38] sm:$0xff]
    %v382 = vld [vmem:[#allocation9 + $0x40] sm:$0xff]
    %v383 = vld [vmem:[#allocation9 + $0x48] sm:$0xff]
    %v384 = vld [vmem:[#allocation9 + $0x50] sm:$0xff]
    %v385 = vld [vmem:[#allocation9 + $0x58] sm:$0xff]
    %v386 = vld [vmem:[#allocation9 + $0x60] sm:$0xff]
    %v387 = vld [vmem:[#allocation9 + $0x68] sm:$0xff]
    %v388 = vld [vmem:[#allocation9 + $0x70] sm:$0xff]
    %v389 = vld [vmem:[#allocation9 + $0x78] sm:$0xff]
    %v390 = vld [vmem:[#allocation9 + $0x80] sm:$0xff]
    %v391 = vld [vmem:[#allocation9 + $0x88] sm:$0xff]
    %v392 = vld [vmem:[#allocation9 + $0x90] sm:$0xff]
    %v393 = vld [vmem:[#allocation9 + $0x98] sm:$0xff]
    %v394 = vld [vmem:[#allocation9 + $0xa0] sm:$0xff]
    %v395 = vld [vmem:[#allocation9 + $0xa8] sm:$0xff]
    %v396 = vld [vmem:[#allocation9 + $0xb0] sm:$0xff]
    %v397 = vld [vmem:[#allocation9 + $0xb8] sm:$0xff]
    %v398 = vld [vmem:[#allocation9 + $0xc0] sm:$0xff]
    %v399 = vld [vmem:[#allocation9 + $0xc8] sm:$0xff]
    %v400 = vld [vmem:[#allocation9 + $0xd0] sm:$0xff]
    %v401 = vld [vmem:[#allocation9 + $0xd8] sm:$0xff]
    %v402 = vld [vmem:[#allocation9 + $0xe0] sm:$0xff]
    %v403 = vld [vmem:[#allocation9 + $0xe8] sm:$0xff]
    %v404 = vld [vmem:[#allocation9 + $0xf0] sm:$0xff]
    %v405 = vld [vmem:[#allocation9 + $0xf8] sm:$0xff]
    %v406 = vld [vmem:[#allocation9 + $0x100] sm:$0xff]
    %v407 = vld [vmem:[#allocation9 + $0x108] sm:$0xff]
    %v408 = vld [vmem:[#allocation9 + $0x110] sm:$0xff]
    %v409 = vld [vmem:[#allocation9 + $0x118] sm:$0xff]
    %v410 = vld [vmem:[#allocation9 + $0x120] sm:$0xff]
    %v411 = vld [vmem:[#allocation9 + $0x128] sm:$0xff]
    %v412 = vld [vmem:[#allocation9 + $0x130] sm:$0xff]
    %v413 = vld [vmem:[#allocation9 + $0x138] sm:$0xff]
    %v414 = vld [vmem:[#allocation9 + $0x140] sm:$0xff]
    %v415 = vld [vmem:[#allocation9 + $0x148] sm:$0xff]
    %v416 = vld [vmem:[#allocation9 + $0x150] sm:$0xff]
    %v417 = vld [vmem:[#allocation9 + $0x158] sm:$0xff]
    %v418 = vld [vmem:[#allocation9 + $0x160] sm:$0xff]
    %v419 = vld [vmem:[#allocation9 + $0x168] sm:$0xff]
    %v420 = vld [vmem:[#allocation9 + $0x170] sm:$0xff]
    %v421 = vld [vmem:[#allocation9 + $0x178] sm:$0xff]
    %v424 = vunpack.c.l.b16 %v372
    %v425 = vunpack.c.h.b16 %v372
    %v426 = vunpack.c.l.b16 %v373
    %v427 = vpack.c.b16 %v424, %v424
    %v428 = vpack.c.b16 %v425, %v425
    %v429 = vpack.c.b16 %v426, %v426
    %v481 = vunpack.c.l.b16 %v374
    %v482 = vunpack.c.h.b16 %v374
    %v483 = vunpack.c.l.b16 %v375
    %v484 = vunpack.c.h.b16 %v375
    %v485 = vunpack.c.l.b16 %v376
    %v486 = vunpack.c.h.b16 %v376
    %v487 = vunpack.c.l.b16 %v377
    %v488 = vunpack.c.h.b16 %v377
    %v489 = vunpack.c.l.b16 %v378
    %v490 = vunpack.c.h.b16 %v378
    %v491 = vunpack.c.l.b16 %v379
    %v492 = vunpack.c.h.b16 %v379
    %v493 = vunpack.c.l.b16 %v380
    %v494 = vunpack.c.h.b16 %v380
    %v495 = vunpack.c.l.b16 %v381
    %v496 = vunpack.c.h.b16 %v381
    %v497 = vunpack.c.l.b16 %v382
    %v498 = vunpack.c.h.b16 %v382
    %v499 = vunpack.c.l.b16 %v383
    %v500 = vunpack.c.h.b16 %v383
    %v501 = vunpack.c.l.b16 %v384
    %v502 = vunpack.c.h.b16 %v384
    %v503 = vunpack.c.l.b16 %v385
    %v504 = vunpack.c.h.b16 %v385
    %v505 = vunpack.c.l.b16 %v386
    %v506 = vunpack.c.h.b16 %v386
    %v507 = vunpack.c.l.b16 %v387
    %v508 = vunpack.c.h.b16 %v387
    %v509 = vunpack.c.l.b16 %v388
    %v510 = vunpack.c.h.b16 %v388
    %v511 = vunpack.c.l.b16 %v389
    %v512 = vunpack.c.h.b16 %v389
    %v513 = vunpack.c.l.b16 %v390
    %v514 = vunpack.c.h.b16 %v390
    %v515 = vunpack.c.l.b16 %v391
    %v516 = vunpack.c.h.b16 %v391
    %v517 = vunpack.c.l.b16 %v392
    %v518 = vunpack.c.h.b16 %v392
    %v519 = vunpack.c.l.b16 %v393
    %v520 = vunpack.c.h.b16 %v393
    %v521 = vunpack.c.l.b16 %v394
    %v522 = vunpack.c.h.b16 %v394
    %v523 = vunpack.c.l.b16 %v395
    %v524 = vunpack.c.h.b16 %v395
    %v525 = vunpack.c.l.b16 %v396
    %v526 = vunpack.c.h.b16 %v396
    %v527 = vunpack.c.l.b16 %v397
    %v528 = vunpack.c.h.b16 %v397
    %v529 = vunpack.c.l.b16 %v398
    %v530 = vunpack.c.h.b16 %v398
    %v531 = vunpack.c.l.b16 %v399
    %v532 = vunpack.c.h.b16 %v399
    %v533 = vunpack.c.l.b16 %v400
    %v534 = vunpack.c.h.b16 %v400
    %v535 = vunpack.c.l.b16 %v401
    %v536 = vunpack.c.h.b16 %v401
    %v537 = vunpack.c.l.b16 %v402
    %v538 = vunpack.c.h.b16 %v402
    %v539 = vunpack.c.l.b16 %v403
    %v540 = vunpack.c.h.b16 %v403
    %v541 = vunpack.c.l.b16 %v404
    %v542 = vunpack.c.h.b16 %v404
    %v543 = vunpack.c.l.b16 %v405
    %v544 = vunpack.c.h.b16 %v405
    %v545 = vunpack.c.l.b16 %v406
    %v546 = vunpack.c.h.b16 %v406
    %v547 = vunpack.c.l.b16 %v407
    %v548 = vunpack.c.h.b16 %v407
    %v549 = vunpack.c.l.b16 %v408
    %v550 = vunpack.c.h.b16 %v408
    %v551 = vunpack.c.l.b16 %v409
    %v552 = vunpack.c.h.b16 %v409
    %v553 = vunpack.c.l.b16 %v410
    %v554 = vunpack.c.h.b16 %v410
    %v555 = vunpack.c.l.b16 %v411
    %v556 = vunpack.c.h.b16 %v411
    %v557 = vunpack.c.l.b16 %v412
    %v558 = vunpack.c.h.b16 %v412
    %v559 = vunpack.c.l.b16 %v413
    %v560 = vunpack.c.h.b16 %v413
    %v561 = vunpack.c.l.b16 %v414
    %v562 = vunpack.c.h.b16 %v414
    %v563 = vunpack.c.l.b16 %v415
    %v564 = vunpack.c.h.b16 %v415
    %v565 = vunpack.c.l.b16 %v416
    %v566 = vunpack.c.h.b16 %v416
    %v567 = vunpack.c.l.b16 %v417
    %v568 = vunpack.c.h.b16 %v417
    %v569 = vunpack.c.l.b16 %v418
    %v570 = vunpack.c.h.b16 %v418
    %v571 = vunpack.c.l.b16 %v419
    %v572 = vunpack.c.h.b16 %v419
    %v573 = vunpack.c.l.b16 %v420
    %v574 = vunpack.c.h.b16 %v420
    %v575 = vunpack.c.l.b16 %v421
    %v576 = vunpack.c.h.b16 %v421
    %v577 = vpack.c.b16 %v483, %v481
    %v578 = vpack.c.b16 %v484, %v482
    %v579 = vpack.c.b16 %v487, %v485
    %v580 = vpack.c.b16 %v488, %v486
    %v581 = vpack.c.b16 %v491, %v489
    %v582 = vpack.c.b16 %v492, %v490
    %v583 = vpack.c.b16 %v495, %v493
    %v584 = vpack.c.b16 %v496, %v494
    %v585 = vpack.c.b16 %v499, %v497
    %v586 = vpack.c.b16 %v500, %v498
    %v587 = vpack.c.b16 %v503, %v501
    %v588 = vpack.c.b16 %v504, %v502
    %v589 = vpack.c.b16 %v507, %v505
    %v590 = vpack.c.b16 %v508, %v506
    %v591 = vpack.c.b16 %v511, %v509
    %v592 = vpack.c.b16 %v512, %v510
    %v593 = vpack.c.b16 %v515, %v513
    %v594 = vpack.c.b16 %v516, %v514
    %v595 = vpack.c.b16 %v519, %v517
    %v596 = vpack.c.b16 %v520, %v518
    %v597 = vpack.c.b16 %v523, %v521
    %v598 = vpack.c.b16 %v524, %v522
    %v599 = vpack.c.b16 %v527, %v525
    %v600 = vpack.c.b16 %v528, %v526
    %v601 = vpack.c.b16 %v531, %v529
    %v602 = vpack.c.b16 %v532, %v530
    %v603 = vpack.c.b16 %v535, %v533
    %v604 = vpack.c.b16 %v536, %v534
    %v605 = vpack.c.b16 %v539, %v537
    %v606 = vpack.c.b16 %v540, %v538
    %v607 = vpack.c.b16 %v543, %v541
    %v608 = vpack.c.b16 %v544, %v542
    %v609 = vpack.c.b16 %v547, %v545
    %v610 = vpack.c.b16 %v548, %v546
    %v611 = vpack.c.b16 %v551, %v549
    %v612 = vpack.c.b16 %v552, %v550
    %v613 = vpack.c.b16 %v555, %v553
    %v614 = vpack.c.b16 %v556, %v554
    %v615 = vpack.c.b16 %v559, %v557
    %v616 = vpack.c.b16 %v560, %v558
    %v617 = vpack.c.b16 %v563, %v561
    %v618 = vpack.c.b16 %v564, %v562
    %v619 = vpack.c.b16 %v567, %v565
    %v620 = vpack.c.b16 %v568, %v566
    %v621 = vpack.c.b16 %v571, %v569
    %v622 = vpack.c.b16 %v572, %v570
    %v623 = vpack.c.b16 %v575, %v573
    %v624 = vpack.c.b16 %v576, %v574
    %673 = vmatprep.subr.bf16.mxu0 %v578
    %674 = vmatpush1.bf16.msra.mxu0 %v577
    %675 = vmatprep.subr.bf16.mxu0 %v580
    %676 = vmatpush1.bf16.msra.mxu0 %v579
    %677 = vmatprep.subr.bf16.mxu0 %v582
    %678 = vmatpush1.bf16.msra.mxu0 %v581
    %679 = vmatprep.subr.bf16.mxu0 %v584
    %680 = vmatpush1.bf16.msra.mxu0 %v583
    %681 = vmatprep.subr.bf16.mxu0 %v586
    %682 = vmatpush1.bf16.msra.mxu0 %v585
    %683 = vmatprep.subr.bf16.mxu0 %v588
    %684 = vmatpush1.bf16.msra.mxu0 %v587
    %685 = vmatprep.subr.bf16.mxu0 %v590
    %686 = vmatpush1.bf16.msra.mxu0 %v589
    %687 = vmatprep.subr.bf16.mxu0 %v592
    %688 = vmatpush1.bf16.msra.mxu0 %v591
    %689 = vmatprep.subr.bf16.mxu0 %v594
    %690 = vmatpush1.bf16.msra.mxu0 %v593
    %691 = vmatprep.subr.bf16.mxu0 %v596
    %692 = vmatpush1.bf16.msra.mxu0 %v595
    %693 = vmatprep.subr.bf16.mxu0 %v598
    %694 = vmatpush1.bf16.msra.mxu0 %v597
    %695 = vmatprep.subr.bf16.mxu0 %v600
    %696 = vmatpush1.bf16.msra.mxu0 %v599
    %697 = vmatprep.subr.bf16.mxu0 %v602
    %698 = vmatpush1.bf16.msra.mxu0 %v601
    %699 = vmatprep.subr.bf16.mxu0 %v604
    %700 = vmatpush1.bf16.msra.mxu0 %v603
    %701 = vmatprep.subr.bf16.mxu0 %v606
    %702 = vmatpush1.bf16.msra.mxu0 %v605
    %703 = vmatprep.subr.bf16.mxu0 %v608
    %704 = vmatpush1.bf16.msra.mxu0 %v607
    %705 = vmatprep.mubr.bf16.mxu0 %v428
    %706 = vmatmul.mubr.bf16.gmra.mrb[0].mxu0 %v427
    %v707 = vpop.f32.mrb[0].mxu0
    %v708 = vadd.f32 0.0, %v707
    %v709 = vpop.f32.mrb[0].mxu0
    %v710 = vadd.f32 0.0, %v709
    %v711 = vpop.f32.mrb[0].mxu0
    %v712 = vpop.f32.mrb[0].mxu0
    %713 = vdwg.mxu0
    %714 = vmatprep.subr.bf16.mxu0 %v610
    %715 = vmatpush1.bf16.msra.mxu0 %v609
    %716 = vmatprep.subr.bf16.mxu0 %v612
    %717 = vmatpush1.bf16.msra.mxu0 %v611
    %718 = vmatprep.subr.bf16.mxu0 %v614
    %719 = vmatpush1.bf16.msra.mxu0 %v613
    %720 = vmatprep.subr.bf16.mxu0 %v616
    %721 = vmatpush1.bf16.msra.mxu0 %v615
    %722 = vmatprep.subr.bf16.mxu0 %v618
    %723 = vmatpush1.bf16.msra.mxu0 %v617
    %724 = vmatprep.subr.bf16.mxu0 %v620
    %725 = vmatpush1.bf16.msra.mxu0 %v619
    %726 = vmatprep.subr.bf16.mxu0 %v622
    %727 = vmatpush1.bf16.msra.mxu0 %v621
    %728 = vmatprep.subr.bf16.mxu0 %v624
    %729 = vmatpush1.bf16.msra.mxu0 %v623
    %730 = vmatprep.subr.bf16.mxu0 0
    %731 = vmatpush1.bf16.msra.mxu0 0
    %732 = vmatprep.subr.bf16.mxu0 0
    %733 = vmatpush1.bf16.msra.mxu0 0
    %734 = vmatprep.subr.bf16.mxu0 0
    %735 = vmatpush1.bf16.msra.mxu0 0
    %736 = vmatprep.subr.bf16.mxu0 0
    %737 = vmatpush1.bf16.msra.mxu0 0
    %738 = vmatprep.subr.bf16.mxu0 0
    %739 = vmatpush1.bf16.msra.mxu0 0
    %740 = vmatprep.subr.bf16.mxu0 0
    %741 = vmatpush1.bf16.msra.mxu0 0
    %742 = vmatprep.subr.bf16.mxu0 0
    %743 = vmatpush1.bf16.msra.mxu0 0
    %744 = vmatprep.subr.bf16.mxu0 0
    %745 = vmatpush1.bf16.msra.mxu0 0
    %746 = vmatprep.mubr.bf16.mxu0 0
    %747 = vmatmul.mubr.bf16.gmra.mrb[0].mxu0 %v429
    %v748 = vpop.f32.mrb[0].mxu0
    %v749 = vadd.f32 %v708, %v748
    %v750 = vpop.f32.mrb[0].mxu0
    %v751 = vadd.f32 %v710, %v750
    %v752 = vpop.f32.mrb[0].mxu0
    %v753 = vpop.f32.mrb[0].mxu0
    %754 = vdwg.mxu0
    %v755 = vld [vmem:[%s5] sm:$0x3]
    %v757 = vlaneseq
    %v758 = vshrl.u32 %v757, 7
    %v759 = vsub.s32 0, %v758
    %v760 = vrot.slane %v755, %v759
    %v761 = vlaneseq
    %v762 = vshrl.u32 %v761, 7
    %v763 = vsub.s32 1, %v762
    %v764 = vrot.slane %v755, %v763
    %v767 = vmul.f32 %v749, %v760
    %v768 = vmul.f32 %v751, %v764
    %v769 = vld [vmem:[%s6] sm:$0x3]
    %v771 = vlaneseq
    %v772 = vshrl.u32 %v771, 7
    %v773 = vsub.s32 0, %v772
    %v774 = vrot.slane %v769, %v773
    %v775 = vlaneseq
    %v776 = vshrl.u32 %v775, 7
    %v777 = vsub.s32 1, %v776
    %v778 = vrot.slane %v769, %v777
    %v781 = vadd.f32 %v767, %v774
    %v782 = vadd.f32 %v768, %v778
    %v783 = vmax.f32 %v781, 0.0
    %v784 = vmax.f32 %v782, 0.0
    %v785 = vpack.c.bf16 %v783, %v783
    %v786 = vpack.c.bf16 %v784, %v784
    %v789 = vunpack.c.l.b16 %v785
    %v790 = vunpack.c.l.b16 %v786
    %v791 = vpack.c.b16 %v790, %v789
    %793 = vst [vmem:[#allocation3 + $0x4] sm:$0xff] %v791
    %v794 = vld [vmem:[#allocation2 + $0x4] sm:$0xff]
    %v795 = vld [vmem:[#allocation2 + $0xc] sm:$0xf]
    %v796 = vld [vmem:[#allocation9] sm:$0xff]
    %v797 = vld [vmem:[#allocation9 + $0x8] sm:$0xff]
    %v798 = vld [vmem:[#allocation9 + $0x10] sm:$0xff]
    %v799 = vld [vmem:[#allocation9 + $0x18] sm:$0xff]
    %v800 = vld [vmem:[#allocation9 + $0x20] sm:$0xff]
    %v801 = vld [vmem:[#allocation9 + $0x28] sm:$0xff]
    %v802 = vld [vmem:[#allocation9 + $0x30] sm:$0xff]
    %v803 = vld [vmem:[#allocation9 + $0x38] sm:$0xff]
    %v804 = vld [vmem:[#allocation9 + $0x40] sm:$0xff]
    %v805 = vld [vmem:[#allocation9 + $0x48] sm:$0xff]
    %v806 = vld [vmem:[#allocation9 + $0x50] sm:$0xff]
    %v807 = vld [vmem:[#allocation9 + $0x58] sm:$0xff]
    %v808 = vld [vmem:[#allocation9 + $0x60] sm:$0xff]
    %v809 = vld [vmem:[#allocation9 + $0x68] sm:$0xff]
    %v810 = vld [vmem:[#allocation9 + $0x70] sm:$0xff]
    %v811 = vld [vmem:[#allocation9 + $0x78] sm:$0xff]
    %v812 = vld [vmem:[#allocation9 + $0x80] sm:$0xff]
    %v813 = vld [vmem:[#allocation9 + $0x88] sm:$0xff]
    %v814 = vld [vmem:[#allocation9 + $0x90] sm:$0xff]
    %v815 = vld [vmem:[#allocation9 + $0x98] sm:$0xff]
    %v816 = vld [vmem:[#allocation9 + $0xa0] sm:$0xff]
    %v817 = vld [vmem:[#allocation9 + $0xa8] sm:$0xff]
    %v818 = vld [vmem:[#allocation9 + $0xb0] sm:$0xff]
    %v819 = vld [vmem:[#allocation9 + $0xb8] sm:$0xff]
    %v820 = vld [vmem:[#allocation9 + $0xc0] sm:$0xff]
    %v821 = vld [vmem:[#allocation9 + $0xc8] sm:$0xff]
    %v822 = vld [vmem:[#allocation9 + $0xd0] sm:$0xff]
    %v823 = vld [vmem:[#allocation9 + $0xd8] sm:$0xff]
    %v824 = vld [vmem:[#allocation9 + $0xe0] sm:$0xff]
    %v825 = vld [vmem:[#allocation9 + $0xe8] sm:$0xff]
    %v826 = vld [vmem:[#allocation9 + $0xf0] sm:$0xff]
    %v827 = vld [vmem:[#allocation9 + $0xf8] sm:$0xff]
    %v828 = vld [vmem:[#allocation9 + $0x100] sm:$0xff]
    %v829 = vld [vmem:[#allocation9 + $0x108] sm:$0xff]
    %v830 = vld [vmem:[#allocation9 + $0x110] sm:$0xff]
    %v831 = vld [vmem:[#allocation9 + $0x118] sm:$0xff]
    %v832 = vld [vmem:[#allocation9 + $0x120] sm:$0xff]
    %v833 = vld [vmem:[#allocation9 + $0x128] sm:$0xff]
    %v834 = vld [vmem:[#allocation9 + $0x130] sm:$0xff]
    %v835 = vld [vmem:[#allocation9 + $0x138] sm:$0xff]
    %v836 = vld [vmem:[#allocation9 + $0x140] sm:$0xff]
    %v837 = vld [vmem:[#allocation9 + $0x148] sm:$0xff]
    %v838 = vld [vmem:[#allocation9 + $0x150] sm:$0xff]
    %v839 = vld [vmem:[#allocation9 + $0x158] sm:$0xff]
    %v840 = vld [vmem:[#allocation9 + $0x160] sm:$0xff]
    %v841 = vld [vmem:[#allocation9 + $0x168] sm:$0xff]
    %v842 = vld [vmem:[#allocation9 + $0x170] sm:$0xff]
    %v843 = vld [vmem:[#allocation9 + $0x178] sm:$0xff]
    %v846 = vunpack.c.l.b16 %v794
    %v847 = vunpack.c.h.b16 %v794
    %v848 = vunpack.c.l.b16 %v795
    %v849 = vpack.c.b16 %v846, %v846
    %v850 = vpack.c.b16 %v847, %v847
    %v851 = vpack.c.b16 %v848, %v848
    %v903 = vunpack.c.l.b16 %v796
    %v904 = vunpack.c.h.b16 %v796
    %v905 = vunpack.c.l.b16 %v797
    %v906 = vunpack.c.h.b16 %v797
    %v907 = vunpack.c.l.b16 %v798
    %v908 = vunpack.c.h.b16 %v798
    %v909 = vunpack.c.l.b16 %v799
    %v910 = vunpack.c.h.b16 %v799
    %v911 = vunpack.c.l.b16 %v800
    %v912 = vunpack.c.h.b16 %v800
    %v913 = vunpack.c.l.b16 %v801
    %v914 = vunpack.c.h.b16 %v801
    %v915 = vunpack.c.l.b16 %v802
    %v916 = vunpack.c.h.b16 %v802
    %v917 = vunpack.c.l.b16 %v803
    %v918 = vunpack.c.h.b16 %v803
    %v919 = vunpack.c.l.b16 %v804
    %v920 = vunpack.c.h.b16 %v804
    %v921 = vunpack.c.l.b16 %v805
    %v922 = vunpack.c.h.b16 %v805
    %v923 = vunpack.c.l.b16 %v806
    %v924 = vunpack.c.h.b16 %v806
    %v925 = vunpack.c.l.b16 %v807
    %v926 = vunpack.c.h.b16 %v807
    %v927 = vunpack.c.l.b16 %v808
    %v928 = vunpack.c.h.b16 %v808
    %v929 = vunpack.c.l.b16 %v809
    %v930 = vunpack.c.h.b16 %v809
    %v931 = vunpack.c.l.b16 %v810
    %v932 = vunpack.c.h.b16 %v810
    %v933 = vunpack.c.l.b16 %v811
    %v934 = vunpack.c.h.b16 %v811
    %v935 = vunpack.c.l.b16 %v812
    %v936 = vunpack.c.h.b16 %v812
    %v937 = vunpack.c.l.b16 %v813
    %v938 = vunpack.c.h.b16 %v813
    %v939 = vunpack.c.l.b16 %v814
    %v940 = vunpack.c.h.b16 %v814
    %v941 = vunpack.c.l.b16 %v815
    %v942 = vunpack.c.h.b16 %v815
    %v943 = vunpack.c.l.b16 %v816
    %v944 = vunpack.c.h.b16 %v816
    %v945 = vunpack.c.l.b16 %v817
    %v946 = vunpack.c.h.b16 %v817
    %v947 = vunpack.c.l.b16 %v818
    %v948 = vunpack.c.h.b16 %v818
    %v949 = vunpack.c.l.b16 %v819
    %v950 = vunpack.c.h.b16 %v819
    %v951 = vunpack.c.l.b16 %v820
    %v952 = vunpack.c.h.b16 %v820
    %v953 = vunpack.c.l.b16 %v821
    %v954 = vunpack.c.h.b16 %v821
    %v955 = vunpack.c.l.b16 %v822
    %v956 = vunpack.c.h.b16 %v822
    %v957 = vunpack.c.l.b16 %v823
    %v958 = vunpack.c.h.b16 %v823
    %v959 = vunpack.c.l.b16 %v824
    %v960 = vunpack.c.h.b16 %v824
    %v961 = vunpack.c.l.b16 %v825
    %v962 = vunpack.c.h.b16 %v825
    %v963 = vunpack.c.l.b16 %v826
    %v964 = vunpack.c.h.b16 %v826
    %v965 = vunpack.c.l.b16 %v827
    %v966 = vunpack.c.h.b16 %v827
    %v967 = vunpack.c.l.b16 %v828
    %v968 = vunpack.c.h.b16 %v828
    %v969 = vunpack.c.l.b16 %v829
    %v970 = vunpack.c.h.b16 %v829
    %v971 = vunpack.c.l.b16 %v830
    %v972 = vunpack.c.h.b16 %v830
    %v973 = vunpack.c.l.b16 %v831
    %v974 = vunpack.c.h.b16 %v831
    %v975 = vunpack.c.l.b16 %v832
    %v976 = vunpack.c.h.b16 %v832
    %v977 = vunpack.c.l.b16 %v833
    %v978 = vunpack.c.h.b16 %v833
    %v979 = vunpack.c.l.b16 %v834
    %v980 = vunpack.c.h.b16 %v834
    %v981 = vunpack.c.l.b16 %v835
    %v982 = vunpack.c.h.b16 %v835
    %v983 = vunpack.c.l.b16 %v836
    %v984 = vunpack.c.h.b16 %v836
    %v985 = vunpack.c.l.b16 %v837
    %v986 = vunpack.c.h.b16 %v837
    %v987 = vunpack.c.l.b16 %v838
    %v988 = vunpack.c.h.b16 %v838
    %v989 = vunpack.c.l.b16 %v839
    %v990 = vunpack.c.h.b16 %v839
    %v991 = vunpack.c.l.b16 %v840
    %v992 = vunpack.c.h.b16 %v840
    %v993 = vunpack.c.l.b16 %v841
    %v994 = vunpack.c.h.b16 %v841
    %v995 = vunpack.c.l.b16 %v842
    %v996 = vunpack.c.h.b16 %v842
    %v997 = vunpack.c.l.b16 %v843
    %v998 = vunpack.c.h.b16 %v843
    %v999 = vpack.c.b16 %v905, %v903
    %v1000 = vpack.c.b16 %v906, %v904
    %v1001 = vpack.c.b16 %v909, %v907
    %v1002 = vpack.c.b16 %v910, %v908
    %v1003 = vpack.c.b16 %v913, %v911
    %v1004 = vpack.c.b16 %v914, %v912
    %v1005 = vpack.c.b16 %v917, %v915
    %v1006 = vpack.c.b16 %v918, %v916
    %v1007 = vpack.c.b16 %v921, %v919
    %v1008 = vpack.c.b16 %v922, %v920
    %v1009 = vpack.c.b16 %v925, %v923
    %v1010 = vpack.c.b16 %v926, %v924
    %v1011 = vpack.c.b16 %v929, %v927
    %v1012 = vpack.c.b16 %v930, %v928
    %v1013 = vpack.c.b16 %v933, %v931
    %v1014 = vpack.c.b16 %v934, %v932
    %v1015 = vpack.c.b16 %v937, %v935
    %v1016 = vpack.c.b16 %v938, %v936
    %v1017 = vpack.c.b16 %v941, %v939
    %v1018 = vpack.c.b16 %v942, %v940
    %v1019 = vpack.c.b16 %v945, %v943
    %v1020 = vpack.c.b16 %v946, %v944
    %v1021 = vpack.c.b16 %v949, %v947
    %v1022 = vpack.c.b16 %v950, %v948
    %v1023 = vpack.c.b16 %v953, %v951
    %v1024 = vpack.c.b16 %v954, %v952
    %v1025 = vpack.c.b16 %v957, %v955
    %v1026 = vpack.c.b16 %v958, %v956
    %v1027 = vpack.c.b16 %v961, %v959
    %v1028 = vpack.c.b16 %v962, %v960
    %v1029 = vpack.c.b16 %v965, %v963
    %v1030 = vpack.c.b16 %v966, %v964
    %v1031 = vpack.c.b16 %v969, %v967
    %v1032 = vpack.c.b16 %v970, %v968
    %v1033 = vpack.c.b16 %v973, %v971
    %v1034 = vpack.c.b16 %v974, %v972
    %v1035 = vpack.c.b16 %v977, %v975
    %v1036 = vpack.c.b16 %v978, %v976
    %v1037 = vpack.c.b16 %v981, %v979
    %v1038 = vpack.c.b16 %v982, %v980
    %v1039 = vpack.c.b16 %v985, %v983
    %v1040 = vpack.c.b16 %v986, %v984
    %v1041 = vpack.c.b16 %v989, %v987
    %v1042 = vpack.c.b16 %v990, %v988
    %v1043 = vpack.c.b16 %v993, %v991
    %v1044 = vpack.c.b16 %v994, %v992
    %v1045 = vpack.c.b16 %v997, %v995
    %v1046 = vpack.c.b16 %v998, %v996
    %1095 = vmatprep.subr.bf16.mxu0 %v1000
    %1096 = vmatpush1.bf16.msra.mxu0 %v999
    %1097 = vmatprep.subr.bf16.mxu0 %v1002
    %1098 = vmatpush1.bf16.msra.mxu0 %v1001
    %1099 = vmatprep.subr.bf16.mxu0 %v1004
    %1100 = vmatpush1.bf16.msra.mxu0 %v1003
    %1101 = vmatprep.subr.bf16.mxu0 %v1006
    %1102 = vmatpush1.bf16.msra.mxu0 %v1005
    %1103 = vmatprep.subr.bf16.mxu0 %v1008
    %1104 = vmatpush1.bf16.msra.mxu0 %v1007
    %1105 = vmatprep.subr.bf16.mxu0 %v1010
    %1106 = vmatpush1.bf16.msra.mxu0 %v1009
    %1107 = vmatprep.subr.bf16.mxu0 %v1012
    %1108 = vmatpush1.bf16.msra.mxu0 %v1011
    %1109 = vmatprep.subr.bf16.mxu0 %v1014
    %1110 = vmatpush1.bf16.msra.mxu0 %v1013
    %1111 = vmatprep.subr.bf16.mxu0 %v1016
    %1112 = vmatpush1.bf16.msra.mxu0 %v1015
    %1113 = vmatprep.subr.bf16.mxu0 %v1018
    %1114 = vmatpush1.bf16.msra.mxu0 %v1017
    %1115 = vmatprep.subr.bf16.mxu0 %v1020
    %1116 = vmatpush1.bf16.msra.mxu0 %v1019
    %1117 = vmatprep.subr.bf16.mxu0 %v1022
    %1118 = vmatpush1.bf16.msra.mxu0 %v1021
    %1119 = vmatprep.subr.bf16.mxu0 %v1024
    %1120 = vmatpush1.bf16.msra.mxu0 %v1023
    %1121 = vmatprep.subr.bf16.mxu0 %v1026
    %1122 = vmatpush1.bf16.msra.mxu0 %v1025
    %1123 = vmatprep.subr.bf16.mxu0 %v1028
    %1124 = vmatpush1.bf16.msra.mxu0 %v1027
    %1125 = vmatprep.subr.bf16.mxu0 %v1030
    %1126 = vmatpush1.bf16.msra.mxu0 %v1029
    %1127 = vmatprep.mubr.bf16.mxu0 %v850
    %1128 = vmatmul.mubr.bf16.gmra.mrb[0].mxu0 %v849
    %v1129 = vpop.f32.mrb[0].mxu0
    %v1130 = vadd.f32 0.0, %v1129
    %v1131 = vpop.f32.mrb[0].mxu0
    %v1132 = vadd.f32 0.0, %v1131
    %v1133 = vpop.f32.mrb[0].mxu0
    %v1134 = vpop.f32.mrb[0].mxu0
    %1135 = vdwg.mxu0
    %1136 = vmatprep.subr.bf16.mxu0 %v1032
    %1137 = vmatpush1.bf16.msra.mxu0 %v1031
    %1138 = vmatprep.subr.bf16.mxu0 %v1034
    %1139 = vmatpush1.bf16.msra.mxu0 %v1033
    %1140 = vmatprep.subr.bf16.mxu0 %v1036
    %1141 = vmatpush1.bf16.msra.mxu0 %v1035
    %1142 = vmatprep.subr.bf16.mxu0 %v1038
    %1143 = vmatpush1.bf16.msra.mxu0 %v1037
    %1144 = vmatprep.subr.bf16.mxu0 %v1040
    %1145 = vmatpush1.bf16.msra.mxu0 %v1039
    %1146 = vmatprep.subr.bf16.mxu0 %v1042
    %1147 = vmatpush1.bf16.msra.mxu0 %v1041
    %1148 = vmatprep.subr.bf16.mxu0 %v1044
    %1149 = vmatpush1.bf16.msra.mxu0 %v1043
    %1150 = vmatprep.subr.bf16.mxu0 %v1046
    %1151 = vmatpush1.bf16.msra.mxu0 %v1045
    %1152 = vmatprep.subr.bf16.mxu0 0
    %1153 = vmatpush1.bf16.msra.mxu0 0
    %1154 = vmatprep.subr.bf16.mxu0 0
    %1155 = vmatpush1.bf16.msra.mxu0 0
    %1156 = vmatprep.subr.bf16.mxu0 0
    %1157 = vmatpush1.bf16.msra.mxu0 0
    %1158 = vmatprep.subr.bf16.mxu0 0
    %1159 = vmatpush1.bf16.msra.mxu0 0
    %1160 = vmatprep.subr.bf16.mxu0 0
    %1161 = vmatpush1.bf16.msra.mxu0 0
    %1162 = vmatprep.subr.bf16.mxu0 0
    %1163 = vmatpush1.bf16.msra.mxu0 0
    %1164 = vmatprep.subr.bf16.mxu0 0
    %1165 = vmatpush1.bf16.msra.mxu0 0
    %1166 = vmatprep.subr.bf16.mxu0 0
    %1167 = vmatpush1.bf16.msra.mxu0 0
    %1168 = vmatprep.mubr.bf16.mxu0 0
    %1169 = vmatmul.mubr.bf16.gmra.mrb[0].mxu0 %v851
    %v1170 = vpop.f32.mrb[0].mxu0
    %v1171 = vadd.f32 %v1130, %v1170
    %v1172 = vpop.f32.mrb[0].mxu0
    %v1173 = vadd.f32 %v1132, %v1172
    %v1174 = vpop.f32.mrb[0].mxu0
    %v1175 = vpop.f32.mrb[0].mxu0
    %1176 = vdwg.mxu0
    %v1177 = vld [vmem:[%s5] sm:$0x3]
    %v1179 = vlaneseq
    %v1180 = vshrl.u32 %v1179, 7
    %v1181 = vsub.s32 0, %v1180
    %v1182 = vrot.slane %v1177, %v1181
    %v1183 = vlaneseq
    %v1184 = vshrl.u32 %v1183, 7
    %v1185 = vsub.s32 1, %v1184
    %v1186 = vrot.slane %v1177, %v1185
    %v1189 = vmul.f32 %v1171, %v1182
    %v1190 = vmul.f32 %v1173, %v1186
    %v1191 = vld [vmem:[%s6] sm:$0x3]
    %v1193 = vlaneseq
    %v1194 = vshrl.u32 %v1193, 7
    %v1195 = vsub.s32 0, %v1194
    %v1196 = vrot.slane %v1191, %v1195
    %v1197 = vlaneseq
    %v1198 = vshrl.u32 %v1197, 7
    %v1199 = vsub.s32 1, %v1198
    %v1200 = vrot.slane %v1191, %v1199
    %v1203 = vadd.f32 %v1189, %v1196
    %v1204 = vadd.f32 %v1190, %v1200
    %v1205 = vmax.f32 %v1203, 0.0
    %v1206 = vmax.f32 %v1204, 0.0
    %v1207 = vpack.c.bf16 %v1205, %v1205
    %v1208 = vpack.c.bf16 %v1206, %v1206
    %v1211 = vunpack.c.l.b16 %v1207
    %v1212 = vunpack.c.l.b16 %v1208
    %v1213 = vpack.c.b16 %v1212, %v1211
    %1215 = vst [vmem:[#allocation3 + $0xc] sm:$0xff] %v1213
    %v1216 = vld [vmem:[#allocation2 + $0x8] sm:$0xff]
    %v1217 = vld [vmem:[#allocation2 + $0x10] sm:$0xf]
    %v1218 = vld [vmem:[#allocation9] sm:$0xff]
    %v1219 = vld [vmem:[#allocation9 + $0x8] sm:$0xff]
    %v1220 = vld [vmem:[#allocation9 + $0x10] sm:$0xff]
    %v1221 = vld [vmem:[#allocation9 + $0x18] sm:$0xff]
    %v1222 = vld [vmem:[#allocation9 + $0x20] sm:$0xff]
    %v1223 = vld [vmem:[#allocation9 + $0x28] sm:$0xff]
    %v1224 = vld [vmem:[#allocation9 + $0x30] sm:$0xff]
    %v1225 = vld [vmem:[#allocation9 + $0x38] sm:$0xff]
    %v1226 = vld [vmem:[#allocation9 + $0x40] sm:$0xff]
    %v1227 = vld [vmem:[#allocation9 + $0x48] sm:$0xff]
    %v1228 = vld [vmem:[#allocation9 + $0x50] sm:$0xff]
    %v1229 = vld [vmem:[#allocation9 + $0x58] sm:$0xff]
    %v1230 = vld [vmem:[#allocation9 + $0x60] sm:$0xff]
    %v1231 = vld [vmem:[#allocation9 + $0x68] sm:$0xff]
    %v1232 = vld [vmem:[#allocation9 + $0x70] sm:$0xff]
    %v1233 = vld [vmem:[#allocation9 + $0x78] sm:$0xff]
    %v1234 = vld [vmem:[#allocation9 + $0x80] sm:$0xff]
    %v1235 = vld [vmem:[#allocation9 + $0x88] sm:$0xff]
    %v1236 = vld [vmem:[#allocation9 + $0x90] sm:$0xff]
    %v1237 = vld [vmem:[#allocation9 + $0x98] sm:$0xff]
    %v1238 = vld [vmem:[#allocation9 + $0xa0] sm:$0xff]
    %v1239 = vld [vmem:[#allocation9 + $0xa8] sm:$0xff]
    %v1240 = vld [vmem:[#allocation9 + $0xb0] sm:$0xff]
    %v1241 = vld [vmem:[#allocation9 + $0xb8] sm:$0xff]
    %v1242 = vld [vmem:[#allocation9 + $0xc0] sm:$0xff]
    %v1243 = vld [vmem:[#allocation9 + $0xc8] sm:$0xff]
    %v1244 = vld [vmem:[#allocation9 + $0xd0] sm:$0xff]
    %v1245 = vld [vmem:[#allocation9 + $0xd8] sm:$0xff]
    %v1246 = vld [vmem:[#allocation9 + $0xe0] sm:$0xff]
    %v1247 = vld [vmem:[#allocation9 + $0xe8] sm:$0xff]
    %v1248 = vld [vmem:[#allocation9 + $0xf0] sm:$0xff]
    %v1249 = vld [vmem:[#allocation9 + $0xf8] sm:$0xff]
    %v1250 = vld [vmem:[#allocation9 + $0x100] sm:$0xff]
    %v1251 = vld [vmem:[#allocation9 + $0x108] sm:$0xff]
    %v1252 = vld [vmem:[#allocation9 + $0x110] sm:$0xff]
    %v1253 = vld [vmem:[#allocation9 + $0x118] sm:$0xff]
    %v1254 = vld [vmem:[#allocation9 + $0x120] sm:$0xff]
    %v1255 = vld [vmem:[#allocation9 + $0x128] sm:$0xff]
    %v1256 = vld [vmem:[#allocation9 + $0x130] sm:$0xff]
    %v1257 = vld [vmem:[#allocation9 + $0x138] sm:$0xff]
    %v1258 = vld [vmem:[#allocation9 + $0x140] sm:$0xff]
    %v1259 = vld [vmem:[#allocation9 + $0x148] sm:$0xff]
    %v1260 = vld [vmem:[#allocation9 + $0x150] sm:$0xff]
    %v1261 = vld [vmem:[#allocation9 + $0x158] sm:$0xff]
    %v1262 = vld [vmem:[#allocation9 + $0x160] sm:$0xff]
    %v1263 = vld [vmem:[#allocation9 + $0x168] sm:$0xff]
    %v1264 = vld [vmem:[#allocation9 + $0x170] sm:$0xff]
    %v1265 = vld [vmem:[#allocation9 + $0x178] sm:$0xff]
    %v1268 = vunpack.c.l.b16 %v1216
    %v1269 = vunpack.c.h.b16 %v1216
    %v1270 = vunpack.c.l.b16 %v1217
    %v1271 = vpack.c.b16 %v1268, %v1268
    %v1272 = vpack.c.b16 %v1269, %v1269
    %v1273 = vpack.c.b16 %v1270, %v1270
    %v1325 = vunpack.c.l.b16 %v1218
    %v1326 = vunpack.c.h.b16 %v1218
    %v1327 = vunpack.c.l.b16 %v1219
    %v1328 = vunpack.c.h.b16 %v1219
    %v1329 = vunpack.c.l.b16 %v1220
    %v1330 = vunpack.c.h.b16 %v1220
    %v1331 = vunpack.c.l.b16 %v1221
    %v1332 = vunpack.c.h.b16 %v1221
    %v1333 = vunpack.c.l.b16 %v1222
    %v1334 = vunpack.c.h.b16 %v1222
    %v1335 = vunpack.c.l.b16 %v1223
    %v1336 = vunpack.c.h.b16 %v1223
    %v1337 = vunpack.c.l.b16 %v1224
    %v1338 = vunpack.c.h.b16 %v1224
    %v1339 = vunpack.c.l.b16 %v1225
    %v1340 = vunpack.c.h.b16 %v1225
    %v1341 = vunpack.c.l.b16 %v1226
    %v1342 = vunpack.c.h.b16 %v1226
    %v1343 = vunpack.c.l.b16 %v1227
    %v1344 = vunpack.c.h.b16 %v1227
    %v1345 = vunpack.c.l.b16 %v1228
    %v1346 = vunpack.c.h.b16 %v1228
    %v1347 = vunpack.c.l.b16 %v1229
    %v1348 = vunpack.c.h.b16 %v1229
    %v1349 = vunpack.c.l.b16 %v1230
    %v1350 = vunpack.c.h.b16 %v1230
    %v1351 = vunpack.c.l.b16 %v1231
    %v1352 = vunpack.c.h.b16 %v1231
    %v1353 = vunpack.c.l.b16 %v1232
    %v1354 = vunpack.c.h.b16 %v1232
    %v1355 = vunpack.c.l.b16 %v1233
    %v1356 = vunpack.c.h.b16 %v1233
    %v1357 = vunpack.c.l.b16 %v1234
    %v1358 = vunpack.c.h.b16 %v1234
    %v1359 = vunpack.c.l.b16 %v1235
    %v1360 = vunpack.c.h.b16 %v1235
    %v1361 = vunpack.c.l.b16 %v1236
    %v1362 = vunpack.c.h.b16 %v1236
    %v1363 = vunpack.c.l.b16 %v1237
    %v1364 = vunpack.c.h.b16 %v1237
    %v1365 = vunpack.c.l.b16 %v1238
    %v1366 = vunpack.c.h.b16 %v1238
    %v1367 = vunpack.c.l.b16 %v1239
    %v1368 = vunpack.c.h.b16 %v1239
    %v1369 = vunpack.c.l.b16 %v1240
    %v1370 = vunpack.c.h.b16 %v1240
    %v1371 = vunpack.c.l.b16 %v1241
    %v1372 = vunpack.c.h.b16 %v1241
    %v1373 = vunpack.c.l.b16 %v1242
    %v1374 = vunpack.c.h.b16 %v1242
    %v1375 = vunpack.c.l.b16 %v1243
    %v1376 = vunpack.c.h.b16 %v1243
    %v1377 = vunpack.c.l.b16 %v1244
    %v1378 = vunpack.c.h.b16 %v1244
    %v1379 = vunpack.c.l.b16 %v1245
    %v1380 = vunpack.c.h.b16 %v1245
    %v1381 = vunpack.c.l.b16 %v1246
    %v1382 = vunpack.c.h.b16 %v1246
    %v1383 = vunpack.c.l.b16 %v1247
    %v1384 = vunpack.c.h.b16 %v1247
    %v1385 = vunpack.c.l.b16 %v1248
    %v1386 = vunpack.c.h.b16 %v1248
    %v1387 = vunpack.c.l.b16 %v1249
    %v1388 = vunpack.c.h.b16 %v1249
    %v1389 = vunpack.c.l.b16 %v1250
    %v1390 = vunpack.c.h.b16 %v1250
    %v1391 = vunpack.c.l.b16 %v1251
    %v1392 = vunpack.c.h.b16 %v1251
    %v1393 = vunpack.c.l.b16 %v1252
    %v1394 = vunpack.c.h.b16 %v1252
    %v1395 = vunpack.c.l.b16 %v1253
    %v1396 = vunpack.c.h.b16 %v1253
    %v1397 = vunpack.c.l.b16 %v1254
    %v1398 = vunpack.c.h.b16 %v1254
    %v1399 = vunpack.c.l.b16 %v1255
    %v1400 = vunpack.c.h.b16 %v1255
    %v1401 = vunpack.c.l.b16 %v1256
    %v1402 = vunpack.c.h.b16 %v1256
    %v1403 = vunpack.c.l.b16 %v1257
    %v1404 = vunpack.c.h.b16 %v1257
    %v1405 = vunpack.c.l.b16 %v1258
    %v1406 = vunpack.c.h.b16 %v1258
    %v1407 = vunpack.c.l.b16 %v1259
    %v1408 = vunpack.c.h.b16 %v1259
    %v1409 = vunpack.c.l.b16 %v1260
    %v1410 = vunpack.c.h.b16 %v1260
    %v1411 = vunpack.c.l.b16 %v1261
    %v1412 = vunpack.c.h.b16 %v1261
    %v1413 = vunpack.c.l.b16 %v1262
    %v1414 = vunpack.c.h.b16 %v1262
    %v1415 = vunpack.c.l.b16 %v1263
    %v1416 = vunpack.c.h.b16 %v1263
    %v1417 = vunpack.c.l.b16 %v1264
    %v1418 = vunpack.c.h.b16 %v1264
    %v1419 = vunpack.c.l.b16 %v1265
    %v1420 = vunpack.c.h.b16 %v1265
    %v1421 = vpack.c.b16 %v1327, %v1325
    %v1422 = vpack.c.b16 %v1328, %v1326
    %v1423 = vpack.c.b16 %v1331, %v1329
    %v1424 = vpack.c.b16 %v1332, %v1330
    %v1425 = vpack.c.b16 %v1335, %v1333
    %v1426 = vpack.c.b16 %v1336, %v1334
    %v1427 = vpack.c.b16 %v1339, %v1337
    %v1428 = vpack.c.b16 %v1340, %v1338
    %v1429 = vpack.c.b16 %v1343, %v1341
    %v1430 = vpack.c.b16 %v1344, %v1342
    %v1431 = vpack.c.b16 %v1347, %v1345
    %v1432 = vpack.c.b16 %v1348, %v1346
    %v1433 = vpack.c.b16 %v1351, %v1349
    %v1434 = vpack.c.b16 %v1352, %v1350
    %v1435 = vpack.c.b16 %v1355, %v1353
    %v1436 = vpack.c.b16 %v1356, %v1354
    %v1437 = vpack.c.b16 %v1359, %v1357
    %v1438 = vpack.c.b16 %v1360, %v1358
    %v1439 = vpack.c.b16 %v1363, %v1361
    %v1440 = vpack.c.b16 %v1364, %v1362
    %v1441 = vpack.c.b16 %v1367, %v1365
    %v1442 = vpack.c.b16 %v1368, %v1366
    %v1443 = vpack.c.b16 %v1371, %v1369
    %v1444 = vpack.c.b16 %v1372, %v1370
    %v1445 = vpack.c.b16 %v1375, %v1373
    %v1446 = vpack.c.b16 %v1376, %v1374
    %v1447 = vpack.c.b16 %v1379, %v1377
    %v1448 = vpack.c.b16 %v1380, %v1378
    %v1449 = vpack.c.b16 %v1383, %v1381
    %v1450 = vpack.c.b16 %v1384, %v1382
    %v1451 = vpack.c.b16 %v1387, %v1385
    %v1452 = vpack.c.b16 %v1388, %v1386
    %v1453 = vpack.c.b16 %v1391, %v1389
    %v1454 = vpack.c.b16 %v1392, %v1390
    %v1455 = vpack.c.b16 %v1395, %v1393
    %v1456 = vpack.c.b16 %v1396, %v1394
    %v1457 = vpack.c.b16 %v1399, %v1397
    %v1458 = vpack.c.b16 %v1400, %v1398
    %v1459 = vpack.c.b16 %v1403, %v1401
    %v1460 = vpack.c.b16 %v1404, %v1402
    %v1461 = vpack.c.b16 %v1407, %v1405
    %v1462 = vpack.c.b16 %v1408, %v1406
    %v1463 = vpack.c.b16 %v1411, %v1409
    %v1464 = vpack.c.b16 %v1412, %v1410
    %v1465 = vpack.c.b16 %v1415, %v1413
    %v1466 = vpack.c.b16 %v1416, %v1414
    %v1467 = vpack.c.b16 %v1419, %v1417
    %v1468 = vpack.c.b16 %v1420, %v1418
    %1517 = vmatprep.subr.bf16.mxu0 %v1422
    %1518 = vmatpush1.bf16.msra.mxu0 %v1421
    %1519 = vmatprep.subr.bf16.mxu0 %v1424
    %1520 = vmatpush1.bf16.msra.mxu0 %v1423
    %1521 = vmatprep.subr.bf16.mxu0 %v1426
    %1522 = vmatpush1.bf16.msra.mxu0 %v1425
    %1523 = vmatprep.subr.bf16.mxu0 %v1428
    %1524 = vmatpush1.bf16.msra.mxu0 %v1427
    %1525 = vmatprep.subr.bf16.mxu0 %v1430
    %1526 = vmatpush1.bf16.msra.mxu0 %v1429
    %1527 = vmatprep.subr.bf16.mxu0 %v1432
    %1528 = vmatpush1.bf16.msra.mxu0 %v1431
    %1529 = vmatprep.subr.bf16.mxu0 %v1434
    %1530 = vmatpush1.bf16.msra.mxu0 %v1433
    %1531 = vmatprep.subr.bf16.mxu0 %v1436
    %1532 = vmatpush1.bf16.msra.mxu0 %v1435
    %1533 = vmatprep.subr.bf16.mxu0 %v1438
    %1534 = vmatpush1.bf16.msra.mxu0 %v1437
    %1535 = vmatprep.subr.bf16.mxu0 %v1440
    %1536 = vmatpush1.bf16.msra.mxu0 %v1439
    %1537 = vmatprep.subr.bf16.mxu0 %v1442
    %1538 = vmatpush1.bf16.msra.mxu0 %v1441
    %1539 = vmatprep.subr.bf16.mxu0 %v1444
    %1540 = vmatpush1.bf16.msra.mxu0 %v1443
    %1541 = vmatprep.subr.bf16.mxu0 %v1446
    %1542 = vmatpush1.bf16.msra.mxu0 %v1445
    %1543 = vmatprep.subr.bf16.mxu0 %v1448
    %1544 = vmatpush1.bf16.msra.mxu0 %v1447
    %1545 = vmatprep.subr.bf16.mxu0 %v1450
    %1546 = vmatpush1.bf16.msra.mxu0 %v1449
    %1547 = vmatprep.subr.bf16.mxu0 %v1452
    %1548 = vmatpush1.bf16.msra.mxu0 %v1451
    %1549 = vmatprep.mubr.bf16.mxu0 %v1272
    %1550 = vmatmul.mubr.bf16.gmra.mrb[0].mxu0 %v1271
    %v1551 = vpop.f32.mrb[0].mxu0
    %v1552 = vadd.f32 0.0, %v1551
    %v1553 = vpop.f32.mrb[0].mxu0
    %v1554 = vadd.f32 0.0, %v1553
    %v1555 = vpop.f32.mrb[0].mxu0
    %v1556 = vpop.f32.mrb[0].mxu0
    %1557 = vdwg.mxu0
    %1558 = vmatprep.subr.bf16.mxu0 %v1454
    %1559 = vmatpush1.bf16.msra.mxu0 %v1453
    %1560 = vmatprep.subr.bf16.mxu0 %v1456
    %1561 = vmatpush1.bf16.msra.mxu0 %v1455
    %1562 = vmatprep.subr.bf16.mxu0 %v1458
    %1563 = vmatpush1.bf16.msra.mxu0 %v1457
    %1564 = vmatprep.subr.bf16.mxu0 %v1460
    %1565 = vmatpush1.bf16.msra.mxu0 %v1459
    %1566 = vmatprep.subr.bf16.mxu0 %v1462
    %1567 = vmatpush1.bf16.msra.mxu0 %v1461
    %1568 = vmatprep.subr.bf16.mxu0 %v1464
    %1569 = vmatpush1.bf16.msra.mxu0 %v1463
    %1570 = vmatprep.subr.bf16.mxu0 %v1466
    %1571 = vmatpush1.bf16.msra.mxu0 %v1465
    %1572 = vmatprep.subr.bf16.mxu0 %v1468
    %1573 = vmatpush1.bf16.msra.mxu0 %v1467
    %1574 = vmatprep.subr.bf16.mxu0 0
    %1575 = vmatpush1.bf16.msra.mxu0 0
    %1576 = vmatprep.subr.bf16.mxu0 0
    %1577 = vmatpush1.bf16.msra.mxu0 0
    %1578 = vmatprep.subr.bf16.mxu0 0
    %1579 = vmatpush1.bf16.msra.mxu0 0
    %1580 = vmatprep.subr.bf16.mxu0 0
    %1581 = vmatpush1.bf16.msra.mxu0 0
    %1582 = vmatprep.subr.bf16.mxu0 0
    %1583 = vmatpush1.bf16.msra.mxu0 0
    %1584 = vmatprep.subr.bf16.mxu0 0
    %1585 = vmatpush1.bf16.msra.mxu0 0
    %1586 = vmatprep.subr.bf16.mxu0 0
    %1587 = vmatpush1.bf16.msra.mxu0 0
    %1588 = vmatprep.subr.bf16.mxu0 0
    %1589 = vmatpush1.bf16.msra.mxu0 0
    %1590 = vmatprep.mubr.bf16.mxu0 0
    %1591 = vmatmul.mubr.bf16.gmra.mrb[0].mxu0 %v1273
    %v1592 = vpop.f32.mrb[0].mxu0
    %v1593 = vadd.f32 %v1552, %v1592
    %v1594 = vpop.f32.mrb[0].mxu0
    %v1595 = vadd.f32 %v1554, %v1594
    %v1596 = vpop.f32.mrb[0].mxu0
    %v1597 = vpop.f32.mrb[0].mxu0
    %1598 = vdwg.mxu0
    %v1599 = vld [vmem:[%s5] sm:$0x3]
    %v1601 = vlaneseq
    %v1602 = vshrl.u32 %v1601, 7
    %v1603 = vsub.s32 0, %v1602
    %v1604 = vrot.slane %v1599, %v1603
    %v1605 = vlaneseq
    %v1606 = vshrl.u32 %v1605, 7
    %v1607 = vsub.s32 1, %v1606
    %v1608 = vrot.slane %v1599, %v1607
    %v1611 = vmul.f32 %v1593, %v1604
    %v1612 = vmul.f32 %v1595, %v1608
    %v1613 = vld [vmem:[%s6] sm:$0x3]
    %v1615 = vlaneseq
    %v1616 = vshrl.u32 %v1615, 7
    %v1617 = vsub.s32 0, %v1616
    %v1618 = vrot.slane %v1613, %v1617
    %v1619 = vlaneseq
    %v1620 = vshrl.u32 %v1619, 7
    %v1621 = vsub.s32 1, %v1620
    %v1622 = vrot.slane %v1613, %v1621
    %v1625 = vadd.f32 %v1611, %v1618
    %v1626 = vadd.f32 %v1612, %v1622
    %v1627 = vmax.f32 %v1625, 0.0
    %v1628 = vmax.f32 %v1626, 0.0
    %v1629 = vpack.c.bf16 %v1627, %v1627
    %v1630 = vpack.c.bf16 %v1628, %v1628
    %v1633 = vunpack.c.l.b16 %v1629
    %v1634 = vunpack.c.l.b16 %v1630
    %v1635 = vpack.c.b16 %v1634, %v1633
    %1637 = vst [vmem:[#allocation3 + $0x14] sm:$0xff] %v1635
    %v1638 = vld [vmem:[#allocation2 + $0xc] sm:$0xff]
    %v1639 = vld [vmem:[#allocation2 + $0x14] sm:$0xf]
    %v1640 = vld [vmem:[#allocation9] sm:$0xff]
    %v1641 = vld [vmem:[#allocation9 + $0x8] sm:$0xff]
    %v1642 = vld [vmem:[#allocation9 + $0x10] sm:$0xff]
    %v1643 = vld [vmem:[#allocation9 + $0x18] sm:$0xff]
    %v1644 = vld [vmem:[#allocation9 + $0x20] sm:$0xff]
    %v1645 = vld [vmem:[#allocation9 + $0x28] sm:$0xff]
    %v1646 = vld [vmem:[#allocation9 + $0x30] sm:$0xff]
    %v1647 = vld [vmem:[#allocation9 + $0x38] sm:$0xff]
    %v1648 = vld [vmem:[#allocation9 + $0x40] sm:$0xff]
    %v1649 = vld [vmem:[#allocation9 + $0x48] sm:$0xff]
    %v1650 = vld [vmem:[#allocation9 + $0x50] sm:$0xff]
    %v1651 = vld [vmem:[#allocation9 + $0x58] sm:$0xff]
    %v1652 = vld [vmem:[#allocation9 + $0x60] sm:$0xff]
    %v1653 = vld [vmem:[#allocation9 + $0x68] sm:$0xff]
    %v1654 = vld [vmem:[#allocation9 + $0x70] sm:$0xff]
    %v1655 = vld [vmem:[#allocation9 + $0x78] sm:$0xff]
    %v1656 = vld [vmem:[#allocation9 + $0x80] sm:$0xff]
    %v1657 = vld [vmem:[#allocation9 + $0x88] sm:$0xff]
    %v1658 = vld [vmem:[#allocation9 + $0x90] sm:$0xff]
    %v1659 = vld [vmem:[#allocation9 + $0x98] sm:$0xff]
    %v1660 = vld [vmem:[#allocation9 + $0xa0] sm:$0xff]
    %v1661 = vld [vmem:[#allocation9 + $0xa8] sm:$0xff]
    %v1662 = vld [vmem:[#allocation9 + $0xb0] sm:$0xff]
    %v1663 = vld [vmem:[#allocation9 + $0xb8] sm:$0xff]
    %v1664 = vld [vmem:[#allocation9 + $0xc0] sm:$0xff]
    %v1665 = vld [vmem:[#allocation9 + $0xc8] sm:$0xff]
    %v1666 = vld [vmem:[#allocation9 + $0xd0] sm:$0xff]
    %v1667 = vld [vmem:[#allocation9 + $0xd8] sm:$0xff]
    %v1668 = vld [vmem:[#allocation9 + $0xe0] sm:$0xff]
    %v1669 = vld [vmem:[#allocation9 + $0xe8] sm:$0xff]
    %v1670 = vld [vmem:[#allocation9 + $0xf0] sm:$0xff]
    %v1671 = vld [vmem:[#allocation9 + $0xf8] sm:$0xff]
    %v1672 = vld [vmem:[#allocation9 + $0x100] sm:$0xff]
    %v1673 = vld [vmem:[#allocation9 + $0x108] sm:$0xff]
    %v1674 = vld [vmem:[#allocation9 + $0x110] sm:$0xff]
    %v1675 = vld [vmem:[#allocation9 + $0x118] sm:$0xff]
    %v1676 = vld [vmem:[#allocation9 + $0x120] sm:$0xff]
    %v1677 = vld [vmem:[#allocation9 + $0x128] sm:$0xff]
    %v1678 = vld [vmem:[#allocation9 + $0x130] sm:$0xff]
    %v1679 = vld [vmem:[#allocation9 + $0x138] sm:$0xff]
    %v1680 = vld [vmem:[#allocation9 + $0x140] sm:$0xff]
    %v1681 = vld [vmem:[#allocation9 + $0x148] sm:$0xff]
    %v1682 = vld [vmem:[#allocation9 + $0x150] sm:$0xff]
    %v1683 = vld [vmem:[#allocation9 + $0x158] sm:$0xff]
    %v1684 = vld [vmem:[#allocation9 + $0x160] sm:$0xff]
    %v1685 = vld [vmem:[#allocation9 + $0x168] sm:$0xff]
    %v1686 = vld [vmem:[#allocation9 + $0x170] sm:$0xff]
    %v1687 = vld [vmem:[#allocation9 + $0x178] sm:$0xff]
    %v1690 = vunpack.c.l.b16 %v1638
    %v1691 = vunpack.c.h.b16 %v1638
    %v1692 = vunpack.c.l.b16 %v1639
    %v1693 = vpack.c.b16 %v1690, %v1690
    %v1694 = vpack.c.b16 %v1691, %v1691
    %v1695 = vpack.c.b16 %v1692, %v1692
    %v1747 = vunpack.c.l.b16 %v1640
    %v1748 = vunpack.c.h.b16 %v1640
    %v1749 = vunpack.c.l.b16 %v1641
    %v1750 = vunpack.c.h.b16 %v1641
    %v1751 = vunpack.c.l.b16 %v1642
    %v1752 = vunpack.c.h.b16 %v1642
    %v1753 = vunpack.c.l.b16 %v1643
    %v1754 = vunpack.c.h.b16 %v1643
    %v1755 = vunpack.c.l.b16 %v1644
    %v1756 = vunpack.c.h.b16 %v1644
    %v1757 = vunpack.c.l.b16 %v1645
    %v1758 = vunpack.c.h.b16 %v1645
    %v1759 = vunpack.c.l.b16 %v1646
    %v1760 = vunpack.c.h.b16 %v1646
    %v1761 = vunpack.c.l.b16 %v1647
    %v1762 = vunpack.c.h.b16 %v1647
    %v1763 = vunpack.c.l.b16 %v1648
    %v1764 = vunpack.c.h.b16 %v1648
    %v1765 = vunpack.c.l.b16 %v1649
    %v1766 = vunpack.c.h.b16 %v1649
    %v1767 = vunpack.c.l.b16 %v1650
    %v1768 = vunpack.c.h.b16 %v1650
    %v1769 = vunpack.c.l.b16 %v1651
    %v1770 = vunpack.c.h.b16 %v1651
    %v1771 = vunpack.c.l.b16 %v1652
    %v1772 = vunpack.c.h.b16 %v1652
    %v1773 = vunpack.c.l.b16 %v1653
    %v1774 = vunpack.c.h.b16 %v1653
    %v1775 = vunpack.c.l.b16 %v1654
    %v1776 = vunpack.c.h.b16 %v1654
    %v1777 = vunpack.c.l.b16 %v1655
    %v1778 = vunpack.c.h.b16 %v1655
    %v1779 = vunpack.c.l.b16 %v1656
    %v1780 = vunpack.c.h.b16 %v1656
    %v1781 = vunpack.c.l.b16 %v1657
    %v1782 = vunpack.c.h.b16 %v1657
    %v1783 = vunpack.c.l.b16 %v1658
    %v1784 = vunpack.c.h.b16 %v1658
    %v1785 = vunpack.c.l.b16 %v1659
    %v1786 = vunpack.c.h.b16 %v1659
    %v1787 = vunpack.c.l.b16 %v1660
    %v1788 = vunpack.c.h.b16 %v1660
    %v1789 = vunpack.c.l.b16 %v1661
    %v1790 = vunpack.c.h.b16 %v1661
    %v1791 = vunpack.c.l.b16 %v1662
    %v1792 = vunpack.c.h.b16 %v1662
    %v1793 = vunpack.c.l.b16 %v1663
    %v1794 = vunpack.c.h.b16 %v1663
    %v1795 = vunpack.c.l.b16 %v1664
    %v1796 = vunpack.c.h.b16 %v1664
    %v1797 = vunpack.c.l.b16 %v1665
    %v1798 = vunpack.c.h.b16 %v1665
    %v1799 = vunpack.c.l.b16 %v1666
    %v1800 = vunpack.c.h.b16 %v1666
    %v1801 = vunpack.c.l.b16 %v1667
    %v1802 = vunpack.c.h.b16 %v1667
    %v1803 = vunpack.c.l.b16 %v1668
    %v1804 = vunpack.c.h.b16 %v1668
    %v1805 = vunpack.c.l.b16 %v1669
    %v1806 = vunpack.c.h.b16 %v1669
    %v1807 = vunpack.c.l.b16 %v1670
    %v1808 = vunpack.c.h.b16 %v1670
    %v1809 = vunpack.c.l.b16 %v1671
    %v1810 = vunpack.c.h.b16 %v1671
    %v1811 = vunpack.c.l.b16 %v1672
    %v1812 = vunpack.c.h.b16 %v1672
    %v1813 = vunpack.c.l.b16 %v1673
    %v1814 = vunpack.c.h.b16 %v1673
    %v1815 = vunpack.c.l.b16 %v1674
    %v1816 = vunpack.c.h.b16 %v1674
    %v1817 = vunpack.c.l.b16 %v1675
    %v1818 = vunpack.c.h.b16 %v1675
    %v1819 = vunpack.c.l.b16 %v1676
    %v1820 = vunpack.c.h.b16 %v1676
    %v1821 = vunpack.c.l.b16 %v1677
    %v1822 = vunpack.c.h.b16 %v1677
    %v1823 = vunpack.c.l.b16 %v1678
    %v1824 = vunpack.c.h.b16 %v1678
    %v1825 = vunpack.c.l.b16 %v1679
    %v1826 = vunpack.c.h.b16 %v1679
    %v1827 = vunpack.c.l.b16 %v1680
    %v1828 = vunpack.c.h.b16 %v1680
    %v1829 = vunpack.c.l.b16 %v1681
    %v1830 = vunpack.c.h.b16 %v1681
    %v1831 = vunpack.c.l.b16 %v1682
    %v1832 = vunpack.c.h.b16 %v1682
    %v1833 = vunpack.c.l.b16 %v1683
    %v1834 = vunpack.c.h.b16 %v1683
    %v1835 = vunpack.c.l.b16 %v1684
    %v1836 = vunpack.c.h.b16 %v1684
    %v1837 = vunpack.c.l.b16 %v1685
    %v1838 = vunpack.c.h.b16 %v1685
    %v1839 = vunpack.c.l.b16 %v1686
    %v1840 = vunpack.c.h.b16 %v1686
    %v1841 = vunpack.c.l.b16 %v1687
    %v1842 = vunpack.c.h.b16 %v1687
    %v1843 = vpack.c.b16 %v1749, %v1747
    %v1844 = vpack.c.b16 %v1750, %v1748
    %v1845 = vpack.c.b16 %v1753, %v1751
    %v1846 = vpack.c.b16 %v1754, %v1752
    %v1847 = vpack.c.b16 %v1757, %v1755
    %v1848 = vpack.c.b16 %v1758, %v1756
    %v1849 = vpack.c.b16 %v1761, %v1759
    %v1850 = vpack.c.b16 %v1762, %v1760
    %v1851 = vpack.c.b16 %v1765, %v1763
    %v1852 = vpack.c.b16 %v1766, %v1764
    %v1853 = vpack.c.b16 %v1769, %v1767
    %v1854 = vpack.c.b16 %v1770, %v1768
    %v1855 = vpack.c.b16 %v1773, %v1771
    %v1856 = vpack.c.b16 %v1774, %v1772
    %v1857 = vpack.c.b16 %v1777, %v1775
    %v1858 = vpack.c.b16 %v1778, %v1776
    %v1859 = vpack.c.b16 %v1781, %v1779
    %v1860 = vpack.c.b16 %v1782, %v1780
    %v1861 = vpack.c.b16 %v1785, %v1783
    %v1862 = vpack.c.b16 %v1786, %v1784
    %v1863 = vpack.c.b16 %v1789, %v1787
    %v1864 = vpack.c.b16 %v1790, %v1788
    %v1865 = vpack.c.b16 %v1793, %v1791
    %v1866 = vpack.c.b16 %v1794, %v1792
    %v1867 = vpack.c.b16 %v1797, %v1795
    %v1868 = vpack.c.b16 %v1798, %v1796
    %v1869 = vpack.c.b16 %v1801, %v1799
    %v1870 = vpack.c.b16 %v1802, %v1800
    %v1871 = vpack.c.b16 %v1805, %v1803
    %v1872 = vpack.c.b16 %v1806, %v1804
    %v1873 = vpack.c.b16 %v1809, %v1807
    %v1874 = vpack.c.b16 %v1810, %v1808
    %v1875 = vpack.c.b16 %v1813, %v1811
    %v1876 = vpack.c.b16 %v1814, %v1812
    %v1877 = vpack.c.b16 %v1817, %v1815
    %v1878 = vpack.c.b16 %v1818, %v1816
    %v1879 = vpack.c.b16 %v1821, %v1819
    %v1880 = vpack.c.b16 %v1822, %v1820
    %v1881 = vpack.c.b16 %v1825, %v1823
    %v1882 = vpack.c.b16 %v1826, %v1824
    %v1883 = vpack.c.b16 %v1829, %v1827
    %v1884 = vpack.c.b16 %v1830, %v1828
    %v1885 = vpack.c.b16 %v1833, %v1831
    %v1886 = vpack.c.b16 %v1834, %v1832
    %v1887 = vpack.c.b16 %v1837, %v1835
    %v1888 = vpack.c.b16 %v1838, %v1836
    %v1889 = vpack.c.b16 %v1841, %v1839
    %v1890 = vpack.c.b16 %v1842, %v1840
    %1939 = vmatprep.subr.bf16.mxu0 %v1844
    %1940 = vmatpush1.bf16.msra.mxu0 %v1843
    %1941 = vmatprep.subr.bf16.mxu0 %v1846
    %1942 = vmatpush1.bf16.msra.mxu0 %v1845
    %1943 = vmatprep.subr.bf16.mxu0 %v1848
    %1944 = vmatpush1.bf16.msra.mxu0 %v1847
    %1945 = vmatprep.subr.bf16.mxu0 %v1850
    %1946 = vmatpush1.bf16.msra.mxu0 %v1849
    %1947 = vmatprep.subr.bf16.mxu0 %v1852
    %1948 = vmatpush1.bf16.msra.mxu0 %v1851
    %1949 = vmatprep.subr.bf16.mxu0 %v1854
    %1950 = vmatpush1.bf16.msra.mxu0 %v1853
    %1951 = vmatprep.subr.bf16.mxu0 %v1856
    %1952 = vmatpush1.bf16.msra.mxu0 %v1855
    %1953 = vmatprep.subr.bf16.mxu0 %v1858
    %1954 = vmatpush1.bf16.msra.mxu0 %v1857
    %1955 = vmatprep.subr.bf16.mxu0 %v1860
    %1956 = vmatpush1.bf16.msra.mxu0 %v1859
    %1957 = vmatprep.subr.bf16.mxu0 %v1862
    %1958 = vmatpush1.bf16.msra.mxu0 %v1861
    %1959 = vmatprep.subr.bf16.mxu0 %v1864
    %1960 = vmatpush1.bf16.msra.mxu0 %v1863
    %1961 = vmatprep.subr.bf16.mxu0 %v1866
    %1962 = vmatpush1.bf16.msra.mxu0 %v1865
    %1963 = vmatprep.subr.bf16.mxu0 %v1868
    %1964 = vmatpush1.bf16.msra.mxu0 %v1867
    %1965 = vmatprep.subr.bf16.mxu0 %v1870
    %1966 = vmatpush1.bf16.msra.mxu0 %v1869
    %1967 = vmatprep.subr.bf16.mxu0 %v1872
    %1968 = vmatpush1.bf16.msra.mxu0 %v1871
    %1969 = vmatprep.subr.bf16.mxu0 %v1874
    %1970 = vmatpush1.bf16.msra.mxu0 %v1873
    %1971 = vmatprep.mubr.bf16.mxu0 %v1694
    %1972 = vmatmul.mubr.bf16.gmra.mrb[0].mxu0 %v1693
    %v1973 = vpop.f32.mrb[0].mxu0
    %v1974 = vadd.f32 0.0, %v1973
    %v1975 = vpop.f32.mrb[0].mxu0
    %v1976 = vadd.f32 0.0, %v1975
    %v1977 = vpop.f32.mrb[0].mxu0
    %v1978 = vpop.f32.mrb[0].mxu0
    %1979 = vdwg.mxu0
    %1980 = vmatprep.subr.bf16.mxu0 %v1876
    %1981 = vmatpush1.bf16.msra.mxu0 %v1875
    %1982 = vmatprep.subr.bf16.mxu0 %v1878
    %1983 = vmatpush1.bf16.msra.mxu0 %v1877
    %1984 = vmatprep.subr.bf16.mxu0 %v1880
    %1985 = vmatpush1.bf16.msra.mxu0 %v1879
    %1986 = vmatprep.subr.bf16.mxu0 %v1882
    %1987 = vmatpush1.bf16.msra.mxu0 %v1881
    %1988 = vmatprep.subr.bf16.mxu0 %v1884
    %1989 = vmatpush1.bf16.msra.mxu0 %v1883
    %1990 = vmatprep.subr.bf16.mxu0 %v1886
    %1991 = vmatpush1.bf16.msra.mxu0 %v1885
    %1992 = vmatprep.subr.bf16.mxu0 %v1888
    %1993 = vmatpush1.bf16.msra.mxu0 %v1887
    %1994 = vmatprep.subr.bf16.mxu0 %v1890
    %1995 = vmatpush1.bf16.msra.mxu0 %v1889
    %1996 = vmatprep.subr.bf16.mxu0 0
    %1997 = vmatpush1.bf16.msra.mxu0 0
    %1998 = vmatprep.subr.bf16.mxu0 0
    %1999 = vmatpush1.bf16.msra.mxu0 0
    %2000 = vmatprep.subr.bf16.mxu0 0
    %2001 = vmatpush1.bf16.msra.mxu0 0
    %2002 = vmatprep.subr.bf16.mxu0 0
    %2003 = vmatpush1.bf16.msra.mxu0 0
    %2004 = vmatprep.subr.bf16.mxu0 0
    %2005 = vmatpush1.bf16.msra.mxu0 0
    %2006 = vmatprep.subr.bf16.mxu0 0
    %2007 = vmatpush1.bf16.msra.mxu0 0
    %2008 = vmatprep.subr.bf16.mxu0 0
    %2009 = vmatpush1.bf16.msra.mxu0 0
    %2010 = vmatprep.subr.bf16.mxu0 0
    %2011 = vmatpush1.bf16.msra.mxu0 0
    %2012 = vmatprep.mubr.bf16.mxu0 0
    %2013 = vmatmul.mubr.bf16.gmra.mrb[0].mxu0 %v1695
    %v2014 = vpop.f32.mrb[0].mxu0
    %v2015 = vadd.f32 %v1974, %v2014
    %v2016 = vpop.f32.mrb[0].mxu0
    %v2017 = vadd.f32 %v1976, %v2016
    %v2018 = vpop.f32.mrb[0].mxu0
    %v2019 = vpop.f32.mrb[0].mxu0
    %2020 = vdwg.mxu0
    %v2021 = vld [vmem:[%s5] sm:$0x3]
    %v2023 = vlaneseq
    %v2024 = vshrl.u32 %v2023, 7
    %v2025 = vsub.s32 0, %v2024
    %v2026 = vrot.slane %v2021, %v2025
    %v2027 = vlaneseq
    %v2028 = vshrl.u32 %v2027, 7
    %v2029 = vsub.s32 1, %v2028
    %v2030 = vrot.slane %v2021, %v2029
    %v2033 = vmul.f32 %v2015, %v2026
    %v2034 = vmul.f32 %v2017, %v2030
    %v2035 = vld [vmem:[%s6] sm:$0x3]
    %v2037 = vlaneseq
    %v2038 = vshrl.u32 %v2037, 7
    %v2039 = vsub.s32 0, %v2038
    %v2040 = vrot.slane %v2035, %v2039
    %v2041 = vlaneseq
    %v2042 = vshrl.u32 %v2041, 7
    %v2043 = vsub.s32 1, %v2042
    %v2044 = vrot.slane %v2035, %v2043
    %v2047 = vadd.f32 %v2033, %v2040
    %v2048 = vadd.f32 %v2034, %v2044
    %v2049 = vmax.f32 %v2047, 0.0
    %v2050 = vmax.f32 %v2048, 0.0
    %v2051 = vpack.c.bf16 %v2049, %v2049
    %v2052 = vpack.c.bf16 %v2050, %v2050
    %v2055 = vunpack.c.l.b16 %v2051
    %v2056 = vunpack.c.l.b16 %v2052
    %v2057 = vpack.c.b16 %v2056, %v2055
    %2059 = vst [vmem:[#allocation3 + $0x1c] sm:$0xff] %v2057
    %v2060 = vld [vmem:[#allocation3] sm:$0xff]
    %v2061 = vld [vmem:[#allocation3 + $0x8] sm:$0xf]
    %v2062 = vld [vmem:[#allocation11] sm:$0xf]
    %v2063 = vld [vmem:[#allocation11 + $0x4] sm:$0xf]
    %v2064 = vld [vmem:[#allocation11 + $0x8] sm:$0xf]
    %v2065 = vld [vmem:[#allocation11 + $0xc] sm:$0xf]
    %v2066 = vld [vmem:[#allocation11 + $0x10] sm:$0xf]
    %v2067 = vld [vmem:[#allocation11 + $0x14] sm:$0xf]
    %v2068 = vld [vmem:[#allocation11 + $0x18] sm:$0xf]
    %v2069 = vld [vmem:[#allocation11 + $0x1c] sm:$0xf]
    %v2070 = vld [vmem:[#allocation11 + $0x20] sm:$0xf]
    %v2071 = vld [vmem:[#allocation11 + $0x24] sm:$0xf]
    %v2072 = vld [vmem:[#allocation11 + $0x28] sm:$0xf]
    %v2073 = vld [vmem:[#allocation11 + $0x2c] sm:$0xf]
    %v2074 = vld [vmem:[#allocation11 + $0x30] sm:$0xf]
    %v2075 = vld [vmem:[#allocation11 + $0x34] sm:$0xf]
    %v2076 = vld [vmem:[#allocation11 + $0x38] sm:$0xf]
    %v2077 = vld [vmem:[#allocation11 + $0x3c] sm:$0xf]
    %v2078 = vld [vmem:[#allocation11 + $0x40] sm:$0xf]
    %v2079 = vld [vmem:[#allocation11 + $0x44] sm:$0xf]
    %v2080 = vld [vmem:[#allocation11 + $0x48] sm:$0xf]
    %v2081 = vld [vmem:[#allocation11 + $0x4c] sm:$0xf]
    %v2082 = vld [vmem:[#allocation11 + $0x50] sm:$0xf]
    %v2083 = vld [vmem:[#allocation11 + $0x54] sm:$0xf]
    %v2084 = vld [vmem:[#allocation11 + $0x58] sm:$0xf]
    %v2085 = vld [vmem:[#allocation11 + $0x5c] sm:$0xf]
    %v2086 = vld [vmem:[#allocation11 + $0x60] sm:$0xf]
    %v2087 = vld [vmem:[#allocation11 + $0x64] sm:$0xf]
    %v2088 = vld [vmem:[#allocation11 + $0x68] sm:$0xf]
    %v2089 = vld [vmem:[#allocation11 + $0x6c] sm:$0xf]
    %v2090 = vld [vmem:[#allocation11 + $0x70] sm:$0xf]
    %v2091 = vld [vmem:[#allocation11 + $0x74] sm:$0xf]
    %v2092 = vld [vmem:[#allocation11 + $0x78] sm:$0xf]
    %v2093 = vld [vmem:[#allocation11 + $0x7c] sm:$0xf]
    %v2094 = vld [vmem:[#allocation11 + $0x80] sm:$0xf]
    %v2095 = vld [vmem:[#allocation11 + $0x84] sm:$0xf]
    %v2096 = vld [vmem:[#allocation11 + $0x88] sm:$0xf]
    %v2097 = vld [vmem:[#allocation11 + $0x8c] sm:$0xf]
    %v2098 = vld [vmem:[#allocation11 + $0x90] sm:$0xf]
    %v2099 = vld [vmem:[#allocation11 + $0x94] sm:$0xf]
    %v2100 = vld [vmem:[#allocation11 + $0x98] sm:$0xf]
    %v2101 = vld [vmem:[#allocation11 + $0x9c] sm:$0xf]
    %v2102 = vld [vmem:[#allocation11 + $0xa0] sm:$0xf]
    %v2103 = vld [vmem:[#allocation11 + $0xa4] sm:$0xf]
    %v2104 = vld [vmem:[#allocation11 + $0xa8] sm:$0xf]
    %v2105 = vld [vmem:[#allocation11 + $0xac] sm:$0xf]
    %v2106 = vld [vmem:[#allocation11 + $0xb0] sm:$0xf]
    %v2107 = vld [vmem:[#allocation11 + $0xb4] sm:$0xf]
    %v2108 = vld [vmem:[#allocation11 + $0xb8] sm:$0xf]
    %v2109 = vld [vmem:[#allocation11 + $0xbc] sm:$0xf]
    %v2110 = vld [vmem:[%s8] sm:$0x1]
    %v2112 = vlaneseq
    %v2113 = vshrl.u32 %v2112, 7
    %v2114 = vsub.s32 0, %v2113
    %v2115 = vrot.slane %v2110, %v2114
    %v2119 = vunpack.c.l.b16 %v2060
    %v2120 = vunpack.c.h.b16 %v2060
    %v2121 = vunpack.c.l.b16 %v2061
    %v2122 = vpack.c.b16 %v2119, %v2119
    %v2123 = vpack.c.b16 %v2120, %v2120
    %v2124 = vpack.c.b16 %v2121, %v2121
    %v2176 = vunpack.c.l.b16 %v2062
    %v2177 = vunpack.c.l.b16 %v2063
    %v2178 = vunpack.c.l.b16 %v2064
    %v2179 = vunpack.c.l.b16 %v2065
    %v2180 = vunpack.c.l.b16 %v2066
    %v2181 = vunpack.c.l.b16 %v2067
    %v2182 = vunpack.c.l.b16 %v2068
    %v2183 = vunpack.c.l.b16 %v2069
    %v2184 = vunpack.c.l.b16 %v2070
    %v2185 = vunpack.c.l.b16 %v2071
    %v2186 = vunpack.c.l.b16 %v2072
    %v2187 = vunpack.c.l.b16 %v2073
    %v2188 = vunpack.c.l.b16 %v2074
    %v2189 = vunpack.c.l.b16 %v2075
    %v2190 = vunpack.c.l.b16 %v2076
    %v2191 = vunpack.c.l.b16 %v2077
    %v2192 = vunpack.c.l.b16 %v2078
    %v2193 = vunpack.c.l.b16 %v2079
    %v2194 = vunpack.c.l.b16 %v2080
    %v2195 = vunpack.c.l.b16 %v2081
    %v2196 = vunpack.c.l.b16 %v2082
    %v2197 = vunpack.c.l.b16 %v2083
    %v2198 = vunpack.c.l.b16 %v2084
    %v2199 = vunpack.c.l.b16 %v2085
    %v2200 = vunpack.c.l.b16 %v2086
    %v2201 = vunpack.c.l.b16 %v2087
    %v2202 = vunpack.c.l.b16 %v2088
    %v2203 = vunpack.c.l.b16 %v2089
    %v2204 = vunpack.c.l.b16 %v2090
    %v2205 = vunpack.c.l.b16 %v2091
    %v2206 = vunpack.c.l.b16 %v2092
    %v2207 = vunpack.c.l.b16 %v2093
    %v2208 = vunpack.c.l.b16 %v2094
    %v2209 = vunpack.c.l.b16 %v2095
    %v2210 = vunpack.c.l.b16 %v2096
    %v2211 = vunpack.c.l.b16 %v2097
    %v2212 = vunpack.c.l.b16 %v2098
    %v2213 = vunpack.c.l.b16 %v2099
    %v2214 = vunpack.c.l.b16 %v2100
    %v2215 = vunpack.c.l.b16 %v2101
    %v2216 = vunpack.c.l.b16 %v2102
    %v2217 = vunpack.c.l.b16 %v2103
    %v2218 = vunpack.c.l.b16 %v2104
    %v2219 = vunpack.c.l.b16 %v2105
    %v2220 = vunpack.c.l.b16 %v2106
    %v2221 = vunpack.c.l.b16 %v2107
    %v2222 = vunpack.c.l.b16 %v2108
    %v2223 = vunpack.c.l.b16 %v2109
    %v2224 = vpack.c.b16 %v2177, %v2176
    %v2225 = vpack.c.b16 %v2179, %v2178
    %v2226 = vpack.c.b16 %v2181, %v2180
    %v2227 = vpack.c.b16 %v2183, %v2182
    %v2228 = vpack.c.b16 %v2185, %v2184
    %v2229 = vpack.c.b16 %v2187, %v2186
    %v2230 = vpack.c.b16 %v2189, %v2188
    %v2231 = vpack.c.b16 %v2191, %v2190
    %v2232 = vpack.c.b16 %v2193, %v2192
    %v2233 = vpack.c.b16 %v2195, %v2194
    %v2234 = vpack.c.b16 %v2197, %v2196
    %v2235 = vpack.c.b16 %v2199, %v2198
    %v2236 = vpack.c.b16 %v2201, %v2200
    %v2237 = vpack.c.b16 %v2203, %v2202
    %v2238 = vpack.c.b16 %v2205, %v2204
    %v2239 = vpack.c.b16 %v2207, %v2206
    %v2240 = vpack.c.b16 %v2209, %v2208
    %v2241 = vpack.c.b16 %v2211, %v2210
    %v2242 = vpack.c.b16 %v2213, %v2212
    %v2243 = vpack.c.b16 %v2215, %v2214
    %v2244 = vpack.c.b16 %v2217, %v2216
    %v2245 = vpack.c.b16 %v2219, %v2218
    %v2246 = vpack.c.b16 %v2221, %v2220
    %v2247 = vpack.c.b16 %v2223, %v2222
    %2272 = vmatprep.subr.bf16.mxu0 0
    %2273 = vmatpush1.bf16.msra.mxu0 %v2224
    %2274 = vmatprep.subr.bf16.mxu0 0
    %2275 = vmatpush1.bf16.msra.mxu0 %v2225
    %2276 = vmatprep.subr.bf16.mxu0 0
    %2277 = vmatpush1.bf16.msra.mxu0 %v2226
    %2278 = vmatprep.subr.bf16.mxu0 0
    %2279 = vmatpush1.bf16.msra.mxu0 %v2227
    %2280 = vmatprep.subr.bf16.mxu0 0
    %2281 = vmatpush1.bf16.msra.mxu0 %v2228
    %2282 = vmatprep.subr.bf16.mxu0 0
    %2283 = vmatpush1.bf16.msra.mxu0 %v2229
    %2284 = vmatprep.subr.bf16.mxu0 0
    %2285 = vmatpush1.bf16.msra.mxu0 %v2230
    %2286 = vmatprep.subr.bf16.mxu0 0
    %2287 = vmatpush1.bf16.msra.mxu0 %v2231
    %2288 = vmatprep.subr.bf16.mxu0 0
    %2289 = vmatpush1.bf16.msra.mxu0 %v2232
    %2290 = vmatprep.subr.bf16.mxu0 0
    %2291 = vmatpush1.bf16.msra.mxu0 %v2233
    %2292 = vmatprep.subr.bf16.mxu0 0
    %2293 = vmatpush1.bf16.msra.mxu0 %v2234
    %2294 = vmatprep.subr.bf16.mxu0 0
    %2295 = vmatpush1.bf16.msra.mxu0 %v2235
    %2296 = vmatprep.subr.bf16.mxu0 0
    %2297 = vmatpush1.bf16.msra.mxu0 %v2236
    %2298 = vmatprep.subr.bf16.mxu0 0
    %2299 = vmatpush1.bf16.msra.mxu0 %v2237
    %2300 = vmatprep.subr.bf16.mxu0 0
    %2301 = vmatpush1.bf16.msra.mxu0 %v2238
    %2302 = vmatprep.subr.bf16.mxu0 0
    %2303 = vmatpush1.bf16.msra.mxu0 %v2239
    %2304 = vmatprep.mubr.bf16.mxu0 %v2123
    %2305 = vmatmul.mubr.bf16.gmra.mrb[0].mxu0 %v2122
    %v2306 = vpop.f32.mrb[0].mxu0
    %v2307 = vadd.f32 %v2115, %v2306
    %v2308 = vpop.f32.mrb[0].mxu0
    %v2309 = vpop.f32.mrb[0].mxu0
    %v2310 = vpop.f32.mrb[0].mxu0
    %2311 = vdwg.mxu0
    %2312 = vmatprep.subr.bf16.mxu0 0
    %2313 = vmatpush1.bf16.msra.mxu0 %v2240
    %2314 = vmatprep.subr.bf16.mxu0 0
    %2315 = vmatpush1.bf16.msra.mxu0 %v2241
    %2316 = vmatprep.subr.bf16.mxu0 0
    %2317 = vmatpush1.bf16.msra.mxu0 %v2242
    %2318 = vmatprep.subr.bf16.mxu0 0
    %2319 = vmatpush1.bf16.msra.mxu0 %v2243
    %2320 = vmatprep.subr.bf16.mxu0 0
    %2321 = vmatpush1.bf16.msra.mxu0 %v2244
    %2322 = vmatprep.subr.bf16.mxu0 0
    %2323 = vmatpush1.bf16.msra.mxu0 %v2245
    %2324 = vmatprep.subr.bf16.mxu0 0
    %2325 = vmatpush1.bf16.msra.mxu0 %v2246
    %2326 = vmatprep.subr.bf16.mxu0 0
    %2327 = vmatpush1.bf16.msra.mxu0 %v2247
    %2328 = vmatprep.subr.bf16.mxu0 0
    %2329 = vmatpush1.bf16.msra.mxu0 0
    %2330 = vmatprep.subr.bf16.mxu0 0
    %2331 = vmatpush1.bf16.msra.mxu0 0
    %2332 = vmatprep.subr.bf16.mxu0 0
    %2333 = vmatpush1.bf16.msra.mxu0 0
    %2334 = vmatprep.subr.bf16.mxu0 0
    %2335 = vmatpush1.bf16.msra.mxu0 0
    %2336 = vmatprep.subr.bf16.mxu0 0
    %2337 = vmatpush1.bf16.msra.mxu0 0
    %2338 = vmatprep.subr.bf16.mxu0 0
    %2339 = vmatpush1.bf16.msra.mxu0 0
    %2340 = vmatprep.subr.bf16.mxu0 0
    %2341 = vmatpush1.bf16.msra.mxu0 0
    %2342 = vmatprep.subr.bf16.mxu0 0
    %2343 = vmatpush1.bf16.msra.mxu0 0
    %2344 = vmatprep.mubr.bf16.mxu0 0
    %2345 = vmatmul.mubr.bf16.gmra.mrb[0].mxu0 %v2124
    %v2346 = vpop.f32.mrb[0].mxu0
    %v2347 = vadd.f32 %v2307, %v2346
    %v2348 = vpop.f32.mrb[0].mxu0
    %v2349 = vpop.f32.mrb[0].mxu0
    %v2350 = vpop.f32.mrb[0].mxu0
    %2351 = vdwg.mxu0
    %v2352 = vtanh.pop %v2347
    %v2353 = vpack.c.bf16 %v2352, %v2352
    %2354 = vst [vmem:[#allocation4 + $0x4] sm:$0xf] %v2353
    %v2355 = vld [vmem:[#allocation3 + $0x4] sm:$0xff]
    %v2356 = vld [vmem:[#allocation3 + $0xc] sm:$0xf]
    %v2357 = vld [vmem:[#allocation11] sm:$0xf]
    %v2358 = vld [vmem:[#allocation11 + $0x4] sm:$0xf]
    %v2359 = vld [vmem:[#allocation11 + $0x8] sm:$0xf]
    %v2360 = vld [vmem:[#allocation11 + $0xc] sm:$0xf]
    %v2361 = vld [vmem:[#allocation11 + $0x10] sm:$0xf]
    %v2362 = vld [vmem:[#allocation11 + $0x14] sm:$0xf]
    %v2363 = vld [vmem:[#allocation11 + $0x18] sm:$0xf]
    %v2364 = vld [vmem:[#allocation11 + $0x1c] sm:$0xf]
    %v2365 = vld [vmem:[#allocation11 + $0x20] sm:$0xf]
    %v2366 = vld [vmem:[#allocation11 + $0x24] sm:$0xf]
    %v2367 = vld [vmem:[#allocation11 + $0x28] sm:$0xf]
    %v2368 = vld [vmem:[#allocation11 + $0x2c] sm:$0xf]
    %v2369 = vld [vmem:[#allocation11 + $0x30] sm:$0xf]
    %v2370 = vld [vmem:[#allocation11 + $0x34] sm:$0xf]
    %v2371 = vld [vmem:[#allocation11 + $0x38] sm:$0xf]
    %v2372 = vld [vmem:[#allocation11 + $0x3c] sm:$0xf]
    %v2373 = vld [vmem:[#allocation11 + $0x40] sm:$0xf]
    %v2374 = vld [vmem:[#allocation11 + $0x44] sm:$0xf]
    %v2375 = vld [vmem:[#allocation11 + $0x48] sm:$0xf]
    %v2376 = vld [vmem:[#allocation11 + $0x4c] sm:$0xf]
    %v2377 = vld [vmem:[#allocation11 + $0x50] sm:$0xf]
    %v2378 = vld [vmem:[#allocation11 + $0x54] sm:$0xf]
    %v2379 = vld [vmem:[#allocation11 + $0x58] sm:$0xf]
    %v2380 = vld [vmem:[#allocation11 + $0x5c] sm:$0xf]
    %v2381 = vld [vmem:[#allocation11 + $0x60] sm:$0xf]
    %v2382 = vld [vmem:[#allocation11 + $0x64] sm:$0xf]
    %v2383 = vld [vmem:[#allocation11 + $0x68] sm:$0xf]
    %v2384 = vld [vmem:[#allocation11 + $0x6c] sm:$0xf]
    %v2385 = vld [vmem:[#allocation11 + $0x70] sm:$0xf]
    %v2386 = vld [vmem:[#allocation11 + $0x74] sm:$0xf]
    %v2387 = vld [vmem:[#allocation11 + $0x78] sm:$0xf]
    %v2388 = vld [vmem:[#allocation11 + $0x7c] sm:$0xf]
    %v2389 = vld [vmem:[#allocation11 + $0x80] sm:$0xf]
    %v2390 = vld [vmem:[#allocation11 + $0x84] sm:$0xf]
    %v2391 = vld [vmem:[#allocation11 + $0x88] sm:$0xf]
    %v2392 = vld [vmem:[#allocation11 + $0x8c] sm:$0xf]
    %v2393 = vld [vmem:[#allocation11 + $0x90] sm:$0xf]
    %v2394 = vld [vmem:[#allocation11 + $0x94] sm:$0xf]
    %v2395 = vld [vmem:[#allocation11 + $0x98] sm:$0xf]
    %v2396 = vld [vmem:[#allocation11 + $0x9c] sm:$0xf]
    %v2397 = vld [vmem:[#allocation11 + $0xa0] sm:$0xf]
    %v2398 = vld [vmem:[#allocation11 + $0xa4] sm:$0xf]
    %v2399 = vld [vmem:[#allocation11 + $0xa8] sm:$0xf]
    %v2400 = vld [vmem:[#allocation11 + $0xac] sm:$0xf]
    %v2401 = vld [vmem:[#allocation11 + $0xb0] sm:$0xf]
    %v2402 = vld [vmem:[#allocation11 + $0xb4] sm:$0xf]
    %v2403 = vld [vmem:[#allocation11 + $0xb8] sm:$0xf]
    %v2404 = vld [vmem:[#allocation11 + $0xbc] sm:$0xf]
    %v2405 = vld [vmem:[%s8] sm:$0x1]
    %v2407 = vlaneseq
    %v2408 = vshrl.u32 %v2407, 7
    %v2409 = vsub.s32 0, %v2408
    %v2410 = vrot.slane %v2405, %v2409
    %v2414 = vunpack.c.l.b16 %v2355
    %v2415 = vunpack.c.h.b16 %v2355
    %v2416 = vunpack.c.l.b16 %v2356
    %v2417 = vpack.c.b16 %v2414, %v2414
    %v2418 = vpack.c.b16 %v2415, %v2415
    %v2419 = vpack.c.b16 %v2416, %v2416
    %v2471 = vunpack.c.l.b16 %v2357
    %v2472 = vunpack.c.l.b16 %v2358
    %v2473 = vunpack.c.l.b16 %v2359
    %v2474 = vunpack.c.l.b16 %v2360
    %v2475 = vunpack.c.l.b16 %v2361
    %v2476 = vunpack.c.l.b16 %v2362
    %v2477 = vunpack.c.l.b16 %v2363
    %v2478 = vunpack.c.l.b16 %v2364
    %v2479 = vunpack.c.l.b16 %v2365
    %v2480 = vunpack.c.l.b16 %v2366
    %v2481 = vunpack.c.l.b16 %v2367
    %v2482 = vunpack.c.l.b16 %v2368
    %v2483 = vunpack.c.l.b16 %v2369
    %v2484 = vunpack.c.l.b16 %v2370
    %v2485 = vunpack.c.l.b16 %v2371
    %v2486 = vunpack.c.l.b16 %v2372
    %v2487 = vunpack.c.l.b16 %v2373
    %v2488 = vunpack.c.l.b16 %v2374
    %v2489 = vunpack.c.l.b16 %v2375
    %v2490 = vunpack.c.l.b16 %v2376
    %v2491 = vunpack.c.l.b16 %v2377
    %v2492 = vunpack.c.l.b16 %v2378
    %v2493 = vunpack.c.l.b16 %v2379
    %v2494 = vunpack.c.l.b16 %v2380
    %v2495 = vunpack.c.l.b16 %v2381
    %v2496 = vunpack.c.l.b16 %v2382
    %v2497 = vunpack.c.l.b16 %v2383
    %v2498 = vunpack.c.l.b16 %v2384
    %v2499 = vunpack.c.l.b16 %v2385
    %v2500 = vunpack.c.l.b16 %v2386
    %v2501 = vunpack.c.l.b16 %v2387
    %v2502 = vunpack.c.l.b16 %v2388
    %v2503 = vunpack.c.l.b16 %v2389
    %v2504 = vunpack.c.l.b16 %v2390
    %v2505 = vunpack.c.l.b16 %v2391
    %v2506 = vunpack.c.l.b16 %v2392
    %v2507 = vunpack.c.l.b16 %v2393
    %v2508 = vunpack.c.l.b16 %v2394
    %v2509 = vunpack.c.l.b16 %v2395
    %v2510 = vunpack.c.l.b16 %v2396
    %v2511 = vunpack.c.l.b16 %v2397
    %v2512 = vunpack.c.l.b16 %v2398
    %v2513 = vunpack.c.l.b16 %v2399
    %v2514 = vunpack.c.l.b16 %v2400
    %v2515 = vunpack.c.l.b16 %v2401
    %v2516 = vunpack.c.l.b16 %v2402
    %v2517 = vunpack.c.l.b16 %v2403
    %v2518 = vunpack.c.l.b16 %v2404
    %v2519 = vpack.c.b16 %v2472, %v2471
    %v2520 = vpack.c.b16 %v2474, %v2473
    %v2521 = vpack.c.b16 %v2476, %v2475
    %v2522 = vpack.c.b16 %v2478, %v2477
    %v2523 = vpack.c.b16 %v2480, %v2479
    %v2524 = vpack.c.b16 %v2482, %v2481
    %v2525 = vpack.c.b16 %v2484, %v2483
    %v2526 = vpack.c.b16 %v2486, %v2485
    %v2527 = vpack.c.b16 %v2488, %v2487
    %v2528 = vpack.c.b16 %v2490, %v2489
    %v2529 = vpack.c.b16 %v2492, %v2491
    %v2530 = vpack.c.b16 %v2494, %v2493
    %v2531 = vpack.c.b16 %v2496, %v2495
    %v2532 = vpack.c.b16 %v2498, %v2497
    %v2533 = vpack.c.b16 %v2500, %v2499
    %v2534 = vpack.c.b16 %v2502, %v2501
    %v2535 = vpack.c.b16 %v2504, %v2503
    %v2536 = vpack.c.b16 %v2506, %v2505
    %v2537 = vpack.c.b16 %v2508, %v2507
    %v2538 = vpack.c.b16 %v2510, %v2509
    %v2539 = vpack.c.b16 %v2512, %v2511
    %v2540 = vpack.c.b16 %v2514, %v2513
    %v2541 = vpack.c.b16 %v2516, %v2515
    %v2542 = vpack.c.b16 %v2518, %v2517
    %2567 = vmatprep.subr.bf16.mxu0 0
    %2568 = vmatpush1.bf16.msra.mxu0 %v2519
    %2569 = vmatprep.subr.bf16.mxu0 0
    %2570 = vmatpush1.bf16.msra.mxu0 %v2520
    %2571 = vmatprep.subr.bf16.mxu0 0
    %2572 = vmatpush1.bf16.msra.mxu0 %v2521
    %2573 = vmatprep.subr.bf16.mxu0 0
    %2574 = vmatpush1.bf16.msra.mxu0 %v2522
    %2575 = vmatprep.subr.bf16.mxu0 0
    %2576 = vmatpush1.bf16.msra.mxu0 %v2523
    %2577 = vmatprep.subr.bf16.mxu0 0
    %2578 = vmatpush1.bf16.msra.mxu0 %v2524
    %2579 = vmatprep.subr.bf16.mxu0 0
    %2580 = vmatpush1.bf16.msra.mxu0 %v2525
    %2581 = vmatprep.subr.bf16.mxu0 0
    %2582 = vmatpush1.bf16.msra.mxu0 %v2526
    %2583 = vmatprep.subr.bf16.mxu0 0
    %2584 = vmatpush1.bf16.msra.mxu0 %v2527
    %2585 = vmatprep.subr.bf16.mxu0 0
    %2586 = vmatpush1.bf16.msra.mxu0 %v2528
    %2587 = vmatprep.subr.bf16.mxu0 0
    %2588 = vmatpush1.bf16.msra.mxu0 %v2529
    %2589 = vmatprep.subr.bf16.mxu0 0
    %2590 = vmatpush1.bf16.msra.mxu0 %v2530
    %2591 = vmatprep.subr.bf16.mxu0 0
    %2592 = vmatpush1.bf16.msra.mxu0 %v2531
    %2593 = vmatprep.subr.bf16.mxu0 0
    %2594 = vmatpush1.bf16.msra.mxu0 %v2532
    %2595 = vmatprep.subr.bf16.mxu0 0
    %2596 = vmatpush1.bf16.msra.mxu0 %v2533
    %2597 = vmatprep.subr.bf16.mxu0 0
    %2598 = vmatpush1.bf16.msra.mxu0 %v2534
    %2599 = vmatprep.mubr.bf16.mxu0 %v2418
    %2600 = vmatmul.mubr.bf16.gmra.mrb[0].mxu0 %v2417
    %v2601 = vpop.f32.mrb[0].mxu0
    %v2602 = vadd.f32 %v2410, %v2601
    %v2603 = vpop.f32.mrb[0].mxu0
    %v2604 = vpop.f32.mrb[0].mxu0
    %v2605 = vpop.f32.mrb[0].mxu0
    %2606 = vdwg.mxu0
    %2607 = vmatprep.subr.bf16.mxu0 0
    %2608 = vmatpush1.bf16.msra.mxu0 %v2535
    %2609 = vmatprep.subr.bf16.mxu0 0
    %2610 = vmatpush1.bf16.msra.mxu0 %v2536
    %2611 = vmatprep.subr.bf16.mxu0 0
    %2612 = vmatpush1.bf16.msra.mxu0 %v2537
    %2613 = vmatprep.subr.bf16.mxu0 0
    %2614 = vmatpush1.bf16.msra.mxu0 %v2538
    %2615 = vmatprep.subr.bf16.mxu0 0
    %2616 = vmatpush1.bf16.msra.mxu0 %v2539
    %2617 = vmatprep.subr.bf16.mxu0 0
    %2618 = vmatpush1.bf16.msra.mxu0 %v2540
    %2619 = vmatprep.subr.bf16.mxu0 0
    %2620 = vmatpush1.bf16.msra.mxu0 %v2541
    %2621 = vmatprep.subr.bf16.mxu0 0
    %2622 = vmatpush1.bf16.msra.mxu0 %v2542
    %2623 = vmatprep.subr.bf16.mxu0 0
    %2624 = vmatpush1.bf16.msra.mxu0 0
    %2625 = vmatprep.subr.bf16.mxu0 0
    %2626 = vmatpush1.bf16.msra.mxu0 0
    %2627 = vmatprep.subr.bf16.mxu0 0
    %2628 = vmatpush1.bf16.msra.mxu0 0
    %2629 = vmatprep.subr.bf16.mxu0 0
    %2630 = vmatpush1.bf16.msra.mxu0 0
    %2631 = vmatprep.subr.bf16.mxu0 0
    %2632 = vmatpush1.bf16.msra.mxu0 0
    %2633 = vmatprep.subr.bf16.mxu0 0
    %2634 = vmatpush1.bf16.msra.mxu0 0
    %2635 = vmatprep.subr.bf16.mxu0 0
    %2636 = vmatpush1.bf16.msra.mxu0 0
    %2637 = vmatprep.subr.bf16.mxu0 0
    %2638 = vmatpush1.bf16.msra.mxu0 0
    %2639 = vmatprep.mubr.bf16.mxu0 0
    %2640 = vmatmul.mubr.bf16.gmra.mrb[0].mxu0 %v2419
    %v2641 = vpop.f32.mrb[0].mxu0
    %v2642 = vadd.f32 %v2602, %v2641
    %v2643 = vpop.f32.mrb[0].mxu0
    %v2644 = vpop.f32.mrb[0].mxu0
    %v2645 = vpop.f32.mrb[0].mxu0
    %2646 = vdwg.mxu0
    %v2647 = vtanh.pop %v2642
    %v2648 = vpack.c.bf16 %v2647, %v2647
    %2649 = vst [vmem:[#allocation4 + $0x8] sm:$0xf] %v2648
    %v2650 = vld [vmem:[#allocation3 + $0x8] sm:$0xff]
    %v2651 = vld [vmem:[#allocation3 + $0x10] sm:$0xf]
    %v2652 = vld [vmem:[#allocation11] sm:$0xf]
    %v2653 = vld [vmem:[#allocation11 + $0x4] sm:$0xf]
    %v2654 = vld [vmem:[#allocation11 + $0x8] sm:$0xf]
    %v2655 = vld [vmem:[#allocation11 + $0xc] sm:$0xf]
    %v2656 = vld [vmem:[#allocation11 + $0x10] sm:$0xf]
    %v2657 = vld [vmem:[#allocation11 + $0x14] sm:$0xf]
    %v2658 = vld [vmem:[#allocation11 + $0x18] sm:$0xf]
    %v2659 = vld [vmem:[#allocation11 + $0x1c] sm:$0xf]
    %v2660 = vld [vmem:[#allocation11 + $0x20] sm:$0xf]
    %v2661 = vld [vmem:[#allocation11 + $0x24] sm:$0xf]
    %v2662 = vld [vmem:[#allocation11 + $0x28] sm:$0xf]
    %v2663 = vld [vmem:[#allocation11 + $0x2c] sm:$0xf]
    %v2664 = vld [vmem:[#allocation11 + $0x30] sm:$0xf]
    %v2665 = vld [vmem:[#allocation11 + $0x34] sm:$0xf]
    %v2666 = vld [vmem:[#allocation11 + $0x38] sm:$0xf]
    %v2667 = vld [vmem:[#allocation11 + $0x3c] sm:$0xf]
    %v2668 = vld [vmem:[#allocation11 + $0x40] sm:$0xf]
    %v2669 = vld [vmem:[#allocation11 + $0x44] sm:$0xf]
    %v2670 = vld [vmem:[#allocation11 + $0x48] sm:$0xf]
    %v2671 = vld [vmem:[#allocation11 + $0x4c] sm:$0xf]
    %v2672 = vld [vmem:[#allocation11 + $0x50] sm:$0xf]
    %v2673 = vld [vmem:[#allocation11 + $0x54] sm:$0xf]
    %v2674 = vld [vmem:[#allocation11 + $0x58] sm:$0xf]
    %v2675 = vld [vmem:[#allocation11 + $0x5c] sm:$0xf]
    %v2676 = vld [vmem:[#allocation11 + $0x60] sm:$0xf]
    %v2677 = vld [vmem:[#allocation11 + $0x64] sm:$0xf]
    %v2678 = vld [vmem:[#allocation11 + $0x68] sm:$0xf]
    %v2679 = vld [vmem:[#allocation11 + $0x6c] sm:$0xf]
    %v2680 = vld [vmem:[#allocation11 + $0x70] sm:$0xf]
    %v2681 = vld [vmem:[#allocation11 + $0x74] sm:$0xf]
    %v2682 = vld [vmem:[#allocation11 + $0x78] sm:$0xf]
    %v2683 = vld [vmem:[#allocation11 + $0x7c] sm:$0xf]
    %v2684 = vld [vmem:[#allocation11 + $0x80] sm:$0xf]
    %v2685 = vld [vmem:[#allocation11 + $0x84] sm:$0xf]
    %v2686 = vld [vmem:[#allocation11 + $0x88] sm:$0xf]
    %v2687 = vld [vmem:[#allocation11 + $0x8c] sm:$0xf]
    %v2688 = vld [vmem:[#allocation11 + $0x90] sm:$0xf]
    %v2689 = vld [vmem:[#allocation11 + $0x94] sm:$0xf]
    %v2690 = vld [vmem:[#allocation11 + $0x98] sm:$0xf]
    %v2691 = vld [vmem:[#allocation11 + $0x9c] sm:$0xf]
    %v2692 = vld [vmem:[#allocation11 + $0xa0] sm:$0xf]
    %v2693 = vld [vmem:[#allocation11 + $0xa4] sm:$0xf]
    %v2694 = vld [vmem:[#allocation11 + $0xa8] sm:$0xf]
    %v2695 = vld [vmem:[#allocation11 + $0xac] sm:$0xf]
    %v2696 = vld [vmem:[#allocation11 + $0xb0] sm:$0xf]
    %v2697 = vld [vmem:[#allocation11 + $0xb4] sm:$0xf]
    %v2698 = vld [vmem:[#allocation11 + $0xb8] sm:$0xf]
    %v2699 = vld [vmem:[#allocation11 + $0xbc] sm:$0xf]
    %v2700 = vld [vmem:[%s8] sm:$0x1]
    %v2702 = vlaneseq
    %v2703 = vshrl.u32 %v2702, 7
    %v2704 = vsub.s32 0, %v2703
    %v2705 = vrot.slane %v2700, %v2704
    %v2709 = vunpack.c.l.b16 %v2650
    %v2710 = vunpack.c.h.b16 %v2650
    %v2711 = vunpack.c.l.b16 %v2651
    %v2712 = vpack.c.b16 %v2709, %v2709
    %v2713 = vpack.c.b16 %v2710, %v2710
    %v2714 = vpack.c.b16 %v2711, %v2711
    %v2766 = vunpack.c.l.b16 %v2652
    %v2767 = vunpack.c.l.b16 %v2653
    %v2768 = vunpack.c.l.b16 %v2654
    %v2769 = vunpack.c.l.b16 %v2655
    %v2770 = vunpack.c.l.b16 %v2656
    %v2771 = vunpack.c.l.b16 %v2657
    %v2772 = vunpack.c.l.b16 %v2658
    %v2773 = vunpack.c.l.b16 %v2659
    %v2774 = vunpack.c.l.b16 %v2660
    %v2775 = vunpack.c.l.b16 %v2661
    %v2776 = vunpack.c.l.b16 %v2662
    %v2777 = vunpack.c.l.b16 %v2663
    %v2778 = vunpack.c.l.b16 %v2664
    %v2779 = vunpack.c.l.b16 %v2665
    %v2780 = vunpack.c.l.b16 %v2666
    %v2781 = vunpack.c.l.b16 %v2667
    %v2782 = vunpack.c.l.b16 %v2668
    %v2783 = vunpack.c.l.b16 %v2669
    %v2784 = vunpack.c.l.b16 %v2670
    %v2785 = vunpack.c.l.b16 %v2671
    %v2786 = vunpack.c.l.b16 %v2672
    %v2787 = vunpack.c.l.b16 %v2673
    %v2788 = vunpack.c.l.b16 %v2674
    %v2789 = vunpack.c.l.b16 %v2675
    %v2790 = vunpack.c.l.b16 %v2676
    %v2791 = vunpack.c.l.b16 %v2677
    %v2792 = vunpack.c.l.b16 %v2678
    %v2793 = vunpack.c.l.b16 %v2679
    %v2794 = vunpack.c.l.b16 %v2680
    %v2795 = vunpack.c.l.b16 %v2681
    %v2796 = vunpack.c.l.b16 %v2682
    %v2797 = vunpack.c.l.b16 %v2683
    %v2798 = vunpack.c.l.b16 %v2684
    %v2799 = vunpack.c.l.b16 %v2685
    %v2800 = vunpack.c.l.b16 %v2686
    %v2801 = vunpack.c.l.b16 %v2687
    %v2802 = vunpack.c.l.b16 %v2688
    %v2803 = vunpack.c.l.b16 %v2689
    %v2804 = vunpack.c.l.b16 %v2690
    %v2805 = vunpack.c.l.b16 %v2691
    %v2806 = vunpack.c.l.b16 %v2692
    %v2807 = vunpack.c.l.b16 %v2693
    %v2808 = vunpack.c.l.b16 %v2694
    %v2809 = vunpack.c.l.b16 %v2695
    %v2810 = vunpack.c.l.b16 %v2696
    %v2811 = vunpack.c.l.b16 %v2697
    %v2812 = vunpack.c.l.b16 %v2698
    %v2813 = vunpack.c.l.b16 %v2699
    %v2814 = vpack.c.b16 %v2767, %v2766
    %v2815 = vpack.c.b16 %v2769, %v2768
    %v2816 = vpack.c.b16 %v2771, %v2770
    %v2817 = vpack.c.b16 %v2773, %v2772
    %v2818 = vpack.c.b16 %v2775, %v2774
    %v2819 = vpack.c.b16 %v2777, %v2776
    %v2820 = vpack.c.b16 %v2779, %v2778
    %v2821 = vpack.c.b16 %v2781, %v2780
    %v2822 = vpack.c.b16 %v2783, %v2782
    %v2823 = vpack.c.b16 %v2785, %v2784
    %v2824 = vpack.c.b16 %v2787, %v2786
    %v2825 = vpack.c.b16 %v2789, %v2788
    %v2826 = vpack.c.b16 %v2791, %v2790
    %v2827 = vpack.c.b16 %v2793, %v2792
    %v2828 = vpack.c.b16 %v2795, %v2794
    %v2829 = vpack.c.b16 %v2797, %v2796
    %v2830 = vpack.c.b16 %v2799, %v2798
    %v2831 = vpack.c.b16 %v2801, %v2800
    %v2832 = vpack.c.b16 %v2803, %v2802
    %v2833 = vpack.c.b16 %v2805, %v2804
    %v2834 = vpack.c.b16 %v2807, %v2806
    %v2835 = vpack.c.b16 %v2809, %v2808
    %v2836 = vpack.c.b16 %v2811, %v2810
    %v2837 = vpack.c.b16 %v2813, %v2812
    %2862 = vmatprep.subr.bf16.mxu0 0
    %2863 = vmatpush1.bf16.msra.mxu0 %v2814
    %2864 = vmatprep.subr.bf16.mxu0 0
    %2865 = vmatpush1.bf16.msra.mxu0 %v2815
    %2866 = vmatprep.subr.bf16.mxu0 0
    %2867 = vmatpush1.bf16.msra.mxu0 %v2816
    %2868 = vmatprep.subr.bf16.mxu0 0
    %2869 = vmatpush1.bf16.msra.mxu0 %v2817
    %2870 = vmatprep.subr.bf16.mxu0 0
    %2871 = vmatpush1.bf16.msra.mxu0 %v2818
    %2872 = vmatprep.subr.bf16.mxu0 0
    %2873 = vmatpush1.bf16.msra.mxu0 %v2819
    %2874 = vmatprep.subr.bf16.mxu0 0
    %2875 = vmatpush1.bf16.msra.mxu0 %v2820
    %2876 = vmatprep.subr.bf16.mxu0 0
    %2877 = vmatpush1.bf16.msra.mxu0 %v2821
    %2878 = vmatprep.subr.bf16.mxu0 0
    %2879 = vmatpush1.bf16.msra.mxu0 %v2822
    %2880 = vmatprep.subr.bf16.mxu0 0
    %2881 = vmatpush1.bf16.msra.mxu0 %v2823
    %2882 = vmatprep.subr.bf16.mxu0 0
    %2883 = vmatpush1.bf16.msra.mxu0 %v2824
    %2884 = vmatprep.subr.bf16.mxu0 0
    %2885 = vmatpush1.bf16.msra.mxu0 %v2825
    %2886 = vmatprep.subr.bf16.mxu0 0
    %2887 = vmatpush1.bf16.msra.mxu0 %v2826
    %2888 = vmatprep.subr.bf16.mxu0 0
    %2889 = vmatpush1.bf16.msra.mxu0 %v2827
    %2890 = vmatprep.subr.bf16.mxu0 0
    %2891 = vmatpush1.bf16.msra.mxu0 %v2828
    %2892 = vmatprep.subr.bf16.mxu0 0
    %2893 = vmatpush1.bf16.msra.mxu0 %v2829
    %2894 = vmatprep.mubr.bf16.mxu0 %v2713
    %2895 = vmatmul.mubr.bf16.gmra.mrb[0].mxu0 %v2712
    %v2896 = vpop.f32.mrb[0].mxu0
    %v2897 = vadd.f32 %v2705, %v2896
    %v2898 = vpop.f32.mrb[0].mxu0
    %v2899 = vpop.f32.mrb[0].mxu0
    %v2900 = vpop.f32.mrb[0].mxu0
    %2901 = vdwg.mxu0
    %2902 = vmatprep.subr.bf16.mxu0 0
    %2903 = vmatpush1.bf16.msra.mxu0 %v2830
    %2904 = vmatprep.subr.bf16.mxu0 0
    %2905 = vmatpush1.bf16.msra.mxu0 %v2831
    %2906 = vmatprep.subr.bf16.mxu0 0
    %2907 = vmatpush1.bf16.msra.mxu0 %v2832
    %2908 = vmatprep.subr.bf16.mxu0 0
    %2909 = vmatpush1.bf16.msra.mxu0 %v2833
    %2910 = vmatprep.subr.bf16.mxu0 0
    %2911 = vmatpush1.bf16.msra.mxu0 %v2834
    %2912 = vmatprep.subr.bf16.mxu0 0
    %2913 = vmatpush1.bf16.msra.mxu0 %v2835
    %2914 = vmatprep.subr.bf16.mxu0 0
    %2915 = vmatpush1.bf16.msra.mxu0 %v2836
    %2916 = vmatprep.subr.bf16.mxu0 0
    %2917 = vmatpush1.bf16.msra.mxu0 %v2837
    %2918 = vmatprep.subr.bf16.mxu0 0
    %2919 = vmatpush1.bf16.msra.mxu0 0
    %2920 = vmatprep.subr.bf16.mxu0 0
    %2921 = vmatpush1.bf16.msra.mxu0 0
    %2922 = vmatprep.subr.bf16.mxu0 0
    %2923 = vmatpush1.bf16.msra.mxu0 0
    %2924 = vmatprep.subr.bf16.mxu0 0
    %2925 = vmatpush1.bf16.msra.mxu0 0
    %2926 = vmatprep.subr.bf16.mxu0 0
    %2927 = vmatpush1.bf16.msra.mxu0 0
    %2928 = vmatprep.subr.bf16.mxu0 0
    %2929 = vmatpush1.bf16.msra.mxu0 0
    %2930 = vmatprep.subr.bf16.mxu0 0
    %2931 = vmatpush1.bf16.msra.mxu0 0
    %2932 = vmatprep.subr.bf16.mxu0 0
    %2933 = vmatpush1.bf16.msra.mxu0 0
    %2934 = vmatprep.mubr.bf16.mxu0 0
    %2935 = vmatmul.mubr.bf16.gmra.mrb[0].mxu0 %v2714
    %v2936 = vpop.f32.mrb[0].mxu0
    %v2937 = vadd.f32 %v2897, %v2936
    %v2938 = vpop.f32.mrb[0].mxu0
    %v2939 = vpop.f32.mrb[0].mxu0
    %v2940 = vpop.f32.mrb[0].mxu0
    %2941 = vdwg.mxu0
    %v2942 = vtanh.pop %v2937
    %v2943 = vpack.c.bf16 %v2942, %v2942
    %2944 = vst [vmem:[#allocation4 + $0xc] sm:$0xf] %v2943
    %v2945 = vld [vmem:[#allocation3 + $0xc] sm:$0xff]
    %v2946 = vld [vmem:[#allocation3 + $0x14] sm:$0xf]
    %v2947 = vld [vmem:[#allocation11] sm:$0xf]
    %v2948 = vld [vmem:[#allocation11 + $0x4] sm:$0xf]
    %v2949 = vld [vmem:[#allocation11 + $0x8] sm:$0xf]
    %v2950 = vld [vmem:[#allocation11 + $0xc] sm:$0xf]
    %v2951 = vld [vmem:[#allocation11 + $0x10] sm:$0xf]
    %v2952 = vld [vmem:[#allocation11 + $0x14] sm:$0xf]
    %v2953 = vld [vmem:[#allocation11 + $0x18] sm:$0xf]
    %v2954 = vld [vmem:[#allocation11 + $0x1c] sm:$0xf]
    %v2955 = vld [vmem:[#allocation11 + $0x20] sm:$0xf]
    %v2956 = vld [vmem:[#allocation11 + $0x24] sm:$0xf]
    %v2957 = vld [vmem:[#allocation11 + $0x28] sm:$0xf]
    %v2958 = vld [vmem:[#allocation11 + $0x2c] sm:$0xf]
    %v2959 = vld [vmem:[#allocation11 + $0x30] sm:$0xf]
    %v2960 = vld [vmem:[#allocation11 + $0x34] sm:$0xf]
    %v2961 = vld [vmem:[#allocation11 + $0x38] sm:$0xf]
    %v2962 = vld [vmem:[#allocation11 + $0x3c] sm:$0xf]
    %v2963 = vld [vmem:[#allocation11 + $0x40] sm:$0xf]
    %v2964 = vld [vmem:[#allocation11 + $0x44] sm:$0xf]
    %v2965 = vld [vmem:[#allocation11 + $0x48] sm:$0xf]
    %v2966 = vld [vmem:[#allocation11 + $0x4c] sm:$0xf]
    %v2967 = vld [vmem:[#allocation11 + $0x50] sm:$0xf]
    %v2968 = vld [vmem:[#allocation11 + $0x54] sm:$0xf]
    %v2969 = vld [vmem:[#allocation11 + $0x58] sm:$0xf]
    %v2970 = vld [vmem:[#allocation11 + $0x5c] sm:$0xf]
    %v2971 = vld [vmem:[#allocation11 + $0x60] sm:$0xf]
    %v2972 = vld [vmem:[#allocation11 + $0x64] sm:$0xf]
    %v2973 = vld [vmem:[#allocation11 + $0x68] sm:$0xf]
    %v2974 = vld [vmem:[#allocation11 + $0x6c] sm:$0xf]
    %v2975 = vld [vmem:[#allocation11 + $0x70] sm:$0xf]
    %v2976 = vld [vmem:[#allocation11 + $0x74] sm:$0xf]
    %v2977 = vld [vmem:[#allocation11 + $0x78] sm:$0xf]
    %v2978 = vld [vmem:[#allocation11 + $0x7c] sm:$0xf]
    %v2979 = vld [vmem:[#allocation11 + $0x80] sm:$0xf]
    %v2980 = vld [vmem:[#allocation11 + $0x84] sm:$0xf]
    %v2981 = vld [vmem:[#allocation11 + $0x88] sm:$0xf]
    %v2982 = vld [vmem:[#allocation11 + $0x8c] sm:$0xf]
    %v2983 = vld [vmem:[#allocation11 + $0x90] sm:$0xf]
    %v2984 = vld [vmem:[#allocation11 + $0x94] sm:$0xf]
    %v2985 = vld [vmem:[#allocation11 + $0x98] sm:$0xf]
    %v2986 = vld [vmem:[#allocation11 + $0x9c] sm:$0xf]
    %v2987 = vld [vmem:[#allocation11 + $0xa0] sm:$0xf]
    %v2988 = vld [vmem:[#allocation11 + $0xa4] sm:$0xf]
    %v2989 = vld [vmem:[#allocation11 + $0xa8] sm:$0xf]
    %v2990 = vld [vmem:[#allocation11 + $0xac] sm:$0xf]
    %v2991 = vld [vmem:[#allocation11 + $0xb0] sm:$0xf]
    %v2992 = vld [vmem:[#allocation11 + $0xb4] sm:$0xf]
    %v2993 = vld [vmem:[#allocation11 + $0xb8] sm:$0xf]
    %v2994 = vld [vmem:[#allocation11 + $0xbc] sm:$0xf]
    %v2995 = vld [vmem:[%s8] sm:$0x1]
    %v2997 = vlaneseq
    %v2998 = vshrl.u32 %v2997, 7
    %v2999 = vsub.s32 0, %v2998
    %v3000 = vrot.slane %v2995, %v2999
    %v3004 = vunpack.c.l.b16 %v2945
    %v3005 = vunpack.c.h.b16 %v2945
    %v3006 = vunpack.c.l.b16 %v2946
    %v3007 = vpack.c.b16 %v3004, %v3004
    %v3008 = vpack.c.b16 %v3005, %v3005
    %v3009 = vpack.c.b16 %v3006, %v3006
    %v3061 = vunpack.c.l.b16 %v2947
    %v3062 = vunpack.c.l.b16 %v2948
    %v3063 = vunpack.c.l.b16 %v2949
    %v3064 = vunpack.c.l.b16 %v2950
    %v3065 = vunpack.c.l.b16 %v2951
    %v3066 = vunpack.c.l.b16 %v2952
    %v3067 = vunpack.c.l.b16 %v2953
    %v3068 = vunpack.c.l.b16 %v2954
    %v3069 = vunpack.c.l.b16 %v2955
    %v3070 = vunpack.c.l.b16 %v2956
    %v3071 = vunpack.c.l.b16 %v2957
    %v3072 = vunpack.c.l.b16 %v2958
    %v3073 = vunpack.c.l.b16 %v2959
    %v3074 = vunpack.c.l.b16 %v2960
    %v3075 = vunpack.c.l.b16 %v2961
    %v3076 = vunpack.c.l.b16 %v2962
    %v3077 = vunpack.c.l.b16 %v2963
    %v3078 = vunpack.c.l.b16 %v2964
    %v3079 = vunpack.c.l.b16 %v2965
    %v3080 = vunpack.c.l.b16 %v2966
    %v3081 = vunpack.c.l.b16 %v2967
    %v3082 = vunpack.c.l.b16 %v2968
    %v3083 = vunpack.c.l.b16 %v2969
    %v3084 = vunpack.c.l.b16 %v2970
    %v3085 = vunpack.c.l.b16 %v2971
    %v3086 = vunpack.c.l.b16 %v2972
    %v3087 = vunpack.c.l.b16 %v2973
    %v3088 = vunpack.c.l.b16 %v2974
    %v3089 = vunpack.c.l.b16 %v2975
    %v3090 = vunpack.c.l.b16 %v2976
    %v3091 = vunpack.c.l.b16 %v2977
    %v3092 = vunpack.c.l.b16 %v2978
    %v3093 = vunpack.c.l.b16 %v2979
    %v3094 = vunpack.c.l.b16 %v2980
    %v3095 = vunpack.c.l.b16 %v2981
    %v3096 = vunpack.c.l.b16 %v2982
    %v3097 = vunpack.c.l.b16 %v2983
    %v3098 = vunpack.c.l.b16 %v2984
    %v3099 = vunpack.c.l.b16 %v2985
    %v3100 = vunpack.c.l.b16 %v2986
    %v3101 = vunpack.c.l.b16 %v2987
    %v3102 = vunpack.c.l.b16 %v2988
    %v3103 = vunpack.c.l.b16 %v2989
    %v3104 = vunpack.c.l.b16 %v2990
    %v3105 = vunpack.c.l.b16 %v2991
    %v3106 = vunpack.c.l.b16 %v2992
    %v3107 = vunpack.c.l.b16 %v2993
    %v3108 = vunpack.c.l.b16 %v2994
    %v3109 = vpack.c.b16 %v3062, %v3061
    %v3110 = vpack.c.b16 %v3064, %v3063
    %v3111 = vpack.c.b16 %v3066, %v3065
    %v3112 = vpack.c.b16 %v3068, %v3067
    %v3113 = vpack.c.b16 %v3070, %v3069
    %v3114 = vpack.c.b16 %v3072, %v3071
    %v3115 = vpack.c.b16 %v3074, %v3073
    %v3116 = vpack.c.b16 %v3076, %v3075
    %v3117 = vpack.c.b16 %v3078, %v3077
    %v3118 = vpack.c.b16 %v3080, %v3079
    %v3119 = vpack.c.b16 %v3082, %v3081
    %v3120 = vpack.c.b16 %v3084, %v3083
    %v3121 = vpack.c.b16 %v3086, %v3085
    %v3122 = vpack.c.b16 %v3088, %v3087
    %v3123 = vpack.c.b16 %v3090, %v3089
    %v3124 = vpack.c.b16 %v3092, %v3091
    %v3125 = vpack.c.b16 %v3094, %v3093
    %v3126 = vpack.c.b16 %v3096, %v3095
    %v3127 = vpack.c.b16 %v3098, %v3097
    %v3128 = vpack.c.b16 %v3100, %v3099
    %v3129 = vpack.c.b16 %v3102, %v3101
    %v3130 = vpack.c.b16 %v3104, %v3103
    %v3131 = vpack.c.b16 %v3106, %v3105
    %v3132 = vpack.c.b16 %v3108, %v3107
    %3157 = vmatprep.subr.bf16.mxu0 0
    %3158 = vmatpush1.bf16.msra.mxu0 %v3109
    %3159 = vmatprep.subr.bf16.mxu0 0
    %3160 = vmatpush1.bf16.msra.mxu0 %v3110
    %3161 = vmatprep.subr.bf16.mxu0 0
    %3162 = vmatpush1.bf16.msra.mxu0 %v3111
    %3163 = vmatprep.subr.bf16.mxu0 0
    %3164 = vmatpush1.bf16.msra.mxu0 %v3112
    %3165 = vmatprep.subr.bf16.mxu0 0
    %3166 = vmatpush1.bf16.msra.mxu0 %v3113
    %3167 = vmatprep.subr.bf16.mxu0 0
    %3168 = vmatpush1.bf16.msra.mxu0 %v3114
    %3169 = vmatprep.subr.bf16.mxu0 0
    %3170 = vmatpush1.bf16.msra.mxu0 %v3115
    %3171 = vmatprep.subr.bf16.mxu0 0
    %3172 = vmatpush1.bf16.msra.mxu0 %v3116
    %3173 = vmatprep.subr.bf16.mxu0 0
    %3174 = vmatpush1.bf16.msra.mxu0 %v3117
    %3175 = vmatprep.subr.bf16.mxu0 0
    %3176 = vmatpush1.bf16.msra.mxu0 %v3118
    %3177 = vmatprep.subr.bf16.mxu0 0
    %3178 = vmatpush1.bf16.msra.mxu0 %v3119
    %3179 = vmatprep.subr.bf16.mxu0 0
    %3180 = vmatpush1.bf16.msra.mxu0 %v3120
    %3181 = vmatprep.subr.bf16.mxu0 0
    %3182 = vmatpush1.bf16.msra.mxu0 %v3121
    %3183 = vmatprep.subr.bf16.mxu0 0
    %3184 = vmatpush1.bf16.msra.mxu0 %v3122
    %3185 = vmatprep.subr.bf16.mxu0 0
    %3186 = vmatpush1.bf16.msra.mxu0 %v3123
    %3187 = vmatprep.subr.bf16.mxu0 0
    %3188 = vmatpush1.bf16.msra.mxu0 %v3124
    %3189 = vmatprep.mubr.bf16.mxu0 %v3008
    %3190 = vmatmul.mubr.bf16.gmra.mrb[0].mxu0 %v3007
    %v3191 = vpop.f32.mrb[0].mxu0
    %v3192 = vadd.f32 %v3000, %v3191
    %v3193 = vpop.f32.mrb[0].mxu0
    %v3194 = vpop.f32.mrb[0].mxu0
    %v3195 = vpop.f32.mrb[0].mxu0
    %3196 = vdwg.mxu0
    %3197 = vmatprep.subr.bf16.mxu0 0
    %3198 = vmatpush1.bf16.msra.mxu0 %v3125
    %3199 = vmatprep.subr.bf16.mxu0 0
    %3200 = vmatpush1.bf16.msra.mxu0 %v3126
    %3201 = vmatprep.subr.bf16.mxu0 0
    %3202 = vmatpush1.bf16.msra.mxu0 %v3127
    %3203 = vmatprep.subr.bf16.mxu0 0
    %3204 = vmatpush1.bf16.msra.mxu0 %v3128
    %3205 = vmatprep.subr.bf16.mxu0 0
    %3206 = vmatpush1.bf16.msra.mxu0 %v3129
    %3207 = vmatprep.subr.bf16.mxu0 0
    %3208 = vmatpush1.bf16.msra.mxu0 %v3130
    %3209 = vmatprep.subr.bf16.mxu0 0
    %3210 = vmatpush1.bf16.msra.mxu0 %v3131
    %3211 = vmatprep.subr.bf16.mxu0 0
    %3212 = vmatpush1.bf16.msra.mxu0 %v3132
    %3213 = vmatprep.subr.bf16.mxu0 0
    %3214 = vmatpush1.bf16.msra.mxu0 0
    %3215 = vmatprep.subr.bf16.mxu0 0
    %3216 = vmatpush1.bf16.msra.mxu0 0
    %3217 = vmatprep.subr.bf16.mxu0 0
    %3218 = vmatpush1.bf16.msra.mxu0 0
    %3219 = vmatprep.subr.bf16.mxu0 0
    %3220 = vmatpush1.bf16.msra.mxu0 0
    %3221 = vmatprep.subr.bf16.mxu0 0
    %3222 = vmatpush1.bf16.msra.mxu0 0
    %3223 = vmatprep.subr.bf16.mxu0 0
    %3224 = vmatpush1.bf16.msra.mxu0 0
    %3225 = vmatprep.subr.bf16.mxu0 0
    %3226 = vmatpush1.bf16.msra.mxu0 0
    %3227 = vmatprep.subr.bf16.mxu0 0
    %3228 = vmatpush1.bf16.msra.mxu0 0
    %3229 = vmatprep.mubr.bf16.mxu0 0
    %3230 = vmatmul.mubr.bf16.gmra.mrb[0].mxu0 %v3009
    %v3231 = vpop.f32.mrb[0].mxu0
    %v3232 = vadd.f32 %v3192, %v3231
    %v3233 = vpop.f32.mrb[0].mxu0
    %v3234 = vpop.f32.mrb[0].mxu0
    %v3235 = vpop.f32.mrb[0].mxu0
    %3236 = vdwg.mxu0
    %v3237 = vtanh.pop %v3232
    %v3238 = vpack.c.bf16 %v3237, %v3237
    %3239 = vst [vmem:[#allocation4 + $0x10] sm:$0xf] %v3238
    %v3240 = vld [vmem:[#allocation3 + $0x10] sm:$0xff]
    %v3241 = vld [vmem:[#allocation3 + $0x18] sm:$0xf]
    %v3242 = vld [vmem:[#allocation11] sm:$0xf]
    %v3243 = vld [vmem:[#allocation11 + $0x4] sm:$0xf]
    %v3244 = vld [vmem:[#allocation11 + $0x8] sm:$0xf]
    %v3245 = vld [vmem:[#allocation11 + $0xc] sm:$0xf]
    %v3246 = vld [vmem:[#allocation11 + $0x10] sm:$0xf]
    %v3247 = vld [vmem:[#allocation11 + $0x14] sm:$0xf]
    %v3248 = vld [vmem:[#allocation11 + $0x18] sm:$0xf]
    %v3249 = vld [vmem:[#allocation11 + $0x1c] sm:$0xf]
    %v3250 = vld [vmem:[#allocation11 + $0x20] sm:$0xf]
    %v3251 = vld [vmem:[#allocation11 + $0x24] sm:$0xf]
    %v3252 = vld [vmem:[#allocation11 + $0x28] sm:$0xf]
    %v3253 = vld [vmem:[#allocation11 + $0x2c] sm:$0xf]
    %v3254 = vld [vmem:[#allocation11 + $0x30] sm:$0xf]
    %v3255 = vld [vmem:[#allocation11 + $0x34] sm:$0xf]
    %v3256 = vld [vmem:[#allocation11 + $0x38] sm:$0xf]
    %v3257 = vld [vmem:[#allocation11 + $0x3c] sm:$0xf]
    %v3258 = vld [vmem:[#allocation11 + $0x40] sm:$0xf]
    %v3259 = vld [vmem:[#allocation11 + $0x44] sm:$0xf]
    %v3260 = vld [vmem:[#allocation11 + $0x48] sm:$0xf]
    %v3261 = vld [vmem:[#allocation11 + $0x4c] sm:$0xf]
    %v3262 = vld [vmem:[#allocation11 + $0x50] sm:$0xf]
    %v3263 = vld [vmem:[#allocation11 + $0x54] sm:$0xf]
    %v3264 = vld [vmem:[#allocation11 + $0x58] sm:$0xf]
    %v3265 = vld [vmem:[#allocation11 + $0x5c] sm:$0xf]
    %v3266 = vld [vmem:[#allocation11 + $0x60] sm:$0xf]
    %v3267 = vld [vmem:[#allocation11 + $0x64] sm:$0xf]
    %v3268 = vld [vmem:[#allocation11 + $0x68] sm:$0xf]
    %v3269 = vld [vmem:[#allocation11 + $0x6c] sm:$0xf]
    %v3270 = vld [vmem:[#allocation11 + $0x70] sm:$0xf]
    %v3271 = vld [vmem:[#allocation11 + $0x74] sm:$0xf]
    %v3272 = vld [vmem:[#allocation11 + $0x78] sm:$0xf]
    %v3273 = vld [vmem:[#allocation11 + $0x7c] sm:$0xf]
    %v3274 = vld [vmem:[#allocation11 + $0x80] sm:$0xf]
    %v3275 = vld [vmem:[#allocation11 + $0x84] sm:$0xf]
    %v3276 = vld [vmem:[#allocation11 + $0x88] sm:$0xf]
    %v3277 = vld [vmem:[#allocation11 + $0x8c] sm:$0xf]
    %v3278 = vld [vmem:[#allocation11 + $0x90] sm:$0xf]
    %v3279 = vld [vmem:[#allocation11 + $0x94] sm:$0xf]
    %v3280 = vld [vmem:[#allocation11 + $0x98] sm:$0xf]
    %v3281 = vld [vmem:[#allocation11 + $0x9c] sm:$0xf]
    %v3282 = vld [vmem:[#allocation11 + $0xa0] sm:$0xf]
    %v3283 = vld [vmem:[#allocation11 + $0xa4] sm:$0xf]
    %v3284 = vld [vmem:[#allocation11 + $0xa8] sm:$0xf]
    %v3285 = vld [vmem:[#allocation11 + $0xac] sm:$0xf]
    %v3286 = vld [vmem:[#allocation11 + $0xb0] sm:$0xf]
    %v3287 = vld [vmem:[#allocation11 + $0xb4] sm:$0xf]
    %v3288 = vld [vmem:[#allocation11 + $0xb8] sm:$0xf]
    %v3289 = vld [vmem:[#allocation11 + $0xbc] sm:$0xf]
    %v3290 = vld [vmem:[%s8] sm:$0x1]
    %v3292 = vlaneseq
    %v3293 = vshrl.u32 %v3292, 7
    %v3294 = vsub.s32 0, %v3293
    %v3295 = vrot.slane %v3290, %v3294
    %v3299 = vunpack.c.l.b16 %v3240
    %v3300 = vunpack.c.h.b16 %v3240
    %v3301 = vunpack.c.l.b16 %v3241
    %v3302 = vpack.c.b16 %v3299, %v3299
    %v3303 = vpack.c.b16 %v3300, %v3300
    %v3304 = vpack.c.b16 %v3301, %v3301
    %v3356 = vunpack.c.l.b16 %v3242
    %v3357 = vunpack.c.l.b16 %v3243
    %v3358 = vunpack.c.l.b16 %v3244
    %v3359 = vunpack.c.l.b16 %v3245
    %v3360 = vunpack.c.l.b16 %v3246
    %v3361 = vunpack.c.l.b16 %v3247
    %v3362 = vunpack.c.l.b16 %v3248
    %v3363 = vunpack.c.l.b16 %v3249
    %v3364 = vunpack.c.l.b16 %v3250
    %v3365 = vunpack.c.l.b16 %v3251
    %v3366 = vunpack.c.l.b16 %v3252
    %v3367 = vunpack.c.l.b16 %v3253
    %v3368 = vunpack.c.l.b16 %v3254
    %v3369 = vunpack.c.l.b16 %v3255
    %v3370 = vunpack.c.l.b16 %v3256
    %v3371 = vunpack.c.l.b16 %v3257
    %v3372 = vunpack.c.l.b16 %v3258
    %v3373 = vunpack.c.l.b16 %v3259
    %v3374 = vunpack.c.l.b16 %v3260
    %v3375 = vunpack.c.l.b16 %v3261
    %v3376 = vunpack.c.l.b16 %v3262
    %v3377 = vunpack.c.l.b16 %v3263
    %v3378 = vunpack.c.l.b16 %v3264
    %v3379 = vunpack.c.l.b16 %v3265
    %v3380 = vunpack.c.l.b16 %v3266
    %v3381 = vunpack.c.l.b16 %v3267
    %v3382 = vunpack.c.l.b16 %v3268
    %v3383 = vunpack.c.l.b16 %v3269
    %v3384 = vunpack.c.l.b16 %v3270
    %v3385 = vunpack.c.l.b16 %v3271
    %v3386 = vunpack.c.l.b16 %v3272
    %v3387 = vunpack.c.l.b16 %v3273
    %v3388 = vunpack.c.l.b16 %v3274
    %v3389 = vunpack.c.l.b16 %v3275
    %v3390 = vunpack.c.l.b16 %v3276
    %v3391 = vunpack.c.l.b16 %v3277
    %v3392 = vunpack.c.l.b16 %v3278
    %v3393 = vunpack.c.l.b16 %v3279
    %v3394 = vunpack.c.l.b16 %v3280
    %v3395 = vunpack.c.l.b16 %v3281
    %v3396 = vunpack.c.l.b16 %v3282
    %v3397 = vunpack.c.l.b16 %v3283
    %v3398 = vunpack.c.l.b16 %v3284
    %v3399 = vunpack.c.l.b16 %v3285
    %v3400 = vunpack.c.l.b16 %v3286
    %v3401 = vunpack.c.l.b16 %v3287
    %v3402 = vunpack.c.l.b16 %v3288
    %v3403 = vunpack.c.l.b16 %v3289
    %v3404 = vpack.c.b16 %v3357, %v3356
    %v3405 = vpack.c.b16 %v3359, %v3358
    %v3406 = vpack.c.b16 %v3361, %v3360
    %v3407 = vpack.c.b16 %v3363, %v3362
    %v3408 = vpack.c.b16 %v3365, %v3364
    %v3409 = vpack.c.b16 %v3367, %v3366
    %v3410 = vpack.c.b16 %v3369, %v3368
    %v3411 = vpack.c.b16 %v3371, %v3370
    %v3412 = vpack.c.b16 %v3373, %v3372
    %v3413 = vpack.c.b16 %v3375, %v3374
    %v3414 = vpack.c.b16 %v3377, %v3376
    %v3415 = vpack.c.b16 %v3379, %v3378
    %v3416 = vpack.c.b16 %v3381, %v3380
    %v3417 = vpack.c.b16 %v3383, %v3382
    %v3418 = vpack.c.b16 %v3385, %v3384
    %v3419 = vpack.c.b16 %v3387, %v3386
    %v3420 = vpack.c.b16 %v3389, %v3388
    %v3421 = vpack.c.b16 %v3391, %v3390
    %v3422 = vpack.c.b16 %v3393, %v3392
    %v3423 = vpack.c.b16 %v3395, %v3394
    %v3424 = vpack.c.b16 %v3397, %v3396
    %v3425 = vpack.c.b16 %v3399, %v3398
    %v3426 = vpack.c.b16 %v3401, %v3400
    %v3427 = vpack.c.b16 %v3403, %v3402
    %3452 = vmatprep.subr.bf16.mxu0 0
    %3453 = vmatpush1.bf16.msra.mxu0 %v3404
    %3454 = vmatprep.subr.bf16.mxu0 0
    %3455 = vmatpush1.bf16.msra.mxu0 %v3405
    %3456 = vmatprep.subr.bf16.mxu0 0
    %3457 = vmatpush1.bf16.msra.mxu0 %v3406
    %3458 = vmatprep.subr.bf16.mxu0 0
    %3459 = vmatpush1.bf16.msra.mxu0 %v3407
    %3460 = vmatprep.subr.bf16.mxu0 0
    %3461 = vmatpush1.bf16.msra.mxu0 %v3408
    %3462 = vmatprep.subr.bf16.mxu0 0
    %3463 = vmatpush1.bf16.msra.mxu0 %v3409
    %3464 = vmatprep.subr.bf16.mxu0 0
    %3465 = vmatpush1.bf16.msra.mxu0 %v3410
    %3466 = vmatprep.subr.bf16.mxu0 0
    %3467 = vmatpush1.bf16.msra.mxu0 %v3411
    %3468 = vmatprep.subr.bf16.mxu0 0
    %3469 = vmatpush1.bf16.msra.mxu0 %v3412
    %3470 = vmatprep.subr.bf16.mxu0 0
    %3471 = vmatpush1.bf16.msra.mxu0 %v3413
    %3472 = vmatprep.subr.bf16.mxu0 0
    %3473 = vmatpush1.bf16.msra.mxu0 %v3414
    %3474 = vmatprep.subr.bf16.mxu0 0
    %3475 = vmatpush1.bf16.msra.mxu0 %v3415
    %3476 = vmatprep.subr.bf16.mxu0 0
    %3477 = vmatpush1.bf16.msra.mxu0 %v3416
    %3478 = vmatprep.subr.bf16.mxu0 0
    %3479 = vmatpush1.bf16.msra.mxu0 %v3417
    %3480 = vmatprep.subr.bf16.mxu0 0
    %3481 = vmatpush1.bf16.msra.mxu0 %v3418
    %3482 = vmatprep.subr.bf16.mxu0 0
    %3483 = vmatpush1.bf16.msra.mxu0 %v3419
    %3484 = vmatprep.mubr.bf16.mxu0 %v3303
    %3485 = vmatmul.mubr.bf16.gmra.mrb[0].mxu0 %v3302
    %v3486 = vpop.f32.mrb[0].mxu0
    %v3487 = vadd.f32 %v3295, %v3486
    %v3488 = vpop.f32.mrb[0].mxu0
    %v3489 = vpop.f32.mrb[0].mxu0
    %v3490 = vpop.f32.mrb[0].mxu0
    %3491 = vdwg.mxu0
    %3492 = vmatprep.subr.bf16.mxu0 0
    %3493 = vmatpush1.bf16.msra.mxu0 %v3420
    %3494 = vmatprep.subr.bf16.mxu0 0
    %3495 = vmatpush1.bf16.msra.mxu0 %v3421
    %3496 = vmatprep.subr.bf16.mxu0 0
    %3497 = vmatpush1.bf16.msra.mxu0 %v3422
    %3498 = vmatprep.subr.bf16.mxu0 0
    %3499 = vmatpush1.bf16.msra.mxu0 %v3423
    %3500 = vmatprep.subr.bf16.mxu0 0
    %3501 = vmatpush1.bf16.msra.mxu0 %v3424
    %3502 = vmatprep.subr.bf16.mxu0 0
    %3503 = vmatpush1.bf16.msra.mxu0 %v3425
    %3504 = vmatprep.subr.bf16.mxu0 0
    %3505 = vmatpush1.bf16.msra.mxu0 %v3426
    %3506 = vmatprep.subr.bf16.mxu0 0
    %3507 = vmatpush1.bf16.msra.mxu0 %v3427
    %3508 = vmatprep.subr.bf16.mxu0 0
    %3509 = vmatpush1.bf16.msra.mxu0 0
    %3510 = vmatprep.subr.bf16.mxu0 0
    %3511 = vmatpush1.bf16.msra.mxu0 0
    %3512 = vmatprep.subr.bf16.mxu0 0
    %3513 = vmatpush1.bf16.msra.mxu0 0
    %3514 = vmatprep.subr.bf16.mxu0 0
    %3515 = vmatpush1.bf16.msra.mxu0 0
    %3516 = vmatprep.subr.bf16.mxu0 0
    %3517 = vmatpush1.bf16.msra.mxu0 0
    %3518 = vmatprep.subr.bf16.mxu0 0
    %3519 = vmatpush1.bf16.msra.mxu0 0
    %3520 = vmatprep.subr.bf16.mxu0 0
    %3521 = vmatpush1.bf16.msra.mxu0 0
    %3522 = vmatprep.subr.bf16.mxu0 0
    %3523 = vmatpush1.bf16.msra.mxu0 0
    %3524 = vmatprep.mubr.bf16.mxu0 0
    %3525 = vmatmul.mubr.bf16.gmra.mrb[0].mxu0 %v3304
    %v3526 = vpop.f32.mrb[0].mxu0
    %v3527 = vadd.f32 %v3487, %v3526
    %v3528 = vpop.f32.mrb[0].mxu0
    %v3529 = vpop.f32.mrb[0].mxu0
    %v3530 = vpop.f32.mrb[0].mxu0
    %3531 = vdwg.mxu0
    %v3532 = vtanh.pop %v3527
    %v3533 = vpack.c.bf16 %v3532, %v3532
    %3534 = vst [vmem:[#allocation4 + $0x14] sm:$0xf] %v3533
    %v3535 = vld [vmem:[#allocation3 + $0x14] sm:$0xff]
    %v3536 = vld [vmem:[#allocation3 + $0x1c] sm:$0xf]
    %v3537 = vld [vmem:[#allocation11] sm:$0xf]
    %v3538 = vld [vmem:[#allocation11 + $0x4] sm:$0xf]
    %v3539 = vld [vmem:[#allocation11 + $0x8] sm:$0xf]
    %v3540 = vld [vmem:[#allocation11 + $0xc] sm:$0xf]
    %v3541 = vld [vmem:[#allocation11 + $0x10] sm:$0xf]
    %v3542 = vld [vmem:[#allocation11 + $0x14] sm:$0xf]
    %v3543 = vld [vmem:[#allocation11 + $0x18] sm:$0xf]
    %v3544 = vld [vmem:[#allocation11 + $0x1c] sm:$0xf]
    %v3545 = vld [vmem:[#allocation11 + $0x20] sm:$0xf]
    %v3546 = vld [vmem:[#allocation11 + $0x24] sm:$0xf]
    %v3547 = vld [vmem:[#allocation11 + $0x28] sm:$0xf]
    %v3548 = vld [vmem:[#allocation11 + $0x2c] sm:$0xf]
    %v3549 = vld [vmem:[#allocation11 + $0x30] sm:$0xf]
    %v3550 = vld [vmem:[#allocation11 + $0x34] sm:$0xf]
    %v3551 = vld [vmem:[#allocation11 + $0x38] sm:$0xf]
    %v3552 = vld [vmem:[#allocation11 + $0x3c] sm:$0xf]
    %v3553 = vld [vmem:[#allocation11 + $0x40] sm:$0xf]
    %v3554 = vld [vmem:[#allocation11 + $0x44] sm:$0xf]
    %v3555 = vld [vmem:[#allocation11 + $0x48] sm:$0xf]
    %v3556 = vld [vmem:[#allocation11 + $0x4c] sm:$0xf]
    %v3557 = vld [vmem:[#allocation11 + $0x50] sm:$0xf]
    %v3558 = vld [vmem:[#allocation11 + $0x54] sm:$0xf]
    %v3559 = vld [vmem:[#allocation11 + $0x58] sm:$0xf]
    %v3560 = vld [vmem:[#allocation11 + $0x5c] sm:$0xf]
    %v3561 = vld [vmem:[#allocation11 + $0x60] sm:$0xf]
    %v3562 = vld [vmem:[#allocation11 + $0x64] sm:$0xf]
    %v3563 = vld [vmem:[#allocation11 + $0x68] sm:$0xf]
    %v3564 = vld [vmem:[#allocation11 + $0x6c] sm:$0xf]
    %v3565 = vld [vmem:[#allocation11 + $0x70] sm:$0xf]
    %v3566 = vld [vmem:[#allocation11 + $0x74] sm:$0xf]
    %v3567 = vld [vmem:[#allocation11 + $0x78] sm:$0xf]
    %v3568 = vld [vmem:[#allocation11 + $0x7c] sm:$0xf]
    %v3569 = vld [vmem:[#allocation11 + $0x80] sm:$0xf]
    %v3570 = vld [vmem:[#allocation11 + $0x84] sm:$0xf]
    %v3571 = vld [vmem:[#allocation11 + $0x88] sm:$0xf]
    %v3572 = vld [vmem:[#allocation11 + $0x8c] sm:$0xf]
    %v3573 = vld [vmem:[#allocation11 + $0x90] sm:$0xf]
    %v3574 = vld [vmem:[#allocation11 + $0x94] sm:$0xf]
    %v3575 = vld [vmem:[#allocation11 + $0x98] sm:$0xf]
    %v3576 = vld [vmem:[#allocation11 + $0x9c] sm:$0xf]
    %v3577 = vld [vmem:[#allocation11 + $0xa0] sm:$0xf]
    %v3578 = vld [vmem:[#allocation11 + $0xa4] sm:$0xf]
    %v3579 = vld [vmem:[#allocation11 + $0xa8] sm:$0xf]
    %v3580 = vld [vmem:[#allocation11 + $0xac] sm:$0xf]
    %v3581 = vld [vmem:[#allocation11 + $0xb0] sm:$0xf]
    %v3582 = vld [vmem:[#allocation11 + $0xb4] sm:$0xf]
    %v3583 = vld [vmem:[#allocation11 + $0xb8] sm:$0xf]
    %v3584 = vld [vmem:[#allocation11 + $0xbc] sm:$0xf]
    %v3585 = vld [vmem:[%s8] sm:$0x1]
    %v3587 = vlaneseq
    %v3588 = vshrl.u32 %v3587, 7
    %v3589 = vsub.s32 0, %v3588
    %v3590 = vrot.slane %v3585, %v3589
    %v3594 = vunpack.c.l.b16 %v3535
    %v3595 = vunpack.c.h.b16 %v3535
    %v3596 = vunpack.c.l.b16 %v3536
    %v3597 = vpack.c.b16 %v3594, %v3594
    %v3598 = vpack.c.b16 %v3595, %v3595
    %v3599 = vpack.c.b16 %v3596, %v3596
    %v3651 = vunpack.c.l.b16 %v3537
    %v3652 = vunpack.c.l.b16 %v3538
    %v3653 = vunpack.c.l.b16 %v3539
    %v3654 = vunpack.c.l.b16 %v3540
    %v3655 = vunpack.c.l.b16 %v3541
    %v3656 = vunpack.c.l.b16 %v3542
    %v3657 = vunpack.c.l.b16 %v3543
    %v3658 = vunpack.c.l.b16 %v3544
    %v3659 = vunpack.c.l.b16 %v3545
    %v3660 = vunpack.c.l.b16 %v3546
    %v3661 = vunpack.c.l.b16 %v3547
    %v3662 = vunpack.c.l.b16 %v3548
    %v3663 = vunpack.c.l.b16 %v3549
    %v3664 = vunpack.c.l.b16 %v3550
    %v3665 = vunpack.c.l.b16 %v3551
    %v3666 = vunpack.c.l.b16 %v3552
    %v3667 = vunpack.c.l.b16 %v3553
    %v3668 = vunpack.c.l.b16 %v3554
    %v3669 = vunpack.c.l.b16 %v3555
    %v3670 = vunpack.c.l.b16 %v3556
    %v3671 = vunpack.c.l.b16 %v3557
    %v3672 = vunpack.c.l.b16 %v3558
    %v3673 = vunpack.c.l.b16 %v3559
    %v3674 = vunpack.c.l.b16 %v3560
    %v3675 = vunpack.c.l.b16 %v3561
    %v3676 = vunpack.c.l.b16 %v3562
    %v3677 = vunpack.c.l.b16 %v3563
    %v3678 = vunpack.c.l.b16 %v3564
    %v3679 = vunpack.c.l.b16 %v3565
    %v3680 = vunpack.c.l.b16 %v3566
    %v3681 = vunpack.c.l.b16 %v3567
    %v3682 = vunpack.c.l.b16 %v3568
    %v3683 = vunpack.c.l.b16 %v3569
    %v3684 = vunpack.c.l.b16 %v3570
    %v3685 = vunpack.c.l.b16 %v3571
    %v3686 = vunpack.c.l.b16 %v3572
    %v3687 = vunpack.c.l.b16 %v3573
    %v3688 = vunpack.c.l.b16 %v3574
    %v3689 = vunpack.c.l.b16 %v3575
    %v3690 = vunpack.c.l.b16 %v3576
    %v3691 = vunpack.c.l.b16 %v3577
    %v3692 = vunpack.c.l.b16 %v3578
    %v3693 = vunpack.c.l.b16 %v3579
    %v3694 = vunpack.c.l.b16 %v3580
    %v3695 = vunpack.c.l.b16 %v3581
    %v3696 = vunpack.c.l.b16 %v3582
    %v3697 = vunpack.c.l.b16 %v3583
    %v3698 = vunpack.c.l.b16 %v3584
    %v3699 = vpack.c.b16 %v3652, %v3651
    %v3700 = vpack.c.b16 %v3654, %v3653
    %v3701 = vpack.c.b16 %v3656, %v3655
    %v3702 = vpack.c.b16 %v3658, %v3657
    %v3703 = vpack.c.b16 %v3660, %v3659
    %v3704 = vpack.c.b16 %v3662, %v3661
    %v3705 = vpack.c.b16 %v3664, %v3663
    %v3706 = vpack.c.b16 %v3666, %v3665
    %v3707 = vpack.c.b16 %v3668, %v3667
    %v3708 = vpack.c.b16 %v3670, %v3669
    %v3709 = vpack.c.b16 %v3672, %v3671
    %v3710 = vpack.c.b16 %v3674, %v3673
    %v3711 = vpack.c.b16 %v3676, %v3675
    %v3712 = vpack.c.b16 %v3678, %v3677
    %v3713 = vpack.c.b16 %v3680, %v3679
    %v3714 = vpack.c.b16 %v3682, %v3681
    %v3715 = vpack.c.b16 %v3684, %v3683
    %v3716 = vpack.c.b16 %v3686, %v3685
    %v3717 = vpack.c.b16 %v3688, %v3687
    %v3718 = vpack.c.b16 %v3690, %v3689
    %v3719 = vpack.c.b16 %v3692, %v3691
    %v3720 = vpack.c.b16 %v3694, %v3693
    %v3721 = vpack.c.b16 %v3696, %v3695
    %v3722 = vpack.c.b16 %v3698, %v3697
    %3747 = vmatprep.subr.bf16.mxu0 0
    %3748 = vmatpush1.bf16.msra.mxu0 %v3699
    %3749 = vmatprep.subr.bf16.mxu0 0
    %3750 = vmatpush1.bf16.msra.mxu0 %v3700
    %3751 = vmatprep.subr.bf16.mxu0 0
    %3752 = vmatpush1.bf16.msra.mxu0 %v3701
    %3753 = vmatprep.subr.bf16.mxu0 0
    %3754 = vmatpush1.bf16.msra.mxu0 %v3702
    %3755 = vmatprep.subr.bf16.mxu0 0
    %3756 = vmatpush1.bf16.msra.mxu0 %v3703
    %3757 = vmatprep.subr.bf16.mxu0 0
    %3758 = vmatpush1.bf16.msra.mxu0 %v3704
    %3759 = vmatprep.subr.bf16.mxu0 0
    %3760 = vmatpush1.bf16.msra.mxu0 %v3705
    %3761 = vmatprep.subr.bf16.mxu0 0
    %3762 = vmatpush1.bf16.msra.mxu0 %v3706
    %3763 = vmatprep.subr.bf16.mxu0 0
    %3764 = vmatpush1.bf16.msra.mxu0 %v3707
    %3765 = vmatprep.subr.bf16.mxu0 0
    %3766 = vmatpush1.bf16.msra.mxu0 %v3708
    %3767 = vmatprep.subr.bf16.mxu0 0
    %3768 = vmatpush1.bf16.msra.mxu0 %v3709
    %3769 = vmatprep.subr.bf16.mxu0 0
    %3770 = vmatpush1.bf16.msra.mxu0 %v3710
    %3771 = vmatprep.subr.bf16.mxu0 0
    %3772 = vmatpush1.bf16.msra.mxu0 %v3711
    %3773 = vmatprep.subr.bf16.mxu0 0
    %3774 = vmatpush1.bf16.msra.mxu0 %v3712
    %3775 = vmatprep.subr.bf16.mxu0 0
    %3776 = vmatpush1.bf16.msra.mxu0 %v3713
    %3777 = vmatprep.subr.bf16.mxu0 0
    %3778 = vmatpush1.bf16.msra.mxu0 %v3714
    %3779 = vmatprep.mubr.bf16.mxu0 %v3598
    %3780 = vmatmul.mubr.bf16.gmra.mrb[0].mxu0 %v3597
    %v3781 = vpop.f32.mrb[0].mxu0
    %v3782 = vadd.f32 %v3590, %v3781
    %v3783 = vpop.f32.mrb[0].mxu0
    %v3784 = vpop.f32.mrb[0].mxu0
    %v3785 = vpop.f32.mrb[0].mxu0
    %3786 = vdwg.mxu0
    %3787 = vmatprep.subr.bf16.mxu0 0
    %3788 = vmatpush1.bf16.msra.mxu0 %v3715
    %3789 = vmatprep.subr.bf16.mxu0 0
    %3790 = vmatpush1.bf16.msra.mxu0 %v3716
    %3791 = vmatprep.subr.bf16.mxu0 0
    %3792 = vmatpush1.bf16.msra.mxu0 %v3717
    %3793 = vmatprep.subr.bf16.mxu0 0
    %3794 = vmatpush1.bf16.msra.mxu0 %v3718
    %3795 = vmatprep.subr.bf16.mxu0 0
    %3796 = vmatpush1.bf16.msra.mxu0 %v3719
    %3797 = vmatprep.subr.bf16.mxu0 0
    %3798 = vmatpush1.bf16.msra.mxu0 %v3720
    %3799 = vmatprep.subr.bf16.mxu0 0
    %3800 = vmatpush1.bf16.msra.mxu0 %v3721
    %3801 = vmatprep.subr.bf16.mxu0 0
    %3802 = vmatpush1.bf16.msra.mxu0 %v3722
    %3803 = vmatprep.subr.bf16.mxu0 0
    %3804 = vmatpush1.bf16.msra.mxu0 0
    %3805 = vmatprep.subr.bf16.mxu0 0
    %3806 = vmatpush1.bf16.msra.mxu0 0
    %3807 = vmatprep.subr.bf16.mxu0 0
    %3808 = vmatpush1.bf16.msra.mxu0 0
    %3809 = vmatprep.subr.bf16.mxu0 0
    %3810 = vmatpush1.bf16.msra.mxu0 0
    %3811 = vmatprep.subr.bf16.mxu0 0
    %3812 = vmatpush1.bf16.msra.mxu0 0
    %3813 = vmatprep.subr.bf16.mxu0 0
    %3814 = vmatpush1.bf16.msra.mxu0 0
    %3815 = vmatprep.subr.bf16.mxu0 0
    %3816 = vmatpush1.bf16.msra.mxu0 0
    %3817 = vmatprep.subr.bf16.mxu0 0
    %3818 = vmatpush1.bf16.msra.mxu0 0
    %3819 = vmatprep.mubr.bf16.mxu0 0
    %3820 = vmatmul.mubr.bf16.gmra.mrb[0].mxu0 %v3599
    %v3821 = vpop.f32.mrb[0].mxu0
    %v3822 = vadd.f32 %v3782, %v3821
    %v3823 = vpop.f32.mrb[0].mxu0
    %v3824 = vpop.f32.mrb[0].mxu0
    %v3825 = vpop.f32.mrb[0].mxu0
    %3826 = vdwg.mxu0
    %v3827 = vtanh.pop %v3822
    %v3828 = vpack.c.bf16 %v3827, %v3827
    %3829 = vst [vmem:[#allocation4 + $0x18] sm:$0xf] %v3828
    %v3830 = vld [vmem:[#allocation3 + $0x18] sm:$0xff]
    %v3831 = vld [vmem:[#allocation3 + $0x20] sm:$0xf]
    %v3832 = vld [vmem:[#allocation11] sm:$0xf]
    %v3833 = vld [vmem:[#allocation11 + $0x4] sm:$0xf]
    %v3834 = vld [vmem:[#allocation11 + $0x8] sm:$0xf]
    %v3835 = vld [vmem:[#allocation11 + $0xc] sm:$0xf]
    %v3836 = vld [vmem:[#allocation11 + $0x10] sm:$0xf]
    %v3837 = vld [vmem:[#allocation11 + $0x14] sm:$0xf]
    %v3838 = vld [vmem:[#allocation11 + $0x18] sm:$0xf]
    %v3839 = vld [vmem:[#allocation11 + $0x1c] sm:$0xf]
    %v3840 = vld [vmem:[#allocation11 + $0x20] sm:$0xf]
    %v3841 = vld [vmem:[#allocation11 + $0x24] sm:$0xf]
    %v3842 = vld [vmem:[#allocation11 + $0x28] sm:$0xf]
    %v3843 = vld [vmem:[#allocation11 + $0x2c] sm:$0xf]
    %v3844 = vld [vmem:[#allocation11 + $0x30] sm:$0xf]
    %v3845 = vld [vmem:[#allocation11 + $0x34] sm:$0xf]
    %v3846 = vld [vmem:[#allocation11 + $0x38] sm:$0xf]
    %v3847 = vld [vmem:[#allocation11 + $0x3c] sm:$0xf]
    %v3848 = vld [vmem:[#allocation11 + $0x40] sm:$0xf]
    %v3849 = vld [vmem:[#allocation11 + $0x44] sm:$0xf]
    %v3850 = vld [vmem:[#allocation11 + $0x48] sm:$0xf]
    %v3851 = vld [vmem:[#allocation11 + $0x4c] sm:$0xf]
    %v3852 = vld [vmem:[#allocation11 + $0x50] sm:$0xf]
    %v3853 = vld [vmem:[#allocation11 + $0x54] sm:$0xf]
    %v3854 = vld [vmem:[#allocation11 + $0x58] sm:$0xf]
    %v3855 = vld [vmem:[#allocation11 + $0x5c] sm:$0xf]
    %v3856 = vld [vmem:[#allocation11 + $0x60] sm:$0xf]
    %v3857 = vld [vmem:[#allocation11 + $0x64] sm:$0xf]
    %v3858 = vld [vmem:[#allocation11 + $0x68] sm:$0xf]
    %v3859 = vld [vmem:[#allocation11 + $0x6c] sm:$0xf]
    %v3860 = vld [vmem:[#allocation11 + $0x70] sm:$0xf]
    %v3861 = vld [vmem:[#allocation11 + $0x74] sm:$0xf]
    %v3862 = vld [vmem:[#allocation11 + $0x78] sm:$0xf]
    %v3863 = vld [vmem:[#allocation11 + $0x7c] sm:$0xf]
    %v3864 = vld [vmem:[#allocation11 + $0x80] sm:$0xf]
    %v3865 = vld [vmem:[#allocation11 + $0x84] sm:$0xf]
    %v3866 = vld [vmem:[#allocation11 + $0x88] sm:$0xf]
    %v3867 = vld [vmem:[#allocation11 + $0x8c] sm:$0xf]
    %v3868 = vld [vmem:[#allocation11 + $0x90] sm:$0xf]
    %v3869 = vld [vmem:[#allocation11 + $0x94] sm:$0xf]
    %v3870 = vld [vmem:[#allocation11 + $0x98] sm:$0xf]
    %v3871 = vld [vmem:[#allocation11 + $0x9c] sm:$0xf]
    %v3872 = vld [vmem:[#allocation11 + $0xa0] sm:$0xf]
    %v3873 = vld [vmem:[#allocation11 + $0xa4] sm:$0xf]
    %v3874 = vld [vmem:[#allocation11 + $0xa8] sm:$0xf]
    %v3875 = vld [vmem:[#allocation11 + $0xac] sm:$0xf]
    %v3876 = vld [vmem:[#allocation11 + $0xb0] sm:$0xf]
    %v3877 = vld [vmem:[#allocation11 + $0xb4] sm:$0xf]
    %v3878 = vld [vmem:[#allocation11 + $0xb8] sm:$0xf]
    %v3879 = vld [vmem:[#allocation11 + $0xbc] sm:$0xf]
    %v3880 = vld [vmem:[%s8] sm:$0x1]
    %v3882 = vlaneseq
    %v3883 = vshrl.u32 %v3882, 7
    %v3884 = vsub.s32 0, %v3883
    %v3885 = vrot.slane %v3880, %v3884
    %v3889 = vunpack.c.l.b16 %v3830
    %v3890 = vunpack.c.h.b16 %v3830
    %v3891 = vunpack.c.l.b16 %v3831
    %v3892 = vpack.c.b16 %v3889, %v3889
    %v3893 = vpack.c.b16 %v3890, %v3890
    %v3894 = vpack.c.b16 %v3891, %v3891
    %v3946 = vunpack.c.l.b16 %v3832
    %v3947 = vunpack.c.l.b16 %v3833
    %v3948 = vunpack.c.l.b16 %v3834
    %v3949 = vunpack.c.l.b16 %v3835
    %v3950 = vunpack.c.l.b16 %v3836
    %v3951 = vunpack.c.l.b16 %v3837
    %v3952 = vunpack.c.l.b16 %v3838
    %v3953 = vunpack.c.l.b16 %v3839
    %v3954 = vunpack.c.l.b16 %v3840
    %v3955 = vunpack.c.l.b16 %v3841
    %v3956 = vunpack.c.l.b16 %v3842
    %v3957 = vunpack.c.l.b16 %v3843
    %v3958 = vunpack.c.l.b16 %v3844
    %v3959 = vunpack.c.l.b16 %v3845
    %v3960 = vunpack.c.l.b16 %v3846
    %v3961 = vunpack.c.l.b16 %v3847
    %v3962 = vunpack.c.l.b16 %v3848
    %v3963 = vunpack.c.l.b16 %v3849
    %v3964 = vunpack.c.l.b16 %v3850
    %v3965 = vunpack.c.l.b16 %v3851
    %v3966 = vunpack.c.l.b16 %v3852
    %v3967 = vunpack.c.l.b16 %v3853
    %v3968 = vunpack.c.l.b16 %v3854
    %v3969 = vunpack.c.l.b16 %v3855
    %v3970 = vunpack.c.l.b16 %v3856
    %v3971 = vunpack.c.l.b16 %v3857
    %v3972 = vunpack.c.l.b16 %v3858
    %v3973 = vunpack.c.l.b16 %v3859
    %v3974 = vunpack.c.l.b16 %v3860
    %v3975 = vunpack.c.l.b16 %v3861
    %v3976 = vunpack.c.l.b16 %v3862
    %v3977 = vunpack.c.l.b16 %v3863
    %v3978 = vunpack.c.l.b16 %v3864
    %v3979 = vunpack.c.l.b16 %v3865
    %v3980 = vunpack.c.l.b16 %v3866
    %v3981 = vunpack.c.l.b16 %v3867
    %v3982 = vunpack.c.l.b16 %v3868
    %v3983 = vunpack.c.l.b16 %v3869
    %v3984 = vunpack.c.l.b16 %v3870
    %v3985 = vunpack.c.l.b16 %v3871
    %v3986 = vunpack.c.l.b16 %v3872
    %v3987 = vunpack.c.l.b16 %v3873
    %v3988 = vunpack.c.l.b16 %v3874
    %v3989 = vunpack.c.l.b16 %v3875
    %v3990 = vunpack.c.l.b16 %v3876
    %v3991 = vunpack.c.l.b16 %v3877
    %v3992 = vunpack.c.l.b16 %v3878
    %v3993 = vunpack.c.l.b16 %v3879
    %v3994 = vpack.c.b16 %v3947, %v3946
    %v3995 = vpack.c.b16 %v3949, %v3948
    %v3996 = vpack.c.b16 %v3951, %v3950
    %v3997 = vpack.c.b16 %v3953, %v3952
    %v3998 = vpack.c.b16 %v3955, %v3954
    %v3999 = vpack.c.b16 %v3957, %v3956
    %v4000 = vpack.c.b16 %v3959, %v3958
    %v4001 = vpack.c.b16 %v3961, %v3960
    %v4002 = vpack.c.b16 %v3963, %v3962
    %v4003 = vpack.c.b16 %v3965, %v3964
    %v4004 = vpack.c.b16 %v3967, %v3966
    %v4005 = vpack.c.b16 %v3969, %v3968
    %v4006 = vpack.c.b16 %v3971, %v3970
    %v4007 = vpack.c.b16 %v3973, %v3972
    %v4008 = vpack.c.b16 %v3975, %v3974
    %v4009 = vpack.c.b16 %v3977, %v3976
    %v4010 = vpack.c.b16 %v3979, %v3978
    %v4011 = vpack.c.b16 %v3981, %v3980
    %v4012 = vpack.c.b16 %v3983, %v3982
    %v4013 = vpack.c.b16 %v3985, %v3984
    %v4014 = vpack.c.b16 %v3987, %v3986
    %v4015 = vpack.c.b16 %v3989, %v3988
    %v4016 = vpack.c.b16 %v3991, %v3990
    %v4017 = vpack.c.b16 %v3993, %v3992
    %4042 = vmatprep.subr.bf16.mxu0 0
    %4043 = vmatpush1.bf16.msra.mxu0 %v3994
    %4044 = vmatprep.subr.bf16.mxu0 0
    %4045 = vmatpush1.bf16.msra.mxu0 %v3995
    %4046 = vmatprep.subr.bf16.mxu0 0
    %4047 = vmatpush1.bf16.msra.mxu0 %v3996
    %4048 = vmatprep.subr.bf16.mxu0 0
    %4049 = vmatpush1.bf16.msra.mxu0 %v3997
    %4050 = vmatprep.subr.bf16.mxu0 0
    %4051 = vmatpush1.bf16.msra.mxu0 %v3998
    %4052 = vmatprep.subr.bf16.mxu0 0
    %4053 = vmatpush1.bf16.msra.mxu0 %v3999
    %4054 = vmatprep.subr.bf16.mxu0 0
    %4055 = vmatpush1.bf16.msra.mxu0 %v4000
    %4056 = vmatprep.subr.bf16.mxu0 0
    %4057 = vmatpush1.bf16.msra.mxu0 %v4001
    %4058 = vmatprep.subr.bf16.mxu0 0
    %4059 = vmatpush1.bf16.msra.mxu0 %v4002
    %4060 = vmatprep.subr.bf16.mxu0 0
    %4061 = vmatpush1.bf16.msra.mxu0 %v4003
    %4062 = vmatprep.subr.bf16.mxu0 0
    %4063 = vmatpush1.bf16.msra.mxu0 %v4004
    %4064 = vmatprep.subr.bf16.mxu0 0
    %4065 = vmatpush1.bf16.msra.mxu0 %v4005
    %4066 = vmatprep.subr.bf16.mxu0 0
    %4067 = vmatpush1.bf16.msra.mxu0 %v4006
    %4068 = vmatprep.subr.bf16.mxu0 0
    %4069 = vmatpush1.bf16.msra.mxu0 %v4007
    %4070 = vmatprep.subr.bf16.mxu0 0
    %4071 = vmatpush1.bf16.msra.mxu0 %v4008
    %4072 = vmatprep.subr.bf16.mxu0 0
    %4073 = vmatpush1.bf16.msra.mxu0 %v4009
    %4074 = vmatprep.mubr.bf16.mxu0 %v3893
    %4075 = vmatmul.mubr.bf16.gmra.mrb[0].mxu0 %v3892
    %v4076 = vpop.f32.mrb[0].mxu0
    %v4077 = vadd.f32 %v3885, %v4076
    %v4078 = vpop.f32.mrb[0].mxu0
    %v4079 = vpop.f32.mrb[0].mxu0
    %v4080 = vpop.f32.mrb[0].mxu0
    %4081 = vdwg.mxu0
    %4082 = vmatprep.subr.bf16.mxu0 0
    %4083 = vmatpush1.bf16.msra.mxu0 %v4010
    %4084 = vmatprep.subr.bf16.mxu0 0
    %4085 = vmatpush1.bf16.msra.mxu0 %v4011
    %4086 = vmatprep.subr.bf16.mxu0 0
    %4087 = vmatpush1.bf16.msra.mxu0 %v4012
    %4088 = vmatprep.subr.bf16.mxu0 0
    %4089 = vmatpush1.bf16.msra.mxu0 %v4013
    %4090 = vmatprep.subr.bf16.mxu0 0
    %4091 = vmatpush1.bf16.msra.mxu0 %v4014
    %4092 = vmatprep.subr.bf16.mxu0 0
    %4093 = vmatpush1.bf16.msra.mxu0 %v4015
    %4094 = vmatprep.subr.bf16.mxu0 0
    %4095 = vmatpush1.bf16.msra.mxu0 %v4016
    %4096 = vmatprep.subr.bf16.mxu0 0
    %4097 = vmatpush1.bf16.msra.mxu0 %v4017
    %4098 = vmatprep.subr.bf16.mxu0 0
    %4099 = vmatpush1.bf16.msra.mxu0 0
    %4100 = vmatprep.subr.bf16.mxu0 0
    %4101 = vmatpush1.bf16.msra.mxu0 0
    %4102 = vmatprep.subr.bf16.mxu0 0
    %4103 = vmatpush1.bf16.msra.mxu0 0
    %4104 = vmatprep.subr.bf16.mxu0 0
    %4105 = vmatpush1.bf16.msra.mxu0 0
    %4106 = vmatprep.subr.bf16.mxu0 0
    %4107 = vmatpush1.bf16.msra.mxu0 0
    %4108 = vmatprep.subr.bf16.mxu0 0
    %4109 = vmatpush1.bf16.msra.mxu0 0
    %4110 = vmatprep.subr.bf16.mxu0 0
    %4111 = vmatpush1.bf16.msra.mxu0 0
    %4112 = vmatprep.subr.bf16.mxu0 0
    %4113 = vmatpush1.bf16.msra.mxu0 0
    %4114 = vmatprep.mubr.bf16.mxu0 0
    %4115 = vmatmul.mubr.bf16.gmra.mrb[0].mxu0 %v3894
    %v4116 = vpop.f32.mrb[0].mxu0
    %v4117 = vadd.f32 %v4077, %v4116
    %v4118 = vpop.f32.mrb[0].mxu0
    %v4119 = vpop.f32.mrb[0].mxu0
    %v4120 = vpop.f32.mrb[0].mxu0
    %4121 = vdwg.mxu0
    %v4122 = vtanh.pop %v4117
    %v4123 = vpack.c.bf16 %v4122, %v4122
    %4124 = vst [vmem:[#allocation4 + $0x1c] sm:$0xf] %v4123
    %v4125 = vld [vmem:[#allocation3 + $0x1c] sm:$0xff]
    %v4126 = vld [vmem:[#allocation3 + $0x24] sm:$0xf]
    %v4127 = vld [vmem:[#allocation11] sm:$0xf]
    %v4128 = vld [vmem:[#allocation11 + $0x4] sm:$0xf]
    %v4129 = vld [vmem:[#allocation11 + $0x8] sm:$0xf]
    %v4130 = vld [vmem:[#allocation11 + $0xc] sm:$0xf]
    %v4131 = vld [vmem:[#allocation11 + $0x10] sm:$0xf]
    %v4132 = vld [vmem:[#allocation11 + $0x14] sm:$0xf]
    %v4133 = vld [vmem:[#allocation11 + $0x18] sm:$0xf]
    %v4134 = vld [vmem:[#allocation11 + $0x1c] sm:$0xf]
    %v4135 = vld [vmem:[#allocation11 + $0x20] sm:$0xf]
    %v4136 = vld [vmem:[#allocation11 + $0x24] sm:$0xf]
    %v4137 = vld [vmem:[#allocation11 + $0x28] sm:$0xf]
    %v4138 = vld [vmem:[#allocation11 + $0x2c] sm:$0xf]
    %v4139 = vld [vmem:[#allocation11 + $0x30] sm:$0xf]
    %v4140 = vld [vmem:[#allocation11 + $0x34] sm:$0xf]
    %v4141 = vld [vmem:[#allocation11 + $0x38] sm:$0xf]
    %v4142 = vld [vmem:[#allocation11 + $0x3c] sm:$0xf]
    %v4143 = vld [vmem:[#allocation11 + $0x40] sm:$0xf]
    %v4144 = vld [vmem:[#allocation11 + $0x44] sm:$0xf]
    %v4145 = vld [vmem:[#allocation11 + $0x48] sm:$0xf]
    %v4146 = vld [vmem:[#allocation11 + $0x4c] sm:$0xf]
    %v4147 = vld [vmem:[#allocation11 + $0x50] sm:$0xf]
    %v4148 = vld [vmem:[#allocation11 + $0x54] sm:$0xf]
    %v4149 = vld [vmem:[#allocation11 + $0x58] sm:$0xf]
    %v4150 = vld [vmem:[#allocation11 + $0x5c] sm:$0xf]
    %v4151 = vld [vmem:[#allocation11 + $0x60] sm:$0xf]
    %v4152 = vld [vmem:[#allocation11 + $0x64] sm:$0xf]
    %v4153 = vld [vmem:[#allocation11 + $0x68] sm:$0xf]
    %v4154 = vld [vmem:[#allocation11 + $0x6c] sm:$0xf]
    %v4155 = vld [vmem:[#allocation11 + $0x70] sm:$0xf]
    %v4156 = vld [vmem:[#allocation11 + $0x74] sm:$0xf]
    %v4157 = vld [vmem:[#allocation11 + $0x78] sm:$0xf]
    %v4158 = vld [vmem:[#allocation11 + $0x7c] sm:$0xf]
    %v4159 = vld [vmem:[#allocation11 + $0x80] sm:$0xf]
    %v4160 = vld [vmem:[#allocation11 + $0x84] sm:$0xf]
    %v4161 = vld [vmem:[#allocation11 + $0x88] sm:$0xf]
    %v4162 = vld [vmem:[#allocation11 + $0x8c] sm:$0xf]
    %v4163 = vld [vmem:[#allocation11 + $0x90] sm:$0xf]
    %v4164 = vld [vmem:[#allocation11 + $0x94] sm:$0xf]
    %v4165 = vld [vmem:[#allocation11 + $0x98] sm:$0xf]
    %v4166 = vld [vmem:[#allocation11 + $0x9c] sm:$0xf]
    %v4167 = vld [vmem:[#allocation11 + $0xa0] sm:$0xf]
    %v4168 = vld [vmem:[#allocation11 + $0xa4] sm:$0xf]
    %v4169 = vld [vmem:[#allocation11 + $0xa8] sm:$0xf]
    %v4170 = vld [vmem:[#allocation11 + $0xac] sm:$0xf]
    %v4171 = vld [vmem:[#allocation11 + $0xb0] sm:$0xf]
    %v4172 = vld [vmem:[#allocation11 + $0xb4] sm:$0xf]
    %v4173 = vld [vmem:[#allocation11 + $0xb8] sm:$0xf]
    %v4174 = vld [vmem:[#allocation11 + $0xbc] sm:$0xf]
    %v4175 = vld [vmem:[%s8] sm:$0x1]
    %v4177 = vlaneseq
    %v4178 = vshrl.u32 %v4177, 7
    %v4179 = vsub.s32 0, %v4178
    %v4180 = vrot.slane %v4175, %v4179
    %v4184 = vunpack.c.l.b16 %v4125
    %v4185 = vunpack.c.h.b16 %v4125
    %v4186 = vunpack.c.l.b16 %v4126
    %v4187 = vpack.c.b16 %v4184, %v4184
    %v4188 = vpack.c.b16 %v4185, %v4185
    %v4189 = vpack.c.b16 %v4186, %v4186
    %v4241 = vunpack.c.l.b16 %v4127
    %v4242 = vunpack.c.l.b16 %v4128
    %v4243 = vunpack.c.l.b16 %v4129
    %v4244 = vunpack.c.l.b16 %v4130
    %v4245 = vunpack.c.l.b16 %v4131
    %v4246 = vunpack.c.l.b16 %v4132
    %v4247 = vunpack.c.l.b16 %v4133
    %v4248 = vunpack.c.l.b16 %v4134
    %v4249 = vunpack.c.l.b16 %v4135
    %v4250 = vunpack.c.l.b16 %v4136
    %v4251 = vunpack.c.l.b16 %v4137
    %v4252 = vunpack.c.l.b16 %v4138
    %v4253 = vunpack.c.l.b16 %v4139
    %v4254 = vunpack.c.l.b16 %v4140
    %v4255 = vunpack.c.l.b16 %v4141
    %v4256 = vunpack.c.l.b16 %v4142
    %v4257 = vunpack.c.l.b16 %v4143
    %v4258 = vunpack.c.l.b16 %v4144
    %v4259 = vunpack.c.l.b16 %v4145
    %v4260 = vunpack.c.l.b16 %v4146
    %v4261 = vunpack.c.l.b16 %v4147
    %v4262 = vunpack.c.l.b16 %v4148
    %v4263 = vunpack.c.l.b16 %v4149
    %v4264 = vunpack.c.l.b16 %v4150
    %v4265 = vunpack.c.l.b16 %v4151
    %v4266 = vunpack.c.l.b16 %v4152
    %v4267 = vunpack.c.l.b16 %v4153
    %v4268 = vunpack.c.l.b16 %v4154
    %v4269 = vunpack.c.l.b16 %v4155
    %v4270 = vunpack.c.l.b16 %v4156
    %v4271 = vunpack.c.l.b16 %v4157
    %v4272 = vunpack.c.l.b16 %v4158
    %v4273 = vunpack.c.l.b16 %v4159
    %v4274 = vunpack.c.l.b16 %v4160
    %v4275 = vunpack.c.l.b16 %v4161
    %v4276 = vunpack.c.l.b16 %v4162
    %v4277 = vunpack.c.l.b16 %v4163
    %v4278 = vunpack.c.l.b16 %v4164
    %v4279 = vunpack.c.l.b16 %v4165
    %v4280 = vunpack.c.l.b16 %v4166
    %v4281 = vunpack.c.l.b16 %v4167
    %v4282 = vunpack.c.l.b16 %v4168
    %v4283 = vunpack.c.l.b16 %v4169
    %v4284 = vunpack.c.l.b16 %v4170
    %v4285 = vunpack.c.l.b16 %v4171
    %v4286 = vunpack.c.l.b16 %v4172
    %v4287 = vunpack.c.l.b16 %v4173
    %v4288 = vunpack.c.l.b16 %v4174
    %v4289 = vpack.c.b16 %v4242, %v4241
    %v4290 = vpack.c.b16 %v4244, %v4243
    %v4291 = vpack.c.b16 %v4246, %v4245
    %v4292 = vpack.c.b16 %v4248, %v4247
    %v4293 = vpack.c.b16 %v4250, %v4249
    %v4294 = vpack.c.b16 %v4252, %v4251
    %v4295 = vpack.c.b16 %v4254, %v4253
    %v4296 = vpack.c.b16 %v4256, %v4255
    %v4297 = vpack.c.b16 %v4258, %v4257
    %v4298 = vpack.c.b16 %v4260, %v4259
    %v4299 = vpack.c.b16 %v4262, %v4261
    %v4300 = vpack.c.b16 %v4264, %v4263
    %v4301 = vpack.c.b16 %v4266, %v4265
    %v4302 = vpack.c.b16 %v4268, %v4267
    %v4303 = vpack.c.b16 %v4270, %v4269
    %v4304 = vpack.c.b16 %v4272, %v4271
    %v4305 = vpack.c.b16 %v4274, %v4273
    %v4306 = vpack.c.b16 %v4276, %v4275
    %v4307 = vpack.c.b16 %v4278, %v4277
    %v4308 = vpack.c.b16 %v4280, %v4279
    %v4309 = vpack.c.b16 %v4282, %v4281
    %v4310 = vpack.c.b16 %v4284, %v4283
    %v4311 = vpack.c.b16 %v4286, %v4285
    %v4312 = vpack.c.b16 %v4288, %v4287
    %4337 = vmatprep.subr.bf16.mxu0 0
    %4338 = vmatpush1.bf16.msra.mxu0 %v4289
    %4339 = vmatprep.subr.bf16.mxu0 0
    %4340 = vmatpush1.bf16.msra.mxu0 %v4290
    %4341 = vmatprep.subr.bf16.mxu0 0
    %4342 = vmatpush1.bf16.msra.mxu0 %v4291
    %4343 = vmatprep.subr.bf16.mxu0 0
    %4344 = vmatpush1.bf16.msra.mxu0 %v4292
    %4345 = vmatprep.subr.bf16.mxu0 0
    %4346 = vmatpush1.bf16.msra.mxu0 %v4293
    %4347 = vmatprep.subr.bf16.mxu0 0
    %4348 = vmatpush1.bf16.msra.mxu0 %v4294
    %4349 = vmatprep.subr.bf16.mxu0 0
    %4350 = vmatpush1.bf16.msra.mxu0 %v4295
    %4351 = vmatprep.subr.bf16.mxu0 0
    %4352 = vmatpush1.bf16.msra.mxu0 %v4296
    %4353 = vmatprep.subr.bf16.mxu0 0
    %4354 = vmatpush1.bf16.msra.mxu0 %v4297
    %4355 = vmatprep.subr.bf16.mxu0 0
    %4356 = vmatpush1.bf16.msra.mxu0 %v4298
    %4357 = vmatprep.subr.bf16.mxu0 0
    %4358 = vmatpush1.bf16.msra.mxu0 %v4299
    %4359 = vmatprep.subr.bf16.mxu0 0
    %4360 = vmatpush1.bf16.msra.mxu0 %v4300
    %4361 = vmatprep.subr.bf16.mxu0 0
    %4362 = vmatpush1.bf16.msra.mxu0 %v4301
    %4363 = vmatprep.subr.bf16.mxu0 0
    %4364 = vmatpush1.bf16.msra.mxu0 %v4302
    %4365 = vmatprep.subr.bf16.mxu0 0
    %4366 = vmatpush1.bf16.msra.mxu0 %v4303
    %4367 = vmatprep.subr.bf16.mxu0 0
    %4368 = vmatpush1.bf16.msra.mxu0 %v4304
    %4369 = vmatprep.mubr.bf16.mxu0 %v4188
    %4370 = vmatmul.mubr.bf16.gmra.mrb[0].mxu0 %v4187
    %v4371 = vpop.f32.mrb[0].mxu0
    %v4372 = vadd.f32 %v4180, %v4371
    %v4373 = vpop.f32.mrb[0].mxu0
    %v4374 = vpop.f32.mrb[0].mxu0
    %v4375 = vpop.f32.mrb[0].mxu0
    %4376 = vdwg.mxu0
    %4377 = vmatprep.subr.bf16.mxu0 0
    %4378 = vmatpush1.bf16.msra.mxu0 %v4305
    %4379 = vmatprep.subr.bf16.mxu0 0
    %4380 = vmatpush1.bf16.msra.mxu0 %v4306
    %4381 = vmatprep.subr.bf16.mxu0 0
    %4382 = vmatpush1.bf16.msra.mxu0 %v4307
    %4383 = vmatprep.subr.bf16.mxu0 0
    %4384 = vmatpush1.bf16.msra.mxu0 %v4308
    %4385 = vmatprep.subr.bf16.mxu0 0
    %4386 = vmatpush1.bf16.msra.mxu0 %v4309
    %4387 = vmatprep.subr.bf16.mxu0 0
    %4388 = vmatpush1.bf16.msra.mxu0 %v4310
    %4389 = vmatprep.subr.bf16.mxu0 0
    %4390 = vmatpush1.bf16.msra.mxu0 %v4311
    %4391 = vmatprep.subr.bf16.mxu0 0
    %4392 = vmatpush1.bf16.msra.mxu0 %v4312
    %4393 = vmatprep.subr.bf16.mxu0 0
    %4394 = vmatpush1.bf16.msra.mxu0 0
    %4395 = vmatprep.subr.bf16.mxu0 0
    %4396 = vmatpush1.bf16.msra.mxu0 0
    %4397 = vmatprep.subr.bf16.mxu0 0
    %4398 = vmatpush1.bf16.msra.mxu0 0
    %4399 = vmatprep.subr.bf16.mxu0 0
    %4400 = vmatpush1.bf16.msra.mxu0 0
    %4401 = vmatprep.subr.bf16.mxu0 0
    %4402 = vmatpush1.bf16.msra.mxu0 0
    %4403 = vmatprep.subr.bf16.mxu0 0
    %4404 = vmatpush1.bf16.msra.mxu0 0
    %4405 = vmatprep.subr.bf16.mxu0 0
    %4406 = vmatpush1.bf16.msra.mxu0 0
    %4407 = vmatprep.subr.bf16.mxu0 0
    %4408 = vmatpush1.bf16.msra.mxu0 0
    %4409 = vmatprep.mubr.bf16.mxu0 0
    %4410 = vmatmul.mubr.bf16.gmra.mrb[0].mxu0 %v4189
    %v4411 = vpop.f32.mrb[0].mxu0
    %v4412 = vadd.f32 %v4372, %v4411
    %v4413 = vpop.f32.mrb[0].mxu0
    %v4414 = vpop.f32.mrb[0].mxu0
    %v4415 = vpop.f32.mrb[0].mxu0
    %4416 = vdwg.mxu0
    %v4417 = vtanh.pop %v4412
    %v4418 = vpack.c.bf16 %v4417, %v4417
    %4419 = vst [vmem:[#allocation4 + $0x20] sm:$0xf] %v4418
    %v4420 = vld [vmem:[#allocation4] sm:$0xff]
    %v4421 = vld [vmem:[#allocation4 + $0x8] sm:$0xff]
    %v4422 = vld [vmem:[#allocation12] sm:$0xff]
    %v4423 = vld [vmem:[#allocation12 + $0x8] sm:$0xff]
    %v4424 = vld [vmem:[#allocation12 + $0x10] sm:$0xff]
    %v4425 = vld [vmem:[#allocation12 + $0x18] sm:$0xff]
    %v4426 = vld [vmem:[#allocation12 + $0x20] sm:$0xff]
    %v4427 = vld [vmem:[#allocation12 + $0x28] sm:$0xff]
    %v4428 = vld [vmem:[#allocation12 + $0x30] sm:$0xff]
    %v4429 = vld [vmem:[#allocation12 + $0x38] sm:$0xff]
    %v4430 = vld [vmem:[#allocation12 + $0x40] sm:$0xff]
    %v4431 = vld [vmem:[#allocation12 + $0x48] sm:$0xff]
    %v4432 = vld [vmem:[#allocation12 + $0x50] sm:$0xff]
    %v4433 = vld [vmem:[#allocation12 + $0x58] sm:$0xff]
    %v4434 = vld [vmem:[#allocation12 + $0x60] sm:$0xff]
    %v4435 = vld [vmem:[#allocation12 + $0x68] sm:$0xff]
    %v4436 = vld [vmem:[#allocation12 + $0x70] sm:$0xff]
    %v4437 = vld [vmem:[#allocation12 + $0x78] sm:$0xff]
    %v4438 = vld [vmem:[#allocation12 + $0x80] sm:$0xff]
    %v4439 = vld [vmem:[#allocation12 + $0x88] sm:$0xff]
    %v4440 = vld [vmem:[#allocation12 + $0x90] sm:$0xff]
    %v4441 = vld [vmem:[#allocation12 + $0x98] sm:$0xff]
    %v4442 = vld [vmem:[#allocation12 + $0xa0] sm:$0xff]
    %v4443 = vld [vmem:[#allocation12 + $0xa8] sm:$0xff]
    %v4444 = vld [vmem:[#allocation12 + $0xb0] sm:$0xff]
    %v4445 = vld [vmem:[#allocation12 + $0xb8] sm:$0xff]
    %v4446 = vld [vmem:[#allocation12 + $0xc0] sm:$0xff]
    %v4447 = vld [vmem:[#allocation12 + $0xc8] sm:$0xff]
    %v4448 = vld [vmem:[#allocation12 + $0xd0] sm:$0xff]
    %v4449 = vld [vmem:[#allocation12 + $0xd8] sm:$0xff]
    %v4450 = vld [vmem:[#allocation12 + $0xe0] sm:$0xff]
    %v4451 = vld [vmem:[#allocation12 + $0xe8] sm:$0xff]
    %v4452 = vld [vmem:[#allocation12 + $0xf0] sm:$0xff]
    %v4453 = vld [vmem:[#allocation12 + $0xf8] sm:$0xff]
    %v4454 = vld [vmem:[#allocation12 + $0x100] sm:$0xff]
    %v4455 = vld [vmem:[#allocation12 + $0x108] sm:$0xff]
    %v4456 = vld [vmem:[#allocation12 + $0x110] sm:$0xff]
    %v4457 = vld [vmem:[#allocation12 + $0x118] sm:$0xff]
    %v4458 = vld [vmem:[#allocation12 + $0x120] sm:$0xff]
    %v4459 = vld [vmem:[#allocation12 + $0x128] sm:$0xff]
    %v4460 = vld [vmem:[#allocation12 + $0x130] sm:$0xff]
    %v4461 = vld [vmem:[#allocation12 + $0x138] sm:$0xff]
    %v4462 = vld [vmem:[#allocation12 + $0x140] sm:$0xff]
    %v4463 = vld [vmem:[#allocation12 + $0x148] sm:$0xff]
    %v4464 = vld [vmem:[#allocation12 + $0x150] sm:$0xff]
    %v4465 = vld [vmem:[#allocation12 + $0x158] sm:$0xff]
    %v4466 = vld [vmem:[#allocation12 + $0x160] sm:$0xff]
    %v4467 = vld [vmem:[#allocation12 + $0x168] sm:$0xff]
    %v4468 = vld [vmem:[#allocation12 + $0x170] sm:$0xff]
    %v4469 = vld [vmem:[#allocation12 + $0x178] sm:$0xff]
    %v4470 = vld [vmem:[#allocation12 + $0x180] sm:$0xff]
    %v4471 = vld [vmem:[#allocation12 + $0x188] sm:$0xff]
    %v4472 = vld [vmem:[#allocation12 + $0x190] sm:$0xff]
    %v4473 = vld [vmem:[#allocation12 + $0x198] sm:$0xff]
    %v4474 = vld [vmem:[#allocation12 + $0x1a0] sm:$0xff]
    %v4475 = vld [vmem:[#allocation12 + $0x1a8] sm:$0xff]
    %v4476 = vld [vmem:[#allocation12 + $0x1b0] sm:$0xff]
    %v4477 = vld [vmem:[#allocation12 + $0x1b8] sm:$0xff]
    %v4478 = vld [vmem:[#allocation12 + $0x1c0] sm:$0xff]
    %v4479 = vld [vmem:[#allocation12 + $0x1c8] sm:$0xff]
    %v4480 = vld [vmem:[#allocation12 + $0x1d0] sm:$0xff]
    %v4481 = vld [vmem:[#allocation12 + $0x1d8] sm:$0xff]
    %v4482 = vld [vmem:[#allocation12 + $0x1e0] sm:$0xff]
    %v4483 = vld [vmem:[#allocation12 + $0x1e8] sm:$0xff]
    %v4484 = vld [vmem:[#allocation12 + $0x1f0] sm:$0xff]
    %v4485 = vld [vmem:[#allocation12 + $0x1f8] sm:$0xff]
    %v4486 = vld [vmem:[%s10] sm:$0x3]
    %v4488 = vlaneseq
    %v4489 = vshrl.u32 %v4488, 7
    %v4490 = vsub.s32 0, %v4489
    %v4491 = vrot.slane %v4486, %v4490
    %v4492 = vlaneseq
    %v4493 = vshrl.u32 %v4492, 7
    %v4494 = vsub.s32 1, %v4493
    %v4495 = vrot.slane %v4486, %v4494
    %v4500 = vunpack.c.l.b16 %v4420
    %v4501 = vunpack.c.h.b16 %v4420
    %v4502 = vunpack.c.l.b16 %v4421
    %v4503 = vunpack.c.h.b16 %v4421
    %v4504 = vpack.c.b16 %v4500, %v4500
    %v4505 = vpack.c.b16 %v4501, %v4501
    %v4506 = vpack.c.b16 %v4502, %v4502
    %v4507 = vpack.c.b16 %v4503, %v4503
    %v4576 = vunpack.c.l.b16 %v4422
    %v4577 = vunpack.c.h.b16 %v4422
    %v4578 = vunpack.c.l.b16 %v4423
    %v4579 = vunpack.c.h.b16 %v4423
    %v4580 = vunpack.c.l.b16 %v4424
    %v4581 = vunpack.c.h.b16 %v4424
    %v4582 = vunpack.c.l.b16 %v4425
    %v4583 = vunpack.c.h.b16 %v4425
    %v4584 = vunpack.c.l.b16 %v4426
    %v4585 = vunpack.c.h.b16 %v4426
    %v4586 = vunpack.c.l.b16 %v4427
    %v4587 = vunpack.c.h.b16 %v4427
    %v4588 = vunpack.c.l.b16 %v4428
    %v4589 = vunpack.c.h.b16 %v4428
    %v4590 = vunpack.c.l.b16 %v4429
    %v4591 = vunpack.c.h.b16 %v4429
    %v4592 = vunpack.c.l.b16 %v4430
    %v4593 = vunpack.c.h.b16 %v4430
    %v4594 = vunpack.c.l.b16 %v4431
    %v4595 = vunpack.c.h.b16 %v4431
    %v4596 = vunpack.c.l.b16 %v4432
    %v4597 = vunpack.c.h.b16 %v4432
    %v4598 = vunpack.c.l.b16 %v4433
    %v4599 = vunpack.c.h.b16 %v4433
    %v4600 = vunpack.c.l.b16 %v4434
    %v4601 = vunpack.c.h.b16 %v4434
    %v4602 = vunpack.c.l.b16 %v4435
    %v4603 = vunpack.c.h.b16 %v4435
    %v4604 = vunpack.c.l.b16 %v4436
    %v4605 = vunpack.c.h.b16 %v4436
    %v4606 = vunpack.c.l.b16 %v4437
    %v4607 = vunpack.c.h.b16 %v4437
    %v4608 = vunpack.c.l.b16 %v4438
    %v4609 = vunpack.c.h.b16 %v4438
    %v4610 = vunpack.c.l.b16 %v4439
    %v4611 = vunpack.c.h.b16 %v4439
    %v4612 = vunpack.c.l.b16 %v4440
    %v4613 = vunpack.c.h.b16 %v4440
    %v4614 = vunpack.c.l.b16 %v4441
    %v4615 = vunpack.c.h.b16 %v4441
    %v4616 = vunpack.c.l.b16 %v4442
    %v4617 = vunpack.c.h.b16 %v4442
    %v4618 = vunpack.c.l.b16 %v4443
    %v4619 = vunpack.c.h.b16 %v4443
    %v4620 = vunpack.c.l.b16 %v4444
    %v4621 = vunpack.c.h.b16 %v4444
    %v4622 = vunpack.c.l.b16 %v4445
    %v4623 = vunpack.c.h.b16 %v4445
    %v4624 = vunpack.c.l.b16 %v4446
    %v4625 = vunpack.c.h.b16 %v4446
    %v4626 = vunpack.c.l.b16 %v4447
    %v4627 = vunpack.c.h.b16 %v4447
    %v4628 = vunpack.c.l.b16 %v4448
    %v4629 = vunpack.c.h.b16 %v4448
    %v4630 = vunpack.c.l.b16 %v4449
    %v4631 = vunpack.c.h.b16 %v4449
    %v4632 = vunpack.c.l.b16 %v4450
    %v4633 = vunpack.c.h.b16 %v4450
    %v4634 = vunpack.c.l.b16 %v4451
    %v4635 = vunpack.c.h.b16 %v4451
    %v4636 = vunpack.c.l.b16 %v4452
    %v4637 = vunpack.c.h.b16 %v4452
    %v4638 = vunpack.c.l.b16 %v4453
    %v4639 = vunpack.c.h.b16 %v4453
    %v4640 = vunpack.c.l.b16 %v4454
    %v4641 = vunpack.c.h.b16 %v4454
    %v4642 = vunpack.c.l.b16 %v4455
    %v4643 = vunpack.c.h.b16 %v4455
    %v4644 = vunpack.c.l.b16 %v4456
    %v4645 = vunpack.c.h.b16 %v4456
    %v4646 = vunpack.c.l.b16 %v4457
    %v4647 = vunpack.c.h.b16 %v4457
    %v4648 = vunpack.c.l.b16 %v4458
    %v4649 = vunpack.c.h.b16 %v4458
    %v4650 = vunpack.c.l.b16 %v4459
    %v4651 = vunpack.c.h.b16 %v4459
    %v4652 = vunpack.c.l.b16 %v4460
    %v4653 = vunpack.c.h.b16 %v4460
    %v4654 = vunpack.c.l.b16 %v4461
    %v4655 = vunpack.c.h.b16 %v4461
    %v4656 = vunpack.c.l.b16 %v4462
    %v4657 = vunpack.c.h.b16 %v4462
    %v4658 = vunpack.c.l.b16 %v4463
    %v4659 = vunpack.c.h.b16 %v4463
    %v4660 = vunpack.c.l.b16 %v4464
    %v4661 = vunpack.c.h.b16 %v4464
    %v4662 = vunpack.c.l.b16 %v4465
    %v4663 = vunpack.c.h.b16 %v4465
    %v4664 = vunpack.c.l.b16 %v4466
    %v4665 = vunpack.c.h.b16 %v4466
    %v4666 = vunpack.c.l.b16 %v4467
    %v4667 = vunpack.c.h.b16 %v4467
    %v4668 = vunpack.c.l.b16 %v4468
    %v4669 = vunpack.c.h.b16 %v4468
    %v4670 = vunpack.c.l.b16 %v4469
    %v4671 = vunpack.c.h.b16 %v4469
    %v4672 = vunpack.c.l.b16 %v4470
    %v4673 = vunpack.c.h.b16 %v4470
    %v4674 = vunpack.c.l.b16 %v4471
    %v4675 = vunpack.c.h.b16 %v4471
    %v4676 = vunpack.c.l.b16 %v4472
    %v4677 = vunpack.c.h.b16 %v4472
    %v4678 = vunpack.c.l.b16 %v4473
    %v4679 = vunpack.c.h.b16 %v4473
    %v4680 = vunpack.c.l.b16 %v4474
    %v4681 = vunpack.c.h.b16 %v4474
    %v4682 = vunpack.c.l.b16 %v4475
    %v4683 = vunpack.c.h.b16 %v4475
    %v4684 = vunpack.c.l.b16 %v4476
    %v4685 = vunpack.c.h.b16 %v4476
    %v4686 = vunpack.c.l.b16 %v4477
    %v4687 = vunpack.c.h.b16 %v4477
    %v4688 = vunpack.c.l.b16 %v4478
    %v4689 = vunpack.c.h.b16 %v4478
    %v4690 = vunpack.c.l.b16 %v4479
    %v4691 = vunpack.c.h.b16 %v4479
    %v4692 = vunpack.c.l.b16 %v4480
    %v4693 = vunpack.c.h.b16 %v4480
    %v4694 = vunpack.c.l.b16 %v4481
    %v4695 = vunpack.c.h.b16 %v4481
    %v4696 = vunpack.c.l.b16 %v4482
    %v4697 = vunpack.c.h.b16 %v4482
    %v4698 = vunpack.c.l.b16 %v4483
    %v4699 = vunpack.c.h.b16 %v4483
    %v4700 = vunpack.c.l.b16 %v4484
    %v4701 = vunpack.c.h.b16 %v4484
    %v4702 = vunpack.c.l.b16 %v4485
    %v4703 = vunpack.c.h.b16 %v4485
    %v4704 = vpack.c.b16 %v4578, %v4576
    %v4705 = vpack.c.b16 %v4579, %v4577
    %v4706 = vpack.c.b16 %v4582, %v4580
    %v4707 = vpack.c.b16 %v4583, %v4581
    %v4708 = vpack.c.b16 %v4586, %v4584
    %v4709 = vpack.c.b16 %v4587, %v4585
    %v4710 = vpack.c.b16 %v4590, %v4588
    %v4711 = vpack.c.b16 %v4591, %v4589
    %v4712 = vpack.c.b16 %v4594, %v4592
    %v4713 = vpack.c.b16 %v4595, %v4593
    %v4714 = vpack.c.b16 %v4598, %v4596
    %v4715 = vpack.c.b16 %v4599, %v4597
    %v4716 = vpack.c.b16 %v4602, %v4600
    %v4717 = vpack.c.b16 %v4603, %v4601
    %v4718 = vpack.c.b16 %v4606, %v4604
    %v4719 = vpack.c.b16 %v4607, %v4605
    %v4720 = vpack.c.b16 %v4610, %v4608
    %v4721 = vpack.c.b16 %v4611, %v4609
    %v4722 = vpack.c.b16 %v4614, %v4612
    %v4723 = vpack.c.b16 %v4615, %v4613
    %v4724 = vpack.c.b16 %v4618, %v4616
    %v4725 = vpack.c.b16 %v4619, %v4617
    %v4726 = vpack.c.b16 %v4622, %v4620
    %v4727 = vpack.c.b16 %v4623, %v4621
    %v4728 = vpack.c.b16 %v4626, %v4624
    %v4729 = vpack.c.b16 %v4627, %v4625
    %v4730 = vpack.c.b16 %v4630, %v4628
    %v4731 = vpack.c.b16 %v4631, %v4629
    %v4732 = vpack.c.b16 %v4634, %v4632
    %v4733 = vpack.c.b16 %v4635, %v4633
    %v4734 = vpack.c.b16 %v4638, %v4636
    %v4735 = vpack.c.b16 %v4639, %v4637
    %v4736 = vpack.c.b16 %v4642, %v4640
    %v4737 = vpack.c.b16 %v4643, %v4641
    %v4738 = vpack.c.b16 %v4646, %v4644
    %v4739 = vpack.c.b16 %v4647, %v4645
    %v4740 = vpack.c.b16 %v4650, %v4648
    %v4741 = vpack.c.b16 %v4651, %v4649
    %v4742 = vpack.c.b16 %v4654, %v4652
    %v4743 = vpack.c.b16 %v4655, %v4653
    %v4744 = vpack.c.b16 %v4658, %v4656
    %v4745 = vpack.c.b16 %v4659, %v4657
    %v4746 = vpack.c.b16 %v4662, %v4660
    %v4747 = vpack.c.b16 %v4663, %v4661
    %v4748 = vpack.c.b16 %v4666, %v4664
    %v4749 = vpack.c.b16 %v4667, %v4665
    %v4750 = vpack.c.b16 %v4670, %v4668
    %v4751 = vpack.c.b16 %v4671, %v4669
    %v4752 = vpack.c.b16 %v4674, %v4672
    %v4753 = vpack.c.b16 %v4675, %v4673
    %v4754 = vpack.c.b16 %v4678, %v4676
    %v4755 = vpack.c.b16 %v4679, %v4677
    %v4756 = vpack.c.b16 %v4682, %v4680
    %v4757 = vpack.c.b16 %v4683, %v4681
    %v4758 = vpack.c.b16 %v4686, %v4684
    %v4759 = vpack.c.b16 %v4687, %v4685
    %v4760 = vpack.c.b16 %v4690, %v4688
    %v4761 = vpack.c.b16 %v4691, %v4689
    %v4762 = vpack.c.b16 %v4694, %v4692
    %v4763 = vpack.c.b16 %v4695, %v4693
    %v4764 = vpack.c.b16 %v4698, %v4696
    %v4765 = vpack.c.b16 %v4699, %v4697
    %v4766 = vpack.c.b16 %v4702, %v4700
    %v4767 = vpack.c.b16 %v4703, %v4701
    %4832 = vmatprep.subr.bf16.mxu0 %v4705
    %4833 = vmatpush1.bf16.msra.mxu0 %v4704
    %4834 = vmatprep.subr.bf16.mxu0 %v4707
    %4835 = vmatpush1.bf16.msra.mxu0 %v4706
    %4836 = vmatprep.subr.bf16.mxu0 %v4709
    %4837 = vmatpush1.bf16.msra.mxu0 %v4708
    %4838 = vmatprep.subr.bf16.mxu0 %v4711
    %4839 = vmatpush1.bf16.msra.mxu0 %v4710
    %4840 = vmatprep.subr.bf16.mxu0 %v4713
    %4841 = vmatpush1.bf16.msra.mxu0 %v4712
    %4842 = vmatprep.subr.bf16.mxu0 %v4715
    %4843 = vmatpush1.bf16.msra.mxu0 %v4714
    %4844 = vmatprep.subr.bf16.mxu0 %v4717
    %4845 = vmatpush1.bf16.msra.mxu0 %v4716
    %4846 = vmatprep.subr.bf16.mxu0 %v4719
    %4847 = vmatpush1.bf16.msra.mxu0 %v4718
    %4848 = vmatprep.subr.bf16.mxu0 %v4721
    %4849 = vmatpush1.bf16.msra.mxu0 %v4720
    %4850 = vmatprep.subr.bf16.mxu0 %v4723
    %4851 = vmatpush1.bf16.msra.mxu0 %v4722
    %4852 = vmatprep.subr.bf16.mxu0 %v4725
    %4853 = vmatpush1.bf16.msra.mxu0 %v4724
    %4854 = vmatprep.subr.bf16.mxu0 %v4727
    %4855 = vmatpush1.bf16.msra.mxu0 %v4726
    %4856 = vmatprep.subr.bf16.mxu0 %v4729
    %4857 = vmatpush1.bf16.msra.mxu0 %v4728
    %4858 = vmatprep.subr.bf16.mxu0 %v4731
    %4859 = vmatpush1.bf16.msra.mxu0 %v4730
    %4860 = vmatprep.subr.bf16.mxu0 %v4733
    %4861 = vmatpush1.bf16.msra.mxu0 %v4732
    %4862 = vmatprep.subr.bf16.mxu0 %v4735
    %4863 = vmatpush1.bf16.msra.mxu0 %v4734
    %4864 = vmatprep.mubr.bf16.mxu0 %v4505
    %4865 = vmatmul.mubr.bf16.gmra.mrb[0].mxu0 %v4504
    %v4866 = vpop.f32.mrb[0].mxu0
    %v4867 = vadd.f32 %v4491, %v4866
    %v4868 = vpop.f32.mrb[0].mxu0
    %v4869 = vadd.f32 %v4495, %v4868
    %v4870 = vpop.f32.mrb[0].mxu0
    %v4871 = vpop.f32.mrb[0].mxu0
    %4872 = vdwg.mxu0
    %4873 = vmatprep.subr.bf16.mxu0 %v4737
    %4874 = vmatpush1.bf16.msra.mxu0 %v4736
    %4875 = vmatprep.subr.bf16.mxu0 %v4739
    %4876 = vmatpush1.bf16.msra.mxu0 %v4738
    %4877 = vmatprep.subr.bf16.mxu0 %v4741
    %4878 = vmatpush1.bf16.msra.mxu0 %v4740
    %4879 = vmatprep.subr.bf16.mxu0 %v4743
    %4880 = vmatpush1.bf16.msra.mxu0 %v4742
    %4881 = vmatprep.subr.bf16.mxu0 %v4745
    %4882 = vmatpush1.bf16.msra.mxu0 %v4744
    %4883 = vmatprep.subr.bf16.mxu0 %v4747
    %4884 = vmatpush1.bf16.msra.mxu0 %v4746
    %4885 = vmatprep.subr.bf16.mxu0 %v4749
    %4886 = vmatpush1.bf16.msra.mxu0 %v4748
    %4887 = vmatprep.subr.bf16.mxu0 %v4751
    %4888 = vmatpush1.bf16.msra.mxu0 %v4750
    %4889 = vmatprep.subr.bf16.mxu0 %v4753
    %4890 = vmatpush1.bf16.msra.mxu0 %v4752
    %4891 = vmatprep.subr.bf16.mxu0 %v4755
    %4892 = vmatpush1.bf16.msra.mxu0 %v4754
    %4893 = vmatprep.subr.bf16.mxu0 %v4757
    %4894 = vmatpush1.bf16.msra.mxu0 %v4756
    %4895 = vmatprep.subr.bf16.mxu0 %v4759
    %4896 = vmatpush1.bf16.msra.mxu0 %v4758
    %4897 = vmatprep.subr.bf16.mxu0 %v4761
    %4898 = vmatpush1.bf16.msra.mxu0 %v4760
    %4899 = vmatprep.subr.bf16.mxu0 %v4763
    %4900 = vmatpush1.bf16.msra.mxu0 %v4762
    %4901 = vmatprep.subr.bf16.mxu0 %v4765
    %4902 = vmatpush1.bf16.msra.mxu0 %v4764
    %4903 = vmatprep.subr.bf16.mxu0 %v4767
    %4904 = vmatpush1.bf16.msra.mxu0 %v4766
    %4905 = vmatprep.mubr.bf16.mxu0 %v4507
    %4906 = vmatmul.mubr.bf16.gmra.mrb[0].mxu0 %v4506
    %v4907 = vpop.f32.mrb[0].mxu0
    %v4908 = vadd.f32 %v4867, %v4907
    %v4909 = vpop.f32.mrb[0].mxu0
    %v4910 = vadd.f32 %v4869, %v4909
    %v4911 = vpop.f32.mrb[0].mxu0
    %v4912 = vpop.f32.mrb[0].mxu0
    %4913 = vdwg.mxu0
    %vm4914 = vcmp.gt.f32.partialorder %v4908, 0.0
    %vm4915 = vcmp.gt.f32.partialorder %v4910, 0.0
    %v4916 = vmul.f32 %v4908, 0.2
    %v4917 = vmul.f32 %v4910, 0.2
    %v4918 = vsel %vm4914, %v4908, %v4916
    %v4919 = vsel %vm4915, %v4910, %v4917
    %v4920 = vpack.c.bf16 %v4918, %v4918
    %v4921 = vpack.c.bf16 %v4919, %v4919
    %v4924 = vunpack.c.l.b16 %v4920
    %v4925 = vunpack.c.l.b16 %v4921
    %v4926 = vpack.c.b16 %v4925, %v4924
    %4928 = vst [vmem:[#allocation5 + $0x8] sm:$0xff] %v4926
    %v4929 = vld [vmem:[#allocation4 + $0x8] sm:$0xff]
    %v4930 = vld [vmem:[#allocation4 + $0x10] sm:$0xff]
    %v4931 = vld [vmem:[#allocation12] sm:$0xff]
    %v4932 = vld [vmem:[#allocation12 + $0x8] sm:$0xff]
    %v4933 = vld [vmem:[#allocation12 + $0x10] sm:$0xff]
    %v4934 = vld [vmem:[#allocation12 + $0x18] sm:$0xff]
    %v4935 = vld [vmem:[#allocation12 + $0x20] sm:$0xff]
    %v4936 = vld [vmem:[#allocation12 + $0x28] sm:$0xff]
    %v4937 = vld [vmem:[#allocation12 + $0x30] sm:$0xff]
    %v4938 = vld [vmem:[#allocation12 + $0x38] sm:$0xff]
    %v4939 = vld [vmem:[#allocation12 + $0x40] sm:$0xff]
    %v4940 = vld [vmem:[#allocation12 + $0x48] sm:$0xff]
    %v4941 = vld [vmem:[#allocation12 + $0x50] sm:$0xff]
    %v4942 = vld [vmem:[#allocation12 + $0x58] sm:$0xff]
    %v4943 = vld [vmem:[#allocation12 + $0x60] sm:$0xff]
    %v4944 = vld [vmem:[#allocation12 + $0x68] sm:$0xff]
    %v4945 = vld [vmem:[#allocation12 + $0x70] sm:$0xff]
    %v4946 = vld [vmem:[#allocation12 + $0x78] sm:$0xff]
    %v4947 = vld [vmem:[#allocation12 + $0x80] sm:$0xff]
    %v4948 = vld [vmem:[#allocation12 + $0x88] sm:$0xff]
    %v4949 = vld [vmem:[#allocation12 + $0x90] sm:$0xff]
    %v4950 = vld [vmem:[#allocation12 + $0x98] sm:$0xff]
    %v4951 = vld [vmem:[#allocation12 + $0xa0] sm:$0xff]
    %v4952 = vld [vmem:[#allocation12 + $0xa8] sm:$0xff]
    %v4953 = vld [vmem:[#allocation12 + $0xb0] sm:$0xff]
    %v4954 = vld [vmem:[#allocation12 + $0xb8] sm:$0xff]
    %v4955 = vld [vmem:[#allocation12 + $0xc0] sm:$0xff]
    %v4956 = vld [vmem:[#allocation12 + $0xc8] sm:$0xff]
    %v4957 = vld [vmem:[#allocation12 + $0xd0] sm:$0xff]
    %v4958 = vld [vmem:[#allocation12 + $0xd8] sm:$0xff]
    %v4959 = vld [vmem:[#allocation12 + $0xe0] sm:$0xff]
    %v4960 = vld [vmem:[#allocation12 + $0xe8] sm:$0xff]
    %v4961 = vld [vmem:[#allocation12 + $0xf0] sm:$0xff]
    %v4962 = vld [vmem:[#allocation12 + $0xf8] sm:$0xff]
    %v4963 = vld [vmem:[#allocation12 + $0x100] sm:$0xff]
    %v4964 = vld [vmem:[#allocation12 + $0x108] sm:$0xff]
    %v4965 = vld [vmem:[#allocation12 + $0x110] sm:$0xff]
    %v4966 = vld [vmem:[#allocation12 + $0x118] sm:$0xff]
    %v4967 = vld [vmem:[#allocation12 + $0x120] sm:$0xff]
    %v4968 = vld [vmem:[#allocation12 + $0x128] sm:$0xff]
    %v4969 = vld [vmem:[#allocation12 + $0x130] sm:$0xff]
    %v4970 = vld [vmem:[#allocation12 + $0x138] sm:$0xff]
    %v4971 = vld [vmem:[#allocation12 + $0x140] sm:$0xff]
    %v4972 = vld [vmem:[#allocation12 + $0x148] sm:$0xff]
    %v4973 = vld [vmem:[#allocation12 + $0x150] sm:$0xff]
    %v4974 = vld [vmem:[#allocation12 + $0x158] sm:$0xff]
    %v4975 = vld [vmem:[#allocation12 + $0x160] sm:$0xff]
    %v4976 = vld [vmem:[#allocation12 + $0x168] sm:$0xff]
    %v4977 = vld [vmem:[#allocation12 + $0x170] sm:$0xff]
    %v4978 = vld [vmem:[#allocation12 + $0x178] sm:$0xff]
    %v4979 = vld [vmem:[#allocation12 + $0x180] sm:$0xff]
    %v4980 = vld [vmem:[#allocation12 + $0x188] sm:$0xff]
    %v4981 = vld [vmem:[#allocation12 + $0x190] sm:$0xff]
    %v4982 = vld [vmem:[#allocation12 + $0x198] sm:$0xff]
    %v4983 = vld [vmem:[#allocation12 + $0x1a0] sm:$0xff]
    %v4984 = vld [vmem:[#allocation12 + $0x1a8] sm:$0xff]
    %v4985 = vld [vmem:[#allocation12 + $0x1b0] sm:$0xff]
    %v4986 = vld [vmem:[#allocation12 + $0x1b8] sm:$0xff]
    %v4987 = vld [vmem:[#allocation12 + $0x1c0] sm:$0xff]
    %v4988 = vld [vmem:[#allocation12 + $0x1c8] sm:$0xff]
    %v4989 = vld [vmem:[#allocation12 + $0x1d0] sm:$0xff]
    %v4990 = vld [vmem:[#allocation12 + $0x1d8] sm:$0xff]
    %v4991 = vld [vmem:[#allocation12 + $0x1e0] sm:$0xff]
    %v4992 = vld [vmem:[#allocation12 + $0x1e8] sm:$0xff]
    %v4993 = vld [vmem:[#allocation12 + $0x1f0] sm:$0xff]
    %v4994 = vld [vmem:[#allocation12 + $0x1f8] sm:$0xff]
    %v4995 = vld [vmem:[%s10] sm:$0x3]
    %v4997 = vlaneseq
    %v4998 = vshrl.u32 %v4997, 7
    %v4999 = vsub.s32 0, %v4998
    %v5000 = vrot.slane %v4995, %v4999
    %v5001 = vlaneseq
    %v5002 = vshrl.u32 %v5001, 7
    %v5003 = vsub.s32 1, %v5002
    %v5004 = vrot.slane %v4995, %v5003
    %v5009 = vunpack.c.l.b16 %v4929
    %v5010 = vunpack.c.h.b16 %v4929
    %v5011 = vunpack.c.l.b16 %v4930
    %v5012 = vunpack.c.h.b16 %v4930
    %v5013 = vpack.c.b16 %v5009, %v5009
    %v5014 = vpack.c.b16 %v5010, %v5010
    %v5015 = vpack.c.b16 %v5011, %v5011
    %v5016 = vpack.c.b16 %v5012, %v5012
    %v5085 = vunpack.c.l.b16 %v4931
    %v5086 = vunpack.c.h.b16 %v4931
    %v5087 = vunpack.c.l.b16 %v4932
    %v5088 = vunpack.c.h.b16 %v4932
    %v5089 = vunpack.c.l.b16 %v4933
    %v5090 = vunpack.c.h.b16 %v4933
    %v5091 = vunpack.c.l.b16 %v4934
    %v5092 = vunpack.c.h.b16 %v4934
    %v5093 = vunpack.c.l.b16 %v4935
    %v5094 = vunpack.c.h.b16 %v4935
    %v5095 = vunpack.c.l.b16 %v4936
    %v5096 = vunpack.c.h.b16 %v4936
    %v5097 = vunpack.c.l.b16 %v4937
    %v5098 = vunpack.c.h.b16 %v4937
    %v5099 = vunpack.c.l.b16 %v4938
    %v5100 = vunpack.c.h.b16 %v4938
    %v5101 = vunpack.c.l.b16 %v4939
    %v5102 = vunpack.c.h.b16 %v4939
    %v5103 = vunpack.c.l.b16 %v4940
    %v5104 = vunpack.c.h.b16 %v4940
    %v5105 = vunpack.c.l.b16 %v4941
    %v5106 = vunpack.c.h.b16 %v4941
    %v5107 = vunpack.c.l.b16 %v4942
    %v5108 = vunpack.c.h.b16 %v4942
    %v5109 = vunpack.c.l.b16 %v4943
    %v5110 = vunpack.c.h.b16 %v4943
    %v5111 = vunpack.c.l.b16 %v4944
    %v5112 = vunpack.c.h.b16 %v4944
    %v5113 = vunpack.c.l.b16 %v4945
    %v5114 = vunpack.c.h.b16 %v4945
    %v5115 = vunpack.c.l.b16 %v4946
    %v5116 = vunpack.c.h.b16 %v4946
    %v5117 = vunpack.c.l.b16 %v4947
    %v5118 = vunpack.c.h.b16 %v4947
    %v5119 = vunpack.c.l.b16 %v4948
    %v5120 = vunpack.c.h.b16 %v4948
    %v5121 = vunpack.c.l.b16 %v4949
    %v5122 = vunpack.c.h.b16 %v4949
    %v5123 = vunpack.c.l.b16 %v4950
    %v5124 = vunpack.c.h.b16 %v4950
    %v5125 = vunpack.c.l.b16 %v4951
    %v5126 = vunpack.c.h.b16 %v4951
    %v5127 = vunpack.c.l.b16 %v4952
    %v5128 = vunpack.c.h.b16 %v4952
    %v5129 = vunpack.c.l.b16 %v4953
    %v5130 = vunpack.c.h.b16 %v4953
    %v5131 = vunpack.c.l.b16 %v4954
    %v5132 = vunpack.c.h.b16 %v4954
    %v5133 = vunpack.c.l.b16 %v4955
    %v5134 = vunpack.c.h.b16 %v4955
    %v5135 = vunpack.c.l.b16 %v4956
    %v5136 = vunpack.c.h.b16 %v4956
    %v5137 = vunpack.c.l.b16 %v4957
    %v5138 = vunpack.c.h.b16 %v4957
    %v5139 = vunpack.c.l.b16 %v4958
    %v5140 = vunpack.c.h.b16 %v4958
    %v5141 = vunpack.c.l.b16 %v4959
    %v5142 = vunpack.c.h.b16 %v4959
    %v5143 = vunpack.c.l.b16 %v4960
    %v5144 = vunpack.c.h.b16 %v4960
    %v5145 = vunpack.c.l.b16 %v4961
    %v5146 = vunpack.c.h.b16 %v4961
    %v5147 = vunpack.c.l.b16 %v4962
    %v5148 = vunpack.c.h.b16 %v4962
    %v5149 = vunpack.c.l.b16 %v4963
    %v5150 = vunpack.c.h.b16 %v4963
    %v5151 = vunpack.c.l.b16 %v4964
    %v5152 = vunpack.c.h.b16 %v4964
    %v5153 = vunpack.c.l.b16 %v4965
    %v5154 = vunpack.c.h.b16 %v4965
    %v5155 = vunpack.c.l.b16 %v4966
    %v5156 = vunpack.c.h.b16 %v4966
    %v5157 = vunpack.c.l.b16 %v4967
    %v5158 = vunpack.c.h.b16 %v4967
    %v5159 = vunpack.c.l.b16 %v4968
    %v5160 = vunpack.c.h.b16 %v4968
    %v5161 = vunpack.c.l.b16 %v4969
    %v5162 = vunpack.c.h.b16 %v4969
    %v5163 = vunpack.c.l.b16 %v4970
    %v5164 = vunpack.c.h.b16 %v4970
    %v5165 = vunpack.c.l.b16 %v4971
    %v5166 = vunpack.c.h.b16 %v4971
    %v5167 = vunpack.c.l.b16 %v4972
    %v5168 = vunpack.c.h.b16 %v4972
    %v5169 = vunpack.c.l.b16 %v4973
    %v5170 = vunpack.c.h.b16 %v4973
    %v5171 = vunpack.c.l.b16 %v4974
    %v5172 = vunpack.c.h.b16 %v4974
    %v5173 = vunpack.c.l.b16 %v4975
    %v5174 = vunpack.c.h.b16 %v4975
    %v5175 = vunpack.c.l.b16 %v4976
    %v5176 = vunpack.c.h.b16 %v4976
    %v5177 = vunpack.c.l.b16 %v4977
    %v5178 = vunpack.c.h.b16 %v4977
    %v5179 = vunpack.c.l.b16 %v4978
    %v5180 = vunpack.c.h.b16 %v4978
    %v5181 = vunpack.c.l.b16 %v4979
    %v5182 = vunpack.c.h.b16 %v4979
    %v5183 = vunpack.c.l.b16 %v4980
    %v5184 = vunpack.c.h.b16 %v4980
    %v5185 = vunpack.c.l.b16 %v4981
    %v5186 = vunpack.c.h.b16 %v4981
    %v5187 = vunpack.c.l.b16 %v4982
    %v5188 = vunpack.c.h.b16 %v4982
    %v5189 = vunpack.c.l.b16 %v4983
    %v5190 = vunpack.c.h.b16 %v4983
    %v5191 = vunpack.c.l.b16 %v4984
    %v5192 = vunpack.c.h.b16 %v4984
    %v5193 = vunpack.c.l.b16 %v4985
    %v5194 = vunpack.c.h.b16 %v4985
    %v5195 = vunpack.c.l.b16 %v4986
    %v5196 = vunpack.c.h.b16 %v4986
    %v5197 = vunpack.c.l.b16 %v4987
    %v5198 = vunpack.c.h.b16 %v4987
    %v5199 = vunpack.c.l.b16 %v4988
    %v5200 = vunpack.c.h.b16 %v4988
    %v5201 = vunpack.c.l.b16 %v4989
    %v5202 = vunpack.c.h.b16 %v4989
    %v5203 = vunpack.c.l.b16 %v4990
    %v5204 = vunpack.c.h.b16 %v4990
    %v5205 = vunpack.c.l.b16 %v4991
    %v5206 = vunpack.c.h.b16 %v4991
    %v5207 = vunpack.c.l.b16 %v4992
    %v5208 = vunpack.c.h.b16 %v4992
    %v5209 = vunpack.c.l.b16 %v4993
    %v5210 = vunpack.c.h.b16 %v4993
    %v5211 = vunpack.c.l.b16 %v4994
    %v5212 = vunpack.c.h.b16 %v4994
    %v5213 = vpack.c.b16 %v5087, %v5085
    %v5214 = vpack.c.b16 %v5088, %v5086
    %v5215 = vpack.c.b16 %v5091, %v5089
    %v5216 = vpack.c.b16 %v5092, %v5090
    %v5217 = vpack.c.b16 %v5095, %v5093
    %v5218 = vpack.c.b16 %v5096, %v5094
    %v5219 = vpack.c.b16 %v5099, %v5097
    %v5220 = vpack.c.b16 %v5100, %v5098
    %v5221 = vpack.c.b16 %v5103, %v5101
    %v5222 = vpack.c.b16 %v5104, %v5102
    %v5223 = vpack.c.b16 %v5107, %v5105
    %v5224 = vpack.c.b16 %v5108, %v5106
    %v5225 = vpack.c.b16 %v5111, %v5109
    %v5226 = vpack.c.b16 %v5112, %v5110
    %v5227 = vpack.c.b16 %v5115, %v5113
    %v5228 = vpack.c.b16 %v5116, %v5114
    %v5229 = vpack.c.b16 %v5119, %v5117
    %v5230 = vpack.c.b16 %v5120, %v5118
    %v5231 = vpack.c.b16 %v5123, %v5121
    %v5232 = vpack.c.b16 %v5124, %v5122
    %v5233 = vpack.c.b16 %v5127, %v5125
    %v5234 = vpack.c.b16 %v5128, %v5126
    %v5235 = vpack.c.b16 %v5131, %v5129
    %v5236 = vpack.c.b16 %v5132, %v5130
    %v5237 = vpack.c.b16 %v5135, %v5133
    %v5238 = vpack.c.b16 %v5136, %v5134
    %v5239 = vpack.c.b16 %v5139, %v5137
    %v5240 = vpack.c.b16 %v5140, %v5138
    %v5241 = vpack.c.b16 %v5143, %v5141
    %v5242 = vpack.c.b16 %v5144, %v5142
    %v5243 = vpack.c.b16 %v5147, %v5145
    %v5244 = vpack.c.b16 %v5148, %v5146
    %v5245 = vpack.c.b16 %v5151, %v5149
    %v5246 = vpack.c.b16 %v5152, %v5150
    %v5247 = vpack.c.b16 %v5155, %v5153
    %v5248 = vpack.c.b16 %v5156, %v5154
    %v5249 = vpack.c.b16 %v5159, %v5157
    %v5250 = vpack.c.b16 %v5160, %v5158
    %v5251 = vpack.c.b16 %v5163, %v5161
    %v5252 = vpack.c.b16 %v5164, %v5162
    %v5253 = vpack.c.b16 %v5167, %v5165
    %v5254 = vpack.c.b16 %v5168, %v5166
    %v5255 = vpack.c.b16 %v5171, %v5169
    %v5256 = vpack.c.b16 %v5172, %v5170
    %v5257 = vpack.c.b16 %v5175, %v5173
    %v5258 = vpack.c.b16 %v5176, %v5174
    %v5259 = vpack.c.b16 %v5179, %v5177
    %v5260 = vpack.c.b16 %v5180, %v5178
    %v5261 = vpack.c.b16 %v5183, %v5181
    %v5262 = vpack.c.b16 %v5184, %v5182
    %v5263 = vpack.c.b16 %v5187, %v5185
    %v5264 = vpack.c.b16 %v5188, %v5186
    %v5265 = vpack.c.b16 %v5191, %v5189
    %v5266 = vpack.c.b16 %v5192, %v5190
    %v5267 = vpack.c.b16 %v5195, %v5193
    %v5268 = vpack.c.b16 %v5196, %v5194
    %v5269 = vpack.c.b16 %v5199, %v5197
    %v5270 = vpack.c.b16 %v5200, %v5198
    %v5271 = vpack.c.b16 %v5203, %v5201
    %v5272 = vpack.c.b16 %v5204, %v5202
    %v5273 = vpack.c.b16 %v5207, %v5205
    %v5274 = vpack.c.b16 %v5208, %v5206
    %v5275 = vpack.c.b16 %v5211, %v5209
    %v5276 = vpack.c.b16 %v5212, %v5210
    %5341 = vmatprep.subr.bf16.mxu0 %v5214
    %5342 = vmatpush1.bf16.msra.mxu0 %v5213
    %5343 = vmatprep.subr.bf16.mxu0 %v5216
    %5344 = vmatpush1.bf16.msra.mxu0 %v5215
    %5345 = vmatprep.subr.bf16.mxu0 %v5218
    %5346 = vmatpush1.bf16.msra.mxu0 %v5217
    %5347 = vmatprep.subr.bf16.mxu0 %v5220
    %5348 = vmatpush1.bf16.msra.mxu0 %v5219
    %5349 = vmatprep.subr.bf16.mxu0 %v5222
    %5350 = vmatpush1.bf16.msra.mxu0 %v5221
    %5351 = vmatprep.subr.bf16.mxu0 %v5224
    %5352 = vmatpush1.bf16.msra.mxu0 %v5223
    %5353 = vmatprep.subr.bf16.mxu0 %v5226
    %5354 = vmatpush1.bf16.msra.mxu0 %v5225
    %5355 = vmatprep.subr.bf16.mxu0 %v5228
    %5356 = vmatpush1.bf16.msra.mxu0 %v5227
    %5357 = vmatprep.subr.bf16.mxu0 %v5230
    %5358 = vmatpush1.bf16.msra.mxu0 %v5229
    %5359 = vmatprep.subr.bf16.mxu0 %v5232
    %5360 = vmatpush1.bf16.msra.mxu0 %v5231
    %5361 = vmatprep.subr.bf16.mxu0 %v5234
    %5362 = vmatpush1.bf16.msra.mxu0 %v5233
    %5363 = vmatprep.subr.bf16.mxu0 %v5236
    %5364 = vmatpush1.bf16.msra.mxu0 %v5235
    %5365 = vmatprep.subr.bf16.mxu0 %v5238
    %5366 = vmatpush1.bf16.msra.mxu0 %v5237
    %5367 = vmatprep.subr.bf16.mxu0 %v5240
    %5368 = vmatpush1.bf16.msra.mxu0 %v5239
    %5369 = vmatprep.subr.bf16.mxu0 %v5242
    %5370 = vmatpush1.bf16.msra.mxu0 %v5241
    %5371 = vmatprep.subr.bf16.mxu0 %v5244
    %5372 = vmatpush1.bf16.msra.mxu0 %v5243
    %5373 = vmatprep.mubr.bf16.mxu0 %v5014
    %5374 = vmatmul.mubr.bf16.gmra.mrb[0].mxu0 %v5013
    %v5375 = vpop.f32.mrb[0].mxu0
    %v5376 = vadd.f32 %v5000, %v5375
    %v5377 = vpop.f32.mrb[0].mxu0
    %v5378 = vadd.f32 %v5004, %v5377
    %v5379 = vpop.f32.mrb[0].mxu0
    %v5380 = vpop.f32.mrb[0].mxu0
    %5381 = vdwg.mxu0
    %5382 = vmatprep.subr.bf16.mxu0 %v5246
    %5383 = vmatpush1.bf16.msra.mxu0 %v5245
    %5384 = vmatprep.subr.bf16.mxu0 %v5248
    %5385 = vmatpush1.bf16.msra.mxu0 %v5247
    %5386 = vmatprep.subr.bf16.mxu0 %v5250
    %5387 = vmatpush1.bf16.msra.mxu0 %v5249
    %5388 = vmatprep.subr.bf16.mxu0 %v5252
    %5389 = vmatpush1.bf16.msra.mxu0 %v5251
    %5390 = vmatprep.subr.bf16.mxu0 %v5254
    %5391 = vmatpush1.bf16.msra.mxu0 %v5253
    %5392 = vmatprep.subr.bf16.mxu0 %v5256
    %5393 = vmatpush1.bf16.msra.mxu0 %v5255
    %5394 = vmatprep.subr.bf16.mxu0 %v5258
    %5395 = vmatpush1.bf16.msra.mxu0 %v5257
    %5396 = vmatprep.subr.bf16.mxu0 %v5260
    %5397 = vmatpush1.bf16.msra.mxu0 %v5259
    %5398 = vmatprep.subr.bf16.mxu0 %v5262
    %5399 = vmatpush1.bf16.msra.mxu0 %v5261
    %5400 = vmatprep.subr.bf16.mxu0 %v5264
    %5401 = vmatpush1.bf16.msra.mxu0 %v5263
    %5402 = vmatprep.subr.bf16.mxu0 %v5266
    %5403 = vmatpush1.bf16.msra.mxu0 %v5265
    %5404 = vmatprep.subr.bf16.mxu0 %v5268
    %5405 = vmatpush1.bf16.msra.mxu0 %v5267
    %5406 = vmatprep.subr.bf16.mxu0 %v5270
    %5407 = vmatpush1.bf16.msra.mxu0 %v5269
    %5408 = vmatprep.subr.bf16.mxu0 %v5272
    %5409 = vmatpush1.bf16.msra.mxu0 %v5271
    %5410 = vmatprep.subr.bf16.mxu0 %v5274
    %5411 = vmatpush1.bf16.msra.mxu0 %v5273
    %5412 = vmatprep.subr.bf16.mxu0 %v5276
    %5413 = vmatpush1.bf16.msra.mxu0 %v5275
    %5414 = vmatprep.mubr.bf16.mxu0 %v5016
    %5415 = vmatmul.mubr.bf16.gmra.mrb[0].mxu0 %v5015
    %v5416 = vpop.f32.mrb[0].mxu0
    %v5417 = vadd.f32 %v5376, %v5416
    %v5418 = vpop.f32.mrb[0].mxu0
    %v5419 = vadd.f32 %v5378, %v5418
    %v5420 = vpop.f32.mrb[0].mxu0
    %v5421 = vpop.f32.mrb[0].mxu0
    %5422 = vdwg.mxu0
    %vm5423 = vcmp.gt.f32.partialorder %v5417, 0.0
    %vm5424 = vcmp.gt.f32.partialorder %v5419, 0.0
    %v5425 = vmul.f32 %v5417, 0.2
    %v5426 = vmul.f32 %v5419, 0.2
    %v5427 = vsel %vm5423, %v5417, %v5425
    %v5428 = vsel %vm5424, %v5419, %v5426
    %v5429 = vpack.c.bf16 %v5427, %v5427
    %v5430 = vpack.c.bf16 %v5428, %v5428
    %v5433 = vunpack.c.l.b16 %v5429
    %v5434 = vunpack.c.l.b16 %v5430
    %v5435 = vpack.c.b16 %v5434, %v5433
    %5437 = vst [vmem:[#allocation5 + $0x10] sm:$0xff] %v5435
    %v5438 = vld [vmem:[#allocation4 + $0x10] sm:$0xff]
    %v5439 = vld [vmem:[#allocation4 + $0x18] sm:$0xff]
    %v5440 = vld [vmem:[#allocation12] sm:$0xff]
    %v5441 = vld [vmem:[#allocation12 + $0x8] sm:$0xff]
    %v5442 = vld [vmem:[#allocation12 + $0x10] sm:$0xff]
    %v5443 = vld [vmem:[#allocation12 + $0x18] sm:$0xff]
    %v5444 = vld [vmem:[#allocation12 + $0x20] sm:$0xff]
    %v5445 = vld [vmem:[#allocation12 + $0x28] sm:$0xff]
    %v5446 = vld [vmem:[#allocation12 + $0x30] sm:$0xff]
    %v5447 = vld [vmem:[#allocation12 + $0x38] sm:$0xff]
    %v5448 = vld [vmem:[#allocation12 + $0x40] sm:$0xff]
    %v5449 = vld [vmem:[#allocation12 + $0x48] sm:$0xff]
    %v5450 = vld [vmem:[#allocation12 + $0x50] sm:$0xff]
    %v5451 = vld [vmem:[#allocation12 + $0x58] sm:$0xff]
    %v5452 = vld [vmem:[#allocation12 + $0x60] sm:$0xff]
    %v5453 = vld [vmem:[#allocation12 + $0x68] sm:$0xff]
    %v5454 = vld [vmem:[#allocation12 + $0x70] sm:$0xff]
    %v5455 = vld [vmem:[#allocation12 + $0x78] sm:$0xff]
    %v5456 = vld [vmem:[#allocation12 + $0x80] sm:$0xff]
    %v5457 = vld [vmem:[#allocation12 + $0x88] sm:$0xff]
    %v5458 = vld [vmem:[#allocation12 + $0x90] sm:$0xff]
    %v5459 = vld [vmem:[#allocation12 + $0x98] sm:$0xff]
    %v5460 = vld [vmem:[#allocation12 + $0xa0] sm:$0xff]
    %v5461 = vld [vmem:[#allocation12 + $0xa8] sm:$0xff]
    %v5462 = vld [vmem:[#allocation12 + $0xb0] sm:$0xff]
    %v5463 = vld [vmem:[#allocation12 + $0xb8] sm:$0xff]
    %v5464 = vld [vmem:[#allocation12 + $0xc0] sm:$0xff]
    %v5465 = vld [vmem:[#allocation12 + $0xc8] sm:$0xff]
    %v5466 = vld [vmem:[#allocation12 + $0xd0] sm:$0xff]
    %v5467 = vld [vmem:[#allocation12 + $0xd8] sm:$0xff]
    %v5468 = vld [vmem:[#allocation12 + $0xe0] sm:$0xff]
    %v5469 = vld [vmem:[#allocation12 + $0xe8] sm:$0xff]
    %v5470 = vld [vmem:[#allocation12 + $0xf0] sm:$0xff]
    %v5471 = vld [vmem:[#allocation12 + $0xf8] sm:$0xff]
    %v5472 = vld [vmem:[#allocation12 + $0x100] sm:$0xff]
    %v5473 = vld [vmem:[#allocation12 + $0x108] sm:$0xff]
    %v5474 = vld [vmem:[#allocation12 + $0x110] sm:$0xff]
    %v5475 = vld [vmem:[#allocation12 + $0x118] sm:$0xff]
    %v5476 = vld [vmem:[#allocation12 + $0x120] sm:$0xff]
    %v5477 = vld [vmem:[#allocation12 + $0x128] sm:$0xff]
    %v5478 = vld [vmem:[#allocation12 + $0x130] sm:$0xff]
    %v5479 = vld [vmem:[#allocation12 + $0x138] sm:$0xff]
    %v5480 = vld [vmem:[#allocation12 + $0x140] sm:$0xff]
    %v5481 = vld [vmem:[#allocation12 + $0x148] sm:$0xff]
    %v5482 = vld [vmem:[#allocation12 + $0x150] sm:$0xff]
    %v5483 = vld [vmem:[#allocation12 + $0x158] sm:$0xff]
    %v5484 = vld [vmem:[#allocation12 + $0x160] sm:$0xff]
    %v5485 = vld [vmem:[#allocation12 + $0x168] sm:$0xff]
    %v5486 = vld [vmem:[#allocation12 + $0x170] sm:$0xff]
    %v5487 = vld [vmem:[#allocation12 + $0x178] sm:$0xff]
    %v5488 = vld [vmem:[#allocation12 + $0x180] sm:$0xff]
    %v5489 = vld [vmem:[#allocation12 + $0x188] sm:$0xff]
    %v5490 = vld [vmem:[#allocation12 + $0x190] sm:$0xff]
    %v5491 = vld [vmem:[#allocation12 + $0x198] sm:$0xff]
    %v5492 = vld [vmem:[#allocation12 + $0x1a0] sm:$0xff]
    %v5493 = vld [vmem:[#allocation12 + $0x1a8] sm:$0xff]
    %v5494 = vld [vmem:[#allocation12 + $0x1b0] sm:$0xff]
    %v5495 = vld [vmem:[#allocation12 + $0x1b8] sm:$0xff]
    %v5496 = vld [vmem:[#allocation12 + $0x1c0] sm:$0xff]
    %v5497 = vld [vmem:[#allocation12 + $0x1c8] sm:$0xff]
    %v5498 = vld [vmem:[#allocation12 + $0x1d0] sm:$0xff]
    %v5499 = vld [vmem:[#allocation12 + $0x1d8] sm:$0xff]
    %v5500 = vld [vmem:[#allocation12 + $0x1e0] sm:$0xff]
    %v5501 = vld [vmem:[#allocation12 + $0x1e8] sm:$0xff]
    %v5502 = vld [vmem:[#allocation12 + $0x1f0] sm:$0xff]
    %v5503 = vld [vmem:[#allocation12 + $0x1f8] sm:$0xff]
    %v5504 = vld [vmem:[%s10] sm:$0x3]
    %v5506 = vlaneseq
    %v5507 = vshrl.u32 %v5506, 7
    %v5508 = vsub.s32 0, %v5507
    %v5509 = vrot.slane %v5504, %v5508
    %v5510 = vlaneseq
    %v5511 = vshrl.u32 %v5510, 7
    %v5512 = vsub.s32 1, %v5511
    %v5513 = vrot.slane %v5504, %v5512
    %v5518 = vunpack.c.l.b16 %v5438
    %v5519 = vunpack.c.h.b16 %v5438
    %v5520 = vunpack.c.l.b16 %v5439
    %v5521 = vunpack.c.h.b16 %v5439
    %v5522 = vpack.c.b16 %v5518, %v5518
    %v5523 = vpack.c.b16 %v5519, %v5519
    %v5524 = vpack.c.b16 %v5520, %v5520
    %v5525 = vpack.c.b16 %v5521, %v5521
    %v5594 = vunpack.c.l.b16 %v5440
    %v5595 = vunpack.c.h.b16 %v5440
    %v5596 = vunpack.c.l.b16 %v5441
    %v5597 = vunpack.c.h.b16 %v5441
    %v5598 = vunpack.c.l.b16 %v5442
    %v5599 = vunpack.c.h.b16 %v5442
    %v5600 = vunpack.c.l.b16 %v5443
    %v5601 = vunpack.c.h.b16 %v5443
    %v5602 = vunpack.c.l.b16 %v5444
    %v5603 = vunpack.c.h.b16 %v5444
    %v5604 = vunpack.c.l.b16 %v5445
    %v5605 = vunpack.c.h.b16 %v5445
    %v5606 = vunpack.c.l.b16 %v5446
    %v5607 = vunpack.c.h.b16 %v5446
    %v5608 = vunpack.c.l.b16 %v5447
    %v5609 = vunpack.c.h.b16 %v5447
    %v5610 = vunpack.c.l.b16 %v5448
    %v5611 = vunpack.c.h.b16 %v5448
    %v5612 = vunpack.c.l.b16 %v5449
    %v5613 = vunpack.c.h.b16 %v5449
    %v5614 = vunpack.c.l.b16 %v5450
    %v5615 = vunpack.c.h.b16 %v5450
    %v5616 = vunpack.c.l.b16 %v5451
    %v5617 = vunpack.c.h.b16 %v5451
    %v5618 = vunpack.c.l.b16 %v5452
    %v5619 = vunpack.c.h.b16 %v5452
    %v5620 = vunpack.c.l.b16 %v5453
    %v5621 = vunpack.c.h.b16 %v5453
    %v5622 = vunpack.c.l.b16 %v5454
    %v5623 = vunpack.c.h.b16 %v5454
    %v5624 = vunpack.c.l.b16 %v5455
    %v5625 = vunpack.c.h.b16 %v5455
    %v5626 = vunpack.c.l.b16 %v5456
    %v5627 = vunpack.c.h.b16 %v5456
    %v5628 = vunpack.c.l.b16 %v5457
    %v5629 = vunpack.c.h.b16 %v5457
    %v5630 = vunpack.c.l.b16 %v5458
    %v5631 = vunpack.c.h.b16 %v5458
    %v5632 = vunpack.c.l.b16 %v5459
    %v5633 = vunpack.c.h.b16 %v5459
    %v5634 = vunpack.c.l.b16 %v5460
    %v5635 = vunpack.c.h.b16 %v5460
    %v5636 = vunpack.c.l.b16 %v5461
    %v5637 = vunpack.c.h.b16 %v5461
    %v5638 = vunpack.c.l.b16 %v5462
    %v5639 = vunpack.c.h.b16 %v5462
    %v5640 = vunpack.c.l.b16 %v5463
    %v5641 = vunpack.c.h.b16 %v5463
    %v5642 = vunpack.c.l.b16 %v5464
    %v5643 = vunpack.c.h.b16 %v5464
    %v5644 = vunpack.c.l.b16 %v5465
    %v5645 = vunpack.c.h.b16 %v5465
    %v5646 = vunpack.c.l.b16 %v5466
    %v5647 = vunpack.c.h.b16 %v5466
    %v5648 = vunpack.c.l.b16 %v5467
    %v5649 = vunpack.c.h.b16 %v5467
    %v5650 = vunpack.c.l.b16 %v5468
    %v5651 = vunpack.c.h.b16 %v5468
    %v5652 = vunpack.c.l.b16 %v5469
    %v5653 = vunpack.c.h.b16 %v5469
    %v5654 = vunpack.c.l.b16 %v5470
    %v5655 = vunpack.c.h.b16 %v5470
    %v5656 = vunpack.c.l.b16 %v5471
    %v5657 = vunpack.c.h.b16 %v5471
    %v5658 = vunpack.c.l.b16 %v5472
    %v5659 = vunpack.c.h.b16 %v5472
    %v5660 = vunpack.c.l.b16 %v5473
    %v5661 = vunpack.c.h.b16 %v5473
    %v5662 = vunpack.c.l.b16 %v5474
    %v5663 = vunpack.c.h.b16 %v5474
    %v5664 = vunpack.c.l.b16 %v5475
    %v5665 = vunpack.c.h.b16 %v5475
    %v5666 = vunpack.c.l.b16 %v5476
    %v5667 = vunpack.c.h.b16 %v5476
    %v5668 = vunpack.c.l.b16 %v5477
    %v5669 = vunpack.c.h.b16 %v5477
    %v5670 = vunpack.c.l.b16 %v5478
    %v5671 = vunpack.c.h.b16 %v5478
    %v5672 = vunpack.c.l.b16 %v5479
    %v5673 = vunpack.c.h.b16 %v5479
    %v5674 = vunpack.c.l.b16 %v5480
    %v5675 = vunpack.c.h.b16 %v5480
    %v5676 = vunpack.c.l.b16 %v5481
    %v5677 = vunpack.c.h.b16 %v5481
    %v5678 = vunpack.c.l.b16 %v5482
    %v5679 = vunpack.c.h.b16 %v5482
    %v5680 = vunpack.c.l.b16 %v5483
    %v5681 = vunpack.c.h.b16 %v5483
    %v5682 = vunpack.c.l.b16 %v5484
    %v5683 = vunpack.c.h.b16 %v5484
    %v5684 = vunpack.c.l.b16 %v5485
    %v5685 = vunpack.c.h.b16 %v5485
    %v5686 = vunpack.c.l.b16 %v5486
    %v5687 = vunpack.c.h.b16 %v5486
    %v5688 = vunpack.c.l.b16 %v5487
    %v5689 = vunpack.c.h.b16 %v5487
    %v5690 = vunpack.c.l.b16 %v5488
    %v5691 = vunpack.c.h.b16 %v5488
    %v5692 = vunpack.c.l.b16 %v5489
    %v5693 = vunpack.c.h.b16 %v5489
    %v5694 = vunpack.c.l.b16 %v5490
    %v5695 = vunpack.c.h.b16 %v5490
    %v5696 = vunpack.c.l.b16 %v5491
    %v5697 = vunpack.c.h.b16 %v5491
    %v5698 = vunpack.c.l.b16 %v5492
    %v5699 = vunpack.c.h.b16 %v5492
    %v5700 = vunpack.c.l.b16 %v5493
    %v5701 = vunpack.c.h.b16 %v5493
    %v5702 = vunpack.c.l.b16 %v5494
    %v5703 = vunpack.c.h.b16 %v5494
    %v5704 = vunpack.c.l.b16 %v5495
    %v5705 = vunpack.c.h.b16 %v5495
    %v5706 = vunpack.c.l.b16 %v5496
    %v5707 = vunpack.c.h.b16 %v5496
    %v5708 = vunpack.c.l.b16 %v5497
    %v5709 = vunpack.c.h.b16 %v5497
    %v5710 = vunpack.c.l.b16 %v5498
    %v5711 = vunpack.c.h.b16 %v5498
    %v5712 = vunpack.c.l.b16 %v5499
    %v5713 = vunpack.c.h.b16 %v5499
    %v5714 = vunpack.c.l.b16 %v5500
    %v5715 = vunpack.c.h.b16 %v5500
    %v5716 = vunpack.c.l.b16 %v5501
    %v5717 = vunpack.c.h.b16 %v5501
    %v5718 = vunpack.c.l.b16 %v5502
    %v5719 = vunpack.c.h.b16 %v5502
    %v5720 = vunpack.c.l.b16 %v5503
    %v5721 = vunpack.c.h.b16 %v5503
    %v5722 = vpack.c.b16 %v5596, %v5594
    %v5723 = vpack.c.b16 %v5597, %v5595
    %v5724 = vpack.c.b16 %v5600, %v5598
    %v5725 = vpack.c.b16 %v5601, %v5599
    %v5726 = vpack.c.b16 %v5604, %v5602
    %v5727 = vpack.c.b16 %v5605, %v5603
    %v5728 = vpack.c.b16 %v5608, %v5606
    %v5729 = vpack.c.b16 %v5609, %v5607
    %v5730 = vpack.c.b16 %v5612, %v5610
    %v5731 = vpack.c.b16 %v5613, %v5611
    %v5732 = vpack.c.b16 %v5616, %v5614
    %v5733 = vpack.c.b16 %v5617, %v5615
    %v5734 = vpack.c.b16 %v5620, %v5618
    %v5735 = vpack.c.b16 %v5621, %v5619
    %v5736 = vpack.c.b16 %v5624, %v5622
    %v5737 = vpack.c.b16 %v5625, %v5623
    %v5738 = vpack.c.b16 %v5628, %v5626
    %v5739 = vpack.c.b16 %v5629, %v5627
    %v5740 = vpack.c.b16 %v5632, %v5630
    %v5741 = vpack.c.b16 %v5633, %v5631
    %v5742 = vpack.c.b16 %v5636, %v5634
    %v5743 = vpack.c.b16 %v5637, %v5635
    %v5744 = vpack.c.b16 %v5640, %v5638
    %v5745 = vpack.c.b16 %v5641, %v5639
    %v5746 = vpack.c.b16 %v5644, %v5642
    %v5747 = vpack.c.b16 %v5645, %v5643
    %v5748 = vpack.c.b16 %v5648, %v5646
    %v5749 = vpack.c.b16 %v5649, %v5647
    %v5750 = vpack.c.b16 %v5652, %v5650
    %v5751 = vpack.c.b16 %v5653, %v5651
    %v5752 = vpack.c.b16 %v5656, %v5654
    %v5753 = vpack.c.b16 %v5657, %v5655
    %v5754 = vpack.c.b16 %v5660, %v5658
    %v5755 = vpack.c.b16 %v5661, %v5659
    %v5756 = vpack.c.b16 %v5664, %v5662
    %v5757 = vpack.c.b16 %v5665, %v5663
    %v5758 = vpack.c.b16 %v5668, %v5666
    %v5759 = vpack.c.b16 %v5669, %v5667
    %v5760 = vpack.c.b16 %v5672, %v5670
    %v5761 = vpack.c.b16 %v5673, %v5671
    %v5762 = vpack.c.b16 %v5676, %v5674
    %v5763 = vpack.c.b16 %v5677, %v5675
    %v5764 = vpack.c.b16 %v5680, %v5678
    %v5765 = vpack.c.b16 %v5681, %v5679
    %v5766 = vpack.c.b16 %v5684, %v5682
    %v5767 = vpack.c.b16 %v5685, %v5683
    %v5768 = vpack.c.b16 %v5688, %v5686
    %v5769 = vpack.c.b16 %v5689, %v5687
    %v5770 = vpack.c.b16 %v5692, %v5690
    %v5771 = vpack.c.b16 %v5693, %v5691
    %v5772 = vpack.c.b16 %v5696, %v5694
    %v5773 = vpack.c.b16 %v5697, %v5695
    %v5774 = vpack.c.b16 %v5700, %v5698
    %v5775 = vpack.c.b16 %v5701, %v5699
    %v5776 = vpack.c.b16 %v5704, %v5702
    %v5777 = vpack.c.b16 %v5705, %v5703
    %v5778 = vpack.c.b16 %v5708, %v5706
    %v5779 = vpack.c.b16 %v5709, %v5707
    %v5780 = vpack.c.b16 %v5712, %v5710
    %v5781 = vpack.c.b16 %v5713, %v5711
    %v5782 = vpack.c.b16 %v5716, %v5714
    %v5783 = vpack.c.b16 %v5717, %v5715
    %v5784 = vpack.c.b16 %v5720, %v5718
    %v5785 = vpack.c.b16 %v5721, %v5719
    %5850 = vmatprep.subr.bf16.mxu0 %v5723
    %5851 = vmatpush1.bf16.msra.mxu0 %v5722
    %5852 = vmatprep.subr.bf16.mxu0 %v5725
    %5853 = vmatpush1.bf16.msra.mxu0 %v5724
    %5854 = vmatprep.subr.bf16.mxu0 %v5727
    %5855 = vmatpush1.bf16.msra.mxu0 %v5726
    %5856 = vmatprep.subr.bf16.mxu0 %v5729
    %5857 = vmatpush1.bf16.msra.mxu0 %v5728
    %5858 = vmatprep.subr.bf16.mxu0 %v5731
    %5859 = vmatpush1.bf16.msra.mxu0 %v5730
    %5860 = vmatprep.subr.bf16.mxu0 %v5733
    %5861 = vmatpush1.bf16.msra.mxu0 %v5732
    %5862 = vmatprep.subr.bf16.mxu0 %v5735
    %5863 = vmatpush1.bf16.msra.mxu0 %v5734
    %5864 = vmatprep.subr.bf16.mxu0 %v5737
    %5865 = vmatpush1.bf16.msra.mxu0 %v5736
    %5866 = vmatprep.subr.bf16.mxu0 %v5739
    %5867 = vmatpush1.bf16.msra.mxu0 %v5738
    %5868 = vmatprep.subr.bf16.mxu0 %v5741
    %5869 = vmatpush1.bf16.msra.mxu0 %v5740
    %5870 = vmatprep.subr.bf16.mxu0 %v5743
    %5871 = vmatpush1.bf16.msra.mxu0 %v5742
    %5872 = vmatprep.subr.bf16.mxu0 %v5745
    %5873 = vmatpush1.bf16.msra.mxu0 %v5744
    %5874 = vmatprep.subr.bf16.mxu0 %v5747
    %5875 = vmatpush1.bf16.msra.mxu0 %v5746
    %5876 = vmatprep.subr.bf16.mxu0 %v5749
    %5877 = vmatpush1.bf16.msra.mxu0 %v5748
    %5878 = vmatprep.subr.bf16.mxu0 %v5751
    %5879 = vmatpush1.bf16.msra.mxu0 %v5750
    %5880 = vmatprep.subr.bf16.mxu0 %v5753
    %5881 = vmatpush1.bf16.msra.mxu0 %v5752
    %5882 = vmatprep.mubr.bf16.mxu0 %v5523
    %5883 = vmatmul.mubr.bf16.gmra.mrb[0].mxu0 %v5522
    %v5884 = vpop.f32.mrb[0].mxu0
    %v5885 = vadd.f32 %v5509, %v5884
    %v5886 = vpop.f32.mrb[0].mxu0
    %v5887 = vadd.f32 %v5513, %v5886
    %v5888 = vpop.f32.mrb[0].mxu0
    %v5889 = vpop.f32.mrb[0].mxu0
    %5890 = vdwg.mxu0
    %5891 = vmatprep.subr.bf16.mxu0 %v5755
    %5892 = vmatpush1.bf16.msra.mxu0 %v5754
    %5893 = vmatprep.subr.bf16.mxu0 %v5757
    %5894 = vmatpush1.bf16.msra.mxu0 %v5756
    %5895 = vmatprep.subr.bf16.mxu0 %v5759
    %5896 = vmatpush1.bf16.msra.mxu0 %v5758
    %5897 = vmatprep.subr.bf16.mxu0 %v5761
    %5898 = vmatpush1.bf16.msra.mxu0 %v5760
    %5899 = vmatprep.subr.bf16.mxu0 %v5763
    %5900 = vmatpush1.bf16.msra.mxu0 %v5762
    %5901 = vmatprep.subr.bf16.mxu0 %v5765
    %5902 = vmatpush1.bf16.msra.mxu0 %v5764
    %5903 = vmatprep.subr.bf16.mxu0 %v5767
    %5904 = vmatpush1.bf16.msra.mxu0 %v5766
    %5905 = vmatprep.subr.bf16.mxu0 %v5769
    %5906 = vmatpush1.bf16.msra.mxu0 %v5768
    %5907 = vmatprep.subr.bf16.mxu0 %v5771
    %5908 = vmatpush1.bf16.msra.mxu0 %v5770
    %5909 = vmatprep.subr.bf16.mxu0 %v5773
    %5910 = vmatpush1.bf16.msra.mxu0 %v5772
    %5911 = vmatprep.subr.bf16.mxu0 %v5775
    %5912 = vmatpush1.bf16.msra.mxu0 %v5774
    %5913 = vmatprep.subr.bf16.mxu0 %v5777
    %5914 = vmatpush1.bf16.msra.mxu0 %v5776
    %5915 = vmatprep.subr.bf16.mxu0 %v5779
    %5916 = vmatpush1.bf16.msra.mxu0 %v5778
    %5917 = vmatprep.subr.bf16.mxu0 %v5781
    %5918 = vmatpush1.bf16.msra.mxu0 %v5780
    %5919 = vmatprep.subr.bf16.mxu0 %v5783
    %5920 = vmatpush1.bf16.msra.mxu0 %v5782
    %5921 = vmatprep.subr.bf16.mxu0 %v5785
    %5922 = vmatpush1.bf16.msra.mxu0 %v5784
    %5923 = vmatprep.mubr.bf16.mxu0 %v5525
    %5924 = vmatmul.mubr.bf16.gmra.mrb[0].mxu0 %v5524
    %v5925 = vpop.f32.mrb[0].mxu0
    %v5926 = vadd.f32 %v5885, %v5925
    %v5927 = vpop.f32.mrb[0].mxu0
    %v5928 = vadd.f32 %v5887, %v5927
    %v5929 = vpop.f32.mrb[0].mxu0
    %v5930 = vpop.f32.mrb[0].mxu0
    %5931 = vdwg.mxu0
    %vm5932 = vcmp.gt.f32.partialorder %v5926, 0.0
    %vm5933 = vcmp.gt.f32.partialorder %v5928, 0.0
    %v5934 = vmul.f32 %v5926, 0.2
    %v5935 = vmul.f32 %v5928, 0.2
    %v5936 = vsel %vm5932, %v5926, %v5934
    %v5937 = vsel %vm5933, %v5928, %v5935
    %v5938 = vpack.c.bf16 %v5936, %v5936
    %v5939 = vpack.c.bf16 %v5937, %v5937
    %v5942 = vunpack.c.l.b16 %v5938
    %v5943 = vunpack.c.l.b16 %v5939
    %v5944 = vpack.c.b16 %v5943, %v5942
    %5946 = vst [vmem:[#allocation5 + $0x18] sm:$0xff] %v5944
    %v5947 = vld [vmem:[#allocation4 + $0x18] sm:$0xff]
    %v5948 = vld [vmem:[#allocation4 + $0x20] sm:$0xff]
    %v5949 = vld [vmem:[#allocation12] sm:$0xff]
    %v5950 = vld [vmem:[#allocation12 + $0x8] sm:$0xff]
    %v5951 = vld [vmem:[#allocation12 + $0x10] sm:$0xff]
    %v5952 = vld [vmem:[#allocation12 + $0x18] sm:$0xff]
    %v5953 = vld [vmem:[#allocation12 + $0x20] sm:$0xff]
    %v5954 = vld [vmem:[#allocation12 + $0x28] sm:$0xff]
    %v5955 = vld [vmem:[#allocation12 + $0x30] sm:$0xff]
    %v5956 = vld [vmem:[#allocation12 + $0x38] sm:$0xff]
    %v5957 = vld [vmem:[#allocation12 + $0x40] sm:$0xff]
    %v5958 = vld [vmem:[#allocation12 + $0x48] sm:$0xff]
    %v5959 = vld [vmem:[#allocation12 + $0x50] sm:$0xff]
    %v5960 = vld [vmem:[#allocation12 + $0x58] sm:$0xff]
    %v5961 = vld [vmem:[#allocation12 + $0x60] sm:$0xff]
    %v5962 = vld [vmem:[#allocation12 + $0x68] sm:$0xff]
    %v5963 = vld [vmem:[#allocation12 + $0x70] sm:$0xff]
    %v5964 = vld [vmem:[#allocation12 + $0x78] sm:$0xff]
    %v5965 = vld [vmem:[#allocation12 + $0x80] sm:$0xff]
    %v5966 = vld [vmem:[#allocation12 + $0x88] sm:$0xff]
    %v5967 = vld [vmem:[#allocation12 + $0x90] sm:$0xff]
    %v5968 = vld [vmem:[#allocation12 + $0x98] sm:$0xff]
    %v5969 = vld [vmem:[#allocation12 + $0xa0] sm:$0xff]
    %v5970 = vld [vmem:[#allocation12 + $0xa8] sm:$0xff]
    %v5971 = vld [vmem:[#allocation12 + $0xb0] sm:$0xff]
    %v5972 = vld [vmem:[#allocation12 + $0xb8] sm:$0xff]
    %v5973 = vld [vmem:[#allocation12 + $0xc0] sm:$0xff]
    %v5974 = vld [vmem:[#allocation12 + $0xc8] sm:$0xff]
    %v5975 = vld [vmem:[#allocation12 + $0xd0] sm:$0xff]
    %v5976 = vld [vmem:[#allocation12 + $0xd8] sm:$0xff]
    %v5977 = vld [vmem:[#allocation12 + $0xe0] sm:$0xff]
    %v5978 = vld [vmem:[#allocation12 + $0xe8] sm:$0xff]
    %v5979 = vld [vmem:[#allocation12 + $0xf0] sm:$0xff]
    %v5980 = vld [vmem:[#allocation12 + $0xf8] sm:$0xff]
    %v5981 = vld [vmem:[#allocation12 + $0x100] sm:$0xff]
    %v5982 = vld [vmem:[#allocation12 + $0x108] sm:$0xff]
    %v5983 = vld [vmem:[#allocation12 + $0x110] sm:$0xff]
    %v5984 = vld [vmem:[#allocation12 + $0x118] sm:$0xff]
    %v5985 = vld [vmem:[#allocation12 + $0x120] sm:$0xff]
    %v5986 = vld [vmem:[#allocation12 + $0x128] sm:$0xff]
    %v5987 = vld [vmem:[#allocation12 + $0x130] sm:$0xff]
    %v5988 = vld [vmem:[#allocation12 + $0x138] sm:$0xff]
    %v5989 = vld [vmem:[#allocation12 + $0x140] sm:$0xff]
    %v5990 = vld [vmem:[#allocation12 + $0x148] sm:$0xff]
    %v5991 = vld [vmem:[#allocation12 + $0x150] sm:$0xff]
    %v5992 = vld [vmem:[#allocation12 + $0x158] sm:$0xff]
    %v5993 = vld [vmem:[#allocation12 + $0x160] sm:$0xff]
    %v5994 = vld [vmem:[#allocation12 + $0x168] sm:$0xff]
    %v5995 = vld [vmem:[#allocation12 + $0x170] sm:$0xff]
    %v5996 = vld [vmem:[#allocation12 + $0x178] sm:$0xff]
    %v5997 = vld [vmem:[#allocation12 + $0x180] sm:$0xff]
    %v5998 = vld [vmem:[#allocation12 + $0x188] sm:$0xff]
    %v5999 = vld [vmem:[#allocation12 + $0x190] sm:$0xff]
    %v6000 = vld [vmem:[#allocation12 + $0x198] sm:$0xff]
    %v6001 = vld [vmem:[#allocation12 + $0x1a0] sm:$0xff]
    %v6002 = vld [vmem:[#allocation12 + $0x1a8] sm:$0xff]
    %v6003 = vld [vmem:[#allocation12 + $0x1b0] sm:$0xff]
    %v6004 = vld [vmem:[#allocation12 + $0x1b8] sm:$0xff]
    %v6005 = vld [vmem:[#allocation12 + $0x1c0] sm:$0xff]
    %v6006 = vld [vmem:[#allocation12 + $0x1c8] sm:$0xff]
    %v6007 = vld [vmem:[#allocation12 + $0x1d0] sm:$0xff]
    %v6008 = vld [vmem:[#allocation12 + $0x1d8] sm:$0xff]
    %v6009 = vld [vmem:[#allocation12 + $0x1e0] sm:$0xff]
    %v6010 = vld [vmem:[#allocation12 + $0x1e8] sm:$0xff]
    %v6011 = vld [vmem:[#allocation12 + $0x1f0] sm:$0xff]
    %v6012 = vld [vmem:[#allocation12 + $0x1f8] sm:$0xff]
    %v6013 = vld [vmem:[%s10] sm:$0x3]
    %v6015 = vlaneseq
    %v6016 = vshrl.u32 %v6015, 7
    %v6017 = vsub.s32 0, %v6016
    %v6018 = vrot.slane %v6013, %v6017
    %v6019 = vlaneseq
    %v6020 = vshrl.u32 %v6019, 7
    %v6021 = vsub.s32 1, %v6020
    %v6022 = vrot.slane %v6013, %v6021
    %v6027 = vunpack.c.l.b16 %v5947
    %v6028 = vunpack.c.h.b16 %v5947
    %v6029 = vunpack.c.l.b16 %v5948
    %v6030 = vunpack.c.h.b16 %v5948
    %v6031 = vpack.c.b16 %v6027, %v6027
    %v6032 = vpack.c.b16 %v6028, %v6028
    %v6033 = vpack.c.b16 %v6029, %v6029
    %v6034 = vpack.c.b16 %v6030, %v6030
    %v6103 = vunpack.c.l.b16 %v5949
    %v6104 = vunpack.c.h.b16 %v5949
    %v6105 = vunpack.c.l.b16 %v5950
    %v6106 = vunpack.c.h.b16 %v5950
    %v6107 = vunpack.c.l.b16 %v5951
    %v6108 = vunpack.c.h.b16 %v5951
    %v6109 = vunpack.c.l.b16 %v5952
    %v6110 = vunpack.c.h.b16 %v5952
    %v6111 = vunpack.c.l.b16 %v5953
    %v6112 = vunpack.c.h.b16 %v5953
    %v6113 = vunpack.c.l.b16 %v5954
    %v6114 = vunpack.c.h.b16 %v5954
    %v6115 = vunpack.c.l.b16 %v5955
    %v6116 = vunpack.c.h.b16 %v5955
    %v6117 = vunpack.c.l.b16 %v5956
    %v6118 = vunpack.c.h.b16 %v5956
    %v6119 = vunpack.c.l.b16 %v5957
    %v6120 = vunpack.c.h.b16 %v5957
    %v6121 = vunpack.c.l.b16 %v5958
    %v6122 = vunpack.c.h.b16 %v5958
    %v6123 = vunpack.c.l.b16 %v5959
    %v6124 = vunpack.c.h.b16 %v5959
    %v6125 = vunpack.c.l.b16 %v5960
    %v6126 = vunpack.c.h.b16 %v5960
    %v6127 = vunpack.c.l.b16 %v5961
    %v6128 = vunpack.c.h.b16 %v5961
    %v6129 = vunpack.c.l.b16 %v5962
    %v6130 = vunpack.c.h.b16 %v5962
    %v6131 = vunpack.c.l.b16 %v5963
    %v6132 = vunpack.c.h.b16 %v5963
    %v6133 = vunpack.c.l.b16 %v5964
    %v6134 = vunpack.c.h.b16 %v5964
    %v6135 = vunpack.c.l.b16 %v5965
    %v6136 = vunpack.c.h.b16 %v5965
    %v6137 = vunpack.c.l.b16 %v5966
    %v6138 = vunpack.c.h.b16 %v5966
    %v6139 = vunpack.c.l.b16 %v5967
    %v6140 = vunpack.c.h.b16 %v5967
    %v6141 = vunpack.c.l.b16 %v5968
    %v6142 = vunpack.c.h.b16 %v5968
    %v6143 = vunpack.c.l.b16 %v5969
    %v6144 = vunpack.c.h.b16 %v5969
    %v6145 = vunpack.c.l.b16 %v5970
    %v6146 = vunpack.c.h.b16 %v5970
    %v6147 = vunpack.c.l.b16 %v5971
    %v6148 = vunpack.c.h.b16 %v5971
    %v6149 = vunpack.c.l.b16 %v5972
    %v6150 = vunpack.c.h.b16 %v5972
    %v6151 = vunpack.c.l.b16 %v5973
    %v6152 = vunpack.c.h.b16 %v5973
    %v6153 = vunpack.c.l.b16 %v5974
    %v6154 = vunpack.c.h.b16 %v5974
    %v6155 = vunpack.c.l.b16 %v5975
    %v6156 = vunpack.c.h.b16 %v5975
    %v6157 = vunpack.c.l.b16 %v5976
    %v6158 = vunpack.c.h.b16 %v5976
    %v6159 = vunpack.c.l.b16 %v5977
    %v6160 = vunpack.c.h.b16 %v5977
    %v6161 = vunpack.c.l.b16 %v5978
    %v6162 = vunpack.c.h.b16 %v5978
    %v6163 = vunpack.c.l.b16 %v5979
    %v6164 = vunpack.c.h.b16 %v5979
    %v6165 = vunpack.c.l.b16 %v5980
    %v6166 = vunpack.c.h.b16 %v5980
    %v6167 = vunpack.c.l.b16 %v5981
    %v6168 = vunpack.c.h.b16 %v5981
    %v6169 = vunpack.c.l.b16 %v5982
    %v6170 = vunpack.c.h.b16 %v5982
    %v6171 = vunpack.c.l.b16 %v5983
    %v6172 = vunpack.c.h.b16 %v5983
    %v6173 = vunpack.c.l.b16 %v5984
    %v6174 = vunpack.c.h.b16 %v5984
    %v6175 = vunpack.c.l.b16 %v5985
    %v6176 = vunpack.c.h.b16 %v5985
    %v6177 = vunpack.c.l.b16 %v5986
    %v6178 = vunpack.c.h.b16 %v5986
    %v6179 = vunpack.c.l.b16 %v5987
    %v6180 = vunpack.c.h.b16 %v5987
    %v6181 = vunpack.c.l.b16 %v5988
    %v6182 = vunpack.c.h.b16 %v5988
    %v6183 = vunpack.c.l.b16 %v5989
    %v6184 = vunpack.c.h.b16 %v5989
    %v6185 = vunpack.c.l.b16 %v5990
    %v6186 = vunpack.c.h.b16 %v5990
    %v6187 = vunpack.c.l.b16 %v5991
    %v6188 = vunpack.c.h.b16 %v5991
    %v6189 = vunpack.c.l.b16 %v5992
    %v6190 = vunpack.c.h.b16 %v5992
    %v6191 = vunpack.c.l.b16 %v5993
    %v6192 = vunpack.c.h.b16 %v5993
    %v6193 = vunpack.c.l.b16 %v5994
    %v6194 = vunpack.c.h.b16 %v5994
    %v6195 = vunpack.c.l.b16 %v5995
    %v6196 = vunpack.c.h.b16 %v5995
    %v6197 = vunpack.c.l.b16 %v5996
    %v6198 = vunpack.c.h.b16 %v5996
    %v6199 = vunpack.c.l.b16 %v5997
    %v6200 = vunpack.c.h.b16 %v5997
    %v6201 = vunpack.c.l.b16 %v5998
    %v6202 = vunpack.c.h.b16 %v5998
    %v6203 = vunpack.c.l.b16 %v5999
    %v6204 = vunpack.c.h.b16 %v5999
    %v6205 = vunpack.c.l.b16 %v6000
    %v6206 = vunpack.c.h.b16 %v6000
    %v6207 = vunpack.c.l.b16 %v6001
    %v6208 = vunpack.c.h.b16 %v6001
    %v6209 = vunpack.c.l.b16 %v6002
    %v6210 = vunpack.c.h.b16 %v6002
    %v6211 = vunpack.c.l.b16 %v6003
    %v6212 = vunpack.c.h.b16 %v6003
    %v6213 = vunpack.c.l.b16 %v6004
    %v6214 = vunpack.c.h.b16 %v6004
    %v6215 = vunpack.c.l.b16 %v6005
    %v6216 = vunpack.c.h.b16 %v6005
    %v6217 = vunpack.c.l.b16 %v6006
    %v6218 = vunpack.c.h.b16 %v6006
    %v6219 = vunpack.c.l.b16 %v6007
    %v6220 = vunpack.c.h.b16 %v6007
    %v6221 = vunpack.c.l.b16 %v6008
    %v6222 = vunpack.c.h.b16 %v6008
    %v6223 = vunpack.c.l.b16 %v6009
    %v6224 = vunpack.c.h.b16 %v6009
    %v6225 = vunpack.c.l.b16 %v6010
    %v6226 = vunpack.c.h.b16 %v6010
    %v6227 = vunpack.c.l.b16 %v6011
    %v6228 = vunpack.c.h.b16 %v6011
    %v6229 = vunpack.c.l.b16 %v6012
    %v6230 = vunpack.c.h.b16 %v6012
    %v6231 = vpack.c.b16 %v6105, %v6103
    %v6232 = vpack.c.b16 %v6106, %v6104
    %v6233 = vpack.c.b16 %v6109, %v6107
    %v6234 = vpack.c.b16 %v6110, %v6108
    %v6235 = vpack.c.b16 %v6113, %v6111
    %v6236 = vpack.c.b16 %v6114, %v6112
    %v6237 = vpack.c.b16 %v6117, %v6115
    %v6238 = vpack.c.b16 %v6118, %v6116
    %v6239 = vpack.c.b16 %v6121, %v6119
    %v6240 = vpack.c.b16 %v6122, %v6120
    %v6241 = vpack.c.b16 %v6125, %v6123
    %v6242 = vpack.c.b16 %v6126, %v6124
    %v6243 = vpack.c.b16 %v6129, %v6127
    %v6244 = vpack.c.b16 %v6130, %v6128
    %v6245 = vpack.c.b16 %v6133, %v6131
    %v6246 = vpack.c.b16 %v6134, %v6132
    %v6247 = vpack.c.b16 %v6137, %v6135
    %v6248 = vpack.c.b16 %v6138, %v6136
    %v6249 = vpack.c.b16 %v6141, %v6139
    %v6250 = vpack.c.b16 %v6142, %v6140
    %v6251 = vpack.c.b16 %v6145, %v6143
    %v6252 = vpack.c.b16 %v6146, %v6144
    %v6253 = vpack.c.b16 %v6149, %v6147
    %v6254 = vpack.c.b16 %v6150, %v6148
    %v6255 = vpack.c.b16 %v6153, %v6151
    %v6256 = vpack.c.b16 %v6154, %v6152
    %v6257 = vpack.c.b16 %v6157, %v6155
    %v6258 = vpack.c.b16 %v6158, %v6156
    %v6259 = vpack.c.b16 %v6161, %v6159
    %v6260 = vpack.c.b16 %v6162, %v6160
    %v6261 = vpack.c.b16 %v6165, %v6163
    %v6262 = vpack.c.b16 %v6166, %v6164
    %v6263 = vpack.c.b16 %v6169, %v6167
    %v6264 = vpack.c.b16 %v6170, %v6168
    %v6265 = vpack.c.b16 %v6173, %v6171
    %v6266 = vpack.c.b16 %v6174, %v6172
    %v6267 = vpack.c.b16 %v6177, %v6175
    %v6268 = vpack.c.b16 %v6178, %v6176
    %v6269 = vpack.c.b16 %v6181, %v6179
    %v6270 = vpack.c.b16 %v6182, %v6180
    %v6271 = vpack.c.b16 %v6185, %v6183
    %v6272 = vpack.c.b16 %v6186, %v6184
    %v6273 = vpack.c.b16 %v6189, %v6187
    %v6274 = vpack.c.b16 %v6190, %v6188
    %v6275 = vpack.c.b16 %v6193, %v6191
    %v6276 = vpack.c.b16 %v6194, %v6192
    %v6277 = vpack.c.b16 %v6197, %v6195
    %v6278 = vpack.c.b16 %v6198, %v6196
    %v6279 = vpack.c.b16 %v6201, %v6199
    %v6280 = vpack.c.b16 %v6202, %v6200
    %v6281 = vpack.c.b16 %v6205, %v6203
    %v6282 = vpack.c.b16 %v6206, %v6204
    %v6283 = vpack.c.b16 %v6209, %v6207
    %v6284 = vpack.c.b16 %v6210, %v6208
    %v6285 = vpack.c.b16 %v6213, %v6211
    %v6286 = vpack.c.b16 %v6214, %v6212
    %v6287 = vpack.c.b16 %v6217, %v6215
    %v6288 = vpack.c.b16 %v6218, %v6216
    %v6289 = vpack.c.b16 %v6221, %v6219
    %v6290 = vpack.c.b16 %v6222, %v6220
    %v6291 = vpack.c.b16 %v6225, %v6223
    %v6292 = vpack.c.b16 %v6226, %v6224
    %v6293 = vpack.c.b16 %v6229, %v6227
    %v6294 = vpack.c.b16 %v6230, %v6228
    %6359 = vmatprep.subr.bf16.mxu0 %v6232
    %6360 = vmatpush1.bf16.msra.mxu0 %v6231
    %6361 = vmatprep.subr.bf16.mxu0 %v6234
    %6362 = vmatpush1.bf16.msra.mxu0 %v6233
    %6363 = vmatprep.subr.bf16.mxu0 %v6236
    %6364 = vmatpush1.bf16.msra.mxu0 %v6235
    %6365 = vmatprep.subr.bf16.mxu0 %v6238
    %6366 = vmatpush1.bf16.msra.mxu0 %v6237
    %6367 = vmatprep.subr.bf16.mxu0 %v6240
    %6368 = vmatpush1.bf16.msra.mxu0 %v6239
    %6369 = vmatprep.subr.bf16.mxu0 %v6242
    %6370 = vmatpush1.bf16.msra.mxu0 %v6241
    %6371 = vmatprep.subr.bf16.mxu0 %v6244
    %6372 = vmatpush1.bf16.msra.mxu0 %v6243
    %6373 = vmatprep.subr.bf16.mxu0 %v6246
    %6374 = vmatpush1.bf16.msra.mxu0 %v6245
    %6375 = vmatprep.subr.bf16.mxu0 %v6248
    %6376 = vmatpush1.bf16.msra.mxu0 %v6247
    %6377 = vmatprep.subr.bf16.mxu0 %v6250
    %6378 = vmatpush1.bf16.msra.mxu0 %v6249
    %6379 = vmatprep.subr.bf16.mxu0 %v6252
    %6380 = vmatpush1.bf16.msra.mxu0 %v6251
    %6381 = vmatprep.subr.bf16.mxu0 %v6254
    %6382 = vmatpush1.bf16.msra.mxu0 %v6253
    %6383 = vmatprep.subr.bf16.mxu0 %v6256
    %6384 = vmatpush1.bf16.msra.mxu0 %v6255
    %6385 = vmatprep.subr.bf16.mxu0 %v6258
    %6386 = vmatpush1.bf16.msra.mxu0 %v6257
    %6387 = vmatprep.subr.bf16.mxu0 %v6260
    %6388 = vmatpush1.bf16.msra.mxu0 %v6259
    %6389 = vmatprep.subr.bf16.mxu0 %v6262
    %6390 = vmatpush1.bf16.msra.mxu0 %v6261
    %6391 = vmatprep.mubr.bf16.mxu0 %v6032
    %6392 = vmatmul.mubr.bf16.gmra.mrb[0].mxu0 %v6031
    %v6393 = vpop.f32.mrb[0].mxu0
    %v6394 = vadd.f32 %v6018, %v6393
    %v6395 = vpop.f32.mrb[0].mxu0
    %v6396 = vadd.f32 %v6022, %v6395
    %v6397 = vpop.f32.mrb[0].mxu0
    %v6398 = vpop.f32.mrb[0].mxu0
    %6399 = vdwg.mxu0
    %6400 = vmatprep.subr.bf16.mxu0 %v6264
    %6401 = vmatpush1.bf16.msra.mxu0 %v6263
    %6402 = vmatprep.subr.bf16.mxu0 %v6266
    %6403 = vmatpush1.bf16.msra.mxu0 %v6265
    %6404 = vmatprep.subr.bf16.mxu0 %v6268
    %6405 = vmatpush1.bf16.msra.mxu0 %v6267
    %6406 = vmatprep.subr.bf16.mxu0 %v6270
    %6407 = vmatpush1.bf16.msra.mxu0 %v6269
    %6408 = vmatprep.subr.bf16.mxu0 %v6272
    %6409 = vmatpush1.bf16.msra.mxu0 %v6271
    %6410 = vmatprep.subr.bf16.mxu0 %v6274
    %6411 = vmatpush1.bf16.msra.mxu0 %v6273
    %6412 = vmatprep.subr.bf16.mxu0 %v6276
    %6413 = vmatpush1.bf16.msra.mxu0 %v6275
    %6414 = vmatprep.subr.bf16.mxu0 %v6278
    %6415 = vmatpush1.bf16.msra.mxu0 %v6277
    %6416 = vmatprep.subr.bf16.mxu0 %v6280
    %6417 = vmatpush1.bf16.msra.mxu0 %v6279
    %6418 = vmatprep.subr.bf16.mxu0 %v6282
    %6419 = vmatpush1.bf16.msra.mxu0 %v6281
    %6420 = vmatprep.subr.bf16.mxu0 %v6284
    %6421 = vmatpush1.bf16.msra.mxu0 %v6283
    %6422 = vmatprep.subr.bf16.mxu0 %v6286
    %6423 = vmatpush1.bf16.msra.mxu0 %v6285
    %6424 = vmatprep.subr.bf16.mxu0 %v6288
    %6425 = vmatpush1.bf16.msra.mxu0 %v6287
    %6426 = vmatprep.subr.bf16.mxu0 %v6290
    %6427 = vmatpush1.bf16.msra.mxu0 %v6289
    %6428 = vmatprep.subr.bf16.mxu0 %v6292
    %6429 = vmatpush1.bf16.msra.mxu0 %v6291
    %6430 = vmatprep.subr.bf16.mxu0 %v6294
    %6431 = vmatpush1.bf16.msra.mxu0 %v6293
    %6432 = vmatprep.mubr.bf16.mxu0 %v6034
    %6433 = vmatmul.mubr.bf16.gmra.mrb[0].mxu0 %v6033
    %v6434 = vpop.f32.mrb[0].mxu0
    %v6435 = vadd.f32 %v6394, %v6434
    %v6436 = vpop.f32.mrb[0].mxu0
    %v6437 = vadd.f32 %v6396, %v6436
    %v6438 = vpop.f32.mrb[0].mxu0
    %v6439 = vpop.f32.mrb[0].mxu0
    %6440 = vdwg.mxu0
    %vm6441 = vcmp.gt.f32.partialorder %v6435, 0.0
    %vm6442 = vcmp.gt.f32.partialorder %v6437, 0.0
    %v6443 = vmul.f32 %v6435, 0.2
    %v6444 = vmul.f32 %v6437, 0.2
    %v6445 = vsel %vm6441, %v6435, %v6443
    %v6446 = vsel %vm6442, %v6437, %v6444
    %v6447 = vpack.c.bf16 %v6445, %v6445
    %v6448 = vpack.c.bf16 %v6446, %v6446
    %v6451 = vunpack.c.l.b16 %v6447
    %v6452 = vunpack.c.l.b16 %v6448
    %v6453 = vpack.c.b16 %v6452, %v6451
    %6455 = vst [vmem:[#allocation5 + $0x20] sm:$0xff] %v6453
    %v6456 = vld [vmem:[#allocation5] sm:$0xff]
    %v6457 = vld [vmem:[#allocation5 + $0x8] sm:$0xff]
    %v6458 = vld [vmem:[#allocation5 + $0x10] sm:$0xff]
    %v6459 = vld [vmem:[#allocation5 + $0x18] sm:$0xf]
    %v6460 = vld [vmem:[#allocation14] sm:$0xff]
    %v6461 = vld [vmem:[#allocation14 + $0x8] sm:$0xff]
    %v6462 = vld [vmem:[#allocation14 + $0x10] sm:$0xff]
    %v6463 = vld [vmem:[#allocation14 + $0x18] sm:$0xff]
    %v6464 = vld [vmem:[#allocation14 + $0x20] sm:$0xff]
    %v6465 = vld [vmem:[#allocation14 + $0x28] sm:$0xff]
    %v6466 = vld [vmem:[#allocation14 + $0x30] sm:$0xff]
    %v6467 = vld [vmem:[#allocation14 + $0x38] sm:$0xff]
    %v6468 = vld [vmem:[#allocation14 + $0x40] sm:$0xff]
    %v6469 = vld [vmem:[#allocation14 + $0x48] sm:$0xff]
    %v6470 = vld [vmem:[#allocation14 + $0x50] sm:$0xff]
    %v6471 = vld [vmem:[#allocation14 + $0x58] sm:$0xff]
    %v6472 = vld [vmem:[#allocation14 + $0x60] sm:$0xff]
    %v6473 = vld [vmem:[#allocation14 + $0x68] sm:$0xff]
    %v6474 = vld [vmem:[#allocation14 + $0x70] sm:$0xff]
    %v6475 = vld [vmem:[#allocation14 + $0x78] sm:$0xff]
    %v6476 = vld [vmem:[#allocation14 + $0x80] sm:$0xff]
    %v6477 = vld [vmem:[#allocation14 + $0x88] sm:$0xff]
    %v6478 = vld [vmem:[#allocation14 + $0x90] sm:$0xff]
    %v6479 = vld [vmem:[#allocation14 + $0x98] sm:$0xff]
    %v6480 = vld [vmem:[#allocation14 + $0xa0] sm:$0xff]
    %v6481 = vld [vmem:[#allocation14 + $0xa8] sm:$0xff]
    %v6482 = vld [vmem:[#allocation14 + $0xb0] sm:$0xff]
    %v6483 = vld [vmem:[#allocation14 + $0xb8] sm:$0xff]
    %v6484 = vld [vmem:[#allocation14 + $0xc0] sm:$0xff]
    %v6485 = vld [vmem:[#allocation14 + $0xc8] sm:$0xff]
    %v6486 = vld [vmem:[#allocation14 + $0xd0] sm:$0xff]
    %v6487 = vld [vmem:[#allocation14 + $0xd8] sm:$0xff]
    %v6488 = vld [vmem:[#allocation14 + $0xe0] sm:$0xff]
    %v6489 = vld [vmem:[#allocation14 + $0xe8] sm:$0xff]
    %v6490 = vld [vmem:[#allocation14 + $0xf0] sm:$0xff]
    %v6491 = vld [vmem:[#allocation14 + $0xf8] sm:$0xff]
    %v6492 = vld [vmem:[#allocation14 + $0x100] sm:$0xff]
    %v6493 = vld [vmem:[#allocation14 + $0x108] sm:$0xff]
    %v6494 = vld [vmem:[#allocation14 + $0x110] sm:$0xff]
    %v6495 = vld [vmem:[#allocation14 + $0x118] sm:$0xff]
    %v6496 = vld [vmem:[#allocation14 + $0x120] sm:$0xff]
    %v6497 = vld [vmem:[#allocation14 + $0x128] sm:$0xff]
    %v6498 = vld [vmem:[#allocation14 + $0x130] sm:$0xff]
    %v6499 = vld [vmem:[#allocation14 + $0x138] sm:$0xff]
    %v6500 = vld [vmem:[#allocation14 + $0x140] sm:$0xff]
    %v6501 = vld [vmem:[#allocation14 + $0x148] sm:$0xff]
    %v6502 = vld [vmem:[#allocation14 + $0x150] sm:$0xff]
    %v6503 = vld [vmem:[#allocation14 + $0x158] sm:$0xff]
    %v6504 = vld [vmem:[#allocation14 + $0x160] sm:$0xff]
    %v6505 = vld [vmem:[#allocation14 + $0x168] sm:$0xff]
    %v6506 = vld [vmem:[#allocation14 + $0x170] sm:$0xff]
    %v6507 = vld [vmem:[#allocation14 + $0x178] sm:$0xff]
    %v6508 = vld [vmem:[#allocation14 + $0x180] sm:$0xff]
    %v6509 = vld [vmem:[#allocation14 + $0x188] sm:$0xff]
    %v6510 = vld [vmem:[#allocation14 + $0x190] sm:$0xff]
    %v6511 = vld [vmem:[#allocation14 + $0x198] sm:$0xff]
    %v6512 = vld [vmem:[#allocation14 + $0x1a0] sm:$0xff]
    %v6513 = vld [vmem:[#allocation14 + $0x1a8] sm:$0xff]
    %v6514 = vld [vmem:[#allocation14 + $0x1b0] sm:$0xff]
    %v6515 = vld [vmem:[#allocation14 + $0x1b8] sm:$0xff]
    %v6516 = vld [vmem:[#allocation14 + $0x1c0] sm:$0xff]
    %v6517 = vld [vmem:[#allocation14 + $0x1c8] sm:$0xff]
    %v6518 = vld [vmem:[#allocation14 + $0x1d0] sm:$0xff]
    %v6519 = vld [vmem:[#allocation14 + $0x1d8] sm:$0xff]
    %v6520 = vld [vmem:[#allocation14 + $0x1e0] sm:$0xff]
    %v6521 = vld [vmem:[#allocation14 + $0x1e8] sm:$0xff]
    %v6522 = vld [vmem:[#allocation14 + $0x1f0] sm:$0xff]
    %v6523 = vld [vmem:[#allocation14 + $0x1f8] sm:$0xff]
    %v6524 = vld [vmem:[#allocation14 + $0x200] sm:$0xff]
    %v6525 = vld [vmem:[#allocation14 + $0x208] sm:$0xff]
    %v6526 = vld [vmem:[#allocation14 + $0x210] sm:$0xff]
    %v6527 = vld [vmem:[#allocation14 + $0x218] sm:$0xff]
    %v6528 = vld [vmem:[#allocation14 + $0x220] sm:$0xff]
    %v6529 = vld [vmem:[#allocation14 + $0x228] sm:$0xff]
    %v6530 = vld [vmem:[#allocation14 + $0x230] sm:$0xff]
    %v6531 = vld [vmem:[#allocation14 + $0x238] sm:$0xff]
    %v6532 = vld [vmem:[#allocation14 + $0x240] sm:$0xff]
    %v6533 = vld [vmem:[#allocation14 + $0x248] sm:$0xff]
    %v6534 = vld [vmem:[#allocation14 + $0x250] sm:$0xff]
    %v6535 = vld [vmem:[#allocation14 + $0x258] sm:$0xff]
    %v6536 = vld [vmem:[#allocation14 + $0x260] sm:$0xff]
    %v6537 = vld [vmem:[#allocation14 + $0x268] sm:$0xff]
    %v6538 = vld [vmem:[#allocation14 + $0x270] sm:$0xff]
    %v6539 = vld [vmem:[#allocation14 + $0x278] sm:$0xff]
    %v6540 = vld [vmem:[#allocation14 + $0x280] sm:$0xff]
    %v6541 = vld [vmem:[#allocation14 + $0x288] sm:$0xff]
    %v6542 = vld [vmem:[#allocation14 + $0x290] sm:$0xff]
    %v6543 = vld [vmem:[#allocation14 + $0x298] sm:$0xff]
    %v6544 = vld [vmem:[#allocation14 + $0x2a0] sm:$0xff]
    %v6545 = vld [vmem:[#allocation14 + $0x2a8] sm:$0xff]
    %v6546 = vld [vmem:[#allocation14 + $0x2b0] sm:$0xff]
    %v6547 = vld [vmem:[#allocation14 + $0x2b8] sm:$0xff]
    %v6548 = vld [vmem:[#allocation14 + $0x2c0] sm:$0xff]
    %v6549 = vld [vmem:[#allocation14 + $0x2c8] sm:$0xff]
    %v6550 = vld [vmem:[#allocation14 + $0x2d0] sm:$0xff]
    %v6551 = vld [vmem:[#allocation14 + $0x2d8] sm:$0xff]
    %v6552 = vld [vmem:[#allocation14 + $0x2e0] sm:$0xff]
    %v6553 = vld [vmem:[#allocation14 + $0x2e8] sm:$0xff]
    %v6554 = vld [vmem:[#allocation14 + $0x2f0] sm:$0xff]
    %v6555 = vld [vmem:[#allocation14 + $0x2f8] sm:$0xff]
    %v6556 = vld [vmem:[#allocation14 + $0x300] sm:$0xff]
    %v6557 = vld [vmem:[#allocation14 + $0x308] sm:$0xff]
    %v6558 = vld [vmem:[#allocation14 + $0x310] sm:$0xff]
    %v6559 = vld [vmem:[#allocation14 + $0x318] sm:$0xff]
    %v6560 = vld [vmem:[#allocation14 + $0x320] sm:$0xff]
    %v6561 = vld [vmem:[#allocation14 + $0x328] sm:$0xff]
    %v6562 = vld [vmem:[#allocation14 + $0x330] sm:$0xff]
    %v6563 = vld [vmem:[#allocation14 + $0x338] sm:$0xff]
    %v6564 = vld [vmem:[#allocation14 + $0x340] sm:$0xff]
    %v6565 = vld [vmem:[#allocation14 + $0x348] sm:$0xff]
    %v6566 = vld [vmem:[#allocation14 + $0x350] sm:$0xff]
    %v6567 = vld [vmem:[#allocation14 + $0x358] sm:$0xff]
    %v6568 = vld [vmem:[#allocation14 + $0x360] sm:$0xff]
    %v6569 = vld [vmem:[#allocation14 + $0x368] sm:$0xff]
    %v6570 = vld [vmem:[#allocation14 + $0x370] sm:$0xff]
    %v6571 = vld [vmem:[#allocation14 + $0x378] sm:$0xff]
    %v6572 = vld [vmem:[%s12] sm:$0x3]
    %v6574 = vlaneseq
    %v6575 = vshrl.u32 %v6574, 7
    %v6576 = vsub.s32 0, %v6575
    %v6577 = vrot.slane %v6572, %v6576
    %v6578 = vlaneseq
    %v6579 = vshrl.u32 %v6578, 7
    %v6580 = vsub.s32 1, %v6579
    %v6581 = vrot.slane %v6572, %v6580
    %v6588 = vunpack.c.l.b16 %v6456
    %v6589 = vunpack.c.h.b16 %v6456
    %v6590 = vunpack.c.l.b16 %v6457
    %v6591 = vunpack.c.h.b16 %v6457
    %v6592 = vunpack.c.l.b16 %v6458
    %v6593 = vunpack.c.h.b16 %v6458
    %v6594 = vunpack.c.l.b16 %v6459
    %v6595 = vpack.c.b16 %v6588, %v6588
    %v6596 = vpack.c.b16 %v6589, %v6589
    %v6597 = vpack.c.b16 %v6590, %v6590
    %v6598 = vpack.c.b16 %v6591, %v6591
    %v6599 = vpack.c.b16 %v6592, %v6592
    %v6600 = vpack.c.b16 %v6593, %v6593
    %v6601 = vpack.c.b16 %v6594, %v6594
    %v6721 = vunpack.c.l.b16 %v6460
    %v6722 = vunpack.c.h.b16 %v6460
    %v6723 = vunpack.c.l.b16 %v6461
    %v6724 = vunpack.c.h.b16 %v6461
    %v6725 = vunpack.c.l.b16 %v6462
    %v6726 = vunpack.c.h.b16 %v6462
    %v6727 = vunpack.c.l.b16 %v6463
    %v6728 = vunpack.c.h.b16 %v6463
    %v6729 = vunpack.c.l.b16 %v6464
    %v6730 = vunpack.c.h.b16 %v6464
    %v6731 = vunpack.c.l.b16 %v6465
    %v6732 = vunpack.c.h.b16 %v6465
    %v6733 = vunpack.c.l.b16 %v6466
    %v6734 = vunpack.c.h.b16 %v6466
    %v6735 = vunpack.c.l.b16 %v6467
    %v6736 = vunpack.c.h.b16 %v6467
    %v6737 = vunpack.c.l.b16 %v6468
    %v6738 = vunpack.c.h.b16 %v6468
    %v6739 = vunpack.c.l.b16 %v6469
    %v6740 = vunpack.c.h.b16 %v6469
    %v6741 = vunpack.c.l.b16 %v6470
    %v6742 = vunpack.c.h.b16 %v6470
    %v6743 = vunpack.c.l.b16 %v6471
    %v6744 = vunpack.c.h.b16 %v6471
    %v6745 = vunpack.c.l.b16 %v6472
    %v6746 = vunpack.c.h.b16 %v6472
    %v6747 = vunpack.c.l.b16 %v6473
    %v6748 = vunpack.c.h.b16 %v6473
    %v6749 = vunpack.c.l.b16 %v6474
    %v6750 = vunpack.c.h.b16 %v6474
    %v6751 = vunpack.c.l.b16 %v6475
    %v6752 = vunpack.c.h.b16 %v6475
    %v6753 = vunpack.c.l.b16 %v6476
    %v6754 = vunpack.c.h.b16 %v6476
    %v6755 = vunpack.c.l.b16 %v6477
    %v6756 = vunpack.c.h.b16 %v6477
    %v6757 = vunpack.c.l.b16 %v6478
    %v6758 = vunpack.c.h.b16 %v6478
    %v6759 = vunpack.c.l.b16 %v6479
    %v6760 = vunpack.c.h.b16 %v6479
    %v6761 = vunpack.c.l.b16 %v6480
    %v6762 = vunpack.c.h.b16 %v6480
    %v6763 = vunpack.c.l.b16 %v6481
    %v6764 = vunpack.c.h.b16 %v6481
    %v6765 = vunpack.c.l.b16 %v6482
    %v6766 = vunpack.c.h.b16 %v6482
    %v6767 = vunpack.c.l.b16 %v6483
    %v6768 = vunpack.c.h.b16 %v6483
    %v6769 = vunpack.c.l.b16 %v6484
    %v6770 = vunpack.c.h.b16 %v6484
    %v6771 = vunpack.c.l.b16 %v6485
    %v6772 = vunpack.c.h.b16 %v6485
    %v6773 = vunpack.c.l.b16 %v6486
    %v6774 = vunpack.c.h.b16 %v6486
    %v6775 = vunpack.c.l.b16 %v6487
    %v6776 = vunpack.c.h.b16 %v6487
    %v6777 = vunpack.c.l.b16 %v6488
    %v6778 = vunpack.c.h.b16 %v6488
    %v6779 = vunpack.c.l.b16 %v6489
    %v6780 = vunpack.c.h.b16 %v6489
    %v6781 = vunpack.c.l.b16 %v6490
    %v6782 = vunpack.c.h.b16 %v6490
    %v6783 = vunpack.c.l.b16 %v6491
    %v6784 = vunpack.c.h.b16 %v6491
    %v6785 = vunpack.c.l.b16 %v6492
    %v6786 = vunpack.c.h.b16 %v6492
    %v6787 = vunpack.c.l.b16 %v6493
    %v6788 = vunpack.c.h.b16 %v6493
    %v6789 = vunpack.c.l.b16 %v6494
    %v6790 = vunpack.c.h.b16 %v6494
    %v6791 = vunpack.c.l.b16 %v6495
    %v6792 = vunpack.c.h.b16 %v6495
    %v6793 = vunpack.c.l.b16 %v6496
    %v6794 = vunpack.c.h.b16 %v6496
    %v6795 = vunpack.c.l.b16 %v6497
    %v6796 = vunpack.c.h.b16 %v6497
    %v6797 = vunpack.c.l.b16 %v6498
    %v6798 = vunpack.c.h.b16 %v6498
    %v6799 = vunpack.c.l.b16 %v6499
    %v6800 = vunpack.c.h.b16 %v6499
    %v6801 = vunpack.c.l.b16 %v6500
    %v6802 = vunpack.c.h.b16 %v6500
    %v6803 = vunpack.c.l.b16 %v6501
    %v6804 = vunpack.c.h.b16 %v6501
    %v6805 = vunpack.c.l.b16 %v6502
    %v6806 = vunpack.c.h.b16 %v6502
    %v6807 = vunpack.c.l.b16 %v6503
    %v6808 = vunpack.c.h.b16 %v6503
    %v6809 = vunpack.c.l.b16 %v6504
    %v6810 = vunpack.c.h.b16 %v6504
    %v6811 = vunpack.c.l.b16 %v6505
    %v6812 = vunpack.c.h.b16 %v6505
    %v6813 = vunpack.c.l.b16 %v6506
    %v6814 = vunpack.c.h.b16 %v6506
    %v6815 = vunpack.c.l.b16 %v6507
    %v6816 = vunpack.c.h.b16 %v6507
    %v6817 = vunpack.c.l.b16 %v6508
    %v6818 = vunpack.c.h.b16 %v6508
    %v6819 = vunpack.c.l.b16 %v6509
    %v6820 = vunpack.c.h.b16 %v6509
    %v6821 = vunpack.c.l.b16 %v6510
    %v6822 = vunpack.c.h.b16 %v6510
    %v6823 = vunpack.c.l.b16 %v6511
    %v6824 = vunpack.c.h.b16 %v6511
    %v6825 = vunpack.c.l.b16 %v6512
    %v6826 = vunpack.c.h.b16 %v6512
    %v6827 = vunpack.c.l.b16 %v6513
    %v6828 = vunpack.c.h.b16 %v6513
    %v6829 = vunpack.c.l.b16 %v6514
    %v6830 = vunpack.c.h.b16 %v6514
    %v6831 = vunpack.c.l.b16 %v6515
    %v6832 = vunpack.c.h.b16 %v6515
    %v6833 = vunpack.c.l.b16 %v6516
    %v6834 = vunpack.c.h.b16 %v6516
    %v6835 = vunpack.c.l.b16 %v6517
    %v6836 = vunpack.c.h.b16 %v6517
    %v6837 = vunpack.c.l.b16 %v6518
    %v6838 = vunpack.c.h.b16 %v6518
    %v6839 = vunpack.c.l.b16 %v6519
    %v6840 = vunpack.c.h.b16 %v6519
    %v6841 = vunpack.c.l.b16 %v6520
    %v6842 = vunpack.c.h.b16 %v6520
    %v6843 = vunpack.c.l.b16 %v6521
    %v6844 = vunpack.c.h.b16 %v6521
    %v6845 = vunpack.c.l.b16 %v6522
    %v6846 = vunpack.c.h.b16 %v6522
    %v6847 = vunpack.c.l.b16 %v6523
    %v6848 = vunpack.c.h.b16 %v6523
    %v6849 = vunpack.c.l.b16 %v6524
    %v6850 = vunpack.c.h.b16 %v6524
    %v6851 = vunpack.c.l.b16 %v6525
    %v6852 = vunpack.c.h.b16 %v6525
    %v6853 = vunpack.c.l.b16 %v6526
    %v6854 = vunpack.c.h.b16 %v6526
    %v6855 = vunpack.c.l.b16 %v6527
    %v6856 = vunpack.c.h.b16 %v6527
    %v6857 = vunpack.c.l.b16 %v6528
    %v6858 = vunpack.c.h.b16 %v6528
    %v6859 = vunpack.c.l.b16 %v6529
    %v6860 = vunpack.c.h.b16 %v6529
    %v6861 = vunpack.c.l.b16 %v6530
    %v6862 = vunpack.c.h.b16 %v6530
    %v6863 = vunpack.c.l.b16 %v6531
    %v6864 = vunpack.c.h.b16 %v6531
    %v6865 = vunpack.c.l.b16 %v6532
    %v6866 = vunpack.c.h.b16 %v6532
    %v6867 = vunpack.c.l.b16 %v6533
    %v6868 = vunpack.c.h.b16 %v6533
    %v6869 = vunpack.c.l.b16 %v6534
    %v6870 = vunpack.c.h.b16 %v6534
    %v6871 = vunpack.c.l.b16 %v6535
    %v6872 = vunpack.c.h.b16 %v6535
    %v6873 = vunpack.c.l.b16 %v6536
    %v6874 = vunpack.c.h.b16 %v6536
    %v6875 = vunpack.c.l.b16 %v6537
    %v6876 = vunpack.c.h.b16 %v6537
    %v6877 = vunpack.c.l.b16 %v6538
    %v6878 = vunpack.c.h.b16 %v6538
    %v6879 = vunpack.c.l.b16 %v6539
    %v6880 = vunpack.c.h.b16 %v6539
    %v6881 = vunpack.c.l.b16 %v6540
    %v6882 = vunpack.c.h.b16 %v6540
    %v6883 = vunpack.c.l.b16 %v6541
    %v6884 = vunpack.c.h.b16 %v6541
    %v6885 = vunpack.c.l.b16 %v6542
    %v6886 = vunpack.c.h.b16 %v6542
    %v6887 = vunpack.c.l.b16 %v6543
    %v6888 = vunpack.c.h.b16 %v6543
    %v6889 = vunpack.c.l.b16 %v6544
    %v6890 = vunpack.c.h.b16 %v6544
    %v6891 = vunpack.c.l.b16 %v6545
    %v6892 = vunpack.c.h.b16 %v6545
    %v6893 = vunpack.c.l.b16 %v6546
    %v6894 = vunpack.c.h.b16 %v6546
    %v6895 = vunpack.c.l.b16 %v6547
    %v6896 = vunpack.c.h.b16 %v6547
    %v6897 = vunpack.c.l.b16 %v6548
    %v6898 = vunpack.c.h.b16 %v6548
    %v6899 = vunpack.c.l.b16 %v6549
    %v6900 = vunpack.c.h.b16 %v6549
    %v6901 = vunpack.c.l.b16 %v6550
    %v6902 = vunpack.c.h.b16 %v6550
    %v6903 = vunpack.c.l.b16 %v6551
    %v6904 = vunpack.c.h.b16 %v6551
    %v6905 = vunpack.c.l.b16 %v6552
    %v6906 = vunpack.c.h.b16 %v6552
    %v6907 = vunpack.c.l.b16 %v6553
    %v6908 = vunpack.c.h.b16 %v6553
    %v6909 = vunpack.c.l.b16 %v6554
    %v6910 = vunpack.c.h.b16 %v6554
    %v6911 = vunpack.c.l.b16 %v6555
    %v6912 = vunpack.c.h.b16 %v6555
    %v6913 = vunpack.c.l.b16 %v6556
    %v6914 = vunpack.c.h.b16 %v6556
    %v6915 = vunpack.c.l.b16 %v6557
    %v6916 = vunpack.c.h.b16 %v6557
    %v6917 = vunpack.c.l.b16 %v6558
    %v6918 = vunpack.c.h.b16 %v6558
    %v6919 = vunpack.c.l.b16 %v6559
    %v6920 = vunpack.c.h.b16 %v6559
    %v6921 = vunpack.c.l.b16 %v6560
    %v6922 = vunpack.c.h.b16 %v6560
    %v6923 = vunpack.c.l.b16 %v6561
    %v6924 = vunpack.c.h.b16 %v6561
    %v6925 = vunpack.c.l.b16 %v6562
    %v6926 = vunpack.c.h.b16 %v6562
    %v6927 = vunpack.c.l.b16 %v6563
    %v6928 = vunpack.c.h.b16 %v6563
    %v6929 = vunpack.c.l.b16 %v6564
    %v6930 = vunpack.c.h.b16 %v6564
    %v6931 = vunpack.c.l.b16 %v6565
    %v6932 = vunpack.c.h.b16 %v6565
    %v6933 = vunpack.c.l.b16 %v6566
    %v6934 = vunpack.c.h.b16 %v6566
    %v6935 = vunpack.c.l.b16 %v6567
    %v6936 = vunpack.c.h.b16 %v6567
    %v6937 = vunpack.c.l.b16 %v6568
    %v6938 = vunpack.c.h.b16 %v6568
    %v6939 = vunpack.c.l.b16 %v6569
    %v6940 = vunpack.c.h.b16 %v6569
    %v6941 = vunpack.c.l.b16 %v6570
    %v6942 = vunpack.c.h.b16 %v6570
    %v6943 = vunpack.c.l.b16 %v6571
    %v6944 = vunpack.c.h.b16 %v6571
    %v6945 = vpack.c.b16 %v6723, %v6721
    %v6946 = vpack.c.b16 %v6724, %v6722
    %v6947 = vpack.c.b16 %v6727, %v6725
    %v6948 = vpack.c.b16 %v6728, %v6726
    %v6949 = vpack.c.b16 %v6731, %v6729
    %v6950 = vpack.c.b16 %v6732, %v6730
    %v6951 = vpack.c.b16 %v6735, %v6733
    %v6952 = vpack.c.b16 %v6736, %v6734
    %v6953 = vpack.c.b16 %v6739, %v6737
    %v6954 = vpack.c.b16 %v6740, %v6738
    %v6955 = vpack.c.b16 %v6743, %v6741
    %v6956 = vpack.c.b16 %v6744, %v6742
    %v6957 = vpack.c.b16 %v6747, %v6745
    %v6958 = vpack.c.b16 %v6748, %v6746
    %v6959 = vpack.c.b16 %v6751, %v6749
    %v6960 = vpack.c.b16 %v6752, %v6750
    %v6961 = vpack.c.b16 %v6755, %v6753
    %v6962 = vpack.c.b16 %v6756, %v6754
    %v6963 = vpack.c.b16 %v6759, %v6757
    %v6964 = vpack.c.b16 %v6760, %v6758
    %v6965 = vpack.c.b16 %v6763, %v6761
    %v6966 = vpack.c.b16 %v6764, %v6762
    %v6967 = vpack.c.b16 %v6767, %v6765
    %v6968 = vpack.c.b16 %v6768, %v6766
    %v6969 = vpack.c.b16 %v6771, %v6769
    %v6970 = vpack.c.b16 %v6772, %v6770
    %v6971 = vpack.c.b16 %v6775, %v6773
    %v6972 = vpack.c.b16 %v6776, %v6774
    %v6973 = vpack.c.b16 %v6779, %v6777
    %v6974 = vpack.c.b16 %v6780, %v6778
    %v6975 = vpack.c.b16 %v6783, %v6781
    %v6976 = vpack.c.b16 %v6784, %v6782
    %v6977 = vpack.c.b16 %v6787, %v6785
    %v6978 = vpack.c.b16 %v6788, %v6786
    %v6979 = vpack.c.b16 %v6791, %v6789
    %v6980 = vpack.c.b16 %v6792, %v6790
    %v6981 = vpack.c.b16 %v6795, %v6793
    %v6982 = vpack.c.b16 %v6796, %v6794
    %v6983 = vpack.c.b16 %v6799, %v6797
    %v6984 = vpack.c.b16 %v6800, %v6798
    %v6985 = vpack.c.b16 %v6803, %v6801
    %v6986 = vpack.c.b16 %v6804, %v6802
    %v6987 = vpack.c.b16 %v6807, %v6805
    %v6988 = vpack.c.b16 %v6808, %v6806
    %v6989 = vpack.c.b16 %v6811, %v6809
    %v6990 = vpack.c.b16 %v6812, %v6810
    %v6991 = vpack.c.b16 %v6815, %v6813
    %v6992 = vpack.c.b16 %v6816, %v6814
    %v6993 = vpack.c.b16 %v6819, %v6817
    %v6994 = vpack.c.b16 %v6820, %v6818
    %v6995 = vpack.c.b16 %v6823, %v6821
    %v6996 = vpack.c.b16 %v6824, %v6822
    %v6997 = vpack.c.b16 %v6827, %v6825
    %v6998 = vpack.c.b16 %v6828, %v6826
    %v6999 = vpack.c.b16 %v6831, %v6829
    %v7000 = vpack.c.b16 %v6832, %v6830
    %v7001 = vpack.c.b16 %v6835, %v6833
    %v7002 = vpack.c.b16 %v6836, %v6834
    %v7003 = vpack.c.b16 %v6839, %v6837
    %v7004 = vpack.c.b16 %v6840, %v6838
    %v7005 = vpack.c.b16 %v6843, %v6841
    %v7006 = vpack.c.b16 %v6844, %v6842
    %v7007 = vpack.c.b16 %v6847, %v6845
    %v7008 = vpack.c.b16 %v6848, %v6846
    %v7009 = vpack.c.b16 %v6851, %v6849
    %v7010 = vpack.c.b16 %v6852, %v6850
    %v7011 = vpack.c.b16 %v6855, %v6853
    %v7012 = vpack.c.b16 %v6856, %v6854
    %v7013 = vpack.c.b16 %v6859, %v6857
    %v7014 = vpack.c.b16 %v6860, %v6858
    %v7015 = vpack.c.b16 %v6863, %v6861
    %v7016 = vpack.c.b16 %v6864, %v6862
    %v7017 = vpack.c.b16 %v6867, %v6865
    %v7018 = vpack.c.b16 %v6868, %v6866
    %v7019 = vpack.c.b16 %v6871, %v6869
    %v7020 = vpack.c.b16 %v6872, %v6870
    %v7021 = vpack.c.b16 %v6875, %v6873
    %v7022 = vpack.c.b16 %v6876, %v6874
    %v7023 = vpack.c.b16 %v6879, %v6877
    %v7024 = vpack.c.b16 %v6880, %v6878
    %v7025 = vpack.c.b16 %v6883, %v6881
    %v7026 = vpack.c.b16 %v6884, %v6882
    %v7027 = vpack.c.b16 %v6887, %v6885
    %v7028 = vpack.c.b16 %v6888, %v6886
    %v7029 = vpack.c.b16 %v6891, %v6889
    %v7030 = vpack.c.b16 %v6892, %v6890
    %v7031 = vpack.c.b16 %v6895, %v6893
    %v7032 = vpack.c.b16 %v6896, %v6894
    %v7033 = vpack.c.b16 %v6899, %v6897
    %v7034 = vpack.c.b16 %v6900, %v6898
    %v7035 = vpack.c.b16 %v6903, %v6901
    %v7036 = vpack.c.b16 %v6904, %v6902
    %v7037 = vpack.c.b16 %v6907, %v6905
    %v7038 = vpack.c.b16 %v6908, %v6906
    %v7039 = vpack.c.b16 %v6911, %v6909
    %v7040 = vpack.c.b16 %v6912, %v6910
    %v7041 = vpack.c.b16 %v6915, %v6913
    %v7042 = vpack.c.b16 %v6916, %v6914
    %v7043 = vpack.c.b16 %v6919, %v6917
    %v7044 = vpack.c.b16 %v6920, %v6918
    %v7045 = vpack.c.b16 %v6923, %v6921
    %v7046 = vpack.c.b16 %v6924, %v6922
    %v7047 = vpack.c.b16 %v6927, %v6925
    %v7048 = vpack.c.b16 %v6928, %v6926
    %v7049 = vpack.c.b16 %v6931, %v6929
    %v7050 = vpack.c.b16 %v6932, %v6930
    %v7051 = vpack.c.b16 %v6935, %v6933
    %v7052 = vpack.c.b16 %v6936, %v6934
    %v7053 = vpack.c.b16 %v6939, %v6937
    %v7054 = vpack.c.b16 %v6940, %v6938
    %v7055 = vpack.c.b16 %v6943, %v6941
    %v7056 = vpack.c.b16 %v6944, %v6942
    %7169 = vmatprep.subr.bf16.mxu0 %v6946
    %7170 = vmatpush1.bf16.msra.mxu0 %v6945
    %7171 = vmatprep.subr.bf16.mxu0 %v6948
    %7172 = vmatpush1.bf16.msra.mxu0 %v6947
    %7173 = vmatprep.subr.bf16.mxu0 %v6950
    %7174 = vmatpush1.bf16.msra.mxu0 %v6949
    %7175 = vmatprep.subr.bf16.mxu0 %v6952
    %7176 = vmatpush1.bf16.msra.mxu0 %v6951
    %7177 = vmatprep.subr.bf16.mxu0 %v6954
    %7178 = vmatpush1.bf16.msra.mxu0 %v6953
    %7179 = vmatprep.subr.bf16.mxu0 %v6956
    %7180 = vmatpush1.bf16.msra.mxu0 %v6955
    %7181 = vmatprep.subr.bf16.mxu0 %v6958
    %7182 = vmatpush1.bf16.msra.mxu0 %v6957
    %7183 = vmatprep.subr.bf16.mxu0 %v6960
    %7184 = vmatpush1.bf16.msra.mxu0 %v6959
    %7185 = vmatprep.subr.bf16.mxu0 %v6962
    %7186 = vmatpush1.bf16.msra.mxu0 %v6961
    %7187 = vmatprep.subr.bf16.mxu0 %v6964
    %7188 = vmatpush1.bf16.msra.mxu0 %v6963
    %7189 = vmatprep.subr.bf16.mxu0 %v6966
    %7190 = vmatpush1.bf16.msra.mxu0 %v6965
    %7191 = vmatprep.subr.bf16.mxu0 %v6968
    %7192 = vmatpush1.bf16.msra.mxu0 %v6967
    %7193 = vmatprep.subr.bf16.mxu0 %v6970
    %7194 = vmatpush1.bf16.msra.mxu0 %v6969
    %7195 = vmatprep.subr.bf16.mxu0 %v6972
    %7196 = vmatpush1.bf16.msra.mxu0 %v6971
    %7197 = vmatprep.subr.bf16.mxu0 %v6974
    %7198 = vmatpush1.bf16.msra.mxu0 %v6973
    %7199 = vmatprep.subr.bf16.mxu0 %v6976
    %7200 = vmatpush1.bf16.msra.mxu0 %v6975
    %7201 = vmatprep.mubr.bf16.mxu0 %v6596
    %7202 = vmatmul.mubr.bf16.gmra.mrb[0].mxu0 %v6595
    %v7203 = vpop.f32.mrb[0].mxu0
    %v7204 = vadd.f32 %v6577, %v7203
    %v7205 = vpop.f32.mrb[0].mxu0
    %v7206 = vadd.f32 %v6581, %v7205
    %v7207 = vpop.f32.mrb[0].mxu0
    %v7208 = vpop.f32.mrb[0].mxu0
    %7209 = vdwg.mxu0
    %7210 = vmatprep.subr.bf16.mxu0 %v6978
    %7211 = vmatpush1.bf16.msra.mxu0 %v6977
    %7212 = vmatprep.subr.bf16.mxu0 %v6980
    %7213 = vmatpush1.bf16.msra.mxu0 %v6979
    %7214 = vmatprep.subr.bf16.mxu0 %v6982
    %7215 = vmatpush1.bf16.msra.mxu0 %v6981
    %7216 = vmatprep.subr.bf16.mxu0 %v6984
    %7217 = vmatpush1.bf16.msra.mxu0 %v6983
    %7218 = vmatprep.subr.bf16.mxu0 %v6986
    %7219 = vmatpush1.bf16.msra.mxu0 %v6985
    %7220 = vmatprep.subr.bf16.mxu0 %v6988
    %7221 = vmatpush1.bf16.msra.mxu0 %v6987
    %7222 = vmatprep.subr.bf16.mxu0 %v6990
    %7223 = vmatpush1.bf16.msra.mxu0 %v6989
    %7224 = vmatprep.subr.bf16.mxu0 %v6992
    %7225 = vmatpush1.bf16.msra.mxu0 %v6991
    %7226 = vmatprep.subr.bf16.mxu0 %v6994
    %7227 = vmatpush1.bf16.msra.mxu0 %v6993
    %7228 = vmatprep.subr.bf16.mxu0 %v6996
    %7229 = vmatpush1.bf16.msra.mxu0 %v6995
    %7230 = vmatprep.subr.bf16.mxu0 %v6998
    %7231 = vmatpush1.bf16.msra.mxu0 %v6997
    %7232 = vmatprep.subr.bf16.mxu0 %v7000
    %7233 = vmatpush1.bf16.msra.mxu0 %v6999
    %7234 = vmatprep.subr.bf16.mxu0 %v7002
    %7235 = vmatpush1.bf16.msra.mxu0 %v7001
    %7236 = vmatprep.subr.bf16.mxu0 %v7004
    %7237 = vmatpush1.bf16.msra.mxu0 %v7003
    %7238 = vmatprep.subr.bf16.mxu0 %v7006
    %7239 = vmatpush1.bf16.msra.mxu0 %v7005
    %7240 = vmatprep.subr.bf16.mxu0 %v7008
    %7241 = vmatpush1.bf16.msra.mxu0 %v7007
    %7242 = vmatprep.mubr.bf16.mxu0 %v6598
    %7243 = vmatmul.mubr.bf16.gmra.mrb[0].mxu0 %v6597
    %v7244 = vpop.f32.mrb[0].mxu0
    %v7245 = vadd.f32 %v7204, %v7244
    %v7246 = vpop.f32.mrb[0].mxu0
    %v7247 = vadd.f32 %v7206, %v7246
    %v7248 = vpop.f32.mrb[0].mxu0
    %v7249 = vpop.f32.mrb[0].mxu0
    %7250 = vdwg.mxu0
    %7251 = vmatprep.subr.bf16.mxu0 %v7010
    %7252 = vmatpush1.bf16.msra.mxu0 %v7009
    %7253 = vmatprep.subr.bf16.mxu0 %v7012
    %7254 = vmatpush1.bf16.msra.mxu0 %v7011
    %7255 = vmatprep.subr.bf16.mxu0 %v7014
    %7256 = vmatpush1.bf16.msra.mxu0 %v7013
    %7257 = vmatprep.subr.bf16.mxu0 %v7016
    %7258 = vmatpush1.bf16.msra.mxu0 %v7015
    %7259 = vmatprep.subr.bf16.mxu0 %v7018
    %7260 = vmatpush1.bf16.msra.mxu0 %v7017
    %7261 = vmatprep.subr.bf16.mxu0 %v7020
    %7262 = vmatpush1.bf16.msra.mxu0 %v7019
    %7263 = vmatprep.subr.bf16.mxu0 %v7022
    %7264 = vmatpush1.bf16.msra.mxu0 %v7021
    %7265 = vmatprep.subr.bf16.mxu0 %v7024
    %7266 = vmatpush1.bf16.msra.mxu0 %v7023
    %7267 = vmatprep.subr.bf16.mxu0 %v7026
    %7268 = vmatpush1.bf16.msra.mxu0 %v7025
    %7269 = vmatprep.subr.bf16.mxu0 %v7028
    %7270 = vmatpush1.bf16.msra.mxu0 %v7027
    %7271 = vmatprep.subr.bf16.mxu0 %v7030
    %7272 = vmatpush1.bf16.msra.mxu0 %v7029
    %7273 = vmatprep.subr.bf16.mxu0 %v7032
    %7274 = vmatpush1.bf16.msra.mxu0 %v7031
    %7275 = vmatprep.subr.bf16.mxu0 %v7034
    %7276 = vmatpush1.bf16.msra.mxu0 %v7033
    %7277 = vmatprep.subr.bf16.mxu0 %v7036
    %7278 = vmatpush1.bf16.msra.mxu0 %v7035
    %7279 = vmatprep.subr.bf16.mxu0 %v7038
    %7280 = vmatpush1.bf16.msra.mxu0 %v7037
    %7281 = vmatprep.subr.bf16.mxu0 %v7040
    %7282 = vmatpush1.bf16.msra.mxu0 %v7039
    %7283 = vmatprep.mubr.bf16.mxu0 %v6600
    %7284 = vmatmul.mubr.bf16.gmra.mrb[0].mxu0 %v6599
    %v7285 = vpop.f32.mrb[0].mxu0
    %v7286 = vadd.f32 %v7245, %v7285
    %v7287 = vpop.f32.mrb[0].mxu0
    %v7288 = vadd.f32 %v7247, %v7287
    %v7289 = vpop.f32.mrb[0].mxu0
    %v7290 = vpop.f32.mrb[0].mxu0
    %7291 = vdwg.mxu0
    %7292 = vmatprep.subr.bf16.mxu0 %v7042
    %7293 = vmatpush1.bf16.msra.mxu0 %v7041
    %7294 = vmatprep.subr.bf16.mxu0 %v7044
    %7295 = vmatpush1.bf16.msra.mxu0 %v7043
    %7296 = vmatprep.subr.bf16.mxu0 %v7046
    %7297 = vmatpush1.bf16.msra.mxu0 %v7045
    %7298 = vmatprep.subr.bf16.mxu0 %v7048
    %7299 = vmatpush1.bf16.msra.mxu0 %v7047
    %7300 = vmatprep.subr.bf16.mxu0 %v7050
    %7301 = vmatpush1.bf16.msra.mxu0 %v7049
    %7302 = vmatprep.subr.bf16.mxu0 %v7052
    %7303 = vmatpush1.bf16.msra.mxu0 %v7051
    %7304 = vmatprep.subr.bf16.mxu0 %v7054
    %7305 = vmatpush1.bf16.msra.mxu0 %v7053
    %7306 = vmatprep.subr.bf16.mxu0 %v7056
    %7307 = vmatpush1.bf16.msra.mxu0 %v7055
    %7308 = vmatprep.subr.bf16.mxu0 0
    %7309 = vmatpush1.bf16.msra.mxu0 0
    %7310 = vmatprep.subr.bf16.mxu0 0
    %7311 = vmatpush1.bf16.msra.mxu0 0
    %7312 = vmatprep.subr.bf16.mxu0 0
    %7313 = vmatpush1.bf16.msra.mxu0 0
    %7314 = vmatprep.subr.bf16.mxu0 0
    %7315 = vmatpush1.bf16.msra.mxu0 0
    %7316 = vmatprep.subr.bf16.mxu0 0
    %7317 = vmatpush1.bf16.msra.mxu0 0
    %7318 = vmatprep.subr.bf16.mxu0 0
    %7319 = vmatpush1.bf16.msra.mxu0 0
    %7320 = vmatprep.subr.bf16.mxu0 0
    %7321 = vmatpush1.bf16.msra.mxu0 0
    %7322 = vmatprep.subr.bf16.mxu0 0
    %7323 = vmatpush1.bf16.msra.mxu0 0
    %7324 = vmatprep.mubr.bf16.mxu0 0
    %7325 = vmatmul.mubr.bf16.gmra.mrb[0].mxu0 %v6601
    %v7326 = vpop.f32.mrb[0].mxu0
    %v7327 = vadd.f32 %v7286, %v7326
    %v7328 = vpop.f32.mrb[0].mxu0
    %v7329 = vadd.f32 %v7288, %v7328
    %v7330 = vpop.f32.mrb[0].mxu0
    %v7331 = vpop.f32.mrb[0].mxu0
    %7332 = vdwg.mxu0
    %vm7333 = vcmp.gt.f32.partialorder %v7327, 0.0
    %vm7334 = vcmp.gt.f32.partialorder %v7329, 0.0
    %v7335 = vmul.f32 %v7327, 0.2
    %v7336 = vmul.f32 %v7329, 0.2
    %v7337 = vsel %vm7333, %v7327, %v7335
    %v7338 = vsel %vm7334, %v7329, %v7336
    %v7339 = vld [vmem:[%s13] sm:$0x3]
    %v7341 = vlaneseq
    %v7342 = vshrl.u32 %v7341, 7
    %v7343 = vsub.s32 0, %v7342
    %v7344 = vrot.slane %v7339, %v7343
    %v7345 = vlaneseq
    %v7346 = vshrl.u32 %v7345, 7
    %v7347 = vsub.s32 1, %v7346
    %v7348 = vrot.slane %v7339, %v7347
    %v7351 = vmul.f32 %v7337, %v7344
    %v7352 = vmul.f32 %v7338, %v7348
    %v7353 = vadd.f32 %v7351, 0.0
    %v7354 = vadd.f32 %v7352, 0.0
    %v7355 = vld [vmem:[#allocation5 + $0x10] sm:$0xff]
    %v7356 = vld [vmem:[#allocation5 + $0x18] sm:$0xff]
    %v7357 = vld [vmem:[#allocation5 + $0x20] sm:$0xff]
    %v7358 = vld [vmem:[#allocation5 + $0x28] sm:$0xf]
    %v7363 = vunpack.c.l.b16 %v7355
    %v7364 = vunpack.c.h.b16 %v7355
    %v7365 = vunpack.c.l.b16 %v7356
    %v7366 = vunpack.c.h.b16 %v7356
    %v7367 = vunpack.c.l.b16 %v7357
    %v7368 = vunpack.c.h.b16 %v7357
    %v7369 = vunpack.c.l.b16 %v7358
    %v7370 = vpack.c.b16 %v7363, %v7363
    %v7371 = vpack.c.b16 %v7364, %v7364
    %v7372 = vpack.c.b16 %v7365, %v7365
    %v7373 = vpack.c.b16 %v7366, %v7366
    %v7374 = vpack.c.b16 %v7367, %v7367
    %v7375 = vpack.c.b16 %v7368, %v7368
    %v7376 = vpack.c.b16 %v7369, %v7369
    %7384 = vmatprep.subr.bf16.mxu0 %v6946
    %7385 = vmatpush1.bf16.msra.mxu0 %v6945
    %7386 = vmatprep.subr.bf16.mxu0 %v6948
    %7387 = vmatpush1.bf16.msra.mxu0 %v6947
    %7388 = vmatprep.subr.bf16.mxu0 %v6950
    %7389 = vmatpush1.bf16.msra.mxu0 %v6949
    %7390 = vmatprep.subr.bf16.mxu0 %v6952
    %7391 = vmatpush1.bf16.msra.mxu0 %v6951
    %7392 = vmatprep.subr.bf16.mxu0 %v6954
    %7393 = vmatpush1.bf16.msra.mxu0 %v6953
    %7394 = vmatprep.subr.bf16.mxu0 %v6956
    %7395 = vmatpush1.bf16.msra.mxu0 %v6955
    %7396 = vmatprep.subr.bf16.mxu0 %v6958
    %7397 = vmatpush1.bf16.msra.mxu0 %v6957
    %7398 = vmatprep.subr.bf16.mxu0 %v6960
    %7399 = vmatpush1.bf16.msra.mxu0 %v6959
    %7400 = vmatprep.subr.bf16.mxu0 %v6962
    %7401 = vmatpush1.bf16.msra.mxu0 %v6961
    %7402 = vmatprep.subr.bf16.mxu0 %v6964
    %7403 = vmatpush1.bf16.msra.mxu0 %v6963
    %7404 = vmatprep.subr.bf16.mxu0 %v6966
    %7405 = vmatpush1.bf16.msra.mxu0 %v6965
    %7406 = vmatprep.subr.bf16.mxu0 %v6968
    %7407 = vmatpush1.bf16.msra.mxu0 %v6967
    %7408 = vmatprep.subr.bf16.mxu0 %v6970
    %7409 = vmatpush1.bf16.msra.mxu0 %v6969
    %7410 = vmatprep.subr.bf16.mxu0 %v6972
    %7411 = vmatpush1.bf16.msra.mxu0 %v6971
    %7412 = vmatprep.subr.bf16.mxu0 %v6974
    %7413 = vmatpush1.bf16.msra.mxu0 %v6973
    %7414 = vmatprep.subr.bf16.mxu0 %v6976
    %7415 = vmatpush1.bf16.msra.mxu0 %v6975
    %7416 = vmatprep.mubr.bf16.mxu0 %v7371
    %7417 = vmatmul.mubr.bf16.gmra.mrb[0].mxu0 %v7370
    %v7418 = vpop.f32.mrb[0].mxu0
    %v7419 = vadd.f32 %v6577, %v7418
    %v7420 = vpop.f32.mrb[0].mxu0
    %v7421 = vadd.f32 %v6581, %v7420
    %v7422 = vpop.f32.mrb[0].mxu0
    %v7423 = vpop.f32.mrb[0].mxu0
    %7424 = vdwg.mxu0
    %7425 = vmatprep.subr.bf16.mxu0 %v6978
    %7426 = vmatpush1.bf16.msra.mxu0 %v6977
    %7427 = vmatprep.subr.bf16.mxu0 %v6980
    %7428 = vmatpush1.bf16.msra.mxu0 %v6979
    %7429 = vmatprep.subr.bf16.mxu0 %v6982
    %7430 = vmatpush1.bf16.msra.mxu0 %v6981
    %7431 = vmatprep.subr.bf16.mxu0 %v6984
    %7432 = vmatpush1.bf16.msra.mxu0 %v6983
    %7433 = vmatprep.subr.bf16.mxu0 %v6986
    %7434 = vmatpush1.bf16.msra.mxu0 %v6985
    %7435 = vmatprep.subr.bf16.mxu0 %v6988
    %7436 = vmatpush1.bf16.msra.mxu0 %v6987
    %7437 = vmatprep.subr.bf16.mxu0 %v6990
    %7438 = vmatpush1.bf16.msra.mxu0 %v6989
    %7439 = vmatprep.subr.bf16.mxu0 %v6992
    %7440 = vmatpush1.bf16.msra.mxu0 %v6991
    %7441 = vmatprep.subr.bf16.mxu0 %v6994
    %7442 = vmatpush1.bf16.msra.mxu0 %v6993
    %7443 = vmatprep.subr.bf16.mxu0 %v6996
    %7444 = vmatpush1.bf16.msra.mxu0 %v6995
    %7445 = vmatprep.subr.bf16.mxu0 %v6998
    %7446 = vmatpush1.bf16.msra.mxu0 %v6997
    %7447 = vmatprep.subr.bf16.mxu0 %v7000
    %7448 = vmatpush1.bf16.msra.mxu0 %v6999
    %7449 = vmatprep.subr.bf16.mxu0 %v7002
    %7450 = vmatpush1.bf16.msra.mxu0 %v7001
    %7451 = vmatprep.subr.bf16.mxu0 %v7004
    %7452 = vmatpush1.bf16.msra.mxu0 %v7003
    %7453 = vmatprep.subr.bf16.mxu0 %v7006
    %7454 = vmatpush1.bf16.msra.mxu0 %v7005
    %7455 = vmatprep.subr.bf16.mxu0 %v7008
    %7456 = vmatpush1.bf16.msra.mxu0 %v7007
    %7457 = vmatprep.mubr.bf16.mxu0 %v7373
    %7458 = vmatmul.mubr.bf16.gmra.mrb[0].mxu0 %v7372
    %v7459 = vpop.f32.mrb[0].mxu0
    %v7460 = vadd.f32 %v7419, %v7459
    %v7461 = vpop.f32.mrb[0].mxu0
    %v7462 = vadd.f32 %v7421, %v7461
    %v7463 = vpop.f32.mrb[0].mxu0
    %v7464 = vpop.f32.mrb[0].mxu0
    %7465 = vdwg.mxu0
    %7466 = vmatprep.subr.bf16.mxu0 %v7010
    %7467 = vmatpush1.bf16.msra.mxu0 %v7009
    %7468 = vmatprep.subr.bf16.mxu0 %v7012
    %7469 = vmatpush1.bf16.msra.mxu0 %v7011
    %7470 = vmatprep.subr.bf16.mxu0 %v7014
    %7471 = vmatpush1.bf16.msra.mxu0 %v7013
    %7472 = vmatprep.subr.bf16.mxu0 %v7016
    %7473 = vmatpush1.bf16.msra.mxu0 %v7015
    %7474 = vmatprep.subr.bf16.mxu0 %v7018
    %7475 = vmatpush1.bf16.msra.mxu0 %v7017
    %7476 = vmatprep.subr.bf16.mxu0 %v7020
    %7477 = vmatpush1.bf16.msra.mxu0 %v7019
    %7478 = vmatprep.subr.bf16.mxu0 %v7022
    %7479 = vmatpush1.bf16.msra.mxu0 %v7021
    %7480 = vmatprep.subr.bf16.mxu0 %v7024
    %7481 = vmatpush1.bf16.msra.mxu0 %v7023
    %7482 = vmatprep.subr.bf16.mxu0 %v7026
    %7483 = vmatpush1.bf16.msra.mxu0 %v7025
    %7484 = vmatprep.subr.bf16.mxu0 %v7028
    %7485 = vmatpush1.bf16.msra.mxu0 %v7027
    %7486 = vmatprep.subr.bf16.mxu0 %v7030
    %7487 = vmatpush1.bf16.msra.mxu0 %v7029
    %7488 = vmatprep.subr.bf16.mxu0 %v7032
    %7489 = vmatpush1.bf16.msra.mxu0 %v7031
    %7490 = vmatprep.subr.bf16.mxu0 %v7034
    %7491 = vmatpush1.bf16.msra.mxu0 %v7033
    %7492 = vmatprep.subr.bf16.mxu0 %v7036
    %7493 = vmatpush1.bf16.msra.mxu0 %v7035
    %7494 = vmatprep.subr.bf16.mxu0 %v7038
    %7495 = vmatpush1.bf16.msra.mxu0 %v7037
    %7496 = vmatprep.subr.bf16.mxu0 %v7040
    %7497 = vmatpush1.bf16.msra.mxu0 %v7039
    %7498 = vmatprep.mubr.bf16.mxu0 %v7375
    %7499 = vmatmul.mubr.bf16.gmra.mrb[0].mxu0 %v7374
    %v7500 = vpop.f32.mrb[0].mxu0
    %v7501 = vadd.f32 %v7460, %v7500
    %v7502 = vpop.f32.mrb[0].mxu0
    %v7503 = vadd.f32 %v7462, %v7502
    %v7504 = vpop.f32.mrb[0].mxu0
    %v7505 = vpop.f32.mrb[0].mxu0
    %7506 = vdwg.mxu0
    %7507 = vmatprep.subr.bf16.mxu0 %v7042
    %7508 = vmatpush1.bf16.msra.mxu0 %v7041
    %7509 = vmatprep.subr.bf16.mxu0 %v7044
    %7510 = vmatpush1.bf16.msra.mxu0 %v7043
    %7511 = vmatprep.subr.bf16.mxu0 %v7046
    %7512 = vmatpush1.bf16.msra.mxu0 %v7045
    %7513 = vmatprep.subr.bf16.mxu0 %v7048
    %7514 = vmatpush1.bf16.msra.mxu0 %v7047
    %7515 = vmatprep.subr.bf16.mxu0 %v7050
    %7516 = vmatpush1.bf16.msra.mxu0 %v7049
    %7517 = vmatprep.subr.bf16.mxu0 %v7052
    %7518 = vmatpush1.bf16.msra.mxu0 %v7051
    %7519 = vmatprep.subr.bf16.mxu0 %v7054
    %7520 = vmatpush1.bf16.msra.mxu0 %v7053
    %7521 = vmatprep.subr.bf16.mxu0 %v7056
    %7522 = vmatpush1.bf16.msra.mxu0 %v7055
    %7523 = vmatprep.subr.bf16.mxu0 0
    %7524 = vmatpush1.bf16.msra.mxu0 0
    %7525 = vmatprep.subr.bf16.mxu0 0
    %7526 = vmatpush1.bf16.msra.mxu0 0
    %7527 = vmatprep.subr.bf16.mxu0 0
    %7528 = vmatpush1.bf16.msra.mxu0 0
    %7529 = vmatprep.subr.bf16.mxu0 0
    %7530 = vmatpush1.bf16.msra.mxu0 0
    %7531 = vmatprep.subr.bf16.mxu0 0
    %7532 = vmatpush1.bf16.msra.mxu0 0
    %7533 = vmatprep.subr.bf16.mxu0 0
    %7534 = vmatpush1.bf16.msra.mxu0 0
    %7535 = vmatprep.subr.bf16.mxu0 0
    %7536 = vmatpush1.bf16.msra.mxu0 0
    %7537 = vmatprep.subr.bf16.mxu0 0
    %7538 = vmatpush1.bf16.msra.mxu0 0
    %7539 = vmatprep.mubr.bf16.mxu0 0
    %7540 = vmatmul.mubr.bf16.gmra.mrb[0].mxu0 %v7376
    %v7541 = vpop.f32.mrb[0].mxu0
    %v7542 = vadd.f32 %v7501, %v7541
    %v7543 = vpop.f32.mrb[0].mxu0
    %v7544 = vadd.f32 %v7503, %v7543
    %v7545 = vpop.f32.mrb[0].mxu0
    %v7546 = vpop.f32.mrb[0].mxu0
    %7547 = vdwg.mxu0
    %vm7548 = vcmp.gt.f32.partialorder %v7542, 0.0
    %vm7549 = vcmp.gt.f32.partialorder %v7544, 0.0
    %v7550 = vmul.f32 %v7542, 0.2
    %v7551 = vmul.f32 %v7544, 0.2
    %v7552 = vsel %vm7548, %v7542, %v7550
    %v7553 = vsel %vm7549, %v7544, %v7551
    %v7554 = vld [vmem:[%s13 + $0x2] sm:$0x3]
    %v7556 = vlaneseq
    %v7557 = vshrl.u32 %v7556, 7
    %v7558 = vsub.s32 0, %v7557
    %v7559 = vrot.slane %v7554, %v7558
    %v7560 = vlaneseq
    %v7561 = vshrl.u32 %v7560, 7
    %v7562 = vsub.s32 1, %v7561
    %v7563 = vrot.slane %v7554, %v7562
    %v7566 = vmul.f32 %v7552, %v7559
    %v7567 = vmul.f32 %v7553, %v7563
    %v7568 = vadd.f32 %v7353, %v7566
    %v7569 = vadd.f32 %v7354, %v7567
    %v7570 = vadd.f32 %v7568, %v7569
    %7571 = vadd.xlane.f32.xlu0 %v7570
    %v7572 = vpop.xlane.xlu0 %7571
    %v7573 = vld [vmem:[#allocation6] sm:$0x1]
    %v7575 = vlaneseq
    %v7576 = vshrl.u32 %v7575, 7
    %v7577 = vsub.s32 0, %v7576
    %v7578 = vrot.slane %v7573, %v7577
    %v7580 = vadd.f32 %v7572, %v7578
    %v7581 = vsub.f32 0.0, %v7580
    %v7582 = vmul.f32 %v7581, 1.442695
    %v7583 = vpow.pop %v7582
    %v7584 = vadd.f32 %v7583, 1.0
    %v7585 = vrcp.pop %v7584
    %v7586 = vmul.f32 1.0, %v7585
    %vm7587 = vcmask 7168
    %7588 = vst.msk [vmem:[%s15] sm:$0xff] %vm7587, %v7586
    // Predicated region
    $region82: #{gan_forward.1} parent=1 // pred_check
      _
    $region83: #{gan_forward.1} parent=1 // pred_check_branch
      %7590 = sbr.rel (0) target = $region85
    $region84: #{gan_forward.1} parent=1 // pred_region
      _
    $region85: #{gan_forward.1} parent=1 // pred_fallthru
      _
    // Predicated region
    $region86: #{gan_forward.1} parent=1 // pred_check
      _
    $region87: #{gan_forward.1} parent=1 // pred_check_branch
      %7592 = sbr.rel (0) target = $region89
    $region88: #{gan_forward.1} parent=1 // pred_region
      _
    $region89: #{gan_forward.1} parent=1 // pred_fallthru
      _
    %7593 = vsyncpa [#allocation8], 1
    %7594 = vsyncpa [#allocation10], 1
    %7595 = vsyncpa [#allocation13], 1

</llo_original>
